<compile_context>
chip_gen: v6e
topology: v6e:2x2x1
jax: 0.10.0
libtpu: 0.0.40
codegen_flags: <defaults>
</compile_context>

<pallas_src>
import functools
import numpy as np
import jax
import jax.numpy as jnp
from jax import lax
from jax.experimental import pallas as pl
from jax.experimental.pallas import tpu as pltpu

# ---------------- small synthetic configuration ----------------
B = 2             # batch
K = 4             # skeleton GMM components
N_PTS = 128       # cfg.skeleton_recon.recon_sample_num
H = W = 16        # cfg.rlbench.camera_resolution
P_PIX = H * W
VOX = 8           # voxel grid resolution per axis
V3 = VOX ** 3
C_IMG = 8         # image feature channels produced by the depth predictor
C_VOX_IN = 7      # VoxelGrid channels: 3 mean coords + 1 occupancy + 3 index grid
C_VOX_HID = 16
C_VOX_OUT = 32    # cfg.gaussian_renderer.final_dim
C_MLP_HID = 64
F_IN = 3 + C_VOX_OUT + C_IMG      # regressor input features per point (43)
N_GS = 14                         # xyz(3) rot(4) scale(3) opacity(1) rgb(3)
N_GT_VIEWS = 2
SCENE_LO = -1.0
SCENE_HI = 1.0
INV_RES = VOX / (SCENE_HI - SCENE_LO)
BG_COLOR = (0.0, 0.0, 0.0)

SMEM_SPEC = pl.BlockSpec(memory_space=pltpu.MemorySpace.SMEM)


def _sigmoid(x):
    return 1.0 / (1.0 + jnp.exp(-x))


# =====================================================================
# Pallas kernels
# =====================================================================
def _sample_project_voxelize_kernel(meanT_ref, cholT_ref, zT_ref, w2c_ref, intr_ref,
                                    pcd_ref, uv_ref, vox_ref):
    """Per-batch: GMM sample + pinhole projection + one-hot voxel accumulation."""
    b = pl.program_id(0)
    m = meanT_ref[...]                 # (3, N) lane-dense
    L = cholT_ref[...]                 # (9, N) row-major lower-triangular factor
    z = zT_ref[...]                    # (3, N)
    z0, z1, z2 = z[0:1, :], z[1:2, :], z[2:3, :]
    x = m[0:1, :] + L[0:1, :] * z0 + L[1:2, :] * z1 + L[2:3, :] * z2
    y = m[1:2, :] + L[3:4, :] * z0 + L[4:5, :] * z1 + L[5:6, :] * z2
    zc = m[2:3, :] + L[6:7, :] * z0 + L[7:8, :] * z1 + L[8:9, :] * z2
    p = jnp.concatenate([x, y, zc], axis=0)          # (3, N)
    pcd_ref[...] = p

    # world -> camera -> pixel (pinhole).  w2c / intr are flattened row-major in SMEM.
    cx = w2c_ref[b, 0] * x + w2c_ref[b, 1] * y + w2c_ref[b, 2] * zc + w2c_ref[b, 3]
    cy = w2c_ref[b, 4] * x + w2c_ref[b, 5] * y + w2c_ref[b, 6] * zc + w2c_ref[b, 7]
    cz = w2c_ref[b, 8] * x + w2c_ref[b, 9] * y + w2c_ref[b, 10] * zc + w2c_ref[b, 11]
    # TODO(synk): points behind the camera are depth-clamped instead of masked
    # (matches the previous simplified behaviour, not the exact reference).
    inv_z = pl.reciprocal(jnp.maximum(cz, 1e-6), approx=True)
    u = intr_ref[b, 0] * cx * inv_z + intr_ref[b, 2]
    v = intr_ref[b, 4] * cy * inv_z + intr_ref[b, 5]
    uv_ref[...] = jnp.concatenate([u, v], axis=0)    # (2, N)

    # point -> voxel scatter as a single MXU contraction (counts + coord sums).
    vx = jnp.clip(jnp.floor((x - SCENE_LO) * INV_RES), 0, VOX - 1)
    vy = jnp.clip(jnp.floor((y - SCENE_LO) * INV_RES), 0, VOX - 1)
    vz = jnp.clip(jnp.floor((zc - SCENE_LO) * INV_RES), 0, VOX - 1)
    idx = (vx * (VOX * VOX) + vy * VOX + vz).astype(jnp.int32)       # (1, N)
    iota_v = lax.broadcasted_iota(jnp.int32, (V3, N_PTS), 0)         # (V3, N)
    onehot = (iota_v == idx).astype(jnp.float32)                     # (V3, N)
    feats = jnp.concatenate([jnp.ones_like(x), p], axis=0)           # (4, N)
    vox_ref[...] = lax.dot_general(                                  # (4, V3)
        feats, onehot, (((1,), (1,)), ((), ())),
        preferred_element_type=jnp.float32)


def sample_project_voxelize(meanT, cholT, zT, w2c_flat, intr_flat):
    return pl.pallas_call(
        _sample_project_voxelize_kernel,
        grid=(B,),
        out_shape=(jax.ShapeDtypeStruct((B, 3, N_PTS), jnp.float32),
                   jax.ShapeDtypeStruct((B, 2, N_PTS), jnp.float32),
                   jax.ShapeDtypeStruct((B, 4, V3), jnp.float32)),
        in_specs=[pl.BlockSpec((None, 3, N_PTS), lambda b: (b, 0, 0)),
                  pl.BlockSpec((None, 9, N_PTS), lambda b: (b, 0, 0)),
                  pl.BlockSpec((None, 3, N_PTS), lambda b: (b, 0, 0)),
                  SMEM_SPEC, SMEM_SPEC],
        out_specs=(pl.BlockSpec((None, 3, N_PTS), lambda b: (b, 0, 0)),
                   pl.BlockSpec((None, 2, N_PTS), lambda b: (b, 0, 0)),
                   pl.BlockSpec((None, 4, V3), lambda b: (b, 0, 0))),
        compiler_params=pltpu.CompilerParams(dimension_semantics=("parallel",)),
    )(meanT.astype(jnp.float32), cholT.astype(jnp.float32), zT.astype(jnp.float32),
      w2c_flat.astype(jnp.float32), intr_flat.astype(jnp.float32))


def _matmul_bias_kernel(x_ref, w_ref, b_ref, o_ref, *, relu):
    y = jnp.dot(x_ref[...], w_ref[...], preferred_element_type=jnp.float32)
    y = y + b_ref[...]
    if relu:
        y = jnp.maximum(y, 0.0)
    o_ref[...] = y


def linear(x, w, b, relu=False):
    """Row-tiled matmul; output channels zero-padded to 128 lanes for unmasked stores."""
    m, kdim = x.shape
    n = w.shape[1]
    n_pad = ((n + 127) // 128) * 128
    if n_pad != n:
        w = jnp.pad(w, ((0, 0), (0, n_pad - n)))
        b = jnp.pad(b, (0, n_pad - n))
    tm = 512 if m % 512 == 0 else m
    kern = functools.partial(_matmul_bias_kernel, relu=relu)
    out = pl.pallas_call(
        kern,
        grid=(m // tm,),
        out_shape=jax.ShapeDtypeStruct((m, n_pad), jnp.float32),
        in_specs=[pl.BlockSpec((tm, kdim), lambda i: (i, 0)),
                  pl.BlockSpec((kdim, n_pad), lambda i: (0, 0)),
                  pl.BlockSpec((1, n_pad), lambda i: (0, 0))],
        out_specs=pl.BlockSpec((tm, n_pad), lambda i: (i, 0)),
        compiler_params=pltpu.CompilerParams(dimension_semantics=("parallel",)),
    )(x.astype(jnp.float32), w.astype(jnp.float32),
      b.reshape(1, n_pad).astype(jnp.float32))
    return out[:, :n] if n_pad != n else out


def _regressor_kernel(featT_ref, pcdT_ref, w1T_ref, b1_ref, w2T_ref, b2_ref, gp_ref):
    """Fused 2-layer MLP + gaussian-parameter heads, everything resident in VMEM."""
    h = jnp.dot(w1T_ref[...], featT_ref[...], preferred_element_type=jnp.float32)
    h = jnp.maximum(h + b1_ref[...], 0.0)                            # (HID, N)
    o = jnp.dot(w2T_ref[...], h, preferred_element_type=jnp.float32) + b2_ref[...]  # (14, N)
    p = pcdT_ref[...]                                                # (3, N)
    xyz = p + 0.05 * jnp.tanh(o[0:3, :])
    rot = o[3:7, :]
    rot = rot * lax.rsqrt(jnp.maximum(jnp.sum(rot * rot, axis=0, keepdims=True), 1e-12))
    scale = 0.01 + 0.05 * _sigmoid(o[7:10, :])
    opacity = _sigmoid(o[10:11, :])
    rgb = _sigmoid(o[11:14, :])
    gp_ref[...] = jnp.concatenate([xyz, rot, scale, opacity, rgb], axis=0)  # (14, N)


def gaussian_regressor(featT, pcdT, params):
    """GaussianRegressor stand-in: per-point features -> gaussian params (B, 14, N)."""
    # TODO(synk): exact GaussianRegressor architecture not available.
    return pl.pallas_call(
        _regressor_kernel,
        grid=(B,),
        out_shape=jax.ShapeDtypeStruct((B, N_GS, N_PTS), jnp.float32),
        in_specs=[pl.BlockSpec((None, F_IN, N_PTS), lambda b: (b, 0, 0)),
                  pl.BlockSpec((None, 3, N_PTS), lambda b: (b, 0, 0)),
                  pl.BlockSpec((C_MLP_HID, F_IN), lambda b: (0, 0)),
                  pl.BlockSpec((C_MLP_HID, 1), lambda b: (0, 0)),
                  pl.BlockSpec((N_GS, C_MLP_HID), lambda b: (0, 0)),
                  pl.BlockSpec((N_GS, 1), lambda b: (0, 0))],
        out_specs=pl.BlockSpec((None, N_GS, N_PTS), lambda b: (b, 0, 0)),
        compiler_params=pltpu.CompilerParams(dimension_semantics=("parallel",)),
    )(featT.astype(jnp.float32), pcdT.astype(jnp.float32),
      params["reg_w1T"], params["reg_b1"], params["reg_w2T"], params["reg_b2"])


def _splat_kernel(px_ref, py_ref, gp_ref, w2c_ref, intr_ref, img_ref, *, bg):
    """Simplified isotropic Gaussian splat for one (batch, view) grid cell."""
    cam = pl.program_id(0) * pl.num_programs(1) + pl.program_id(1)
    g = gp_ref[...]                                                  # (14, N)
    xg, yg, zg = g[0:1, :], g[1:2, :], g[2:3, :]
    cx = w2c_ref[cam, 0] * xg + w2c_ref[cam, 1] * yg + w2c_ref[cam, 2] * zg + w2c_ref[cam, 3]
    cy = w2c_ref[cam, 4] * xg + w2c_ref[cam, 5] * yg + w2c_ref[cam, 6] * zg + w2c_ref[cam, 7]
    cz = w2c_ref[cam, 8] * xg + w2c_ref[cam, 9] * yg + w2c_ref[cam, 10] * zg + w2c_ref[cam, 11]
    fx = intr_ref[cam, 0]
    cxp = intr_ref[cam, 2]
    fy = intr_ref[cam, 4]
    cyp = intr_ref[cam, 5]
    valid = (cz > 1e-6).astype(jnp.float32)
    inv_z = pl.reciprocal(jnp.maximum(cz, 1e-6), approx=True)
    u = fx * cx * inv_z + cxp                                        # (1, N)
    v = fy * cy * inv_z + cyp                                        # (1, N)
    s_mean = (g[7:8, :] + g[8:9, :] + g[9:10, :]) * (1.0 / 3.0)
    sig = 1.0 + fx * s_mean
    neg_half_inv = -0.5 * pl.reciprocal(sig * sig, approx=True)      # (1, N) hoisted
    opa = g[10:11, :] * valid                                        # (1, N)
    d2 = (px_ref[...] - u) ** 2 + (py_ref[...] - v) ** 2             # (P, N)
    wgt = opa * jnp.exp(neg_half_inv * d2)                           # (P, N)
    rgba = jnp.concatenate([g[11:14, :], jnp.ones_like(u)], axis=0)  # (4, N)
    out4 = lax.dot_general(rgba, wgt, (((1,), (1,)), ((), ())),
                           preferred_element_type=jnp.float32)       # (4, P)
    color = out4[0:3, :]
    alpha = out4[3:4, :]
    resid = jnp.maximum(0.0, 1.0 - jnp.minimum(alpha, 1.0))
    img_ref[...] = color + jnp.concatenate(
        [bg[0] * resid, bg[1] * resid, bg[2] * resid], axis=0)       # (3, P)


def splat_render_all(gp, w2c_flat, intr_flat):
    """All (batch, gt-view) renders in one pallas_call."""
    # TODO(synk): full 3DGS EWA splatting / SH / depth-sorted alpha compositing
    # (CUDA rasterizer) has no direct Pallas equivalent; additive compositing used.
    pid = jnp.arange(P_PIX, dtype=jnp.float32)
    py = jnp.floor(pid / W).reshape(P_PIX, 1)
    px = (pid - jnp.floor(pid / W) * W).reshape(P_PIX, 1)
    kern = functools.partial(_splat_kernel, bg=BG_COLOR)
    return pl.pallas_call(
        kern,
        grid=(B, N_GT_VIEWS),
        out_shape=jax.ShapeDtypeStruct((B, N_GT_VIEWS, 3, P_PIX), jnp.float32),
        in_specs=[pl.BlockSpec((P_PIX, 1), lambda b, v: (0, 0)),
                  pl.BlockSpec((P_PIX, 1), lambda b, v: (0, 0)),
                  pl.BlockSpec((None, N_GS, N_PTS), lambda b, v: (b, 0, 0)),
                  SMEM_SPEC, SMEM_SPEC],
        out_specs=pl.BlockSpec((None, None, 3, P_PIX), lambda b, v: (b, v, 0, 0)),
        compiler_params=pltpu.CompilerParams(
            dimension_semantics=("parallel", "parallel")),
    )(px, py, gp.astype(jnp.float32),
      w2c_flat.astype(jnp.float32), intr_flat.astype(jnp.float32))


# =====================================================================
# JAX glue (reshapes, gathers, parameter setup)
# =====================================================================
def init_params(key):
    ks = jax.random.split(key, 4)

    def w_init(k, shape, scale):
        return (scale * jax.random.normal(k, shape)).astype(jnp.float32)

    return {
        "vox_w1": w_init(ks[0], (27 * C_VOX_IN, C_VOX_HID), 0.05),
        "vox_b1": jnp.zeros((C_VOX_HID,), jnp.float32),
        "vox_w2": w_init(ks[1], (27 * C_VOX_HID, C_VOX_OUT), 0.05),
        "vox_b2": jnp.zeros((C_VOX_OUT,), jnp.float32),
        "reg_w1T": w_init(ks[2], (C_MLP_HID, F_IN), 0.1),
        "reg_b1": jnp.zeros((C_MLP_HID, 1), jnp.float32),
        "reg_w2T": w_init(ks[3], (N_GS, C_MLP_HID), 0.1),
        "reg_b2": jnp.zeros((N_GS, 1), jnp.float32),
    }


def im2col3d(x):
    """x: (B, D, H, W, C) -> (B, D, H, W, 27*C) for a 3x3x3 / pad-1 conv."""
    b, d, h, w, c = x.shape
    xp = jnp.pad(x, ((0, 0), (1, 1), (1, 1), (1, 1), (0, 0)))
    patches = []
    for dz in range(3):
        for dy in range(3):
            for dx in range(3):
                patches.append(xp[:, dz:dz + d, dy:dy + h, dx:dx + w, :])
    return jnp.concatenate(patches, axis=-1)


def voxel_encoder(voxel_grids, params):
    """MultiLayer3DEncoderShallow stand-in: two 3x3x3 convs (im2col + Pallas matmul)."""
    # TODO(synk): exact MultiLayer3DEncoderShallow architecture not available.
    p1 = im2col3d(voxel_grids).reshape(B * V3, 27 * C_VOX_IN)
    h1 = linear(p1, params["vox_w1"], params["vox_b1"], relu=True)
    h1g = h1.reshape(B, VOX, VOX, VOX, C_VOX_HID)
    p2 = im2col3d(h1g).reshape(B * V3, 27 * C_VOX_HID)
    h2 = linear(p2, params["vox_w2"], params["vox_b2"], relu=True)
    voxel_feature = h2.reshape(B, VOX, VOX, VOX, C_VOX_OUT)
    return voxel_feature, [h1g]


# =====================================================================
# GaussianRecon.forward (jitted core over batched camera arrays)
# =====================================================================
@jax.jit
def _forward_core(params, key, c2w_in, intr_in, c2w_gt, intr_gt):
    kd, ks = jax.random.split(key)
    # ---- depth predictor outputs ----
    # TODO(synk): SkeletonRecon (depth predictor) is an external module; its
    # outputs (3D GMM params, object indices, image feature map) are
    # synthesized deterministically here.
    means_3d = 0.5 * jax.random.uniform(jax.random.fold_in(kd, 0), (B, K, 3),
                                        minval=-1.0, maxval=1.0)
    A = 0.1 * jax.random.normal(jax.random.fold_in(kd, 1), (B, K, 3, 3))
    cov_3d = jnp.einsum('bkij,bklj->bkil', A, A) + 1e-3 * jnp.eye(3)
    weight_3d = jax.nn.softmax(jax.random.normal(jax.random.fold_in(kd, 2), (B, K)), -1)
    object_index = jnp.tile(jnp.arange(K, dtype=jnp.int32)[None], (B, 1))
    feature_map = jax.random.normal(jax.random.fold_in(kd, 3), (B, H, W, C_IMG))

    chol_3d = jnp.linalg.cholesky(cov_3d)                           # (B, K, 3, 3)

    # ---- GMM component sampling (Gumbel-max, vectorized over batch) ----
    kc, kz = jax.random.split(ks)
    gumbel = jax.random.gumbel(kc, (B, N_PTS, K))
    comp = jnp.argmax(jnp.log(weight_3d)[:, None, :] + gumbel, axis=-1)   # (B, N)
    mean_sel = jnp.take_along_axis(means_3d, comp[..., None], axis=1)     # (B, N, 3)
    chol_sel = jnp.take_along_axis(chol_3d.reshape(B, K, 9),
                                   comp[..., None], axis=1)               # (B, N, 9)
    z = jax.random.normal(kz, (B, N_PTS, 3))

    meanT = jnp.transpose(mean_sel, (0, 2, 1))                      # (B, 3, N)
    cholT = jnp.transpose(chol_sel, (0, 2, 1))                      # (B, 9, N)
    zT = jnp.transpose(z, (0, 2, 1))                                # (B, 3, N)
    w2c_in = jnp.linalg.inv(c2w_in)                                 # (B, 4, 4)

    # ---- fused GMM sampling + projection + voxel accumulation (Pallas) ----
    pcdT, uvT, voxacc = sample_project_voxelize(
        meanT, cholT, zT, w2c_in.reshape(B, 16), intr_in.reshape(B, 9))

    # ---- assemble voxel grid channels (mean coords, occupancy, index grid) ----
    counts = voxacc[:, 0:1, :]                                      # (B, 1, V3)
    sums = voxacc[:, 1:4, :]                                        # (B, 3, V3)
    occupancy = jnp.minimum(counts, 1.0)
    mean_coords = sums / jnp.maximum(counts, 1.0)
    ii = jnp.stack(jnp.meshgrid(jnp.arange(VOX), jnp.arange(VOX), jnp.arange(VOX),
                                indexing="ij"), axis=-1).reshape(V3, 3).astype(jnp.float32)
    idx_grid = ((ii + 0.5) / VOX * (SCENE_HI - SCENE_LO) + SCENE_LO).T    # (3, V3)
    idx_grid_b = jnp.broadcast_to(idx_grid[None], (B, 3, V3))
    gridT = jnp.concatenate([mean_coords, occupancy, idx_grid_b], axis=1)  # (B, 7, V3)
    voxel_grids = jnp.transpose(gridT, (0, 2, 1)).reshape(B, VOX, VOX, VOX, C_VOX_IN)

    # ---- voxel encoder (Pallas matmuls) ----
    voxel_feature, _multi_scale = voxel_encoder(voxel_grids, params)

    # ---- regressor feature gather (XLA) + fused MLP heads (Pallas) ----
    pcd_bn3 = jnp.transpose(pcdT, (0, 2, 1))                        # (B, N, 3)
    vidx = jnp.clip(jnp.floor((pcd_bn3 - SCENE_LO) * INV_RES), 0, VOX - 1).astype(jnp.int32)
    flat_v = vidx[..., 0] * (VOX * VOX) + vidx[..., 1] * VOX + vidx[..., 2]   # (B, N)
    vox_flat = voxel_feature.reshape(B, V3, C_VOX_OUT)
    vox_feat = jnp.take_along_axis(vox_flat, flat_v[..., None], axis=1)       # (B, N, Cv)
    ui = jnp.clip(jnp.round(uvT[:, 0, :]), 0, W - 1).astype(jnp.int32)
    vi = jnp.clip(jnp.round(uvT[:, 1, :]), 0, H - 1).astype(jnp.int32)
    pix_idx = vi * W + ui                                                     # (B, N)
    img_flat = feature_map.reshape(B, P_PIX, C_IMG)
    img_feat = jnp.take_along_axis(img_flat, pix_idx[..., None], axis=1)      # (B, N, Ci)
    featT = jnp.concatenate([pcdT,
                             jnp.transpose(vox_feat, (0, 2, 1)),
                             jnp.transpose(img_feat, (0, 2, 1))], axis=1)     # (B, F_IN, N)
    gp = gaussian_regressor(featT, pcdT, params)                              # (B, 14, N)

    # ---- per-view rendering (single Pallas launch over B x views) ----
    w2c_gt = jnp.linalg.inv(c2w_gt)                                           # (B, NV, 4, 4)
    imgs = splat_render_all(gp, w2c_gt.reshape(B * N_GT_VIEWS, 16),
                            intr_gt.reshape(B * N_GT_VIEWS, 9))               # (B, NV, 3, H*W)
    imgs = jnp.transpose(imgs.reshape(B, N_GT_VIEWS, 3, H, W), (0, 1, 3, 4, 2))
    return imgs, pcdT, means_3d, cov_3d, weight_3d, object_index


def gaussian_recon_forward(data, params, key):
    c2w_in = jnp.stack([data[i]['input_view']['pose'][0] for i in range(B)])
    intr_in = jnp.stack([data[i]['input_view']['pose'][1] for i in range(B)])
    c2w_gt = jnp.stack([jnp.stack([data[i]['gt_view'][j]['pose'][0]
                                   for j in range(N_GT_VIEWS)]) for i in range(B)])
    intr_gt = jnp.stack([jnp.stack([data[i]['gt_view'][j]['pose'][1]
                                    for j in range(N_GT_VIEWS)]) for i in range(B)])
    imgs, pcdT, means_3d, cov_3d, weight_3d, object_index = _forward_core(
        params, key, c2w_in, intr_in, c2w_gt, intr_gt)
    pcds = [jnp.transpose(pcdT[i]) for i in range(B)]               # (N, 3) each
    skeleton_gmm = [{"means": means_3d[i], "covariances": cov_3d[i],
                     "weights": weight_3d[i], "object_index": object_index[i]}
                    for i in range(B)]
    return imgs, pcds, skeleton_gmm


# =====================================================================
# deterministic example data
# =====================================================================
def make_camera(angle):
    c, s = float(np.cos(angle)), float(np.sin(angle))
    R = np.array([[c, 0.0, s], [0.0, 1.0, 0.0], [-s, 0.0, c]], np.float32)
    center = np.array([-2.0 * s, 0.0, -2.0 * c], np.float32)   # looks at origin
    c2w = np.eye(4, dtype=np.float32)
    c2w[:3, :3] = R
    c2w[:3, 3] = center
    intr = np.array([[float(W), 0.0, W / 2.0],
                     [0.0, float(H), H / 2.0],
                     [0.0, 0.0, 1.0]], np.float32)
    return jnp.asarray(c2w), jnp.asarray(intr)


def build_data():
    data = []
    for i in range(B):
        in_c2w, in_intr = make_camera(0.1 * i)
        gt_views = []
        for j in range(N_GT_VIEWS):
            c2w_j, intr_j = make_camera(0.3 * (j + 1) + 0.1 * i)
            gt_views.append({'pose': (c2w_j, intr_j)})
        data.append({'input_view': {'pose': (in_c2w, in_intr)},
                     'gt_view': gt_views})
    return data


if __name__ == "__main__":
    key = jax.random.PRNGKey(0)
    kp, kf = jax.random.split(key)
    params = init_params(kp)
    data = build_data()
    imgs, pcds, skeleton_gmm = gaussian_recon_forward(data, params, kf)
    jax.block_until_ready(imgs)
    for p in pcds:
        jax.block_until_ready(p)
    assert imgs.shape == (B, N_GT_VIEWS, H, W, 3)
    assert all(p.shape == (N_PTS, 3) for p in pcds)
    assert bool(jnp.all(jnp.isfinite(imgs)))
    print("KERNEL_OK")
</pallas_src>

<mosaic_0001>
module attributes {stable_mosaic.version = 11 : i64} {
  func.func @_sample_project_voxelize_kernel(%arg0: i32, %arg1: memref<1x3x128xf32, #tpu.memory_space<vmem>>, %arg2: memref<1x9x128xf32, #tpu.memory_space<vmem>>, %arg3: memref<1x3x128xf32, #tpu.memory_space<vmem>>, %arg4: memref<2x16xf32, #tpu.memory_space<smem>>, %arg5: memref<2x9xf32, #tpu.memory_space<smem>>, %arg6: memref<1x3x128xf32, #tpu.memory_space<vmem>>, %arg7: memref<1x2x128xf32, #tpu.memory_space<vmem>>, %arg8: memref<1x4x512xf32, #tpu.memory_space<vmem>>) attributes {dimension_semantics = [#tpu.dimension_semantics<parallel>], iteration_bounds = array<i64: 2>, scalar_prefetch = 0 : i64, scratch_operands = 0 : i64, tpu.core_type = #tpu.core_type<tc>, window_params = [{transform_indices = @transform_0, window_bounds = array<i64: 1, 3, 128>}, {transform_indices = @transform_1, window_bounds = array<i64: 1, 9, 128>}, {transform_indices = @transform_2, window_bounds = array<i64: 1, 3, 128>}, {transform_indices = @transform_3, window_bounds = array<i64: 2, 16>}, {transform_indices = @transform_4, window_bounds = array<i64: 2, 9>}, {transform_indices = @transform_5, window_bounds = array<i64: 1, 3, 128>}, {transform_indices = @transform_6, window_bounds = array<i64: 1, 2, 128>}, {transform_indices = @transform_7, window_bounds = array<i64: 1, 4, 512>}]} {
    %c0 = arith.constant 0 : index
    %c0_0 = arith.constant 0 : index
    %c0_1 = arith.constant 0 : index
    %0 = vector.load %arg1[%c0, %c0_0, %c0_1] : memref<1x3x128xf32, #tpu.memory_space<vmem>>, vector<1x3x128xf32>
    %1 = vector.shape_cast %0 : vector<1x3x128xf32> to vector<3x128xf32>
    %c0_2 = arith.constant 0 : index
    %c0_3 = arith.constant 0 : index
    %c0_4 = arith.constant 0 : index
    %2 = vector.load %arg2[%c0_2, %c0_3, %c0_4] : memref<1x9x128xf32, #tpu.memory_space<vmem>>, vector<1x9x128xf32>
    %3 = vector.shape_cast %2 : vector<1x9x128xf32> to vector<9x128xf32>
    %c0_5 = arith.constant 0 : index
    %c0_6 = arith.constant 0 : index
    %c0_7 = arith.constant 0 : index
    %4 = vector.load %arg3[%c0_5, %c0_6, %c0_7] : memref<1x3x128xf32, #tpu.memory_space<vmem>>, vector<1x3x128xf32>
    %5 = vector.shape_cast %4 : vector<1x3x128xf32> to vector<3x128xf32>
    %6 = vector.extract_strided_slice %5 {offsets = [0, 0], sizes = [1, 128], strides = [1, 1]} : vector<3x128xf32> to vector<1x128xf32>
    %7 = vector.extract_strided_slice %5 {offsets = [1, 0], sizes = [1, 128], strides = [1, 1]} : vector<3x128xf32> to vector<1x128xf32>
    %8 = vector.extract_strided_slice %5 {offsets = [2, 0], sizes = [1, 128], strides = [1, 1]} : vector<3x128xf32> to vector<1x128xf32>
    %9 = vector.extract_strided_slice %1 {offsets = [0, 0], sizes = [1, 128], strides = [1, 1]} : vector<3x128xf32> to vector<1x128xf32>
    %10 = vector.extract_strided_slice %3 {offsets = [0, 0], sizes = [1, 128], strides = [1, 1]} : vector<9x128xf32> to vector<1x128xf32>
    %11 = arith.mulf %10, %6 : vector<1x128xf32>
    %12 = arith.addf %9, %11 : vector<1x128xf32>
    %13 = vector.extract_strided_slice %3 {offsets = [1, 0], sizes = [1, 128], strides = [1, 1]} : vector<9x128xf32> to vector<1x128xf32>
    %14 = arith.mulf %13, %7 : vector<1x128xf32>
    %15 = arith.addf %12, %14 : vector<1x128xf32>
    %16 = vector.extract_strided_slice %3 {offsets = [2, 0], sizes = [1, 128], strides = [1, 1]} : vector<9x128xf32> to vector<1x128xf32>
    %17 = arith.mulf %16, %8 : vector<1x128xf32>
    %18 = arith.addf %15, %17 : vector<1x128xf32>
    %19 = vector.extract_strided_slice %1 {offsets = [1, 0], sizes = [1, 128], strides = [1, 1]} : vector<3x128xf32> to vector<1x128xf32>
    %20 = vector.extract_strided_slice %3 {offsets = [3, 0], sizes = [1, 128], strides = [1, 1]} : vector<9x128xf32> to vector<1x128xf32>
    %21 = arith.mulf %20, %6 : vector<1x128xf32>
    %22 = arith.addf %19, %21 : vector<1x128xf32>
    %23 = vector.extract_strided_slice %3 {offsets = [4, 0], sizes = [1, 128], strides = [1, 1]} : vector<9x128xf32> to vector<1x128xf32>
    %24 = arith.mulf %23, %7 : vector<1x128xf32>
    %25 = arith.addf %22, %24 : vector<1x128xf32>
    %26 = vector.extract_strided_slice %3 {offsets = [5, 0], sizes = [1, 128], strides = [1, 1]} : vector<9x128xf32> to vector<1x128xf32>
    %27 = arith.mulf %26, %8 : vector<1x128xf32>
    %28 = arith.addf %25, %27 : vector<1x128xf32>
    %29 = vector.extract_strided_slice %1 {offsets = [2, 0], sizes = [1, 128], strides = [1, 1]} : vector<3x128xf32> to vector<1x128xf32>
    %30 = vector.extract_strided_slice %3 {offsets = [6, 0], sizes = [1, 128], strides = [1, 1]} : vector<9x128xf32> to vector<1x128xf32>
    %31 = arith.mulf %30, %6 : vector<1x128xf32>
    %32 = arith.addf %29, %31 : vector<1x128xf32>
    %33 = vector.extract_strided_slice %3 {offsets = [7, 0], sizes = [1, 128], strides = [1, 1]} : vector<9x128xf32> to vector<1x128xf32>
    %34 = arith.mulf %33, %7 : vector<1x128xf32>
    %35 = arith.addf %32, %34 : vector<1x128xf32>
    %36 = vector.extract_strided_slice %3 {offsets = [8, 0], sizes = [1, 128], strides = [1, 1]} : vector<9x128xf32> to vector<1x128xf32>
    %37 = arith.mulf %36, %8 : vector<1x128xf32>
    %38 = arith.addf %35, %37 : vector<1x128xf32>
    %39 = tpu.concatenate %18, %28, %38 in 0 : vector<1x128xf32>, vector<1x128xf32>, vector<1x128xf32> -> vector<3x128xf32>
    %c0_8 = arith.constant 0 : index
    %c0_9 = arith.constant 0 : index
    %c0_10 = arith.constant 0 : index
    %40 = vector.load %arg6[%c0_8, %c0_9, %c0_10] : memref<1x3x128xf32, #tpu.memory_space<vmem>>, vector<1x3x128xf32>
    %41 = vector.shape_cast %40 : vector<1x3x128xf32> to vector<3x128xf32>
    %42 = vector.shape_cast %39 : vector<3x128xf32> to vector<1x3x128xf32>
    tpu.vector_store %arg6[%c0_8, %c0_9, %c0_10], %42 {strides = array<i32>} : memref<1x3x128xf32, #tpu.memory_space<vmem>>, vector<1x3x128xf32>,
    %43 = arith.index_cast %arg0 : i32 to index
    %c0_11 = arith.constant 0 : index
    %44 = memref.load %arg4[%43, %c0_11] : memref<2x16xf32, #tpu.memory_space<smem>>
    %45 = vector.broadcast %44 : f32 to vector<1x128xf32>
    %46 = arith.mulf %45, %18 : vector<1x128xf32>
    %47 = arith.index_cast %arg0 : i32 to index
    %c1 = arith.constant 1 : index
    %48 = memref.load %arg4[%47, %c1] : memref<2x16xf32, #tpu.memory_space<smem>>
    %49 = vector.broadcast %48 : f32 to vector<1x128xf32>
    %50 = arith.mulf %49, %28 : vector<1x128xf32>
    %51 = arith.addf %46, %50 : vector<1x128xf32>
    %52 = arith.index_cast %arg0 : i32 to index
    %c2 = arith.constant 2 : index
    %53 = memref.load %arg4[%52, %c2] : memref<2x16xf32, #tpu.memory_space<smem>>
    %54 = vector.broadcast %53 : f32 to vector<1x128xf32>
    %55 = arith.mulf %54, %38 : vector<1x128xf32>
    %56 = arith.addf %51, %55 : vector<1x128xf32>
    %57 = arith.index_cast %arg0 : i32 to index
    %c3 = arith.constant 3 : index
    %58 = memref.load %arg4[%57, %c3] : memref<2x16xf32, #tpu.memory_space<smem>>
    %59 = vector.broadcast %58 : f32 to vector<1x128xf32>
    %60 = arith.addf %56, %59 : vector<1x128xf32>
    %61 = arith.index_cast %arg0 : i32 to index
    %c4 = arith.constant 4 : index
    %62 = memref.load %arg4[%61, %c4] : memref<2x16xf32, #tpu.memory_space<smem>>
    %63 = vector.broadcast %62 : f32 to vector<1x128xf32>
    %64 = arith.mulf %63, %18 : vector<1x128xf32>
    %65 = arith.index_cast %arg0 : i32 to index
    %c5 = arith.constant 5 : index
    %66 = memref.load %arg4[%65, %c5] : memref<2x16xf32, #tpu.memory_space<smem>>
    %67 = vector.broadcast %66 : f32 to vector<1x128xf32>
    %68 = arith.mulf %67, %28 : vector<1x128xf32>
    %69 = arith.addf %64, %68 : vector<1x128xf32>
    %70 = arith.index_cast %arg0 : i32 to index
    %c6 = arith.constant 6 : index
    %71 = memref.load %arg4[%70, %c6] : memref<2x16xf32, #tpu.memory_space<smem>>
    %72 = vector.broadcast %71 : f32 to vector<1x128xf32>
    %73 = arith.mulf %72, %38 : vector<1x128xf32>
    %74 = arith.addf %69, %73 : vector<1x128xf32>
    %75 = arith.index_cast %arg0 : i32 to index
    %c7 = arith.constant 7 : index
    %76 = memref.load %arg4[%75, %c7] : memref<2x16xf32, #tpu.memory_space<smem>>
    %77 = vector.broadcast %76 : f32 to vector<1x128xf32>
    %78 = arith.addf %74, %77 : vector<1x128xf32>
    %79 = arith.index_cast %arg0 : i32 to index
    %c8 = arith.constant 8 : index
    %80 = memref.load %arg4[%79, %c8] : memref<2x16xf32, #tpu.memory_space<smem>>
    %81 = vector.broadcast %80 : f32 to vector<1x128xf32>
    %82 = arith.mulf %81, %18 : vector<1x128xf32>
    %83 = arith.index_cast %arg0 : i32 to index
    %c9 = arith.constant 9 : index
    %84 = memref.load %arg4[%83, %c9] : memref<2x16xf32, #tpu.memory_space<smem>>
    %85 = vector.broadcast %84 : f32 to vector<1x128xf32>
    %86 = arith.mulf %85, %28 : vector<1x128xf32>
    %87 = arith.addf %82, %86 : vector<1x128xf32>
    %88 = arith.index_cast %arg0 : i32 to index
    %c10 = arith.constant 10 : index
    %89 = memref.load %arg4[%88, %c10] : memref<2x16xf32, #tpu.memory_space<smem>>
    %90 = vector.broadcast %89 : f32 to vector<1x128xf32>
    %91 = arith.mulf %90, %38 : vector<1x128xf32>
    %92 = arith.addf %87, %91 : vector<1x128xf32>
    %93 = arith.index_cast %arg0 : i32 to index
    %c11 = arith.constant 11 : index
    %94 = memref.load %arg4[%93, %c11] : memref<2x16xf32, #tpu.memory_space<smem>>
    %95 = vector.broadcast %94 : f32 to vector<1x128xf32>
    %96 = arith.addf %92, %95 : vector<1x128xf32>
    %cst = arith.constant 9.99999997E-7 : f32
    %97 = vector.broadcast %cst : f32 to vector<1x128xf32>
    %98 = arith.maximumf %96, %97 : vector<1x128xf32>
    %99 = tpu.reciprocal %98 {approx = true} : vector<1x128xf32> -> vector<1x128xf32>
    %100 = arith.index_cast %arg0 : i32 to index
    %c0_12 = arith.constant 0 : index
    %101 = memref.load %arg5[%100, %c0_12] : memref<2x9xf32, #tpu.memory_space<smem>>
    %102 = vector.broadcast %101 : f32 to vector<1x128xf32>
    %103 = arith.mulf %102, %60 : vector<1x128xf32>
    %104 = arith.mulf %103, %99 : vector<1x128xf32>
    %105 = arith.index_cast %arg0 : i32 to index
    %c2_13 = arith.constant 2 : index
    %106 = memref.load %arg5[%105, %c2_13] : memref<2x9xf32, #tpu.memory_space<smem>>
    %107 = vector.broadcast %106 : f32 to vector<1x128xf32>
    %108 = arith.addf %104, %107 : vector<1x128xf32>
    %109 = arith.index_cast %arg0 : i32 to index
    %c4_14 = arith.constant 4 : index
    %110 = memref.load %arg5[%109, %c4_14] : memref<2x9xf32, #tpu.memory_space<smem>>
    %111 = vector.broadcast %110 : f32 to vector<1x128xf32>
    %112 = arith.mulf %111, %78 : vector<1x128xf32>
    %113 = arith.mulf %112, %99 : vector<1x128xf32>
    %114 = arith.index_cast %arg0 : i32 to index
    %c5_15 = arith.constant 5 : index
    %115 = memref.load %arg5[%114, %c5_15] : memref<2x9xf32, #tpu.memory_space<smem>>
    %116 = vector.broadcast %115 : f32 to vector<1x128xf32>
    %117 = arith.addf %113, %116 : vector<1x128xf32>
    %118 = tpu.concatenate %108, %117 in 0 : vector<1x128xf32>, vector<1x128xf32> -> vector<2x128xf32>
    %c0_16 = arith.constant 0 : index
    %c0_17 = arith.constant 0 : index
    %c0_18 = arith.constant 0 : index
    %119 = vector.load %arg7[%c0_16, %c0_17, %c0_18] : memref<1x2x128xf32, #tpu.memory_space<vmem>>, vector<1x2x128xf32>
    %120 = vector.shape_cast %119 : vector<1x2x128xf32> to vector<2x128xf32>
    %121 = vector.shape_cast %118 : vector<2x128xf32> to vector<1x2x128xf32>
    tpu.vector_store %arg7[%c0_16, %c0_17, %c0_18], %121 {strides = array<i32>} : memref<1x2x128xf32, #tpu.memory_space<vmem>>, vector<1x2x128xf32>,
    %cst_19 = arith.constant -1.000000e+00 : f32
    %122 = vector.broadcast %cst_19 : f32 to vector<1x128xf32>
    %123 = arith.subf %18, %122 : vector<1x128xf32>
    %cst_20 = arith.constant 4.000000e+00 : f32
    %124 = vector.broadcast %cst_20 : f32 to vector<1x128xf32>
    %125 = arith.mulf %123, %124 : vector<1x128xf32>
    %126 = math.floor %125 : vector<1x128xf32>
    %c0_i32 = arith.constant 0 : i32
    %c7_i32 = arith.constant 7 : i32
    %127 = arith.sitofp %c0_i32 : i32 to f32
    %128 = vector.broadcast %127 : f32 to vector<1x128xf32>
    %129 = arith.maximumf %128, %126 : vector<1x128xf32>
    %130 = arith.sitofp %c7_i32 : i32 to f32
    %131 = vector.broadcast %130 : f32 to vector<1x128xf32>
    %132 = arith.minimumf %131, %129 : vector<1x128xf32>
    %cst_21 = arith.constant -1.000000e+00 : f32
    %133 = vector.broadcast %cst_21 : f32 to vector<1x128xf32>
    %134 = arith.subf %28, %133 : vector<1x128xf32>
    %cst_22 = arith.constant 4.000000e+00 : f32
    %135 = vector.broadcast %cst_22 : f32 to vector<1x128xf32>
    %136 = arith.mulf %134, %135 : vector<1x128xf32>
    %137 = math.floor %136 : vector<1x128xf32>
    %c0_i32_23 = arith.constant 0 : i32
    %c7_i32_24 = arith.constant 7 : i32
    %138 = arith.sitofp %c0_i32_23 : i32 to f32
    %139 = vector.broadcast %138 : f32 to vector<1x128xf32>
    %140 = arith.maximumf %139, %137 : vector<1x128xf32>
    %141 = arith.sitofp %c7_i32_24 : i32 to f32
    %142 = vector.broadcast %141 : f32 to vector<1x128xf32>
    %143 = arith.minimumf %142, %140 : vector<1x128xf32>
    %cst_25 = arith.constant -1.000000e+00 : f32
    %144 = vector.broadcast %cst_25 : f32 to vector<1x128xf32>
    %145 = arith.subf %38, %144 : vector<1x128xf32>
    %cst_26 = arith.constant 4.000000e+00 : f32
    %146 = vector.broadcast %cst_26 : f32 to vector<1x128xf32>
    %147 = arith.mulf %145, %146 : vector<1x128xf32>
    %148 = math.floor %147 : vector<1x128xf32>
    %c0_i32_27 = arith.constant 0 : i32
    %c7_i32_28 = arith.constant 7 : i32
    %149 = arith.sitofp %c0_i32_27 : i32 to f32
    %150 = vector.broadcast %149 : f32 to vector<1x128xf32>
    %151 = arith.maximumf %150, %148 : vector<1x128xf32>
    %152 = arith.sitofp %c7_i32_28 : i32 to f32
    %153 = vector.broadcast %152 : f32 to vector<1x128xf32>
    %154 = arith.minimumf %153, %151 : vector<1x128xf32>
    %cst_29 = arith.constant 6.400000e+01 : f32
    %155 = vector.broadcast %cst_29 : f32 to vector<1x128xf32>
    %156 = arith.mulf %132, %155 : vector<1x128xf32>
    %cst_30 = arith.constant 8.000000e+00 : f32
    %157 = vector.broadcast %cst_30 : f32 to vector<1x128xf32>
    %158 = arith.mulf %143, %157 : vector<1x128xf32>
    %159 = arith.addf %156, %158 : vector<1x128xf32>
    %160 = arith.addf %159, %154 : vector<1x128xf32>
    %161 = arith.fptosi %160 : vector<1x128xf32> to vector<1x128xi32>
    %162 = tpu.iota {dimensions = array<i32: 0>} : vector<512x128xi32>
    %163 = vector.broadcast %161 : vector<1x128xi32> to vector<512x128xi32>
    %164 = arith.cmpi eq, %162, %163 : vector<512x128xi32>
    %165 = arith.extui %164 : vector<512x128xi1> to vector<512x128xi32>
    %166 = arith.sitofp %165 : vector<512x128xi32> to vector<512x128xf32>
    %cst_31 = arith.constant 1.000000e+00 : f32
    %167 = vector.broadcast %cst_31 : f32 to vector<1x128xf32>
    %168 = tpu.concatenate %167, %39 in 0 : vector<1x128xf32>, vector<3x128xf32> -> vector<4x128xf32>
    %cst_32 = arith.constant dense<0.000000e+00> : vector<4x512xf32>
    %169 = tpu.matmul %168, %166, %cst_32 {dimension_numbers = #tpu.dot_dimension_numbers<[1], [1], [0], [0], [0, 0, 1, 0], [], []>} : vector<4x128xf32>, vector<512x128xf32>, vector<4x512xf32> -> vector<4x512xf32>
    %c0_33 = arith.constant 0 : index
    %c0_34 = arith.constant 0 : index
    %c0_35 = arith.constant 0 : index
    %170 = vector.load %arg8[%c0_33, %c0_34, %c0_35] : memref<1x4x512xf32, #tpu.memory_space<vmem>>, vector<1x4x512xf32>
    %171 = vector.shape_cast %170 : vector<1x4x512xf32> to vector<4x512xf32>
    %172 = vector.shape_cast %169 : vector<4x512xf32> to vector<1x4x512xf32>
    tpu.vector_store %arg8[%c0_33, %c0_34, %c0_35], %172 {strides = array<i32>} : memref<1x4x512xf32, #tpu.memory_space<vmem>>, vector<1x4x512xf32>,
    return
  }
  func.func @transform_0(%arg0: i32) -> (i32, i32, i32) {
    %c0_i32 = arith.constant 0 : i32
    %c0_i32_0 = arith.constant 0 : i32
    %c0_i32_1 = arith.constant 0 : i32
    return %arg0, %c0_i32, %c0_i32_0 : i32, i32, i32
  }
  func.func @transform_1(%arg0: i32) -> (i32, i32, i32) {
    %c0_i32 = arith.constant 0 : i32
    %c0_i32_0 = arith.constant 0 : i32
    %c0_i32_1 = arith.constant 0 : i32
    return %arg0, %c0_i32, %c0_i32_0 : i32, i32, i32
  }
  func.func @transform_2(%arg0: i32) -> (i32, i32, i32) {
    %c0_i32 = arith.constant 0 : i32
    %c0_i32_0 = arith.constant 0 : i32
    %c0_i32_1 = arith.constant 0 : i32
    return %arg0, %c0_i32, %c0_i32_0 : i32, i32, i32
  }
  func.func @transform_3(%arg0: i32) -> (i32, i32) {
    %c0_i32 = arith.constant 0 : i32
    %c0_i32_0 = arith.constant 0 : i32
    %c0_i32_1 = arith.constant 0 : i32
    return %c0_i32, %c0_i32_0 : i32, i32
  }
  func.func @transform_4(%arg0: i32) -> (i32, i32) {
    %c0_i32 = arith.constant 0 : i32
    %c0_i32_0 = arith.constant 0 : i32
    %c0_i32_1 = arith.constant 0 : i32
    return %c0_i32, %c0_i32_0 : i32, i32
  }
  func.func @transform_5(%arg0: i32) -> (i32, i32, i32) {
    %c0_i32 = arith.constant 0 : i32
    %c0_i32_0 = arith.constant 0 : i32
    %c0_i32_1 = arith.constant 0 : i32
    return %arg0, %c0_i32, %c0_i32_0 : i32, i32, i32
  }
  func.func @transform_6(%arg0: i32) -> (i32, i32, i32) {
    %c0_i32 = arith.constant 0 : i32
    %c0_i32_0 = arith.constant 0 : i32
    %c0_i32_1 = arith.constant 0 : i32
    return %arg0, %c0_i32, %c0_i32_0 : i32, i32, i32
  }
  func.func @transform_7(%arg0: i32) -> (i32, i32, i32) {
    %c0_i32 = arith.constant 0 : i32
    %c0_i32_0 = arith.constant 0 : i32
    %c0_i32_1 = arith.constant 0 : i32
    return %arg0, %c0_i32, %c0_i32_0 : i32, i32, i32
  }
}

module attributes {stable_mosaic.version = 11 : i64} {
  func.func @_matmul_bias_kernel(%arg0: i32, %arg1: memref<512x189xf32, #tpu.memory_space<vmem>>, %arg2: memref<189x128xf32, #tpu.memory_space<vmem>>, %arg3: memref<1x128xf32, #tpu.memory_space<vmem>>, %arg4: memref<512x128xf32, #tpu.memory_space<vmem>>) attributes {dimension_semantics = [#tpu.dimension_semantics<parallel>], iteration_bounds = array<i64: 2>, scalar_prefetch = 0 : i64, scratch_operands = 0 : i64, tpu.core_type = #tpu.core_type<tc>, window_params = [{transform_indices = @transform_0, window_bounds = array<i64: 512, 189>}, {pipeline_mode = #tpu.pipeline_mode<synchronous>, transform_indices = @transform_1, window_bounds = array<i64: 189, 128>}, {pipeline_mode = #tpu.pipeline_mode<synchronous>, transform_indices = @transform_2, window_bounds = array<i64: 1, 128>}, {transform_indices = @transform_3, window_bounds = array<i64: 512, 128>}]} {
    %c0 = arith.constant 0 : index
    %c0_0 = arith.constant 0 : index
    %0 = vector.load %arg1[%c0, %c0_0] : memref<512x189xf32, #tpu.memory_space<vmem>>, vector<512x189xf32>
    %c0_1 = arith.constant 0 : index
    %c0_2 = arith.constant 0 : index
    %1 = vector.load %arg2[%c0_1, %c0_2] : memref<189x128xf32, #tpu.memory_space<vmem>>, vector<189x128xf32>
    %cst = arith.constant dense<0.000000e+00> : vector<512x128xf32>
    %2 = tpu.matmul %0, %1, %cst {dimension_numbers = #tpu.dot_dimension_numbers<[1], [0], [0], [1], [0, 0, 1, 1], [], []>} : vector<512x189xf32>, vector<189x128xf32>, vector<512x128xf32> -> vector<512x128xf32>
    %c0_3 = arith.constant 0 : index
    %c0_4 = arith.constant 0 : index
    %3 = vector.load %arg3[%c0_3, %c0_4] : memref<1x128xf32, #tpu.memory_space<vmem>>, vector<1x128xf32>
    %4 = vector.broadcast %3 : vector<1x128xf32> to vector<512x128xf32>
    %5 = arith.addf %2, %4 : vector<512x128xf32>
    %cst_5 = arith.constant 0.000000e+00 : f32
    %6 = vector.broadcast %cst_5 : f32 to vector<512x128xf32>
    %7 = arith.maximumf %5, %6 : vector<512x128xf32>
    %c0_6 = arith.constant 0 : index
    %c0_7 = arith.constant 0 : index
    %8 = vector.load %arg4[%c0_6, %c0_7] : memref<512x128xf32, #tpu.memory_space<vmem>>, vector<512x128xf32>
    tpu.vector_store %arg4[%c0_6, %c0_7], %7 {strides = array<i32>} : memref<512x128xf32, #tpu.memory_space<vmem>>, vector<512x128xf32>,
    return
  }
  func.func @transform_0(%arg0: i32) -> (i32, i32) {
    %c0_i32 = arith.constant 0 : i32
    %c0_i32_0 = arith.constant 0 : i32
    return %arg0, %c0_i32 : i32, i32
  }
  func.func @transform_1(%arg0: i32) -> (i32, i32) {
    %c0_i32 = arith.constant 0 : i32
    %c0_i32_0 = arith.constant 0 : i32
    %c0_i32_1 = arith.constant 0 : i32
    return %c0_i32, %c0_i32_0 : i32, i32
  }
  func.func @transform_2(%arg0: i32) -> (i32, i32) {
    %c0_i32 = arith.constant 0 : i32
    %c0_i32_0 = arith.constant 0 : i32
    %c0_i32_1 = arith.constant 0 : i32
    return %c0_i32, %c0_i32_0 : i32, i32
  }
  func.func @transform_3(%arg0: i32) -> (i32, i32) {
    %c0_i32 = arith.constant 0 : i32
    %c0_i32_0 = arith.constant 0 : i32
    return %arg0, %c0_i32 : i32, i32
  }
}

module attributes {stable_mosaic.version = 11 : i64} {
  func.func @_matmul_bias_kernel(%arg0: i32, %arg1: memref<512x432xf32, #tpu.memory_space<vmem>>, %arg2: memref<432x128xf32, #tpu.memory_space<vmem>>, %arg3: memref<1x128xf32, #tpu.memory_space<vmem>>, %arg4: memref<512x128xf32, #tpu.memory_space<vmem>>) attributes {dimension_semantics = [#tpu.dimension_semantics<parallel>], iteration_bounds = array<i64: 2>, scalar_prefetch = 0 : i64, scratch_operands = 0 : i64, tpu.core_type = #tpu.core_type<tc>, window_params = [{transform_indices = @transform_0, window_bounds = array<i64: 512, 432>}, {pipeline_mode = #tpu.pipeline_mode<synchronous>, transform_indices = @transform_1, window_bounds = array<i64: 432, 128>}, {pipeline_mode = #tpu.pipeline_mode<synchronous>, transform_indices = @transform_2, window_bounds = array<i64: 1, 128>}, {transform_indices = @transform_3, window_bounds = array<i64: 512, 128>}]} {
    %c0 = arith.constant 0 : index
    %c0_0 = arith.constant 0 : index
    %0 = vector.load %arg1[%c0, %c0_0] : memref<512x432xf32, #tpu.memory_space<vmem>>, vector<512x432xf32>
    %c0_1 = arith.constant 0 : index
    %c0_2 = arith.constant 0 : index
    %1 = vector.load %arg2[%c0_1, %c0_2] : memref<432x128xf32, #tpu.memory_space<vmem>>, vector<432x128xf32>
    %cst = arith.constant dense<0.000000e+00> : vector<512x128xf32>
    %2 = tpu.matmul %0, %1, %cst {dimension_numbers = #tpu.dot_dimension_numbers<[1], [0], [0], [1], [0, 0, 1, 1], [], []>} : vector<512x432xf32>, vector<432x128xf32>, vector<512x128xf32> -> vector<512x128xf32>
    %c0_3 = arith.constant 0 : index
    %c0_4 = arith.constant 0 : index
    %3 = vector.load %arg3[%c0_3, %c0_4] : memref<1x128xf32, #tpu.memory_space<vmem>>, vector<1x128xf32>
    %4 = vector.broadcast %3 : vector<1x128xf32> to vector<512x128xf32>
    %5 = arith.addf %2, %4 : vector<512x128xf32>
    %cst_5 = arith.constant 0.000000e+00 : f32
    %6 = vector.broadcast %cst_5 : f32 to vector<512x128xf32>
    %7 = arith.maximumf %5, %6 : vector<512x128xf32>
    %c0_6 = arith.constant 0 : index
    %c0_7 = arith.constant 0 : index
    %8 = vector.load %arg4[%c0_6, %c0_7] : memref<512x128xf32, #tpu.memory_space<vmem>>, vector<512x128xf32>
    tpu.vector_store %arg4[%c0_6, %c0_7], %7 {strides = array<i32>} : memref<512x128xf32, #tpu.memory_space<vmem>>, vector<512x128xf32>,
    return
  }
  func.func @transform_0(%arg0: i32) -> (i32, i32) {
    %c0_i32 = arith.constant 0 : i32
    %c0_i32_0 = arith.constant 0 : i32
    return %arg0, %c0_i32 : i32, i32
  }
  func.func @transform_1(%arg0: i32) -> (i32, i32) {
    %c0_i32 = arith.constant 0 : i32
    %c0_i32_0 = arith.constant 0 : i32
    %c0_i32_1 = arith.constant 0 : i32
    return %c0_i32, %c0_i32_0 : i32, i32
  }
  func.func @transform_2(%arg0: i32) -> (i32, i32) {
    %c0_i32 = arith.constant 0 : i32
    %c0_i32_0 = arith.constant 0 : i32
    %c0_i32_1 = arith.constant 0 : i32
    return %c0_i32, %c0_i32_0 : i32, i32
  }
  func.func @transform_3(%arg0: i32) -> (i32, i32) {
    %c0_i32 = arith.constant 0 : i32
    %c0_i32_0 = arith.constant 0 : i32
    return %arg0, %c0_i32 : i32, i32
  }
}

module attributes {stable_mosaic.version = 11 : i64} {
  func.func @_regressor_kernel(%arg0: i32, %arg1: memref<1x43x128xf32, #tpu.memory_space<vmem>>, %arg2: memref<1x3x128xf32, #tpu.memory_space<vmem>>, %arg3: memref<64x43xf32, #tpu.memory_space<vmem>>, %arg4: memref<64x1xf32, #tpu.memory_space<vmem>>, %arg5: memref<14x64xf32, #tpu.memory_space<vmem>>, %arg6: memref<14x1xf32, #tpu.memory_space<vmem>>, %arg7: memref<1x14x128xf32, #tpu.memory_space<vmem>>) attributes {dimension_semantics = [#tpu.dimension_semantics<parallel>], iteration_bounds = array<i64: 2>, scalar_prefetch = 0 : i64, scratch_operands = 0 : i64, tpu.core_type = #tpu.core_type<tc>, window_params = [{transform_indices = @transform_0, window_bounds = array<i64: 1, 43, 128>}, {transform_indices = @transform_1, window_bounds = array<i64: 1, 3, 128>}, {pipeline_mode = #tpu.pipeline_mode<synchronous>, transform_indices = @transform_2, window_bounds = array<i64: 64, 43>}, {pipeline_mode = #tpu.pipeline_mode<synchronous>, transform_indices = @transform_3, window_bounds = array<i64: 64, 1>}, {pipeline_mode = #tpu.pipeline_mode<synchronous>, transform_indices = @transform_4, window_bounds = array<i64: 14, 64>}, {pipeline_mode = #tpu.pipeline_mode<synchronous>, transform_indices = @transform_5, window_bounds = array<i64: 14, 1>}, {transform_indices = @transform_6, window_bounds = array<i64: 1, 14, 128>}]} {
    %c0 = arith.constant 0 : index
    %c0_0 = arith.constant 0 : index
    %0 = vector.load %arg3[%c0, %c0_0] : memref<64x43xf32, #tpu.memory_space<vmem>>, vector<64x43xf32>
    %c0_1 = arith.constant 0 : index
    %c0_2 = arith.constant 0 : index
    %c0_3 = arith.constant 0 : index
    %1 = vector.load %arg1[%c0_1, %c0_2, %c0_3] : memref<1x43x128xf32, #tpu.memory_space<vmem>>, vector<1x43x128xf32>
    %2 = vector.shape_cast %1 : vector<1x43x128xf32> to vector<43x128xf32>
    %cst = arith.constant dense<0.000000e+00> : vector<64x128xf32>
    %3 = tpu.matmul %0, %2, %cst {dimension_numbers = #tpu.dot_dimension_numbers<[1], [0], [0], [1], [0, 0, 1, 1], [], []>} : vector<64x43xf32>, vector<43x128xf32>, vector<64x128xf32> -> vector<64x128xf32>
    %c0_4 = arith.constant 0 : index
    %c0_5 = arith.constant 0 : index
    %4 = vector.load %arg4[%c0_4, %c0_5] : memref<64x1xf32, #tpu.memory_space<vmem>>, vector<64x1xf32>
    %5 = vector.broadcast %4 : vector<64x1xf32> to vector<64x128xf32>
    %6 = arith.addf %3, %5 : vector<64x128xf32>
    %cst_6 = arith.constant 0.000000e+00 : f32
    %7 = vector.broadcast %cst_6 : f32 to vector<64x128xf32>
    %8 = arith.maximumf %6, %7 : vector<64x128xf32>
    %c0_7 = arith.constant 0 : index
    %c0_8 = arith.constant 0 : index
    %9 = vector.load %arg5[%c0_7, %c0_8] : memref<14x64xf32, #tpu.memory_space<vmem>>, vector<14x64xf32>
    %cst_9 = arith.constant dense<0.000000e+00> : vector<14x128xf32>
    %10 = tpu.matmul %9, %8, %cst_9 {dimension_numbers = #tpu.dot_dimension_numbers<[1], [0], [0], [1], [0, 0, 1, 1], [], []>} : vector<14x64xf32>, vector<64x128xf32>, vector<14x128xf32> -> vector<14x128xf32>
    %c0_10 = arith.constant 0 : index
    %c0_11 = arith.constant 0 : index
    %11 = vector.load %arg6[%c0_10, %c0_11] : memref<14x1xf32, #tpu.memory_space<vmem>>, vector<14x1xf32>
    %12 = vector.broadcast %11 : vector<14x1xf32> to vector<14x128xf32>
    %13 = arith.addf %10, %12 : vector<14x128xf32>
    %c0_12 = arith.constant 0 : index
    %c0_13 = arith.constant 0 : index
    %c0_14 = arith.constant 0 : index
    %14 = vector.load %arg2[%c0_12, %c0_13, %c0_14] : memref<1x3x128xf32, #tpu.memory_space<vmem>>, vector<1x3x128xf32>
    %15 = vector.shape_cast %14 : vector<1x3x128xf32> to vector<3x128xf32>
    %16 = vector.extract_strided_slice %13 {offsets = [0, 0], sizes = [3, 128], strides = [1, 1]} : vector<14x128xf32> to vector<3x128xf32>
    %17 = math.tanh %16 : vector<3x128xf32>
    %cst_15 = arith.constant 5.000000e-02 : f32
    %18 = vector.broadcast %cst_15 : f32 to vector<3x128xf32>
    %19 = arith.mulf %18, %17 : vector<3x128xf32>
    %20 = arith.addf %15, %19 : vector<3x128xf32>
    %21 = vector.extract_strided_slice %13 {offsets = [3, 0], sizes = [4, 128], strides = [1, 1]} : vector<14x128xf32> to vector<4x128xf32>
    %22 = arith.mulf %21, %21 : vector<4x128xf32>
    %cst_16 = arith.constant dense<0.000000e+00> : vector<128xf32>
    %23 = vector.multi_reduction <add>, %22, %cst_16 [0] : vector<4x128xf32> to vector<128xf32>
    %24 = vector.shape_cast %23 : vector<128xf32> to vector<1x128xf32>
    %cst_17 = arith.constant 9.99999996E-13 : f32
    %25 = vector.broadcast %cst_17 : f32 to vector<1x128xf32>
    %26 = arith.maximumf %24, %25 : vector<1x128xf32>
    %27 = math.rsqrt %26 : vector<1x128xf32>
    %28 = vector.broadcast %27 : vector<1x128xf32> to vector<4x128xf32>
    %29 = arith.mulf %21, %28 : vector<4x128xf32>
    %30 = vector.extract_strided_slice %13 {offsets = [7, 0], sizes = [3, 128], strides = [1, 1]} : vector<14x128xf32> to vector<3x128xf32>
    %cst_18 = arith.constant 0.000000e+00 : f32
    %31 = vector.broadcast %cst_18 : f32 to vector<3x128xf32>
    %32 = arith.subf %31, %30 : vector<3x128xf32>
    %33 = math.exp %32 : vector<3x128xf32>
    %cst_19 = arith.constant 1.000000e+00 : f32
    %34 = vector.broadcast %cst_19 : f32 to vector<3x128xf32>
    %35 = arith.addf %34, %33 : vector<3x128xf32>
    %cst_20 = arith.constant 1.000000e+00 : f32
    %36 = vector.broadcast %cst_20 : f32 to vector<3x128xf32>
    %37 = arith.divf %36, %35 : vector<3x128xf32>
    %cst_21 = arith.constant 5.000000e-02 : f32
    %38 = vector.broadcast %cst_21 : f32 to vector<3x128xf32>
    %39 = arith.mulf %38, %37 : vector<3x128xf32>
    %cst_22 = arith.constant 0.00999999977 : f32
    %40 = vector.broadcast %cst_22 : f32 to vector<3x128xf32>
    %41 = arith.addf %40, %39 : vector<3x128xf32>
    %42 = vector.extract_strided_slice %13 {offsets = [10, 0], sizes = [1, 128], strides = [1, 1]} : vector<14x128xf32> to vector<1x128xf32>
    %cst_23 = arith.constant 0.000000e+00 : f32
    %43 = vector.broadcast %cst_23 : f32 to vector<1x128xf32>
    %44 = arith.subf %43, %42 : vector<1x128xf32>
    %45 = math.exp %44 : vector<1x128xf32>
    %cst_24 = arith.constant 1.000000e+00 : f32
    %46 = vector.broadcast %cst_24 : f32 to vector<1x128xf32>
    %47 = arith.addf %46, %45 : vector<1x128xf32>
    %cst_25 = arith.constant 1.000000e+00 : f32
    %48 = vector.broadcast %cst_25 : f32 to vector<1x128xf32>
    %49 = arith.divf %48, %47 : vector<1x128xf32>
    %50 = vector.extract_strided_slice %13 {offsets = [11, 0], sizes = [3, 128], strides = [1, 1]} : vector<14x128xf32> to vector<3x128xf32>
    %cst_26 = arith.constant 0.000000e+00 : f32
    %51 = vector.broadcast %cst_26 : f32 to vector<3x128xf32>
    %52 = arith.subf %51, %50 : vector<3x128xf32>
    %53 = math.exp %52 : vector<3x128xf32>
    %cst_27 = arith.constant 1.000000e+00 : f32
    %54 = vector.broadcast %cst_27 : f32 to vector<3x128xf32>
    %55 = arith.addf %54, %53 : vector<3x128xf32>
    %cst_28 = arith.constant 1.000000e+00 : f32
    %56 = vector.broadcast %cst_28 : f32 to vector<3x128xf32>
    %57 = arith.divf %56, %55 : vector<3x128xf32>
    %58 = tpu.concatenate %20, %29, %41, %49, %57 in 0 : vector<3x128xf32>, vector<4x128xf32>, vector<3x128xf32>, vector<1x128xf32>, vector<3x128xf32> -> vector<14x128xf32>
    %c0_29 = arith.constant 0 : index
    %c0_30 = arith.constant 0 : index
    %c0_31 = arith.constant 0 : index
    %59 = vector.load %arg7[%c0_29, %c0_30, %c0_31] : memref<1x14x128xf32, #tpu.memory_space<vmem>>, vector<1x14x128xf32>
    %60 = vector.shape_cast %59 : vector<1x14x128xf32> to vector<14x128xf32>
    %61 = vector.shape_cast %58 : vector<14x128xf32> to vector<1x14x128xf32>
    tpu.vector_store %arg7[%c0_29, %c0_30, %c0_31], %61 {strides = array<i32>} : memref<1x14x128xf32, #tpu.memory_space<vmem>>, vector<1x14x128xf32>,
    return
  }
  func.func @transform_0(%arg0: i32) -> (i32, i32, i32) {
    %c0_i32 = arith.constant 0 : i32
    %c0_i32_0 = arith.constant 0 : i32
    %c0_i32_1 = arith.constant 0 : i32
    return %arg0, %c0_i32, %c0_i32_0 : i32, i32, i32
  }
  func.func @transform_1(%arg0: i32) -> (i32, i32, i32) {
    %c0_i32 = arith.constant 0 : i32
    %c0_i32_0 = arith.constant 0 : i32
    %c0_i32_1 = arith.constant 0 : i32
    return %arg0, %c0_i32, %c0_i32_0 : i32, i32, i32
  }
  func.func @transform_2(%arg0: i32) -> (i32, i32) {
    %c0_i32 = arith.constant 0 : i32
    %c0_i32_0 = arith.constant 0 : i32
    %c0_i32_1 = arith.constant 0 : i32
    return %c0_i32, %c0_i32_0 : i32, i32
  }
  func.func @transform_3(%arg0: i32) -> (i32, i32) {
    %c0_i32 = arith.constant 0 : i32
    %c0_i32_0 = arith.constant 0 : i32
    %c0_i32_1 = arith.constant 0 : i32
    return %c0_i32, %c0_i32_0 : i32, i32
  }
  func.func @transform_4(%arg0: i32) -> (i32, i32) {
    %c0_i32 = arith.constant 0 : i32
    %c0_i32_0 = arith.constant 0 : i32
    %c0_i32_1 = arith.constant 0 : i32
    return %c0_i32, %c0_i32_0 : i32, i32
  }
  func.func @transform_5(%arg0: i32) -> (i32, i32) {
    %c0_i32 = arith.constant 0 : i32
    %c0_i32_0 = arith.constant 0 : i32
    %c0_i32_1 = arith.constant 0 : i32
    return %c0_i32, %c0_i32_0 : i32, i32
  }
  func.func @transform_6(%arg0: i32) -> (i32, i32, i32) {
    %c0_i32 = arith.constant 0 : i32
    %c0_i32_0 = arith.constant 0 : i32
    %c0_i32_1 = arith.constant 0 : i32
    return %arg0, %c0_i32, %c0_i32_0 : i32, i32, i32
  }
}

module attributes {stable_mosaic.version = 11 : i64} {
  func.func @_splat_kernel(%arg0: i32, %arg1: i32, %arg2: memref<256x1xf32, #tpu.memory_space<vmem>>, %arg3: memref<256x1xf32, #tpu.memory_space<vmem>>, %arg4: memref<1x14x128xf32, #tpu.memory_space<vmem>>, %arg5: memref<4x16xf32, #tpu.memory_space<smem>>, %arg6: memref<4x9xf32, #tpu.memory_space<smem>>, %arg7: memref<1x1x3x256xf32, #tpu.memory_space<vmem>>) attributes {dimension_semantics = [#tpu.dimension_semantics<parallel>, #tpu.dimension_semantics<parallel>], iteration_bounds = array<i64: 2, 2>, scalar_prefetch = 0 : i64, scratch_operands = 0 : i64, tpu.core_type = #tpu.core_type<tc>, window_params = [{pipeline_mode = #tpu.pipeline_mode<synchronous>, transform_indices = @transform_0, window_bounds = array<i64: 256, 1>}, {pipeline_mode = #tpu.pipeline_mode<synchronous>, transform_indices = @transform_1, window_bounds = array<i64: 256, 1>}, {transform_indices = @transform_2, window_bounds = array<i64: 1, 14, 128>}, {transform_indices = @transform_3, window_bounds = array<i64: 4, 16>}, {transform_indices = @transform_4, window_bounds = array<i64: 4, 9>}, {transform_indices = @transform_5, window_bounds = array<i64: 1, 1, 3, 256>}]} {
    %c2_i32 = arith.constant 2 : i32
    %0 = arith.muli %arg0, %c2_i32 : i32
    %1 = arith.addi %0, %arg1 : i32
    %c0 = arith.constant 0 : index
    %c0_0 = arith.constant 0 : index
    %c0_1 = arith.constant 0 : index
    %2 = vector.load %arg4[%c0, %c0_0, %c0_1] : memref<1x14x128xf32, #tpu.memory_space<vmem>>, vector<1x14x128xf32>
    %3 = vector.shape_cast %2 : vector<1x14x128xf32> to vector<14x128xf32>
    %4 = vector.extract_strided_slice %3 {offsets = [0, 0], sizes = [1, 128], strides = [1, 1]} : vector<14x128xf32> to vector<1x128xf32>
    %5 = vector.extract_strided_slice %3 {offsets = [1, 0], sizes = [1, 128], strides = [1, 1]} : vector<14x128xf32> to vector<1x128xf32>
    %6 = vector.extract_strided_slice %3 {offsets = [2, 0], sizes = [1, 128], strides = [1, 1]} : vector<14x128xf32> to vector<1x128xf32>
    %7 = arith.index_cast %1 : i32 to index
    %c0_2 = arith.constant 0 : index
    %8 = memref.load %arg5[%7, %c0_2] : memref<4x16xf32, #tpu.memory_space<smem>>
    %9 = vector.broadcast %8 : f32 to vector<1x128xf32>
    %10 = arith.mulf %9, %4 : vector<1x128xf32>
    %11 = arith.index_cast %1 : i32 to index
    %c1 = arith.constant 1 : index
    %12 = memref.load %arg5[%11, %c1] : memref<4x16xf32, #tpu.memory_space<smem>>
    %13 = vector.broadcast %12 : f32 to vector<1x128xf32>
    %14 = arith.mulf %13, %5 : vector<1x128xf32>
    %15 = arith.addf %10, %14 : vector<1x128xf32>
    %16 = arith.index_cast %1 : i32 to index
    %c2 = arith.constant 2 : index
    %17 = memref.load %arg5[%16, %c2] : memref<4x16xf32, #tpu.memory_space<smem>>
    %18 = vector.broadcast %17 : f32 to vector<1x128xf32>
    %19 = arith.mulf %18, %6 : vector<1x128xf32>
    %20 = arith.addf %15, %19 : vector<1x128xf32>
    %21 = arith.index_cast %1 : i32 to index
    %c3 = arith.constant 3 : index
    %22 = memref.load %arg5[%21, %c3] : memref<4x16xf32, #tpu.memory_space<smem>>
    %23 = vector.broadcast %22 : f32 to vector<1x128xf32>
    %24 = arith.addf %20, %23 : vector<1x128xf32>
    %25 = arith.index_cast %1 : i32 to index
    %c4 = arith.constant 4 : index
    %26 = memref.load %arg5[%25, %c4] : memref<4x16xf32, #tpu.memory_space<smem>>
    %27 = vector.broadcast %26 : f32 to vector<1x128xf32>
    %28 = arith.mulf %27, %4 : vector<1x128xf32>
    %29 = arith.index_cast %1 : i32 to index
    %c5 = arith.constant 5 : index
    %30 = memref.load %arg5[%29, %c5] : memref<4x16xf32, #tpu.memory_space<smem>>
    %31 = vector.broadcast %30 : f32 to vector<1x128xf32>
    %32 = arith.mulf %31, %5 : vector<1x128xf32>
    %33 = arith.addf %28, %32 : vector<1x128xf32>
    %34 = arith.index_cast %1 : i32 to index
    %c6 = arith.constant 6 : index
    %35 = memref.load %arg5[%34, %c6] : memref<4x16xf32, #tpu.memory_space<smem>>
    %36 = vector.broadcast %35 : f32 to vector<1x128xf32>
    %37 = arith.mulf %36, %6 : vector<1x128xf32>
    %38 = arith.addf %33, %37 : vector<1x128xf32>
    %39 = arith.index_cast %1 : i32 to index
    %c7 = arith.constant 7 : index
    %40 = memref.load %arg5[%39, %c7] : memref<4x16xf32, #tpu.memory_space<smem>>
    %41 = vector.broadcast %40 : f32 to vector<1x128xf32>
    %42 = arith.addf %38, %41 : vector<1x128xf32>
    %43 = arith.index_cast %1 : i32 to index
    %c8 = arith.constant 8 : index
    %44 = memref.load %arg5[%43, %c8] : memref<4x16xf32, #tpu.memory_space<smem>>
    %45 = vector.broadcast %44 : f32 to vector<1x128xf32>
    %46 = arith.mulf %45, %4 : vector<1x128xf32>
    %47 = arith.index_cast %1 : i32 to index
    %c9 = arith.constant 9 : index
    %48 = memref.load %arg5[%47, %c9] : memref<4x16xf32, #tpu.memory_space<smem>>
    %49 = vector.broadcast %48 : f32 to vector<1x128xf32>
    %50 = arith.mulf %49, %5 : vector<1x128xf32>
    %51 = arith.addf %46, %50 : vector<1x128xf32>
    %52 = arith.index_cast %1 : i32 to index
    %c10 = arith.constant 10 : index
    %53 = memref.load %arg5[%52, %c10] : memref<4x16xf32, #tpu.memory_space<smem>>
    %54 = vector.broadcast %53 : f32 to vector<1x128xf32>
    %55 = arith.mulf %54, %6 : vector<1x128xf32>
    %56 = arith.addf %51, %55 : vector<1x128xf32>
    %57 = arith.index_cast %1 : i32 to index
    %c11 = arith.constant 11 : index
    %58 = memref.load %arg5[%57, %c11] : memref<4x16xf32, #tpu.memory_space<smem>>
    %59 = vector.broadcast %58 : f32 to vector<1x128xf32>
    %60 = arith.addf %56, %59 : vector<1x128xf32>
    %61 = arith.index_cast %1 : i32 to index
    %c0_3 = arith.constant 0 : index
    %62 = memref.load %arg6[%61, %c0_3] : memref<4x9xf32, #tpu.memory_space<smem>>
    %63 = arith.index_cast %1 : i32 to index
    %c2_4 = arith.constant 2 : index
    %64 = memref.load %arg6[%63, %c2_4] : memref<4x9xf32, #tpu.memory_space<smem>>
    %65 = arith.index_cast %1 : i32 to index
    %c4_5 = arith.constant 4 : index
    %66 = memref.load %arg6[%65, %c4_5] : memref<4x9xf32, #tpu.memory_space<smem>>
    %67 = arith.index_cast %1 : i32 to index
    %c5_6 = arith.constant 5 : index
    %68 = memref.load %arg6[%67, %c5_6] : memref<4x9xf32, #tpu.memory_space<smem>>
    %cst = arith.constant 9.99999997E-7 : f32
    %69 = vector.broadcast %cst : f32 to vector<1x128xf32>
    %70 = arith.cmpf ogt, %60, %69 : vector<1x128xf32>
    %71 = arith.extui %70 : vector<1x128xi1> to vector<1x128xi32>
    %72 = arith.sitofp %71 : vector<1x128xi32> to vector<1x128xf32>
    %cst_7 = arith.constant 9.99999997E-7 : f32
    %73 = vector.broadcast %cst_7 : f32 to vector<1x128xf32>
    %74 = arith.maximumf %60, %73 : vector<1x128xf32>
    %75 = tpu.reciprocal %74 {approx = true} : vector<1x128xf32> -> vector<1x128xf32>
    %76 = vector.broadcast %62 : f32 to vector<1x128xf32>
    %77 = arith.mulf %76, %24 : vector<1x128xf32>
    %78 = arith.mulf %77, %75 : vector<1x128xf32>
    %79 = vector.broadcast %64 : f32 to vector<1x128xf32>
    %80 = arith.addf %78, %79 : vector<1x128xf32>
    %81 = vector.broadcast %66 : f32 to vector<1x128xf32>
    %82 = arith.mulf %81, %42 : vector<1x128xf32>
    %83 = arith.mulf %82, %75 : vector<1x128xf32>
    %84 = vector.broadcast %68 : f32 to vector<1x128xf32>
    %85 = arith.addf %83, %84 : vector<1x128xf32>
    %86 = vector.extract_strided_slice %3 {offsets = [7, 0], sizes = [1, 128], strides = [1, 1]} : vector<14x128xf32> to vector<1x128xf32>
    %87 = vector.extract_strided_slice %3 {offsets = [8, 0], sizes = [1, 128], strides = [1, 1]} : vector<14x128xf32> to vector<1x128xf32>
    %88 = arith.addf %86, %87 : vector<1x128xf32>
    %89 = vector.extract_strided_slice %3 {offsets = [9, 0], sizes = [1, 128], strides = [1, 1]} : vector<14x128xf32> to vector<1x128xf32>
    %90 = arith.addf %88, %89 : vector<1x128xf32>
    %cst_8 = arith.constant 0.333333343 : f32
    %91 = vector.broadcast %cst_8 : f32 to vector<1x128xf32>
    %92 = arith.mulf %90, %91 : vector<1x128xf32>
    %93 = vector.broadcast %62 : f32 to vector<1x128xf32>
    %94 = arith.mulf %93, %92 : vector<1x128xf32>
    %cst_9 = arith.constant 1.000000e+00 : f32
    %95 = vector.broadcast %cst_9 : f32 to vector<1x128xf32>
    %96 = arith.addf %95, %94 : vector<1x128xf32>
    %97 = arith.mulf %96, %96 : vector<1x128xf32>
    %98 = tpu.reciprocal %97 {approx = true} : vector<1x128xf32> -> vector<1x128xf32>
    %cst_10 = arith.constant -5.000000e-01 : f32
    %99 = vector.broadcast %cst_10 : f32 to vector<1x128xf32>
    %100 = arith.mulf %99, %98 : vector<1x128xf32>
    %101 = vector.extract_strided_slice %3 {offsets = [10, 0], sizes = [1, 128], strides = [1, 1]} : vector<14x128xf32> to vector<1x128xf32>
    %102 = arith.mulf %101, %72 : vector<1x128xf32>
    %c0_11 = arith.constant 0 : index
    %c0_12 = arith.constant 0 : index
    %103 = vector.load %arg2[%c0_11, %c0_12] : memref<256x1xf32, #tpu.memory_space<vmem>>, vector<256x1xf32>
    %104 = vector.broadcast %103 : vector<256x1xf32> to vector<256x128xf32>
    %105 = vector.broadcast %80 : vector<1x128xf32> to vector<256x128xf32>
    %106 = arith.subf %104, %105 : vector<256x128xf32>
    %107 = arith.mulf %106, %106 : vector<256x128xf32>
    %c0_13 = arith.constant 0 : index
    %c0_14 = arith.constant 0 : index
    %108 = vector.load %arg3[%c0_13, %c0_14] : memref<256x1xf32, #tpu.memory_space<vmem>>, vector<256x1xf32>
    %109 = vector.broadcast %108 : vector<256x1xf32> to vector<256x128xf32>
    %110 = vector.broadcast %85 : vector<1x128xf32> to vector<256x128xf32>
    %111 = arith.subf %109, %110 : vector<256x128xf32>
    %112 = arith.mulf %111, %111 : vector<256x128xf32>
    %113 = arith.addf %107, %112 : vector<256x128xf32>
    %114 = vector.broadcast %100 : vector<1x128xf32> to vector<256x128xf32>
    %115 = arith.mulf %114, %113 : vector<256x128xf32>
    %116 = math.exp %115 : vector<256x128xf32>
    %117 = vector.broadcast %102 : vector<1x128xf32> to vector<256x128xf32>
    %118 = arith.mulf %117, %116 : vector<256x128xf32>
    %119 = vector.extract_strided_slice %3 {offsets = [11, 0], sizes = [3, 128], strides = [1, 1]} : vector<14x128xf32> to vector<3x128xf32>
    %cst_15 = arith.constant 1.000000e+00 : f32
    %120 = vector.broadcast %cst_15 : f32 to vector<1x128xf32>
    %121 = tpu.concatenate %119, %120 in 0 : vector<3x128xf32>, vector<1x128xf32> -> vector<4x128xf32>
    %cst_16 = arith.constant dense<0.000000e+00> : vector<4x256xf32>
    %122 = tpu.matmul %121, %118, %cst_16 {dimension_numbers = #tpu.dot_dimension_numbers<[1], [1], [0], [0], [0, 0, 1, 0], [], []>} : vector<4x128xf32>, vector<256x128xf32>, vector<4x256xf32> -> vector<4x256xf32>
    %123 = vector.extract_strided_slice %122 {offsets = [0, 0], sizes = [3, 256], strides = [1, 1]} : vector<4x256xf32> to vector<3x256xf32>
    %124 = vector.extract_strided_slice %122 {offsets = [3, 0], sizes = [1, 256], strides = [1, 1]} : vector<4x256xf32> to vector<1x256xf32>
    %cst_17 = arith.constant 1.000000e+00 : f32
    %125 = vector.broadcast %cst_17 : f32 to vector<1x256xf32>
    %126 = arith.minimumf %124, %125 : vector<1x256xf32>
    %cst_18 = arith.constant 1.000000e+00 : f32
    %127 = vector.broadcast %cst_18 : f32 to vector<1x256xf32>
    %128 = arith.subf %127, %126 : vector<1x256xf32>
    %cst_19 = arith.constant 0.000000e+00 : f32
    %129 = vector.broadcast %cst_19 : f32 to vector<1x256xf32>
    %130 = arith.maximumf %129, %128 : vector<1x256xf32>
    %cst_20 = arith.constant 0.000000e+00 : f32
    %131 = vector.broadcast %cst_20 : f32 to vector<1x256xf32>
    %132 = arith.mulf %131, %130 : vector<1x256xf32>
    %cst_21 = arith.constant 0.000000e+00 : f32
    %133 = vector.broadcast %cst_21 : f32 to vector<1x256xf32>
    %134 = arith.mulf %133, %130 : vector<1x256xf32>
    %cst_22 = arith.constant 0.000000e+00 : f32
    %135 = vector.broadcast %cst_22 : f32 to vector<1x256xf32>
    %136 = arith.mulf %135, %130 : vector<1x256xf32>
    %137 = tpu.concatenate %132, %134, %136 in 0 : vector<1x256xf32>, vector<1x256xf32>, vector<1x256xf32> -> vector<3x256xf32>
    %138 = arith.addf %123, %137 : vector<3x256xf32>
    %c0_23 = arith.constant 0 : index
    %c0_24 = arith.constant 0 : index
    %c0_25 = arith.constant 0 : index
    %c0_26 = arith.constant 0 : index
    %139 = vector.load %arg7[%c0_23, %c0_24, %c0_25, %c0_26] : memref<1x1x3x256xf32, #tpu.memory_space<vmem>>, vector<1x1x3x256xf32>
    %140 = vector.shape_cast %139 : vector<1x1x3x256xf32> to vector<3x256xf32>
    %141 = vector.shape_cast %138 : vector<3x256xf32> to vector<1x1x3x256xf32>
    tpu.vector_store %arg7[%c0_23, %c0_24, %c0_25, %c0_26], %141 {strides = array<i32>} : memref<1x1x3x256xf32, #tpu.memory_space<vmem>>, vector<1x1x3x256xf32>,
    return
  }
  func.func @transform_0(%arg0: i32, %arg1: i32) -> (i32, i32) {
    %c0_i32 = arith.constant 0 : i32
    %c0_i32_0 = arith.constant 0 : i32
    %c0_i32_1 = arith.constant 0 : i32
    return %c0_i32, %c0_i32_0 : i32, i32
  }
  func.func @transform_1(%arg0: i32, %arg1: i32) -> (i32, i32) {
    %c0_i32 = arith.constant 0 : i32
    %c0_i32_0 = arith.constant 0 : i32
    %c0_i32_1 = arith.constant 0 : i32
    return %c0_i32, %c0_i32_0 : i32, i32
  }
  func.func @transform_2(%arg0: i32, %arg1: i32) -> (i32, i32, i32) {
    %c0_i32 = arith.constant 0 : i32
    %c0_i32_0 = arith.constant 0 : i32
    %c0_i32_1 = arith.constant 0 : i32
    return %arg0, %c0_i32, %c0_i32_0 : i32, i32, i32
  }
  func.func @transform_3(%arg0: i32, %arg1: i32) -> (i32, i32) {
    %c0_i32 = arith.constant 0 : i32
    %c0_i32_0 = arith.constant 0 : i32
    %c0_i32_1 = arith.constant 0 : i32
    return %c0_i32, %c0_i32_0 : i32, i32
  }
  func.func @transform_4(%arg0: i32, %arg1: i32) -> (i32, i32) {
    %c0_i32 = arith.constant 0 : i32
    %c0_i32_0 = arith.constant 0 : i32
    %c0_i32_1 = arith.constant 0 : i32
    return %c0_i32, %c0_i32_0 : i32, i32
  }
  func.func @transform_5(%arg0: i32, %arg1: i32) -> (i32, i32, i32, i32) {
    %c0_i32 = arith.constant 0 : i32
    %c0_i32_0 = arith.constant 0 : i32
    %c0_i32_1 = arith.constant 0 : i32
    return %arg0, %arg1, %c0_i32, %c0_i32_0 : i32, i32, i32, i32
  }
}

</mosaic_0001>

<llo_original>
// kernel: custom-call.24
$region0: #{custom-call.24}
  %s0 = inlined_call_operand.vmem [shape: f32[2,4,3,3], index: 0, kind: input, shape index: {}]
  %s1 = inlined_call_operand.vmem [shape: f32[2,4,3,3], index: 1, kind: output, shape index: {}]
  $region1: #{custom-call.24} parent=0
    #allocation0 [shape = 'u8[4096]{0}', space=vmem, size = 0x1000, scoped, tag = 'operand span for operand 0']
    #allocation1 [shape = 'u8[4096]{0}', space=vmem, size = 0x1000, scoped, tag = 'packed  for operand 0']
    #allocation2 [shape = 'u8[4096]{0}', space=vmem, size = 0x1000, scoped, tag = 'operand span for operand 1']
    #allocation3 [shape = 'u8[4096]{0}', space=vmem, size = 0x1000, scoped, tag = 'packed  for operand 1']
    loop: start=0, step=1, limit=10
    $region2: #{custom-call.24} parent=1 // loop_pre_header
      _
    $region3: #{custom-call.24} parent=1 // loop_header
      %s3 = sphi 0, %s7
      %p4 = scmp.ge.s32.totalorder %s3, 10
      %s10 = sphi 0, %s36
      %s11 = sphi 0, %s32
      %s12 = sphi 0, %s28
      %s13 = sphi 0, %s24
      %s14 = sphi 0, %s10
      %s15 = sphi 0, %s11
      %s16 = sphi 0, %s12
      %s17 = sphi 0, %s13
      %s18 = sphi 0, %s14
      %s19 = sphi 0, %s15
      %s20 = sphi 0, %s16
      %s21 = sphi 0, %s17
    $region4: #{custom-call.24} parent=1 // loop_header_branch
      %6 = sbr.rel (%p4) target = $region8
    $region5: #{custom-call.24} parent=1 // loop_body
      %s8 = ssub.s32 %s3, 1
      %s9 = ssub.s32 %s3, 2
      %s22 = sadd.s32 1, %s13
      %p23 = scmp.ge.s32.totalorder %s22, 1
      %s24 = scalar_select %p23, 0, %s22
      %s25 = sadd.s32 1, %s12
      %s26 = scalar_select %p23, %s25, %s12
      %p27 = scmp.ge.s32.totalorder %s26, 1
      %s28 = scalar_select %p27, 0, %s26
      %s29 = sadd.s32 1, %s11
      %s30 = scalar_select %p27, %s29, %s11
      %p31 = scmp.ge.s32.totalorder %s30, 4
      %s32 = scalar_select %p31, 0, %s30
      %s33 = sadd.s32 1, %s10
      %s34 = scalar_select %p31, %s33, %s10
      %p35 = scmp.ge.s32.totalorder %s34, 2
      %s36 = scalar_select %p35, 0, %s34
      %p37 = scmp.le.s32.totalorder 1, %s3
      %p38 = scmp.lt.s32.totalorder %s3, 9
      %p39 = pnand %p37, %p38
      %p40 = pneg %p39
      // Predicated region
      $region9: #{custom-call.24} parent=5 // pred_check
        _
      $region10: #{custom-call.24} parent=5 // pred_check_branch
        %42 = sbr.rel (%p39) target = $region12
      $region11: #{custom-call.24} parent=5 // pred_region
        %s43 = ssub.s32 %s3, 1
      $region12: #{custom-call.24} parent=5 // pred_fallthru
        _
      %p44 = scmp.lt.s32.totalorder %s3, 8
      // Predicated region
      $region13: #{custom-call.24} parent=5 // pred_check
        %p45 = pneg %p44
      $region14: #{custom-call.24} parent=5 // pred_check_branch
        %47 = sbr.rel (%p45) target = $region16
      $region15: #{custom-call.24} parent=5 // pred_region
        %s48 = sand.u32 %s3, 1
        %s49 = sand.u32 %s3, 1
        %s50 = smul.addr %s49, 4
        %s51 = scalar_lea.vmem [#allocation1], %s50
        %s52 = sadd.s32 %s13, %s12
        %s53 = sadd.s32 %s52, %s11
        %s54 = smul.addr %s10, 4
        %s55 = sadd.s32 %s53, %s54
        %s56 = smul.addr %s55, 4
        %s57 = scalar_lea.vmem %s0, %s56
        // Predicated region
        $region17: #{custom-call.24} parent=15 // pred_check
          _
        $region18: #{custom-call.24} parent=15 // pred_check_branch
          %59 = sbr.rel (0) target = $region20
        $region19: #{custom-call.24} parent=15 // pred_region
          // Predicated region
          $region21: #{custom-call.24} parent=19 // pred_check
            _
          $region22: #{custom-call.24} parent=19 // pred_check_branch
            %61 = sbr.rel target = $region24
          $region23: #{custom-call.24} parent=19 // pred_region
            // Predicated region
            $region36: #{custom-call.24} parent=23 // pred_check
              _
            $region37: #{custom-call.24} parent=23 // pred_check_branch
              %77 = sbr.rel (0) target = $region39
            $region38: #{custom-call.24} parent=23 // pred_region
              %s79 = ssub.s32 16, 1
              loop: start=0, step=1, limit=1
              $region40: #{custom-call.24} parent=38 // loop_pre_header
                _
              $region41: #{custom-call.24} parent=38 // loop_header
                %s81 = sphi 0, %s85
                %p82 = scmp.ge.s32.totalorder %s81, 1
                %s86 = sphi %s57, %s57
                %s87 = sphi %s51, %s51
              $region42: #{custom-call.24} parent=38 // loop_header_branch
                %84 = sbr.rel (%p82) target = $region46
              $region43: #{custom-call.24} parent=38 // loop_body
                %v88 = vld [vmem:[%s86] sm:%s79]
                %89 = vst [vmem:[%s87] sm:%s79] %v88
              $region44: #{custom-call.24} parent=38 // loop_footer
                %s85 = sadd.s32 1, %s81
              $region45: #{custom-call.24} parent=38 // loop_footer_branch
                %80 = sbr.rel target = $region41
              $region46: #{custom-call.24} parent=38 // loop_exit
                _
            $region39: #{custom-call.24} parent=23 // pred_fallthru
              _
          $region24: #{custom-call.24} parent=19 // pred_fallthru
            _
          // Predicated region
          $region25: #{custom-call.24} parent=19 // pred_check
            _
          $region26: #{custom-call.24} parent=19 // pred_check_branch
            %63 = sbr.rel (0) target = $region28
          $region27: #{custom-call.24} parent=19 // pred_region
            %s65 = ssub.s32 16, 1
            loop: start=0, step=1, limit=1
            $region29: #{custom-call.24} parent=27 // loop_pre_header
              _
            $region30: #{custom-call.24} parent=27 // loop_header
              %s67 = sphi 0, %s71
              %p68 = scmp.ge.s32.totalorder %s67, 1
              %s72 = sphi %s57, %s57
              %s73 = sphi %s51, %s51
            $region31: #{custom-call.24} parent=27 // loop_header_branch
              %70 = sbr.rel (%p68) target = $region35
            $region32: #{custom-call.24} parent=27 // loop_body
              %v74 = vld [vmem:[%s72] sm:%s65]
              %75 = vst [vmem:[%s73] sm:%s65] %v74
            $region33: #{custom-call.24} parent=27 // loop_footer
              %s71 = sadd.s32 1, %s67
            $region34: #{custom-call.24} parent=27 // loop_footer_branch
              %66 = sbr.rel target = $region30
            $region35: #{custom-call.24} parent=27 // loop_exit
              _
          $region28: #{custom-call.24} parent=19 // pred_fallthru
            _
        $region20: #{custom-call.24} parent=15 // pred_fallthru
          _
        %90 = vnop
      $region16: #{custom-call.24} parent=5 // pred_fallthru
        _
      %p91 = scmp.le.s32.totalorder 1, %s3
      %p92 = scmp.lt.s32.totalorder %s3, 9
      %p93 = pnand %p91, %p92
      %p94 = pneg %p93
      // Predicated region
      $region47: #{custom-call.24} parent=5 // pred_check
        _
      $region48: #{custom-call.24} parent=5 // pred_check_branch
        %96 = sbr.rel (%p93) target = $region50
      $region49: #{custom-call.24} parent=5 // pred_region
        %s97 = ssub.s32 %s3, 1
        %s98 = sand.u32 %s8, 1
        %s99 = sand.u32 %s8, 1
        %s100 = smul.addr %s99, 4
        %s101 = scalar_lea.vmem [#allocation1], %s100
        %s102 = sand.u32 %s8, 1
        %s103 = sand.u32 %s8, 1
        %s104 = smul.addr %s103, 4
        %s105 = scalar_lea.vmem [#allocation1], %s104
        %s106 = sand.u32 %s8, 1
        %s107 = sand.u32 %s8, 1
        %s108 = smul.addr %s107, 4
        %s109 = scalar_lea.vmem [#allocation3], %s108
        %s111 = sshll.u32 1, 4
        %s112 = ssub.s32 %s111, 1
        %v113 = vld [vmem:[%s105] sm:%s112]
        %114 = vst [vmem:[#allocation0] sm:%s112] %v113
        %115 = vst [vmem:[#allocation2] sm:$0xff] 0.0
        %vm116 = vcmask 7168
        %v117 = vld [vmem:[#allocation2] ss:$0 sm:$0xff]
        %v118 = vld [vmem:[#allocation0] ss:$0 sm:$0xff]
        %v119 = vmul.f32 %v117, %v117
        %120 = vadd.xlane.f32.xlu0 %v119
        %v121 = vpop.xlane.xlu0 %120
        %v122 = vsub.f32 %v118, %v121
        %v123 = vrsqrt.pop %v122
        %v124 = vld [vmem:[#allocation0] sm:$0xff]
        %v125 = vld [vmem:[#allocation2] sm:$0xff]
        %v126 = vmul.f32 %v125, %v117
        %127 = vadd.xlane.f32.xlu0 %v126
        %v128 = vpop.xlane.xlu0 %127
        %v129 = vsub.f32 %v124, %v128
        %v130 = vmul.f32 %v129, %v123
        %v131 = vsel %vm116, %v130, 0.0
        %v132 = vadd.f32 %v125, %v131
        %133 = vst [vmem:[#allocation2] sm:$0xff] %v132
        %vm134 = vcmask 15368
        %s135 = scalar_lea.vmem [#allocation2], 1
        %v136 = vld [vmem:[%s135] ss:$0 sm:$0xff]
        %s137 = scalar_lea.vmem [#allocation0], 1
        %v138 = vld [vmem:[%s137] ss:$0 sm:$0xff]
        %v139 = vmul.f32 %v136, %v136
        %140 = vadd.xlane.f32.xlu0 %v139
        %v141 = vpop.xlane.xlu0 %140
        %v142 = vsub.f32 %v138, %v141
        %v143 = vrsqrt.pop %v142
        %v144 = vld [vmem:[#allocation0] sm:$0xff]
        %v145 = vld [vmem:[#allocation2] sm:$0xff]
        %v146 = vmul.f32 %v145, %v136
        %147 = vadd.xlane.f32.xlu0 %v146
        %v148 = vpop.xlane.xlu0 %147
        %v149 = vsub.f32 %v144, %v148
        %v150 = vmul.f32 %v149, %v143
        %vm151 = vcmask 1047553
        %vm152 = vmand %vm134, %vm151
        %v153 = vsel %vm152, %v150, 0.0
        %v154 = vadd.f32 %v145, %v153
        %155 = vst [vmem:[#allocation2] sm:$0xff] %v154
        %vm156 = vcmask 23568
        %s157 = scalar_lea.vmem [#allocation2], 2
        %v158 = vld [vmem:[%s157] ss:$0 sm:$0xff]
        %s159 = scalar_lea.vmem [#allocation0], 2
        %v160 = vld [vmem:[%s159] ss:$0 sm:$0xff]
        %v161 = vmul.f32 %v158, %v158
        %162 = vadd.xlane.f32.xlu0 %v161
        %v163 = vpop.xlane.xlu0 %162
        %v164 = vsub.f32 %v160, %v163
        %v165 = vrsqrt.pop %v164
        %v166 = vld [vmem:[#allocation0] sm:$0xff]
        %v167 = vld [vmem:[#allocation2] sm:$0xff]
        %v168 = vmul.f32 %v167, %v158
        %169 = vadd.xlane.f32.xlu0 %v168
        %v170 = vpop.xlane.xlu0 %169
        %v171 = vsub.f32 %v166, %v170
        %v172 = vmul.f32 %v171, %v165
        %vm173 = vcmask 1047554
        %vm174 = vmand %vm156, %vm173
        %v175 = vsel %vm174, %v172, 0.0
        %v176 = vadd.f32 %v167, %v175
        %177 = vst [vmem:[#allocation2] sm:$0xff] %v176
        %s179 = sshll.u32 1, 4
        %s180 = ssub.s32 %s179, 1
        %v182 = vld [vmem:[#allocation2] sm:%s180]
        %s183 = sshll.u32 1, 4
        %s184 = ssub.s32 %s183, 1
        %185 = vst [vmem:[%s109] sm:%s184] %v182
        %s186 = sand.u32 %s8, 1
        %s187 = sand.u32 %s8, 1
        %s188 = smul.addr %s187, 4
        %s189 = scalar_lea.vmem [#allocation3], %s188
        %s190 = sadd.s32 %s17, %s16
        %s191 = sadd.s32 %s190, %s15
        %s192 = smul.addr %s14, 4
        %s193 = sadd.s32 %s191, %s192
        %s194 = smul.addr %s193, 4
        %s195 = scalar_lea.vmem %s1, %s194
        // Predicated region
        $region51: #{custom-call.24} parent=49 // pred_check
          _
        $region52: #{custom-call.24} parent=49 // pred_check_branch
          %197 = sbr.rel (0) target = $region54
        $region53: #{custom-call.24} parent=49 // pred_region
          // Predicated region
          $region55: #{custom-call.24} parent=53 // pred_check
            _
          $region56: #{custom-call.24} parent=53 // pred_check_branch
            %199 = sbr.rel target = $region58
          $region57: #{custom-call.24} parent=53 // pred_region
            // Predicated region
            $region70: #{custom-call.24} parent=57 // pred_check
              _
            $region71: #{custom-call.24} parent=57 // pred_check_branch
              %215 = sbr.rel (0) target = $region73
            $region72: #{custom-call.24} parent=57 // pred_region
              %s217 = ssub.s32 16, 1
              loop: start=0, step=1, limit=1
              $region74: #{custom-call.24} parent=72 // loop_pre_header
                _
              $region75: #{custom-call.24} parent=72 // loop_header
                %s219 = sphi 0, %s223
                %p220 = scmp.ge.s32.totalorder %s219, 1
                %s224 = sphi %s189, %s189
                %s225 = sphi %s195, %s195
              $region76: #{custom-call.24} parent=72 // loop_header_branch
                %222 = sbr.rel (%p220) target = $region80
              $region77: #{custom-call.24} parent=72 // loop_body
                %v226 = vld [vmem:[%s224] sm:%s217]
                %227 = vst [vmem:[%s225] sm:%s217] %v226
              $region78: #{custom-call.24} parent=72 // loop_footer
                %s223 = sadd.s32 1, %s219
              $region79: #{custom-call.24} parent=72 // loop_footer_branch
                %218 = sbr.rel target = $region75
              $region80: #{custom-call.24} parent=72 // loop_exit
                _
            $region73: #{custom-call.24} parent=57 // pred_fallthru
              _
          $region58: #{custom-call.24} parent=53 // pred_fallthru
            _
          // Predicated region
          $region59: #{custom-call.24} parent=53 // pred_check
            _
          $region60: #{custom-call.24} parent=53 // pred_check_branch
            %201 = sbr.rel (0) target = $region62
          $region61: #{custom-call.24} parent=53 // pred_region
            %s203 = ssub.s32 16, 1
            loop: start=0, step=1, limit=1
            $region63: #{custom-call.24} parent=61 // loop_pre_header
              _
            $region64: #{custom-call.24} parent=61 // loop_header
              %s205 = sphi 0, %s209
              %p206 = scmp.ge.s32.totalorder %s205, 1
              %s210 = sphi %s189, %s189
              %s211 = sphi %s195, %s195
            $region65: #{custom-call.24} parent=61 // loop_header_branch
              %208 = sbr.rel (%p206) target = $region69
            $region66: #{custom-call.24} parent=61 // loop_body
              %v212 = vld [vmem:[%s210] sm:%s203]
              %213 = vst [vmem:[%s211] sm:%s203] %v212
            $region67: #{custom-call.24} parent=61 // loop_footer
              %s209 = sadd.s32 1, %s205
            $region68: #{custom-call.24} parent=61 // loop_footer_branch
              %204 = sbr.rel target = $region64
            $region69: #{custom-call.24} parent=61 // loop_exit
              _
          $region62: #{custom-call.24} parent=53 // pred_fallthru
            _
        $region54: #{custom-call.24} parent=49 // pred_fallthru
          _
        %228 = vnop
      $region50: #{custom-call.24} parent=5 // pred_fallthru
        _
      %p229 = scmp.le.s32.totalorder 2, %s3
      // Predicated region
      $region81: #{custom-call.24} parent=5 // pred_check
        %p230 = pneg %p229
      $region82: #{custom-call.24} parent=5 // pred_check_branch
        %232 = sbr.rel (%p230) target = $region84
      $region83: #{custom-call.24} parent=5 // pred_region
        %s233 = ssub.s32 %s3, 2
        %s234 = sand.u32 %s9, 1
        %s235 = sand.u32 %s9, 1
        %s236 = smul.addr %s235, 4
        %s237 = scalar_lea.vmem [#allocation3], %s236
      $region84: #{custom-call.24} parent=5 // pred_fallthru
        _
    $region6: #{custom-call.24} parent=1 // loop_footer
      %s7 = sadd.s32 1, %s3
    $region7: #{custom-call.24} parent=1 // loop_footer_branch
      %2 = sbr.rel target = $region3
    $region8: #{custom-call.24} parent=1 // loop_exit
      _

// kernel: custom-call.25
$region0: #{custom-call.25}
  %s0 = inlined_call_operand.hbm [shape: f32[2,4,4], index: 0, kind: input, shape index: {}]
  %s1 = inlined_call_operand.vmem [shape: f32[2,4,4], index: 1, kind: output, shape index: {0}]
  %s2 = inlined_call_operand.hbm [shape: s32[2,4], index: 2, kind: output, shape index: {1}]
  %s3 = inlined_call_operand.vmem [shape: s32[2,4], index: 3, kind: output, shape index: {2}]
  %4 = xla_tuple %s1, %s2, %s3
  $region1: #{custom-call.25} parent=0
    #allocation0 [shape = 'u8[4096]{0}', space=vmem, size = 0x1000, scoped, tag = 'operand span for operand 0']
    #allocation1 [shape = 'u8[4096]{0}', space=vmem, size = 0x1000, scoped, tag = 'packed  for operand 0']
    #allocation2 [shape = 's32[2]{0}', space=sflag, size = 0x8, scoped, tag = 'scoped memory for custom-call.25']
    #allocation3 [shape = 's32[2]{0}', space=sflag, size = 0x8, scoped, tag = 'scoped memory for custom-call.25']
    #allocation4 [shape = 'u8[4096]{0}', space=vmem, size = 0x1000, scoped, tag = 'operand span for operand 1']
    #allocation5 [shape = 'u8[4096]{0}', space=vmem, size = 0x1000, scoped, tag = 'packed  for operand 1']
    #allocation6 [shape = 'u8[4096]{0}', space=vmem, size = 0x1000, scoped, tag = 'operand span for operand 2']
    #allocation7 [shape = 'u8[2048]{0}', space=vmem, size = 0x800, scoped, tag = 'packed  for operand 2']
    #allocation8 [shape = 'u8[4096]{0}', space=vmem, size = 0x1000, scoped, tag = 'operand span for operand 3']
    #allocation9 [shape = 'u8[2048]{0}', space=vmem, size = 0x800, scoped, tag = 'packed  for operand 3']
    %5 = vsyncpa [#allocation2], 0
    %s6 = scalar_lea.sflag [#allocation2], 1
    %7 = vsyncpa %s6, 0
    %8 = vsyncpa [#allocation3], 0
    %s9 = scalar_lea.sflag [#allocation3], 1
    %10 = vsyncpa %s9, 0
    loop: start=0, step=1, limit=4
    $region2: #{custom-call.25} parent=1 // loop_pre_header
      _
    $region3: #{custom-call.25} parent=1 // loop_header
      %s12 = sphi 0, %s16
      %p13 = scmp.ge.s32.totalorder %s12, 4
      %s24 = sphi 0, %s26
      %s27 = sphi 0, %s24
      %s28 = sphi 0, %s27
      %s44 = sphi 0, %s28
      %s52 = sphi 0, %s54
      %s55 = sphi 0, %s52
      %s56 = sphi 0, %s55
      %s72 = sphi 0, %s56
    $region4: #{custom-call.25} parent=1 // loop_header_branch
      %15 = sbr.rel (%p13) target = $region8
    $region5: #{custom-call.25} parent=1 // loop_body
      %s17 = ssub.s32 %s12, 1
      %s18 = ssub.s32 %s12, 2
      %s19 = sadd.s32 %s12, 1
      %s20 = sshrl.u32 %s12, 3
      %s21 = sshrl.u32 %s19, 3
      %s22 = ssub.s32 %s20, %s21
      %p23 = scmp.eq.s32.totalorder %s22, 0
      %s25 = sadd.s32 %s24, 1
      %s26 = scalar_select %p23, %s24, %s25
      %p29 = pneg %p23
      %p30 = scmp.eq.s32.totalorder %s12, 1
      %p31 = por %p29, %p30
      %p32 = scmp.ne.s32.totalorder %s24, %s27
      %p33 = scmp.eq.s32.totalorder %s12, 0
      %p34 = por %p32, %p33
      %p35 = scmp.ne.s32.totalorder %s24, %s27
      %p36 = scmp.eq.s32.totalorder %s17, 1
      %p37 = por %p35, %p36
      %p38 = scmp.ne.s32.totalorder %s27, %s28
      %p39 = scmp.eq.s32.totalorder %s17, 0
      %p40 = por %p38, %p39
      %p41 = scmp.ne.s32.totalorder %s27, %s28
      %p42 = scmp.eq.s32.totalorder %s18, 1
      %p43 = por %p41, %p42
      %p45 = scmp.ne.s32.totalorder %s28, %s44
      %p46 = scmp.eq.s32.totalorder %s18, 0
      %p47 = por %p45, %p46
      %s48 = sshrl.u32 %s12, 3
      %s49 = sshrl.u32 %s19, 3
      %s50 = ssub.s32 %s48, %s49
      %p51 = scmp.eq.s32.totalorder %s50, 0
      %s53 = sadd.s32 %s52, 1
      %s54 = scalar_select %p51, %s52, %s53
      %p57 = pneg %p51
      %p58 = scmp.eq.s32.totalorder %s12, 1
      %p59 = por %p57, %p58
      %p60 = scmp.ne.s32.totalorder %s52, %s55
      %p61 = scmp.eq.s32.totalorder %s12, 0
      %p62 = por %p60, %p61
      %p63 = scmp.ne.s32.totalorder %s52, %s55
      %p64 = scmp.eq.s32.totalorder %s17, 1
      %p65 = por %p63, %p64
      %p66 = scmp.ne.s32.totalorder %s55, %s56
      %p67 = scmp.eq.s32.totalorder %s17, 0
      %p68 = por %p66, %p67
      %p69 = scmp.ne.s32.totalorder %s55, %s56
      %p70 = scmp.eq.s32.totalorder %s18, 1
      %p71 = por %p69, %p70
      %p73 = scmp.ne.s32.totalorder %s56, %s72
      %p74 = scmp.eq.s32.totalorder %s18, 0
      %p75 = por %p73, %p74
      %p76 = scmp.le.s32.totalorder 1, %s12
      %p77 = scmp.lt.s32.totalorder %s12, 3
      %p78 = pnand %p76, %p77
      %p79 = pneg %p78
      // Predicated region
      $region9: #{custom-call.25} parent=5 // pred_check
        _
      $region10: #{custom-call.25} parent=5 // pred_check_branch
        %81 = sbr.rel (%p78) target = $region12
      $region11: #{custom-call.25} parent=5 // pred_region
        %s82 = ssub.s32 %s12, 1
      $region12: #{custom-call.25} parent=5 // pred_fallthru
        _
      %p83 = scmp.lt.s32.totalorder %s12, 2
      // Predicated region
      $region13: #{custom-call.25} parent=5 // pred_check
        %p84 = pneg %p83
      $region14: #{custom-call.25} parent=5 // pred_check_branch
        %86 = sbr.rel (%p84) target = $region16
      $region15: #{custom-call.25} parent=5 // pred_region
        %s87 = sand.u32 %s12, 1
        %s88 = scalar_lea.sflag [#allocation2], %s87
        %s89 = sand.u32 %s12, 1
        %s90 = smul.addr %s89, 4
        %s91 = scalar_lea.vmem [#allocation1], %s90
        %s93 = ssub.s32 64, 64
        %94 = vsyncadd %s88, %s93
        %s95 = smul.addr %s12, 64
        %s96 = scalar_lea.hbm %s0, %s95
        %s98 = sshll.u32 %s91, 4
        %s99 = int_to_ptr.vmem [resolvable:$true] %s98
        %101 = dma.hbm_to_vmem [thread:$0]  %s96, 64, %s99, %s88
      $region16: #{custom-call.25} parent=5 // pred_fallthru
        _
      %p102 = scmp.le.s32.totalorder 1, %s12
      %p103 = scmp.lt.s32.totalorder %s12, 3
      %p104 = pnand %p102, %p103
      %p105 = pneg %p104
      // Predicated region
      $region17: #{custom-call.25} parent=5 // pred_check
        _
      $region18: #{custom-call.25} parent=5 // pred_check_branch
        %107 = sbr.rel (%p104) target = $region20
      $region19: #{custom-call.25} parent=5 // pred_region
        #allocation10 [shape = 's32[4,128]{1,0}', space=vmem, size = 0x1000, scoped, tag = 'scratch for permutations']
        %s108 = ssub.s32 %s12, 1
        %s109 = sand.u32 %s17, 1
        %s110 = scalar_lea.sflag [#allocation2], %s109
        %s111 = sand.u32 %s17, 1
        %s112 = smul.addr %s111, 4
        %s113 = scalar_lea.vmem [#allocation1], %s112
        %114 = dma.done %s110, 64
        %s115 = sand.u32 %s17, 1
        %s116 = scalar_lea.sflag [#allocation2], %s115
        %s117 = sand.u32 %s17, 1
        %s118 = smul.addr %s117, 4
        %s119 = scalar_lea.vmem [#allocation1], %s118
        %s120 = sand.u32 %s17, 1
        %s121 = sand.u32 %s17, 1
        %s122 = smul.addr %s121, 4
        %s123 = scalar_lea.vmem [#allocation5], %s122
        %p124 = pneg %p40
        %p125 = pneg %p37
        %s126 = sand.u32 %s27, 1
        %s127 = scalar_lea.sflag [#allocation3], %s126
        %s128 = sand.u32 %s27, 1
        %s129 = smul.addr %s128, 2
        %s130 = scalar_lea.vmem [#allocation7], %s129
        %p131 = pneg %p68
        %p132 = pneg %p65
        %s133 = sand.u32 %s55, 1
        %s134 = sand.u32 %s55, 1
        %s135 = smul.addr %s134, 2
        %s136 = scalar_lea.vmem [#allocation9], %s135
        %s138 = sshll.u32 1, 4
        %s139 = ssub.s32 %s138, 1
        %v140 = vld [vmem:[%s119] sm:%s139]
        %141 = vst [vmem:[#allocation0] sm:%s139] %v140
        %s142 = sshrl.u32 %s17, 3
        %s143 = sshrl.u32 %s17, 3
        %v144 = vld [vmem:[#allocation0] sm:$0xff]
        %145 = vst [vmem:[#allocation4] sm:$0xff] %v144
        %s146 = sand.u32 %s17, 7
        %s147 = scalar_lea.vmem [#allocation6], %s146
        %s148 = sand.u32 %s17, 7
        %s149 = scalar_lea.vmem [#allocation8], %s148
        %150 = vst [vmem:[%s147] sm:$0x1] 0
        %v151 = vlaneseq
        %v152 = vshrl.u32 %v151, 7
        %v153 = vmov %v152
        %155 = vst [vmem:[#allocation10] sm:$0xff] %v153
        loop: start=0, step=1, limit=4
        $region22: #{custom-call.25} parent=19 // loop_pre_header
          _
        $region23: #{custom-call.25} parent=19 // loop_header
          %s157 = sphi 0, %s161
          %p158 = scmp.ge.s32.totalorder %s157, 4
        $region24: #{custom-call.25} parent=19 // loop_header_branch
          %160 = sbr.rel (%p158) target = $region28
        $region25: #{custom-call.25} parent=19 // loop_body
          %v162 = vstv %s157
          %v163 = vlaneseq
          %v164 = vshrl.u32 %v163, 7
          %v165 = vmov %v164
          %v166 = vld [vmem:[#allocation4] sm:$0xff]
          %v167 = vand.u32 2147483647, %v166
          %v169 = vstv %s157
          %vm170 = vcmp.ge.s32.totalorder %v165, %v169
          %vm171 = vcmp.lt.s32.totalorder %v165, 4
          %vm172 = vmand %vm170, %vm171
          %vm173 = vcmp.lt.f32.partialorder -inf, %v167
          %vm174 = vmand %vm172, %vm173
          %v175 = vsel %vm174, %v165, %v162
          %v176 = vsel %vm174, %v167, -inf
          %v177 = vrot.slane %v176, 1
          %v178 = vrot.slane %v175, 1
          %vm179 = vcmp.ge.f32.partialorder %v177, %v176
          %v180 = vsel %vm179, %v177, %v176
          %v181 = vsel %vm179, %v178, %v175
          %v182 = vrot.slane %v177, 1
          %v183 = vrot.slane %v178, 1
          %vm184 = vcmp.ge.f32.partialorder %v182, %v180
          %v185 = vsel %vm184, %v182, %v180
          %v186 = vsel %vm184, %v183, %v181
          %v187 = vrot.slane %v182, 1
          %v188 = vrot.slane %v183, 1
          %vm189 = vcmp.ge.f32.partialorder %v187, %v185
          %v190 = vsel %vm189, %v187, %v185
          %v191 = vsel %vm189, %v188, %v186
          %v192 = vrot.slane %v187, 1
          %v193 = vrot.slane %v188, 1
          %vm194 = vcmp.ge.f32.partialorder %v192, %v190
          %v195 = vsel %vm194, %v192, %v190
          %v196 = vsel %vm194, %v193, %v191
          %v197 = vrot.slane %v192, 1
          %v198 = vrot.slane %v193, 1
          %vm199 = vcmp.ge.f32.partialorder %v197, %v195
          %v200 = vsel %vm199, %v197, %v195
          %v201 = vsel %vm199, %v198, %v196
          %v202 = vrot.slane %v197, 1
          %v203 = vrot.slane %v198, 1
          %vm204 = vcmp.ge.f32.partialorder %v202, %v200
          %v205 = vsel %vm204, %v202, %v200
          %v206 = vsel %vm204, %v203, %v201
          %v207 = vrot.slane %v202, 1
          %v208 = vrot.slane %v203, 1
          %vm209 = vcmp.ge.f32.partialorder %v207, %v205
          %v210 = vsel %vm209, %v207, %v205
          %v211 = vsel %vm209, %v208, %v206
          %s212 = ssub.s32 128, %s157
          %213 = vrot.lane.b32.xlu0 %v211, %s212
          %v214 = vpop.permute.xlu0 %213
          %s215 = vtos %v214
          %v216 = vstv %s157
          %v217 = vlaneseq
          %v218 = vand.u32 %v217, 127
          %vm219 = vcmp.eq.s32.totalorder %v218, %v216
          %v220 = vstv %s215
          %v221 = vld [vmem:[%s147] ss:$0 sm:$0xff]
          %v222 = vsel %vm219, %v220, %v221
          %223 = vst [vmem:[%s147] sm:$0x1] %v222
          %s224 = scalar_lea.vmem [#allocation4], %s157
          %s225 = scalar_lea.vmem [#allocation4], %s215
          %v226 = vld [vmem:[%s224] ss:$0 sm:$0xff]
          %v227 = vld [vmem:[%s225] ss:$0 sm:$0xff]
          %228 = vst [vmem:[%s225] sm:$0x1] %v226
          %229 = vst [vmem:[%s224] sm:$0x1] %v227
          %s230 = scalar_lea.vmem [#allocation10], %s157
          %s231 = scalar_lea.vmem [#allocation10], %s215
          %v232 = vld [vmem:[%s230] ss:$0 sm:$0xff]
          %v233 = vld [vmem:[%s231] ss:$0 sm:$0xff]
          %234 = vst [vmem:[%s231] sm:$0x1] %v232
          %235 = vst [vmem:[%s230] sm:$0x1] %v233
          %vm236 = vcmp.ne.f32.partialorder %v227, 0.0
          %vm237 = vmand %vm219, %vm236
          %v238 = vsel %vm237, %v227, 1.0
          %v239 = vlaneseq
          %v240 = vand.u32 %v239, 127
          %v241 = vstv %s157
          %vm242 = vcmp.gt.s32.totalorder %v240, %v241
          %v243 = vsel %vm242, %v227, 0.0
          %v244 = vlaneseq
          %v245 = vshrl.u32 %v244, 7
          %v246 = vmov %v245
          %v247 = vld [vmem:[#allocation4] sm:$0xff]
          %v249 = vstv %s157
          %vm250 = vcmp.gt.s32.totalorder %v246, %v249
          %v251 = vsel %vm250, %v238, 1.0
          %v252 = vrcp.pop %v251
          %v253 = vmul.f32 %v247, %v252
          %vm254 = vmand %vm250, %vm219
          %v255 = vsel %vm254, %v253, 0.0
          %256 = vadd.xlane.f32.xlu0 %v255
          %v257 = vpop.xlane.xlu0 %256
          %v258 = vmul.f32 %v257, %v243
          %v259 = vsub.f32 %v253, %v258
          %260 = vst [vmem:[#allocation4] sm:$0xff] %v259
        $region26: #{custom-call.25} parent=19 // loop_footer
          %s161 = sadd.s32 1, %s157
        $region27: #{custom-call.25} parent=19 // loop_footer_branch
          %156 = sbr.rel target = $region23
        $region28: #{custom-call.25} parent=19 // loop_exit
          _
        %v261 = vld [vmem:[#allocation10] sm:$0xff]
        %s262 = scalar_lea.vmem [#allocation10], 8
        %s263 = scalar_lea.vmem [#allocation10], 16
        %s264 = scalar_lea.vmem [#allocation10], 24
        %s265 = scalar_lea.vmem [#allocation10], 32
        %s266 = scalar_lea.vmem [#allocation10], 40
        %s267 = scalar_lea.vmem [#allocation10], 48
        %s268 = scalar_lea.vmem [#allocation10], 56
        %s269 = scalar_lea.vmem [#allocation10], 64
        %s270 = scalar_lea.vmem [#allocation10], 72
        %s271 = scalar_lea.vmem [#allocation10], 80
        %s272 = scalar_lea.vmem [#allocation10], 88
        %s273 = scalar_lea.vmem [#allocation10], 96
        %s274 = scalar_lea.vmem [#allocation10], 104
        %s275 = scalar_lea.vmem [#allocation10], 112
        %s276 = scalar_lea.vmem [#allocation10], 120
        %277 = vxpose.xlu0.b32.start [1/16] %v261, 128
        %278 = vxpose.xlu0.b32.cont [2/16] 0, 128
        %279 = vxpose.xlu0.b32.cont [3/16] 0, 128
        %280 = vxpose.xlu0.b32.cont [4/16] 0, 128
        %281 = vxpose.xlu0.b32.cont [5/16] 0, 128
        %282 = vxpose.xlu0.b32.cont [6/16] 0, 128
        %283 = vxpose.xlu0.b32.cont [7/16] 0, 128
        %284 = vxpose.xlu0.b32.cont [8/16] 0, 128
        %285 = vxpose.xlu0.b32.cont [9/16] 0, 128
        %286 = vxpose.xlu0.b32.cont [10/16] 0, 128
        %287 = vxpose.xlu0.b32.cont [11/16] 0, 128
        %288 = vxpose.xlu0.b32.cont [12/16] 0, 128
        %289 = vxpose.xlu0.b32.cont [13/16] 0, 128
        %290 = vxpose.xlu0.b32.cont [14/16] 0, 128
        %291 = vxpose.xlu0.b32.cont [15/16] 0, 128
        %292 = vxpose.xlu0.b32.end [16/16] 0, 128
        %v293 = vpop.trf.xlu0
        %v294 = vpop.trf.xlu0
        %v295 = vpop.trf.xlu0
        %v296 = vpop.trf.xlu0
        %v297 = vpop.trf.xlu0
        %v298 = vpop.trf.xlu0
        %v299 = vpop.trf.xlu0
        %v300 = vpop.trf.xlu0
        %v301 = vpop.trf.xlu0
        %v302 = vpop.trf.xlu0
        %v303 = vpop.trf.xlu0
        %v304 = vpop.trf.xlu0
        %v305 = vpop.trf.xlu0
        %v306 = vpop.trf.xlu0
        %v307 = vpop.trf.xlu0
        %v308 = vpop.trf.xlu0
        %309 = vst [vmem:[%s149] sm:$0x1] %v293
        %s311 = sshll.u32 1, 4
        %s312 = ssub.s32 %s311, 1
        %v314 = vld [vmem:[#allocation4] sm:%s312]
        %s315 = sshll.u32 1, 4
        %s316 = ssub.s32 %s315, 1
        %317 = vst [vmem:[%s123] sm:%s316] %v314
        %s319 = sshll.u32 1, 2
        %s320 = ssub.s32 %s319, 1
        %v322 = vld [vmem:[#allocation6] sm:%s320]
        %s323 = sshll.u32 1, 2
        %s324 = ssub.s32 %s323, 1
        %325 = vst [vmem:[%s130] sm:%s324] %v322
        %s327 = sshll.u32 1, 2
        %s328 = ssub.s32 %s327, 1
        %v330 = vld [vmem:[#allocation8] sm:%s328]
        %s331 = sshll.u32 1, 2
        %s332 = ssub.s32 %s331, 1
        %333 = vst [vmem:[%s136] sm:%s332] %v330
        %s334 = sand.u32 %s17, 1
        %s335 = sand.u32 %s17, 1
        %s336 = smul.addr %s335, 4
        %s337 = scalar_lea.vmem [#allocation5], %s336
        %s338 = sand.u32 %s27, 1
        %s339 = scalar_lea.sflag [#allocation3], %s338
        %s340 = sand.u32 %s27, 1
        %s341 = smul.addr %s340, 2
        %s342 = scalar_lea.vmem [#allocation7], %s341
        %s343 = sand.u32 %s55, 1
        %s344 = sand.u32 %s55, 1
        %s345 = smul.addr %s344, 2
        %s346 = scalar_lea.vmem [#allocation9], %s345
        %s347 = smul.addr %s17, 4
        %s348 = scalar_lea.vmem %s1, %s347
        // Predicated region
        $region29: #{custom-call.25} parent=19 // pred_check
          _
        $region30: #{custom-call.25} parent=19 // pred_check_branch
          %350 = sbr.rel (0) target = $region32
        $region31: #{custom-call.25} parent=19 // pred_region
          // Predicated region
          $region33: #{custom-call.25} parent=31 // pred_check
            _
          $region34: #{custom-call.25} parent=31 // pred_check_branch
            %352 = sbr.rel target = $region36
          $region35: #{custom-call.25} parent=31 // pred_region
            // Predicated region
            $region48: #{custom-call.25} parent=35 // pred_check
              _
            $region49: #{custom-call.25} parent=35 // pred_check_branch
              %368 = sbr.rel (0) target = $region51
            $region50: #{custom-call.25} parent=35 // pred_region
              %s370 = ssub.s32 16, 1
              loop: start=0, step=1, limit=1
              $region52: #{custom-call.25} parent=50 // loop_pre_header
                _
              $region53: #{custom-call.25} parent=50 // loop_header
                %s372 = sphi 0, %s376
                %p373 = scmp.ge.s32.totalorder %s372, 1
                %s377 = sphi %s337, %s337
                %s378 = sphi %s348, %s348
              $region54: #{custom-call.25} parent=50 // loop_header_branch
                %375 = sbr.rel (%p373) target = $region58
              $region55: #{custom-call.25} parent=50 // loop_body
                %v379 = vld [vmem:[%s377] sm:%s370]
                %380 = vst [vmem:[%s378] sm:%s370] %v379
              $region56: #{custom-call.25} parent=50 // loop_footer
                %s376 = sadd.s32 1, %s372
              $region57: #{custom-call.25} parent=50 // loop_footer_branch
                %371 = sbr.rel target = $region53
              $region58: #{custom-call.25} parent=50 // loop_exit
                _
            $region51: #{custom-call.25} parent=35 // pred_fallthru
              _
          $region36: #{custom-call.25} parent=31 // pred_fallthru
            _
          // Predicated region
          $region37: #{custom-call.25} parent=31 // pred_check
            _
          $region38: #{custom-call.25} parent=31 // pred_check_branch
            %354 = sbr.rel (0) target = $region40
          $region39: #{custom-call.25} parent=31 // pred_region
            %s356 = ssub.s32 16, 1
            loop: start=0, step=1, limit=1
            $region41: #{custom-call.25} parent=39 // loop_pre_header
              _
            $region42: #{custom-call.25} parent=39 // loop_header
              %s358 = sphi 0, %s362
              %p359 = scmp.ge.s32.totalorder %s358, 1
              %s363 = sphi %s337, %s337
              %s364 = sphi %s348, %s348
            $region43: #{custom-call.25} parent=39 // loop_header_branch
              %361 = sbr.rel (%p359) target = $region47
            $region44: #{custom-call.25} parent=39 // loop_body
              %v365 = vld [vmem:[%s363] sm:%s356]
              %366 = vst [vmem:[%s364] sm:%s356] %v365
            $region45: #{custom-call.25} parent=39 // loop_footer
              %s362 = sadd.s32 1, %s358
            $region46: #{custom-call.25} parent=39 // loop_footer_branch
              %357 = sbr.rel target = $region42
            $region47: #{custom-call.25} parent=39 // loop_exit
              _
          $region40: #{custom-call.25} parent=31 // pred_fallthru
            _
        $region32: #{custom-call.25} parent=19 // pred_fallthru
          _
        %381 = vnop
        // Predicated region
        $region59: #{custom-call.25} parent=19 // pred_check
          %p382 = pneg %p37
        $region60: #{custom-call.25} parent=19 // pred_check_branch
          %384 = sbr.rel (%p382) target = $region62
        $region61: #{custom-call.25} parent=19 // pred_region
          %s385 = sshrl.u32 %s17, 3
          %s387 = ssub.s32 32, 32
          %388 = vsyncadd %s339, %s387
          %s389 = smul.addr %s385, 32
          %s390 = scalar_lea.hbm %s2, %s389
          %s392 = sshll.u32 %s342, 4
          %s393 = int_to_ptr.vmem [resolvable:$true] %s392
          %395 = dma.vmem_to_hbm [thread:$0]  %s393, 32, %s390, %s339
        $region62: #{custom-call.25} parent=19 // pred_fallthru
          _
        // Predicated region
        $region63: #{custom-call.25} parent=19 // pred_check
          %p396 = pneg %p65
        $region64: #{custom-call.25} parent=19 // pred_check_branch
          %398 = sbr.rel (%p396) target = $region66
        $region65: #{custom-call.25} parent=19 // pred_region
          %s399 = sshrl.u32 %s17, 3
          %s400 = smul.addr %s399, 2
          %s401 = scalar_lea.vmem %s3, %s400
          // Predicated region
          $region67: #{custom-call.25} parent=65 // pred_check
            _
          $region68: #{custom-call.25} parent=65 // pred_check_branch
            %403 = sbr.rel (0) target = $region70
          $region69: #{custom-call.25} parent=65 // pred_region
            // Predicated region
            $region71: #{custom-call.25} parent=69 // pred_check
              _
            $region72: #{custom-call.25} parent=69 // pred_check_branch
              %405 = sbr.rel target = $region74
            $region73: #{custom-call.25} parent=69 // pred_region
              // Predicated region
              $region86: #{custom-call.25} parent=73 // pred_check
                _
              $region87: #{custom-call.25} parent=73 // pred_check_branch
                %421 = sbr.rel (0) target = $region89
              $region88: #{custom-call.25} parent=73 // pred_region
                %s423 = ssub.s32 4, 1
                loop: start=0, step=1, limit=1
                $region90: #{custom-call.25} parent=88 // loop_pre_header
                  _
                $region91: #{custom-call.25} parent=88 // loop_header
                  %s425 = sphi 0, %s429
                  %p426 = scmp.ge.s32.totalorder %s425, 1
                  %s430 = sphi %s346, %s346
                  %s431 = sphi %s401, %s401
                $region92: #{custom-call.25} parent=88 // loop_header_branch
                  %428 = sbr.rel (%p426) target = $region96
                $region93: #{custom-call.25} parent=88 // loop_body
                  %v432 = vld [vmem:[%s430] sm:%s423]
                  %433 = vst [vmem:[%s431] sm:%s423] %v432
                $region94: #{custom-call.25} parent=88 // loop_footer
                  %s429 = sadd.s32 1, %s425
                $region95: #{custom-call.25} parent=88 // loop_footer_branch
                  %424 = sbr.rel target = $region91
                $region96: #{custom-call.25} parent=88 // loop_exit
                  _
              $region89: #{custom-call.25} parent=73 // pred_fallthru
                _
            $region74: #{custom-call.25} parent=69 // pred_fallthru
              _
            // Predicated region
            $region75: #{custom-call.25} parent=69 // pred_check
              _
            $region76: #{custom-call.25} parent=69 // pred_check_branch
              %407 = sbr.rel (0) target = $region78
            $region77: #{custom-call.25} parent=69 // pred_region
              %s409 = ssub.s32 4, 1
              loop: start=0, step=1, limit=1
              $region79: #{custom-call.25} parent=77 // loop_pre_header
                _
              $region80: #{custom-call.25} parent=77 // loop_header
                %s411 = sphi 0, %s415
                %p412 = scmp.ge.s32.totalorder %s411, 1
                %s416 = sphi %s346, %s346
                %s417 = sphi %s401, %s401
              $region81: #{custom-call.25} parent=77 // loop_header_branch
                %414 = sbr.rel (%p412) target = $region85
              $region82: #{custom-call.25} parent=77 // loop_body
                %v418 = vld [vmem:[%s416] sm:%s409]
                %419 = vst [vmem:[%s417] sm:%s409] %v418
              $region83: #{custom-call.25} parent=77 // loop_footer
                %s415 = sadd.s32 1, %s411
              $region84: #{custom-call.25} parent=77 // loop_footer_branch
                %410 = sbr.rel target = $region80
              $region85: #{custom-call.25} parent=77 // loop_exit
                _
            $region78: #{custom-call.25} parent=69 // pred_fallthru
              _
          $region70: #{custom-call.25} parent=65 // pred_fallthru
            _
          %434 = vnop
        $region66: #{custom-call.25} parent=19 // pred_fallthru
          _
      $region20: #{custom-call.25} parent=5 // pred_fallthru
        _
      %p435 = scmp.le.s32.totalorder 2, %s12
      // Predicated region
      $region97: #{custom-call.25} parent=5 // pred_check
        %p436 = pneg %p435
      $region98: #{custom-call.25} parent=5 // pred_check_branch
        %438 = sbr.rel (%p436) target = $region100
      $region99: #{custom-call.25} parent=5 // pred_region
        %s439 = ssub.s32 %s12, 2
        %s440 = sand.u32 %s18, 1
        %s441 = sand.u32 %s18, 1
        %s442 = smul.addr %s441, 4
        %s443 = scalar_lea.vmem [#allocation5], %s442
        // Predicated region
        $region101: #{custom-call.25} parent=99 // pred_check
          %p444 = pneg %p43
        $region102: #{custom-call.25} parent=99 // pred_check_branch
          %446 = sbr.rel (%p444) target = $region104
        $region103: #{custom-call.25} parent=99 // pred_region
          %s447 = sand.u32 %s28, 1
          %s448 = scalar_lea.sflag [#allocation3], %s447
          %s449 = sand.u32 %s28, 1
          %s450 = smul.addr %s449, 2
          %s451 = scalar_lea.vmem [#allocation7], %s450
          %452 = dma.done %s448, 32
        $region104: #{custom-call.25} parent=99 // pred_fallthru
          _
        // Predicated region
        $region105: #{custom-call.25} parent=99 // pred_check
          %p453 = pneg %p71
        $region106: #{custom-call.25} parent=99 // pred_check_branch
          %455 = sbr.rel (%p453) target = $region108
        $region107: #{custom-call.25} parent=99 // pred_region
          %s456 = sand.u32 %s56, 1
          %s457 = sand.u32 %s56, 1
          %s458 = smul.addr %s457, 2
          %s459 = scalar_lea.vmem [#allocation9], %s458
        $region108: #{custom-call.25} parent=99 // pred_fallthru
          _
      $region100: #{custom-call.25} parent=5 // pred_fallthru
        _
    $region6: #{custom-call.25} parent=1 // loop_footer
      %s16 = sadd.s32 1, %s12
    $region7: #{custom-call.25} parent=1 // loop_footer_branch
      %11 = sbr.rel target = $region3
    $region8: #{custom-call.25} parent=1 // loop_exit
      _
    %460 = vsyncpa [#allocation2], 1
    %s461 = scalar_lea.sflag [#allocation2], 1
    %462 = vsyncpa %s461, 1
    %463 = vsyncpa [#allocation3], 1
    %s464 = scalar_lea.sflag [#allocation3], 1
    %465 = vsyncpa %s464, 1

// kernel: custom-call.27
$region0: #{custom-call.27}
  %s0 = inlined_call_operand.vmem [shape: f32[2,1,4,4], index: 0, kind: input, shape index: {}]
  %s1 = inlined_call_operand.vmem [shape: f32[2,1,4,4], index: 1, kind: output, shape index: {}]
  $region1: #{custom-call.27} parent=0
    #allocation0 [shape = 'u8[4096]{0}', space=vmem, size = 0x1000, scoped, tag = 'operand span for operand 0']
    #allocation1 [shape = 'u8[4096]{0}', space=vmem, size = 0x1000, scoped, tag = 'packed  for operand 0']
    #allocation2 [shape = 'u8[4096]{0}', space=vmem, size = 0x1000, scoped, tag = 'operand span for operand 1']
    #allocation3 [shape = 'u8[4096]{0}', space=vmem, size = 0x1000, scoped, tag = 'packed  for operand 1']
    loop: start=0, step=1, limit=4
    $region2: #{custom-call.27} parent=1 // loop_pre_header
      _
    $region3: #{custom-call.27} parent=1 // loop_header
      %s3 = sphi 0, %s7
      %p4 = scmp.ge.s32.totalorder %s3, 4
      %s10 = sphi 0, %s36
      %s11 = sphi 0, %s32
      %s12 = sphi 0, %s28
      %s13 = sphi 0, %s24
      %s14 = sphi 0, %s10
      %s15 = sphi 0, %s11
      %s16 = sphi 0, %s12
      %s17 = sphi 0, %s13
      %s18 = sphi 0, %s14
      %s19 = sphi 0, %s15
      %s20 = sphi 0, %s16
      %s21 = sphi 0, %s17
    $region4: #{custom-call.27} parent=1 // loop_header_branch
      %6 = sbr.rel (%p4) target = $region8
    $region5: #{custom-call.27} parent=1 // loop_body
      %s8 = ssub.s32 %s3, 1
      %s9 = ssub.s32 %s3, 2
      %s22 = sadd.s32 1, %s13
      %p23 = scmp.ge.s32.totalorder %s22, 1
      %s24 = scalar_select %p23, 0, %s22
      %s25 = sadd.s32 1, %s12
      %s26 = scalar_select %p23, %s25, %s12
      %p27 = scmp.ge.s32.totalorder %s26, 1
      %s28 = scalar_select %p27, 0, %s26
      %s29 = sadd.s32 1, %s11
      %s30 = scalar_select %p27, %s29, %s11
      %p31 = scmp.ge.s32.totalorder %s30, 1
      %s32 = scalar_select %p31, 0, %s30
      %s33 = sadd.s32 1, %s10
      %s34 = scalar_select %p31, %s33, %s10
      %p35 = scmp.ge.s32.totalorder %s34, 2
      %s36 = scalar_select %p35, 0, %s34
      %p37 = scmp.le.s32.totalorder 1, %s3
      %p38 = scmp.lt.s32.totalorder %s3, 3
      %p39 = pnand %p37, %p38
      %p40 = pneg %p39
      // Predicated region
      $region9: #{custom-call.27} parent=5 // pred_check
        _
      $region10: #{custom-call.27} parent=5 // pred_check_branch
        %42 = sbr.rel (%p39) target = $region12
      $region11: #{custom-call.27} parent=5 // pred_region
        %s43 = ssub.s32 %s3, 1
      $region12: #{custom-call.27} parent=5 // pred_fallthru
        _
      %p44 = scmp.lt.s32.totalorder %s3, 2
      // Predicated region
      $region13: #{custom-call.27} parent=5 // pred_check
        %p45 = pneg %p44
      $region14: #{custom-call.27} parent=5 // pred_check_branch
        %47 = sbr.rel (%p45) target = $region16
      $region15: #{custom-call.27} parent=5 // pred_region
        %s48 = sand.u32 %s3, 1
        %s49 = sand.u32 %s3, 1
        %s50 = smul.addr %s49, 4
        %s51 = scalar_lea.vmem [#allocation1], %s50
        %s52 = sadd.s32 %s13, %s12
        %s53 = sadd.s32 %s52, %s11
        %s54 = sadd.s32 %s53, %s10
        %s55 = smul.addr %s54, 4
        %s56 = scalar_lea.vmem %s0, %s55
        // Predicated region
        $region17: #{custom-call.27} parent=15 // pred_check
          _
        $region18: #{custom-call.27} parent=15 // pred_check_branch
          %58 = sbr.rel (0) target = $region20
        $region19: #{custom-call.27} parent=15 // pred_region
          // Predicated region
          $region21: #{custom-call.27} parent=19 // pred_check
            _
          $region22: #{custom-call.27} parent=19 // pred_check_branch
            %60 = sbr.rel target = $region24
          $region23: #{custom-call.27} parent=19 // pred_region
            // Predicated region
            $region36: #{custom-call.27} parent=23 // pred_check
              _
            $region37: #{custom-call.27} parent=23 // pred_check_branch
              %76 = sbr.rel (0) target = $region39
            $region38: #{custom-call.27} parent=23 // pred_region
              %s78 = ssub.s32 16, 1
              loop: start=0, step=1, limit=1
              $region40: #{custom-call.27} parent=38 // loop_pre_header
                _
              $region41: #{custom-call.27} parent=38 // loop_header
                %s80 = sphi 0, %s84
                %p81 = scmp.ge.s32.totalorder %s80, 1
                %s85 = sphi %s56, %s56
                %s86 = sphi %s51, %s51
              $region42: #{custom-call.27} parent=38 // loop_header_branch
                %83 = sbr.rel (%p81) target = $region46
              $region43: #{custom-call.27} parent=38 // loop_body
                %v87 = vld [vmem:[%s85] sm:%s78]
                %88 = vst [vmem:[%s86] sm:%s78] %v87
              $region44: #{custom-call.27} parent=38 // loop_footer
                %s84 = sadd.s32 1, %s80
              $region45: #{custom-call.27} parent=38 // loop_footer_branch
                %79 = sbr.rel target = $region41
              $region46: #{custom-call.27} parent=38 // loop_exit
                _
            $region39: #{custom-call.27} parent=23 // pred_fallthru
              _
          $region24: #{custom-call.27} parent=19 // pred_fallthru
            _
          // Predicated region
          $region25: #{custom-call.27} parent=19 // pred_check
            _
          $region26: #{custom-call.27} parent=19 // pred_check_branch
            %62 = sbr.rel (0) target = $region28
          $region27: #{custom-call.27} parent=19 // pred_region
            %s64 = ssub.s32 16, 1
            loop: start=0, step=1, limit=1
            $region29: #{custom-call.27} parent=27 // loop_pre_header
              _
            $region30: #{custom-call.27} parent=27 // loop_header
              %s66 = sphi 0, %s70
              %p67 = scmp.ge.s32.totalorder %s66, 1
              %s71 = sphi %s56, %s56
              %s72 = sphi %s51, %s51
            $region31: #{custom-call.27} parent=27 // loop_header_branch
              %69 = sbr.rel (%p67) target = $region35
            $region32: #{custom-call.27} parent=27 // loop_body
              %v73 = vld [vmem:[%s71] sm:%s64]
              %74 = vst [vmem:[%s72] sm:%s64] %v73
            $region33: #{custom-call.27} parent=27 // loop_footer
              %s70 = sadd.s32 1, %s66
            $region34: #{custom-call.27} parent=27 // loop_footer_branch
              %65 = sbr.rel target = $region30
            $region35: #{custom-call.27} parent=27 // loop_exit
              _
          $region28: #{custom-call.27} parent=19 // pred_fallthru
            _
        $region20: #{custom-call.27} parent=15 // pred_fallthru
          _
        %89 = vnop
      $region16: #{custom-call.27} parent=5 // pred_fallthru
        _
      %p90 = scmp.le.s32.totalorder 1, %s3
      %p91 = scmp.lt.s32.totalorder %s3, 3
      %p92 = pnand %p90, %p91
      %p93 = pneg %p92
      // Predicated region
      $region47: #{custom-call.27} parent=5 // pred_check
        _
      $region48: #{custom-call.27} parent=5 // pred_check_branch
        %95 = sbr.rel (%p92) target = $region50
      $region49: #{custom-call.27} parent=5 // pred_region
        #allocation4 [shape = 'f32[4,4]{1,0}', space=vmem, size = 0x1000, scoped, tag = 'rescaled input a']
        %s96 = ssub.s32 %s3, 1
        %s97 = sand.u32 %s8, 1
        %s98 = sand.u32 %s8, 1
        %s99 = smul.addr %s98, 4
        %s100 = scalar_lea.vmem [#allocation1], %s99
        %s101 = sand.u32 %s8, 1
        %s102 = sand.u32 %s8, 1
        %s103 = smul.addr %s102, 4
        %s104 = scalar_lea.vmem [#allocation1], %s103
        %s105 = sand.u32 %s8, 1
        %s106 = sand.u32 %s8, 1
        %s107 = smul.addr %s106, 4
        %s108 = scalar_lea.vmem [#allocation3], %s107
        %s110 = sshll.u32 1, 4
        %s111 = ssub.s32 %s110, 1
        %v112 = vld [vmem:[%s104] sm:%s111]
        %113 = vst [vmem:[#allocation0] sm:%s111] %v112
        %v114 = vlaneseq
        %v115 = vand.u32 %v114, 127
        %vm116 = vcmp.lt.s32.totalorder %v115, 4
        %v117 = vlaneseq
        %v118 = vshrl.u32 %v117, 7
        %vm120 = vcmp.eq.s32.totalorder %v118, %v115
        %v121 = vld [vmem:[#allocation0] sm:$0xff]
        %v122 = vsel %vm120, %v121, 0.0
        %123 = vadd.xlane.f32.xlu0 %v122
        %v124 = vpop.xlane.xlu0 %123
        %vm125 = vcmp.ge.s32.totalorder %v118, %v115
        %vm126 = vmand %vm125, %vm116
        %v127 = vsel %vm126, %v121, 0.0
        %v128 = vrcp.pop %v124
        %v129 = vmul.f32 %v127, %v128
        %130 = vst [vmem:[#allocation4] sm:$0xff] %v129
        %v131 = vlaneseq
        %v132 = vand.u32 %v131, 127
        %v133 = vlaneseq
        %v134 = vshrl.u32 %v133, 7
        %vm136 = vcmp.eq.s32.totalorder %v132, %v134
        %v137 = vlaneseq
        %v138 = vand.u32 %v137, 127
        %vm139 = vcmp.eq.s32.totalorder %v138, 0
        %v140 = vsel %vm139, 1.0, -1.0
        %v141 = vsel %vm136, %v140, 0.0
        %s142 = scalar_lea.vmem [#allocation4], 1
        %v143 = vld [vmem:[%s142] ss:$0 sm:$0xff]
        %v144 = vxor.u32 %v143, 2147483648
        %v145 = vlaneseq
        %v146 = vand.u32 %v145, 127
        %vm147 = vcmp.eq.s32.totalorder %v146, 1
        %v148 = vmul.f32 %v144, %v141
        %149 = vadd.xlane.f32.xlu0 %v148
        %v150 = vpop.xlane.xlu0 %149
        %v151 = vsel %vm147, %v150, %v141
        %s152 = scalar_lea.vmem [#allocation4], 2
        %v153 = vld [vmem:[%s152] ss:$0 sm:$0xff]
        %v154 = vxor.u32 %v153, 2147483648
        %v155 = vlaneseq
        %v156 = vand.u32 %v155, 127
        %vm157 = vcmp.eq.s32.totalorder %v156, 2
        %v158 = vmul.f32 %v154, %v151
        %159 = vadd.xlane.f32.xlu0 %v158
        %v160 = vpop.xlane.xlu0 %159
        %v161 = vsel %vm157, %v160, %v151
        %s162 = scalar_lea.vmem [#allocation4], 3
        %v163 = vld [vmem:[%s162] ss:$0 sm:$0xff]
        %v164 = vxor.u32 %v163, 2147483648
        %v165 = vlaneseq
        %v166 = vand.u32 %v165, 127
        %vm167 = vcmp.eq.s32.totalorder %v166, 3
        %v168 = vmul.f32 %v164, %v161
        %169 = vadd.xlane.f32.xlu0 %v168
        %v170 = vpop.xlane.xlu0 %169
        %v171 = vsel %vm167, %v170, %v161
        %v172 = vrcp.pop %v124
        %v173 = vmul.f32 %v171, %v172
        %vm174 = vweird.f32 %v124
        %v175 = vsel %vm174, %v171, %v173
        %176 = vst [vmem:[#allocation2] sm:$0xff] %v175
        %s178 = sshll.u32 1, 4
        %s179 = ssub.s32 %s178, 1
        %v181 = vld [vmem:[#allocation2] sm:%s179]
        %s182 = sshll.u32 1, 4
        %s183 = ssub.s32 %s182, 1
        %184 = vst [vmem:[%s108] sm:%s183] %v181
        %s185 = sand.u32 %s8, 1
        %s186 = sand.u32 %s8, 1
        %s187 = smul.addr %s186, 4
        %s188 = scalar_lea.vmem [#allocation3], %s187
        %s189 = sadd.s32 %s17, %s16
        %s190 = sadd.s32 %s189, %s15
        %s191 = sadd.s32 %s190, %s14
        %s192 = smul.addr %s191, 4
        %s193 = scalar_lea.vmem %s1, %s192
        // Predicated region
        $region51: #{custom-call.27} parent=49 // pred_check
          _
        $region52: #{custom-call.27} parent=49 // pred_check_branch
          %195 = sbr.rel (0) target = $region54
        $region53: #{custom-call.27} parent=49 // pred_region
          // Predicated region
          $region55: #{custom-call.27} parent=53 // pred_check
            _
          $region56: #{custom-call.27} parent=53 // pred_check_branch
            %197 = sbr.rel target = $region58
          $region57: #{custom-call.27} parent=53 // pred_region
            // Predicated region
            $region70: #{custom-call.27} parent=57 // pred_check
              _
            $region71: #{custom-call.27} parent=57 // pred_check_branch
              %213 = sbr.rel (0) target = $region73
            $region72: #{custom-call.27} parent=57 // pred_region
              %s215 = ssub.s32 16, 1
              loop: start=0, step=1, limit=1
              $region74: #{custom-call.27} parent=72 // loop_pre_header
                _
              $region75: #{custom-call.27} parent=72 // loop_header
                %s217 = sphi 0, %s221
                %p218 = scmp.ge.s32.totalorder %s217, 1
                %s222 = sphi %s188, %s188
                %s223 = sphi %s193, %s193
              $region76: #{custom-call.27} parent=72 // loop_header_branch
                %220 = sbr.rel (%p218) target = $region80
              $region77: #{custom-call.27} parent=72 // loop_body
                %v224 = vld [vmem:[%s222] sm:%s215]
                %225 = vst [vmem:[%s223] sm:%s215] %v224
              $region78: #{custom-call.27} parent=72 // loop_footer
                %s221 = sadd.s32 1, %s217
              $region79: #{custom-call.27} parent=72 // loop_footer_branch
                %216 = sbr.rel target = $region75
              $region80: #{custom-call.27} parent=72 // loop_exit
                _
            $region73: #{custom-call.27} parent=57 // pred_fallthru
              _
          $region58: #{custom-call.27} parent=53 // pred_fallthru
            _
          // Predicated region
          $region59: #{custom-call.27} parent=53 // pred_check
            _
          $region60: #{custom-call.27} parent=53 // pred_check_branch
            %199 = sbr.rel (0) target = $region62
          $region61: #{custom-call.27} parent=53 // pred_region
            %s201 = ssub.s32 16, 1
            loop: start=0, step=1, limit=1
            $region63: #{custom-call.27} parent=61 // loop_pre_header
              _
            $region64: #{custom-call.27} parent=61 // loop_header
              %s203 = sphi 0, %s207
              %p204 = scmp.ge.s32.totalorder %s203, 1
              %s208 = sphi %s188, %s188
              %s209 = sphi %s193, %s193
            $region65: #{custom-call.27} parent=61 // loop_header_branch
              %206 = sbr.rel (%p204) target = $region69
            $region66: #{custom-call.27} parent=61 // loop_body
              %v210 = vld [vmem:[%s208] sm:%s201]
              %211 = vst [vmem:[%s209] sm:%s201] %v210
            $region67: #{custom-call.27} parent=61 // loop_footer
              %s207 = sadd.s32 1, %s203
            $region68: #{custom-call.27} parent=61 // loop_footer_branch
              %202 = sbr.rel target = $region64
            $region69: #{custom-call.27} parent=61 // loop_exit
              _
          $region62: #{custom-call.27} parent=53 // pred_fallthru
            _
        $region54: #{custom-call.27} parent=49 // pred_fallthru
          _
        %226 = vnop
      $region50: #{custom-call.27} parent=5 // pred_fallthru
        _
      %p227 = scmp.le.s32.totalorder 2, %s3
      // Predicated region
      $region81: #{custom-call.27} parent=5 // pred_check
        %p228 = pneg %p227
      $region82: #{custom-call.27} parent=5 // pred_check_branch
        %230 = sbr.rel (%p228) target = $region84
      $region83: #{custom-call.27} parent=5 // pred_region
        %s231 = ssub.s32 %s3, 2
        %s232 = sand.u32 %s9, 1
        %s233 = sand.u32 %s9, 1
        %s234 = smul.addr %s233, 4
        %s235 = scalar_lea.vmem [#allocation3], %s234
      $region84: #{custom-call.27} parent=5 // pred_fallthru
        _
    $region6: #{custom-call.27} parent=1 // loop_footer
      %s7 = sadd.s32 1, %s3
    $region7: #{custom-call.27} parent=1 // loop_footer_branch
      %2 = sbr.rel target = $region3
    $region8: #{custom-call.27} parent=1 // loop_exit
      _

// kernel: custom-call.26
$region0: #{custom-call.26}
  %s0 = inlined_call_operand.vmem [shape: f32[2,1,4,4], index: 0, kind: input, shape index: {}]
  %s1 = inlined_call_operand.vmem [shape: f32[2,1,4,4], index: 1, kind: output, shape index: {}]
  $region1: #{custom-call.26} parent=0
    #allocation0 [shape = 'u8[4096]{0}', space=vmem, size = 0x1000, scoped, tag = 'operand span for operand 0']
    #allocation1 [shape = 'u8[4096]{0}', space=vmem, size = 0x1000, scoped, tag = 'packed  for operand 0']
    #allocation2 [shape = 'u8[4096]{0}', space=vmem, size = 0x1000, scoped, tag = 'operand span for operand 1']
    #allocation3 [shape = 'u8[4096]{0}', space=vmem, size = 0x1000, scoped, tag = 'packed  for operand 1']
    loop: start=0, step=1, limit=4
    $region2: #{custom-call.26} parent=1 // loop_pre_header
      _
    $region3: #{custom-call.26} parent=1 // loop_header
      %s3 = sphi 0, %s7
      %p4 = scmp.ge.s32.totalorder %s3, 4
      %s10 = sphi 0, %s36
      %s11 = sphi 0, %s32
      %s12 = sphi 0, %s28
      %s13 = sphi 0, %s24
      %s14 = sphi 0, %s10
      %s15 = sphi 0, %s11
      %s16 = sphi 0, %s12
      %s17 = sphi 0, %s13
      %s18 = sphi 0, %s14
      %s19 = sphi 0, %s15
      %s20 = sphi 0, %s16
      %s21 = sphi 0, %s17
    $region4: #{custom-call.26} parent=1 // loop_header_branch
      %6 = sbr.rel (%p4) target = $region8
    $region5: #{custom-call.26} parent=1 // loop_body
      %s8 = ssub.s32 %s3, 1
      %s9 = ssub.s32 %s3, 2
      %s22 = sadd.s32 1, %s13
      %p23 = scmp.ge.s32.totalorder %s22, 1
      %s24 = scalar_select %p23, 0, %s22
      %s25 = sadd.s32 1, %s12
      %s26 = scalar_select %p23, %s25, %s12
      %p27 = scmp.ge.s32.totalorder %s26, 1
      %s28 = scalar_select %p27, 0, %s26
      %s29 = sadd.s32 1, %s11
      %s30 = scalar_select %p27, %s29, %s11
      %p31 = scmp.ge.s32.totalorder %s30, 1
      %s32 = scalar_select %p31, 0, %s30
      %s33 = sadd.s32 1, %s10
      %s34 = scalar_select %p31, %s33, %s10
      %p35 = scmp.ge.s32.totalorder %s34, 2
      %s36 = scalar_select %p35, 0, %s34
      %p37 = scmp.le.s32.totalorder 1, %s3
      %p38 = scmp.lt.s32.totalorder %s3, 3
      %p39 = pnand %p37, %p38
      %p40 = pneg %p39
      // Predicated region
      $region9: #{custom-call.26} parent=5 // pred_check
        _
      $region10: #{custom-call.26} parent=5 // pred_check_branch
        %42 = sbr.rel (%p39) target = $region12
      $region11: #{custom-call.26} parent=5 // pred_region
        %s43 = ssub.s32 %s3, 1
      $region12: #{custom-call.26} parent=5 // pred_fallthru
        _
      %p44 = scmp.lt.s32.totalorder %s3, 2
      // Predicated region
      $region13: #{custom-call.26} parent=5 // pred_check
        %p45 = pneg %p44
      $region14: #{custom-call.26} parent=5 // pred_check_branch
        %47 = sbr.rel (%p45) target = $region16
      $region15: #{custom-call.26} parent=5 // pred_region
        %s48 = sand.u32 %s3, 1
        %s49 = sand.u32 %s3, 1
        %s50 = smul.addr %s49, 4
        %s51 = scalar_lea.vmem [#allocation1], %s50
        %s52 = sadd.s32 %s13, %s12
        %s53 = sadd.s32 %s52, %s11
        %s54 = sadd.s32 %s53, %s10
        %s55 = smul.addr %s54, 4
        %s56 = scalar_lea.vmem %s0, %s55
        // Predicated region
        $region17: #{custom-call.26} parent=15 // pred_check
          _
        $region18: #{custom-call.26} parent=15 // pred_check_branch
          %58 = sbr.rel (0) target = $region20
        $region19: #{custom-call.26} parent=15 // pred_region
          // Predicated region
          $region21: #{custom-call.26} parent=19 // pred_check
            _
          $region22: #{custom-call.26} parent=19 // pred_check_branch
            %60 = sbr.rel target = $region24
          $region23: #{custom-call.26} parent=19 // pred_region
            // Predicated region
            $region36: #{custom-call.26} parent=23 // pred_check
              _
            $region37: #{custom-call.26} parent=23 // pred_check_branch
              %76 = sbr.rel (0) target = $region39
            $region38: #{custom-call.26} parent=23 // pred_region
              %s78 = ssub.s32 16, 1
              loop: start=0, step=1, limit=1
              $region40: #{custom-call.26} parent=38 // loop_pre_header
                _
              $region41: #{custom-call.26} parent=38 // loop_header
                %s80 = sphi 0, %s84
                %p81 = scmp.ge.s32.totalorder %s80, 1
                %s85 = sphi %s56, %s56
                %s86 = sphi %s51, %s51
              $region42: #{custom-call.26} parent=38 // loop_header_branch
                %83 = sbr.rel (%p81) target = $region46
              $region43: #{custom-call.26} parent=38 // loop_body
                %v87 = vld [vmem:[%s85] sm:%s78]
                %88 = vst [vmem:[%s86] sm:%s78] %v87
              $region44: #{custom-call.26} parent=38 // loop_footer
                %s84 = sadd.s32 1, %s80
              $region45: #{custom-call.26} parent=38 // loop_footer_branch
                %79 = sbr.rel target = $region41
              $region46: #{custom-call.26} parent=38 // loop_exit
                _
            $region39: #{custom-call.26} parent=23 // pred_fallthru
              _
          $region24: #{custom-call.26} parent=19 // pred_fallthru
            _
          // Predicated region
          $region25: #{custom-call.26} parent=19 // pred_check
            _
          $region26: #{custom-call.26} parent=19 // pred_check_branch
            %62 = sbr.rel (0) target = $region28
          $region27: #{custom-call.26} parent=19 // pred_region
            %s64 = ssub.s32 16, 1
            loop: start=0, step=1, limit=1
            $region29: #{custom-call.26} parent=27 // loop_pre_header
              _
            $region30: #{custom-call.26} parent=27 // loop_header
              %s66 = sphi 0, %s70
              %p67 = scmp.ge.s32.totalorder %s66, 1
              %s71 = sphi %s56, %s56
              %s72 = sphi %s51, %s51
            $region31: #{custom-call.26} parent=27 // loop_header_branch
              %69 = sbr.rel (%p67) target = $region35
            $region32: #{custom-call.26} parent=27 // loop_body
              %v73 = vld [vmem:[%s71] sm:%s64]
              %74 = vst [vmem:[%s72] sm:%s64] %v73
            $region33: #{custom-call.26} parent=27 // loop_footer
              %s70 = sadd.s32 1, %s66
            $region34: #{custom-call.26} parent=27 // loop_footer_branch
              %65 = sbr.rel target = $region30
            $region35: #{custom-call.26} parent=27 // loop_exit
              _
          $region28: #{custom-call.26} parent=19 // pred_fallthru
            _
        $region20: #{custom-call.26} parent=15 // pred_fallthru
          _
        %89 = vnop
      $region16: #{custom-call.26} parent=5 // pred_fallthru
        _
      %p90 = scmp.le.s32.totalorder 1, %s3
      %p91 = scmp.lt.s32.totalorder %s3, 3
      %p92 = pnand %p90, %p91
      %p93 = pneg %p92
      // Predicated region
      $region47: #{custom-call.26} parent=5 // pred_check
        _
      $region48: #{custom-call.26} parent=5 // pred_check_branch
        %95 = sbr.rel (%p92) target = $region50
      $region49: #{custom-call.26} parent=5 // pred_region
        #allocation4 [shape = 'f32[4,4]{1,0}', space=vmem, size = 0x1000, scoped, tag = 'rescaled input a']
        %s96 = ssub.s32 %s3, 1
        %s97 = sand.u32 %s8, 1
        %s98 = sand.u32 %s8, 1
        %s99 = smul.addr %s98, 4
        %s100 = scalar_lea.vmem [#allocation1], %s99
        %s101 = sand.u32 %s8, 1
        %s102 = sand.u32 %s8, 1
        %s103 = smul.addr %s102, 4
        %s104 = scalar_lea.vmem [#allocation1], %s103
        %s105 = sand.u32 %s8, 1
        %s106 = sand.u32 %s8, 1
        %s107 = smul.addr %s106, 4
        %s108 = scalar_lea.vmem [#allocation3], %s107
        %s110 = sshll.u32 1, 4
        %s111 = ssub.s32 %s110, 1
        %v112 = vld [vmem:[%s104] sm:%s111]
        %113 = vst [vmem:[#allocation0] sm:%s111] %v112
        %v114 = vlaneseq
        %v115 = vand.u32 %v114, 127
        %vm116 = vcmp.lt.s32.totalorder %v115, 4
        %v117 = vlaneseq
        %v118 = vshrl.u32 %v117, 7
        %vm120 = vcmp.eq.s32.totalorder %v118, %v115
        %v121 = vld [vmem:[#allocation0] sm:$0xff]
        %v122 = vsel %vm120, %v121, 0.0
        %123 = vadd.xlane.f32.xlu0 %v122
        %v124 = vpop.xlane.xlu0 %123
        %vm125 = vcmp.le.s32.totalorder %v118, %v115
        %vm126 = vmand %vm125, %vm116
        %v127 = vsel %vm126, %v121, 0.0
        %v128 = vrcp.pop %v124
        %v129 = vmul.f32 %v127, %v128
        %130 = vst [vmem:[#allocation4] sm:$0xff] %v129
        %v131 = vlaneseq
        %v132 = vand.u32 %v131, 127
        %v133 = vlaneseq
        %v134 = vshrl.u32 %v133, 7
        %vm136 = vcmp.eq.s32.totalorder %v132, %v134
        %v137 = vlaneseq
        %v138 = vand.u32 %v137, 127
        %vm139 = vcmp.eq.s32.totalorder %v138, 3
        %v140 = vsel %vm139, 1.0, -1.0
        %v141 = vsel %vm136, %v140, 0.0
        %s142 = scalar_lea.vmem [#allocation4], 2
        %v143 = vld [vmem:[%s142] ss:$0 sm:$0xff]
        %v144 = vxor.u32 %v143, 2147483648
        %v145 = vlaneseq
        %v146 = vand.u32 %v145, 127
        %vm147 = vcmp.eq.s32.totalorder %v146, 2
        %v148 = vmul.f32 %v144, %v141
        %149 = vadd.xlane.f32.xlu0 %v148
        %v150 = vpop.xlane.xlu0 %149
        %v151 = vsel %vm147, %v150, %v141
        %s152 = scalar_lea.vmem [#allocation4], 1
        %v153 = vld [vmem:[%s152] ss:$0 sm:$0xff]
        %v154 = vxor.u32 %v153, 2147483648
        %v155 = vlaneseq
        %v156 = vand.u32 %v155, 127
        %vm157 = vcmp.eq.s32.totalorder %v156, 1
        %v158 = vmul.f32 %v154, %v151
        %159 = vadd.xlane.f32.xlu0 %v158
        %v160 = vpop.xlane.xlu0 %159
        %v161 = vsel %vm157, %v160, %v151
        %v162 = vld [vmem:[#allocation4] ss:$0 sm:$0xff]
        %v163 = vxor.u32 %v162, 2147483648
        %v164 = vlaneseq
        %v165 = vand.u32 %v164, 127
        %vm166 = vcmp.eq.s32.totalorder %v165, 0
        %v167 = vmul.f32 %v163, %v161
        %168 = vadd.xlane.f32.xlu0 %v167
        %v169 = vpop.xlane.xlu0 %168
        %v170 = vsel %vm166, %v169, %v161
        %v171 = vrcp.pop %v124
        %v172 = vmul.f32 %v170, %v171
        %vm173 = vweird.f32 %v124
        %v174 = vsel %vm173, %v170, %v172
        %175 = vst [vmem:[#allocation2] sm:$0xff] %v174
        %s177 = sshll.u32 1, 4
        %s178 = ssub.s32 %s177, 1
        %v180 = vld [vmem:[#allocation2] sm:%s178]
        %s181 = sshll.u32 1, 4
        %s182 = ssub.s32 %s181, 1
        %183 = vst [vmem:[%s108] sm:%s182] %v180
        %s184 = sand.u32 %s8, 1
        %s185 = sand.u32 %s8, 1
        %s186 = smul.addr %s185, 4
        %s187 = scalar_lea.vmem [#allocation3], %s186
        %s188 = sadd.s32 %s17, %s16
        %s189 = sadd.s32 %s188, %s15
        %s190 = sadd.s32 %s189, %s14
        %s191 = smul.addr %s190, 4
        %s192 = scalar_lea.vmem %s1, %s191
        // Predicated region
        $region51: #{custom-call.26} parent=49 // pred_check
          _
        $region52: #{custom-call.26} parent=49 // pred_check_branch
          %194 = sbr.rel (0) target = $region54
        $region53: #{custom-call.26} parent=49 // pred_region
          // Predicated region
          $region55: #{custom-call.26} parent=53 // pred_check
            _
          $region56: #{custom-call.26} parent=53 // pred_check_branch
            %196 = sbr.rel target = $region58
          $region57: #{custom-call.26} parent=53 // pred_region
            // Predicated region
            $region70: #{custom-call.26} parent=57 // pred_check
              _
            $region71: #{custom-call.26} parent=57 // pred_check_branch
              %212 = sbr.rel (0) target = $region73
            $region72: #{custom-call.26} parent=57 // pred_region
              %s214 = ssub.s32 16, 1
              loop: start=0, step=1, limit=1
              $region74: #{custom-call.26} parent=72 // loop_pre_header
                _
              $region75: #{custom-call.26} parent=72 // loop_header
                %s216 = sphi 0, %s220
                %p217 = scmp.ge.s32.totalorder %s216, 1
                %s221 = sphi %s187, %s187
                %s222 = sphi %s192, %s192
              $region76: #{custom-call.26} parent=72 // loop_header_branch
                %219 = sbr.rel (%p217) target = $region80
              $region77: #{custom-call.26} parent=72 // loop_body
                %v223 = vld [vmem:[%s221] sm:%s214]
                %224 = vst [vmem:[%s222] sm:%s214] %v223
              $region78: #{custom-call.26} parent=72 // loop_footer
                %s220 = sadd.s32 1, %s216
              $region79: #{custom-call.26} parent=72 // loop_footer_branch
                %215 = sbr.rel target = $region75
              $region80: #{custom-call.26} parent=72 // loop_exit
                _
            $region73: #{custom-call.26} parent=57 // pred_fallthru
              _
          $region58: #{custom-call.26} parent=53 // pred_fallthru
            _
          // Predicated region
          $region59: #{custom-call.26} parent=53 // pred_check
            _
          $region60: #{custom-call.26} parent=53 // pred_check_branch
            %198 = sbr.rel (0) target = $region62
          $region61: #{custom-call.26} parent=53 // pred_region
            %s200 = ssub.s32 16, 1
            loop: start=0, step=1, limit=1
            $region63: #{custom-call.26} parent=61 // loop_pre_header
              _
            $region64: #{custom-call.26} parent=61 // loop_header
              %s202 = sphi 0, %s206
              %p203 = scmp.ge.s32.totalorder %s202, 1
              %s207 = sphi %s187, %s187
              %s208 = sphi %s192, %s192
            $region65: #{custom-call.26} parent=61 // loop_header_branch
              %205 = sbr.rel (%p203) target = $region69
            $region66: #{custom-call.26} parent=61 // loop_body
              %v209 = vld [vmem:[%s207] sm:%s200]
              %210 = vst [vmem:[%s208] sm:%s200] %v209
            $region67: #{custom-call.26} parent=61 // loop_footer
              %s206 = sadd.s32 1, %s202
            $region68: #{custom-call.26} parent=61 // loop_footer_branch
              %201 = sbr.rel target = $region64
            $region69: #{custom-call.26} parent=61 // loop_exit
              _
          $region62: #{custom-call.26} parent=53 // pred_fallthru
            _
        $region54: #{custom-call.26} parent=49 // pred_fallthru
          _
        %225 = vnop
      $region50: #{custom-call.26} parent=5 // pred_fallthru
        _
      %p226 = scmp.le.s32.totalorder 2, %s3
      // Predicated region
      $region81: #{custom-call.26} parent=5 // pred_check
        %p227 = pneg %p226
      $region82: #{custom-call.26} parent=5 // pred_check_branch
        %229 = sbr.rel (%p227) target = $region84
      $region83: #{custom-call.26} parent=5 // pred_region
        %s230 = ssub.s32 %s3, 2
        %s231 = sand.u32 %s9, 1
        %s232 = sand.u32 %s9, 1
        %s233 = smul.addr %s232, 4
        %s234 = scalar_lea.vmem [#allocation3], %s233
      $region84: #{custom-call.26} parent=5 // pred_fallthru
        _
    $region6: #{custom-call.26} parent=1 // loop_footer
      %s7 = sadd.s32 1, %s3
    $region7: #{custom-call.26} parent=1 // loop_footer_branch
      %2 = sbr.rel target = $region3
    $region8: #{custom-call.26} parent=1 // loop_exit
      _

// kernel: _forward_core.5
$region0: #{_forward_core.5}
  #allocation0 [shape = 'u32[]', space=smem, size = 0x4, offset = 0x4, fixed_abs, tag = 'smem constant byte address 0x4 - core index']
  #allocation1 [shape = 'u32[144,128]{1,0:T(1,128)}', space=vmem, size = 0x12000, scoped, tag = 'internal scratch']
  %s0 = inlined_call_operand.vmem [shape: f32[2,3,128], index: 0, kind: input, shape index: {}]
  %s1 = inlined_call_operand.vmem [shape: f32[2,9,128], index: 1, kind: input, shape index: {}]
  %s2 = inlined_call_operand.vmem [shape: f32[2,3,128], index: 2, kind: input, shape index: {}]
  %s3 = inlined_call_operand.vmem [shape: f32[2,16], index: 3, kind: input, shape index: {}]
  %s4 = inlined_call_operand.vmem [shape: f32[2,9], index: 4, kind: input, shape index: {}]
  %s5 = inlined_call_operand.vmem [shape: f32[2,3,128], index: 5, kind: output, shape index: {0}]
  %s6 = inlined_call_operand.vmem [shape: f32[2,2,128], index: 6, kind: output, shape index: {1}]
  %s7 = inlined_call_operand.vmem [shape: f32[2,4,512], index: 7, kind: output, shape index: {2}]
  %8 = xla_tuple %s5, %s6, %s7
  %s9 = sld [smem:[#allocation0]]
  $region77: #{_forward_core.5} parent=0
    _
  %s11 = ssub.s32 1, %s9
  %s12 = scalar_select 0, %s11, %s9
  $region1: #{_forward_core.5} parent=0
    #allocation2 [shape = 'u8[1024]{0}', space=smem, size = 0x400, scoped, tag = 'input window, operand 3, single buffered']
    #allocation3 [shape = 's32[2]{0}', space=sflag, size = 0x8, scoped, tag = 'scoped memory for _forward_core.5']
    #allocation4 [shape = 'u8[1024]{0}', space=smem, size = 0x400, scoped, tag = 'input window, operand 4, single buffered']
    #allocation5 [shape = 's32[1]{0}', space=sflag, size = 0x4, scoped, tag = 'scoped memory for _forward_core.5']
    %13 = vsyncpa [#allocation3], 0
    %14 = vsyncpa [#allocation5], 0
    loop: start=0, step=1, limit=4
    $region2: #{_forward_core.5} parent=1 // loop_pre_header
      _
    $region3: #{_forward_core.5} parent=1 // loop_header
      %s16 = sphi 0, %s20
      %p17 = scmp.ge.s32.totalorder %s16, 4
      %s26 = sphi 0, %s28
      %s29 = sphi 0, %s26
      %s30 = sphi 0, %s29
      %s46 = sphi 0, %s30
      %s52 = sphi 0, %s54
      %s55 = sphi 0, %s52
      %s56 = sphi 0, %s55
      %s72 = sphi 0, %s56
      %s78 = sphi 0, %s80
      %s81 = sphi 0, %s78
      %s82 = sphi 0, %s81
      %s98 = sphi 0, %s82
      %s102 = sphi 0, %s102
      %s104 = sphi 0, %s102
      %s105 = sphi 0, %s104
      %s119 = sphi 0, %s105
      %s123 = sphi 0, %s123
      %s125 = sphi 0, %s123
      %s126 = sphi 0, %s125
      %s140 = sphi 0, %s126
      %s146 = sphi 0, %s148
      %s149 = sphi 0, %s146
      %s150 = sphi 0, %s149
      %s166 = sphi 0, %s150
      %s172 = sphi 0, %s174
      %s175 = sphi 0, %s172
      %s176 = sphi 0, %s175
      %s192 = sphi 0, %s176
      %s198 = sphi 0, %s200
      %s201 = sphi 0, %s198
      %s202 = sphi 0, %s201
      %s218 = sphi 0, %s202
    $region4: #{_forward_core.5} parent=1 // loop_header_branch
      %19 = sbr.rel (%p17) target = $region8
    $region5: #{_forward_core.5} parent=1 // loop_body
      %s21 = ssub.s32 %s16, 1
      %s22 = ssub.s32 %s16, 2
      %s23 = sadd.s32 %s16, 1
      %s24 = ssub.s32 %s16, %s23
      %p25 = scmp.eq.s32.totalorder %s24, 0
      %s27 = sadd.s32 %s26, 1
      %s28 = scalar_select %p25, %s26, %s27
      %p31 = pneg %p25
      %p32 = scmp.eq.s32.totalorder %s16, 1
      %p33 = por %p31, %p32
      %p34 = scmp.ne.s32.totalorder %s26, %s29
      %p35 = scmp.eq.s32.totalorder %s16, 0
      %p36 = por %p34, %p35
      %p37 = scmp.ne.s32.totalorder %s26, %s29
      %p38 = scmp.eq.s32.totalorder %s21, 1
      %p39 = por %p37, %p38
      %p40 = scmp.ne.s32.totalorder %s29, %s30
      %p41 = scmp.eq.s32.totalorder %s21, 0
      %p42 = por %p40, %p41
      %p43 = scmp.ne.s32.totalorder %s29, %s30
      %p44 = scmp.eq.s32.totalorder %s22, 1
      %p45 = por %p43, %p44
      %p47 = scmp.ne.s32.totalorder %s30, %s46
      %p48 = scmp.eq.s32.totalorder %s22, 0
      %p49 = por %p47, %p48
      %s50 = ssub.s32 %s16, %s23
      %p51 = scmp.eq.s32.totalorder %s50, 0
      %s53 = sadd.s32 %s52, 1
      %s54 = scalar_select %p51, %s52, %s53
      %p57 = pneg %p51
      %p58 = scmp.eq.s32.totalorder %s16, 1
      %p59 = por %p57, %p58
      %p60 = scmp.ne.s32.totalorder %s52, %s55
      %p61 = scmp.eq.s32.totalorder %s16, 0
      %p62 = por %p60, %p61
      %p63 = scmp.ne.s32.totalorder %s52, %s55
      %p64 = scmp.eq.s32.totalorder %s21, 1
      %p65 = por %p63, %p64
      %p66 = scmp.ne.s32.totalorder %s55, %s56
      %p67 = scmp.eq.s32.totalorder %s21, 0
      %p68 = por %p66, %p67
      %p69 = scmp.ne.s32.totalorder %s55, %s56
      %p70 = scmp.eq.s32.totalorder %s22, 1
      %p71 = por %p69, %p70
      %p73 = scmp.ne.s32.totalorder %s56, %s72
      %p74 = scmp.eq.s32.totalorder %s22, 0
      %p75 = por %p73, %p74
      %s76 = ssub.s32 %s16, %s23
      %p77 = scmp.eq.s32.totalorder %s76, 0
      %s79 = sadd.s32 %s78, 1
      %s80 = scalar_select %p77, %s78, %s79
      %p83 = pneg %p77
      %p84 = scmp.eq.s32.totalorder %s16, 1
      %p85 = por %p83, %p84
      %p86 = scmp.ne.s32.totalorder %s78, %s81
      %p87 = scmp.eq.s32.totalorder %s16, 0
      %p88 = por %p86, %p87
      %p89 = scmp.ne.s32.totalorder %s78, %s81
      %p90 = scmp.eq.s32.totalorder %s21, 1
      %p91 = por %p89, %p90
      %p92 = scmp.ne.s32.totalorder %s81, %s82
      %p93 = scmp.eq.s32.totalorder %s21, 0
      %p94 = por %p92, %p93
      %p95 = scmp.ne.s32.totalorder %s81, %s82
      %p96 = scmp.eq.s32.totalorder %s22, 1
      %p97 = por %p95, %p96
      %p99 = scmp.ne.s32.totalorder %s82, %s98
      %p100 = scmp.eq.s32.totalorder %s22, 0
      %p101 = por %p99, %p100
      %s103 = sadd.s32 %s102, 1
      %p106 = scmp.eq.s32.totalorder %s16, 1
      %p107 = scmp.ne.s32.totalorder %s102, %s104
      %p108 = scmp.eq.s32.totalorder %s16, 0
      %p109 = por %p107, %p108
      %p110 = scmp.ne.s32.totalorder %s102, %s104
      %p111 = scmp.eq.s32.totalorder %s21, 1
      %p112 = por %p110, %p111
      %p113 = scmp.ne.s32.totalorder %s104, %s105
      %p114 = scmp.eq.s32.totalorder %s21, 0
      %p115 = por %p113, %p114
      %p116 = scmp.ne.s32.totalorder %s104, %s105
      %p117 = scmp.eq.s32.totalorder %s22, 1
      %p118 = por %p116, %p117
      %p120 = scmp.ne.s32.totalorder %s105, %s119
      %p121 = scmp.eq.s32.totalorder %s22, 0
      %p122 = por %p120, %p121
      %s124 = sadd.s32 %s123, 1
      %p127 = scmp.eq.s32.totalorder %s16, 1
      %p128 = scmp.ne.s32.totalorder %s123, %s125
      %p129 = scmp.eq.s32.totalorder %s16, 0
      %p130 = por %p128, %p129
      %p131 = scmp.ne.s32.totalorder %s123, %s125
      %p132 = scmp.eq.s32.totalorder %s21, 1
      %p133 = por %p131, %p132
      %p134 = scmp.ne.s32.totalorder %s125, %s126
      %p135 = scmp.eq.s32.totalorder %s21, 0
      %p136 = por %p134, %p135
      %p137 = scmp.ne.s32.totalorder %s125, %s126
      %p138 = scmp.eq.s32.totalorder %s22, 1
      %p139 = por %p137, %p138
      %p141 = scmp.ne.s32.totalorder %s126, %s140
      %p142 = scmp.eq.s32.totalorder %s22, 0
      %p143 = por %p141, %p142
      %s144 = ssub.s32 %s16, %s23
      %p145 = scmp.eq.s32.totalorder %s144, 0
      %s147 = sadd.s32 %s146, 1
      %s148 = scalar_select %p145, %s146, %s147
      %p151 = pneg %p145
      %p152 = scmp.eq.s32.totalorder %s16, 1
      %p153 = por %p151, %p152
      %p154 = scmp.ne.s32.totalorder %s146, %s149
      %p155 = scmp.eq.s32.totalorder %s16, 0
      %p156 = por %p154, %p155
      %p157 = scmp.ne.s32.totalorder %s146, %s149
      %p158 = scmp.eq.s32.totalorder %s21, 1
      %p159 = por %p157, %p158
      %p160 = scmp.ne.s32.totalorder %s149, %s150
      %p161 = scmp.eq.s32.totalorder %s21, 0
      %p162 = por %p160, %p161
      %p163 = scmp.ne.s32.totalorder %s149, %s150
      %p164 = scmp.eq.s32.totalorder %s22, 1
      %p165 = por %p163, %p164
      %p167 = scmp.ne.s32.totalorder %s150, %s166
      %p168 = scmp.eq.s32.totalorder %s22, 0
      %p169 = por %p167, %p168
      %s170 = ssub.s32 %s16, %s23
      %p171 = scmp.eq.s32.totalorder %s170, 0
      %s173 = sadd.s32 %s172, 1
      %s174 = scalar_select %p171, %s172, %s173
      %p177 = pneg %p171
      %p178 = scmp.eq.s32.totalorder %s16, 1
      %p179 = por %p177, %p178
      %p180 = scmp.ne.s32.totalorder %s172, %s175
      %p181 = scmp.eq.s32.totalorder %s16, 0
      %p182 = por %p180, %p181
      %p183 = scmp.ne.s32.totalorder %s172, %s175
      %p184 = scmp.eq.s32.totalorder %s21, 1
      %p185 = por %p183, %p184
      %p186 = scmp.ne.s32.totalorder %s175, %s176
      %p187 = scmp.eq.s32.totalorder %s21, 0
      %p188 = por %p186, %p187
      %p189 = scmp.ne.s32.totalorder %s175, %s176
      %p190 = scmp.eq.s32.totalorder %s22, 1
      %p191 = por %p189, %p190
      %p193 = scmp.ne.s32.totalorder %s176, %s192
      %p194 = scmp.eq.s32.totalorder %s22, 0
      %p195 = por %p193, %p194
      %s196 = ssub.s32 %s16, %s23
      %p197 = scmp.eq.s32.totalorder %s196, 0
      %s199 = sadd.s32 %s198, 1
      %s200 = scalar_select %p197, %s198, %s199
      %p203 = pneg %p197
      %p204 = scmp.eq.s32.totalorder %s16, 1
      %p205 = por %p203, %p204
      %p206 = scmp.ne.s32.totalorder %s198, %s201
      %p207 = scmp.eq.s32.totalorder %s16, 0
      %p208 = por %p206, %p207
      %p209 = scmp.ne.s32.totalorder %s198, %s201
      %p210 = scmp.eq.s32.totalorder %s21, 1
      %p211 = por %p209, %p210
      %p212 = scmp.ne.s32.totalorder %s201, %s202
      %p213 = scmp.eq.s32.totalorder %s21, 0
      %p214 = por %p212, %p213
      %p215 = scmp.ne.s32.totalorder %s201, %s202
      %p216 = scmp.eq.s32.totalorder %s22, 1
      %p217 = por %p215, %p216
      %p219 = scmp.ne.s32.totalorder %s202, %s218
      %p220 = scmp.eq.s32.totalorder %s22, 0
      %p221 = por %p219, %p220
      %p222 = scmp.le.s32.totalorder 1, %s16
      %p223 = scmp.lt.s32.totalorder %s16, 3
      %p224 = pnand %p222, %p223
      %p225 = pneg %p224
      // Predicated region
      $region9: #{_forward_core.5} parent=5 // pred_check
        _
      $region10: #{_forward_core.5} parent=5 // pred_check_branch
        %227 = sbr.rel (%p224) target = $region12
      $region11: #{_forward_core.5} parent=5 // pred_region
        %s228 = ssub.s32 %s16, 1
        // Predicated region
        $region13: #{_forward_core.5} parent=11 // pred_check
          %p229 = pneg %p115
        $region14: #{_forward_core.5} parent=11 // pred_check_branch
          %231 = sbr.rel (%p229) target = $region16
        $region15: #{_forward_core.5} parent=11 // pred_region
          %s233 = ssub.s32 32, 32
          %234 = vsyncadd [#allocation3], %s233
          %s236 = sshll.u32 %s3, 4
          %s237 = int_to_ptr.vmem [resolvable:$true] %s236
          %239 = dma.vmem_to_smem %s237, 32, [#allocation2], [#allocation3]
        $region16: #{_forward_core.5} parent=11 // pred_fallthru
          _
        // Predicated region
        $region17: #{_forward_core.5} parent=11 // pred_check
          %p240 = pneg %p136
        $region18: #{_forward_core.5} parent=11 // pred_check_branch
          %242 = sbr.rel (%p240) target = $region20
        $region19: #{_forward_core.5} parent=11 // pred_region
          %s244 = ssub.s32 32, 32
          %245 = vsyncadd [#allocation5], %s244
          %s247 = sshll.u32 %s4, 4
          %s248 = int_to_ptr.vmem [resolvable:$true] %s247
          %250 = dma.vmem_to_smem %s248, 32, [#allocation4], [#allocation5]
        $region20: #{_forward_core.5} parent=11 // pred_fallthru
          _
      $region12: #{_forward_core.5} parent=5 // pred_fallthru
        _
      %p251 = scmp.lt.s32.totalorder %s16, 2
      // Predicated region
      $region21: #{_forward_core.5} parent=5 // pred_check
        %p252 = pneg %p251
      $region22: #{_forward_core.5} parent=5 // pred_check_branch
        %254 = sbr.rel (%p252) target = $region24
      $region23: #{_forward_core.5} parent=5 // pred_region
        // Predicated region
        $region25: #{_forward_core.5} parent=23 // pred_check
          %p255 = pneg %p36
        $region26: #{_forward_core.5} parent=23 // pred_check_branch
          %257 = sbr.rel (%p255) target = $region28
        $region27: #{_forward_core.5} parent=23 // pred_region
          %p258 = scmp.lt.s32.totalorder %s16, 1
          %s259 = scalar_select %p258, %s16, 1
          %s260 = smul.addr %s259, 4
          %s261 = scalar_lea.vmem %s0, %s260
        $region28: #{_forward_core.5} parent=23 // pred_fallthru
          _
        // Predicated region
        $region29: #{_forward_core.5} parent=23 // pred_check
          %p262 = pneg %p62
        $region30: #{_forward_core.5} parent=23 // pred_check_branch
          %264 = sbr.rel (%p262) target = $region32
        $region31: #{_forward_core.5} parent=23 // pred_region
          %p265 = scmp.lt.s32.totalorder %s16, 1
          %s266 = scalar_select %p265, %s16, 1
          %s267 = smul.addr %s266, 2
          %s268 = smul.addr %s267, 8
          %s269 = scalar_lea.vmem %s1, %s268
        $region32: #{_forward_core.5} parent=23 // pred_fallthru
          _
        // Predicated region
        $region33: #{_forward_core.5} parent=23 // pred_check
          %p270 = pneg %p88
        $region34: #{_forward_core.5} parent=23 // pred_check_branch
          %272 = sbr.rel (%p270) target = $region36
        $region35: #{_forward_core.5} parent=23 // pred_region
          %p273 = scmp.lt.s32.totalorder %s16, 1
          %s274 = scalar_select %p273, %s16, 1
          %s275 = smul.addr %s274, 4
          %s276 = scalar_lea.vmem %s2, %s275
        $region36: #{_forward_core.5} parent=23 // pred_fallthru
          _
      $region24: #{_forward_core.5} parent=5 // pred_fallthru
        _
      %p277 = scmp.le.s32.totalorder 1, %s16
      %p278 = scmp.lt.s32.totalorder %s16, 3
      %p279 = pnand %p277, %p278
      %p280 = pneg %p279
      // Predicated region
      $region37: #{_forward_core.5} parent=5 // pred_check
        _
      $region38: #{_forward_core.5} parent=5 // pred_check_branch
        %282 = sbr.rel (%p279) target = $region40
      $region39: #{_forward_core.5} parent=5 // pred_region
        %s283 = ssub.s32 %s16, 1
        // Predicated region
        $region41: #{_forward_core.5} parent=39 // pred_check
          %p284 = pneg %p115
        $region42: #{_forward_core.5} parent=39 // pred_check_branch
          %286 = sbr.rel (%p284) target = $region44
        $region43: #{_forward_core.5} parent=39 // pred_region
          %287 = dma.done [#allocation3], 32
        $region44: #{_forward_core.5} parent=39 // pred_fallthru
          _
        // Predicated region
        $region45: #{_forward_core.5} parent=39 // pred_check
          %p288 = pneg %p136
        $region46: #{_forward_core.5} parent=39 // pred_check_branch
          %290 = sbr.rel (%p288) target = $region48
        $region47: #{_forward_core.5} parent=39 // pred_region
          %291 = dma.done [#allocation5], 32
        $region48: #{_forward_core.5} parent=39 // pred_fallthru
          _
        %292 = sfence
        %p293 = scmp.lt.s32.totalorder %s21, 1
        %s294 = scalar_select %p293, %s21, 1
        %s295 = smul.addr %s294, 4
        %s296 = scalar_lea.vmem %s0, %s295
        %p297 = pneg %p42
        %p298 = pneg %p39
        %p299 = scmp.lt.s32.totalorder %s21, 1
        %s300 = scalar_select %p299, %s21, 1
        %s301 = smul.addr %s300, 2
        %s302 = smul.addr %s301, 8
        %s303 = scalar_lea.vmem %s1, %s302
        %p304 = pneg %p68
        %p305 = pneg %p65
        %p306 = scmp.lt.s32.totalorder %s21, 1
        %s307 = scalar_select %p306, %s21, 1
        %s308 = smul.addr %s307, 4
        %s309 = scalar_lea.vmem %s2, %s308
        %p310 = pneg %p94
        %p311 = pneg %p91
        %p312 = pneg %p115
        %p313 = pneg %p112
        %p314 = pneg %p136
        %p315 = pneg %p133
        %p316 = pneg %p162
        %p317 = pneg %p159
        %p318 = scmp.lt.s32.totalorder %s21, 1
        %s319 = scalar_select %p318, %s21, 1
        %s320 = smul.addr %s319, 4
        %s321 = scalar_lea.vmem %s5, %s320
        %p322 = pneg %p188
        %p323 = pneg %p185
        %p324 = scmp.lt.s32.totalorder %s21, 1
        %s325 = scalar_select %p324, %s21, 1
        %s326 = smul.addr %s325, 2
        %s327 = scalar_lea.vmem %s6, %s326
        %p328 = pneg %p214
        %p329 = pneg %p211
        %p330 = scmp.lt.s32.totalorder %s21, 1
        %s331 = scalar_select %p330, %s21, 1
        %s332 = smul.addr %s331, 4
        %s333 = smul.addr %s332, 4
        %s334 = scalar_lea.vmem %s7, %s333
        %p335 = scmp.lt.s32.totalorder %s21, 1
        %s336 = scalar_select %p335, %s21, 1
        %s337 = smul.addr %s336, 4
        %s338 = scalar_lea.vmem %s0, %s337
        %p339 = scmp.lt.s32.totalorder %s21, 1
        %s340 = scalar_select %p339, %s21, 1
        %s341 = smul.addr %s340, 2
        %s342 = smul.addr %s341, 8
        %s343 = scalar_lea.vmem %s1, %s342
        %p344 = scmp.lt.s32.totalorder %s21, 1
        %s345 = scalar_select %p344, %s21, 1
        %s346 = smul.addr %s345, 4
        %s347 = scalar_lea.vmem %s2, %s346
        %p348 = scmp.lt.s32.totalorder %s21, 1
        %s349 = scalar_select %p348, %s21, 1
        %s350 = smul.addr %s349, 4
        %s351 = scalar_lea.vmem %s5, %s350
        %p352 = scmp.lt.s32.totalorder %s21, 1
        %s353 = scalar_select %p352, %s21, 1
        %s354 = smul.addr %s353, 2
        %s355 = scalar_lea.vmem %s6, %s354
        %p356 = scmp.lt.s32.totalorder %s21, 1
        %s357 = scalar_select %p356, %s21, 1
        %s358 = smul.addr %s357, 4
        %s359 = smul.addr %s358, 4
        %s360 = scalar_lea.vmem %s7, %s359
        %v361 = vld [vmem:[%s338] sm:$0x7]
        %v362 = vld [vmem:[%s343] sm:$0xff]
        %v363 = vld [vmem:[%s343 + $0x8] sm:$0x1]
        %v364 = vld [vmem:[%s347] sm:$0x7]
        %v365 = vmul.f32 %v362, %v364
        %v366 = vadd.f32 %v361, %v365
        %v368 = vrot.slane %v365, 1
        %v370 = vadd.f32 %v366, %v368
        %v371 = vrot.slane %v365, 2
        %v373 = vadd.f32 %v370, %v371
        %v375 = vrot.slane %v364, 5
        %v377 = vmul.f32 %v362, %v375
        %v379 = vrot.slane %v377, 2
        %v381 = vadd.f32 %v361, %v379
        %v382 = vrot.slane %v377, 3
        %v384 = vadd.f32 %v381, %v382
        %v385 = vrot.slane %v377, 4
        %v387 = vadd.f32 %v384, %v385
        %v388 = vrot.slane %v364, 2
        %v390 = vmul.f32 %v362, %v388
        %v392 = vrot.slane %v390, 4
        %v394 = vadd.f32 %v361, %v392
        %v395 = vrot.slane %v390, 5
        %v397 = vadd.f32 %v394, %v395
        %v398 = vmul.f32 %v363, %v388
        %v400 = vrot.slane %v398, 6
        %v402 = vadd.f32 %v397, %v400
        %vm403 = vcmask 1040384
        %v404 = vsel %vm403, %v373, %v387
        %vm405 = vcmask 1041408
        %v406 = vsel %vm405, %v404, %v402
        %407 = vst [vmem:[%s351] sm:$0x7] %v406
        %s408 = smul.u32 %s21, 128
        %s409 = sld [smem:[#allocation2 + %s408]]
        %v410 = vstv %s409
        %v411 = vmul.f32 %v410, %v373
        %s412 = sadd.s32 %s408, 1
        %s413 = sld [smem:[#allocation2 + %s412]]
        %v414 = vstv %s413
        %v415 = vmul.f32 %v414, %v387
        %v417 = vrot.slane %v415, 1
        %v419 = vadd.f32 %v411, %v417
        %s420 = sadd.s32 %s408, 2
        %s421 = sld [smem:[#allocation2 + %s420]]
        %v422 = vstv %s421
        %v423 = vmul.f32 %v422, %v402
        %v425 = vrot.slane %v423, 2
        %v427 = vadd.f32 %v419, %v425
        %s428 = sadd.s32 %s408, 3
        %s429 = sld [smem:[#allocation2 + %s428]]
        %v430 = vstv %s429
        %v431 = vadd.f32 %v427, %v430
        %s432 = sadd.s32 %s408, 4
        %s433 = sld [smem:[#allocation2 + %s432]]
        %v434 = vstv %s433
        %v435 = vmul.f32 %v434, %v373
        %s436 = sadd.s32 %s408, 5
        %s437 = sld [smem:[#allocation2 + %s436]]
        %v438 = vstv %s437
        %v439 = vmul.f32 %v438, %v387
        %v441 = vrot.slane %v439, 1
        %v443 = vadd.f32 %v435, %v441
        %s444 = sadd.s32 %s408, 6
        %s445 = sld [smem:[#allocation2 + %s444]]
        %v446 = vstv %s445
        %v447 = vmul.f32 %v446, %v402
        %v449 = vrot.slane %v447, 2
        %v451 = vadd.f32 %v443, %v449
        %s452 = sadd.s32 %s408, 7
        %s453 = sld [smem:[#allocation2 + %s452]]
        %v454 = vstv %s453
        %v455 = vadd.f32 %v451, %v454
        %s456 = sadd.s32 %s408, 8
        %s457 = sld [smem:[#allocation2 + %s456]]
        %v458 = vstv %s457
        %v459 = vmul.f32 %v458, %v373
        %s460 = sadd.s32 %s408, 9
        %s461 = sld [smem:[#allocation2 + %s460]]
        %v462 = vstv %s461
        %v463 = vmul.f32 %v462, %v387
        %v465 = vrot.slane %v463, 1
        %v467 = vadd.f32 %v459, %v465
        %s468 = sadd.s32 %s408, 10
        %s469 = sld [smem:[#allocation2 + %s468]]
        %v470 = vstv %s469
        %v471 = vmul.f32 %v470, %v402
        %v473 = vrot.slane %v471, 2
        %v475 = vadd.f32 %v467, %v473
        %s476 = sadd.s32 %s408, 11
        %s477 = sld [smem:[#allocation2 + %s476]]
        %v478 = vstv %s477
        %v479 = vadd.f32 %v475, %v478
        %v480 = vmax.f32 %v479, 1e-06
        %v481 = vrcp.pop %v480
        %s482 = sld [smem:[#allocation4 + %s408]]
        %v483 = vstv %s482
        %v484 = vmul.f32 %v483, %v431
        %v485 = vmul.f32 %v484, %v481
        %s486 = sld [smem:[#allocation4 + %s420]]
        %v487 = vstv %s486
        %v488 = vadd.f32 %v485, %v487
        %s489 = sld [smem:[#allocation4 + %s432]]
        %v490 = vstv %s489
        %v491 = vmul.f32 %v490, %v455
        %v492 = vmul.f32 %v491, %v481
        %s493 = sld [smem:[#allocation4 + %s436]]
        %v494 = vstv %s493
        %v495 = vadd.f32 %v492, %v494
        %v497 = vrot.slane %v495, 7
        %v499 = vsel %vm403, %v488, %v497
        %500 = vst [vmem:[%s355] sm:$0x3] %v499
        %v501 = vsub.f32 %v373, -1.0
        %v502 = vmul.f32 %v501, 4.0
        %v503 = vfloor.f32 %v502
        %v504 = vmax.f32 %v503, 0.0
        %v505 = vmin.f32 %v504, 7.0
        %v506 = vsub.f32 %v387, -1.0
        %v507 = vmul.f32 %v506, 4.0
        %v508 = vfloor.f32 %v507
        %v509 = vmax.f32 %v508, 0.0
        %v510 = vmin.f32 %v509, 7.0
        %v511 = vsub.f32 %v402, -1.0
        %v512 = vmul.f32 %v511, 4.0
        %v513 = vfloor.f32 %v512
        %v514 = vmax.f32 %v513, 0.0
        %v515 = vmin.f32 %v514, 7.0
        %v516 = vmul.f32 %v505, 64.0
        %v517 = vmul.f32 %v510, 8.0
        %v519 = vrot.slane %v517, 1
        %v521 = vadd.f32 %v516, %v519
        %v523 = vrot.slane %v515, 2
        %v525 = vadd.f32 %v521, %v523
        %v526 = vcvt.f32.s32.to.zero.pseudo %v525
        %v527 = vlaneseq
        %v528 = vshrl.u32 %v527, 7
        %v529 = vadd.s32 %v528, 8
        %v530 = vadd.s32 %v528, 16
        %v531 = vadd.s32 %v528, 24
        %v532 = vadd.s32 %v528, 32
        %v533 = vadd.s32 %v528, 40
        %v534 = vadd.s32 %v528, 48
        %v535 = vadd.s32 %v528, 56
        %v536 = vadd.s32 %v528, 64
        %v537 = vadd.s32 %v528, 72
        %v538 = vadd.s32 %v528, 80
        %v539 = vadd.s32 %v528, 88
        %v540 = vadd.s32 %v528, 96
        %v541 = vadd.s32 %v528, 104
        %v542 = vadd.s32 %v528, 112
        %v543 = vadd.s32 %v528, 120
        %v544 = vadd.s32 %v528, 128
        %v545 = vadd.s32 %v528, 136
        %v546 = vadd.s32 %v528, 144
        %v547 = vadd.s32 %v528, 152
        %v548 = vadd.s32 %v528, 160
        %v549 = vadd.s32 %v528, 168
        %v550 = vadd.s32 %v528, 176
        %v551 = vadd.s32 %v528, 184
        %v552 = vadd.s32 %v528, 192
        %v553 = vadd.s32 %v528, 200
        %v554 = vadd.s32 %v528, 208
        %v555 = vadd.s32 %v528, 216
        %v556 = vadd.s32 %v528, 224
        %v557 = vadd.s32 %v528, 232
        %v558 = vadd.s32 %v528, 240
        %v559 = vadd.s32 %v528, 248
        %v560 = vadd.s32 %v528, 256
        %v561 = vadd.s32 %v528, 264
        %v562 = vadd.s32 %v528, 272
        %v563 = vadd.s32 %v528, 280
        %v564 = vadd.s32 %v528, 288
        %v565 = vadd.s32 %v528, 296
        %v566 = vadd.s32 %v528, 304
        %v567 = vadd.s32 %v528, 312
        %v568 = vadd.s32 %v528, 320
        %v569 = vadd.s32 %v528, 328
        %v570 = vadd.s32 %v528, 336
        %v571 = vadd.s32 %v528, 344
        %v572 = vadd.s32 %v528, 352
        %v573 = vadd.s32 %v528, 360
        %v574 = vadd.s32 %v528, 368
        %v575 = vadd.s32 %v528, 376
        %v576 = vadd.s32 %v528, 384
        %v577 = vadd.s32 %v528, 392
        %v578 = vadd.s32 %v528, 400
        %v579 = vadd.s32 %v528, 408
        %v580 = vadd.s32 %v528, 416
        %v581 = vadd.s32 %v528, 424
        %v582 = vadd.s32 %v528, 432
        %v583 = vadd.s32 %v528, 440
        %v584 = vadd.s32 %v528, 448
        %v585 = vadd.s32 %v528, 456
        %v586 = vadd.s32 %v528, 464
        %v587 = vadd.s32 %v528, 472
        %v588 = vadd.s32 %v528, 480
        %v589 = vadd.s32 %v528, 488
        %v590 = vadd.s32 %v528, 496
        %v591 = vadd.s32 %v528, 504
        %v592 = vlaneseq
        %v593 = vshrl.u32 %v592, 7
        %v594 = vsub.s32 0, %v593
        %v595 = vrot.slane %v526, %v594
        %vm596 = vcmp.eq.s32.totalorder %v528, %v595
        %vm597 = vcmp.eq.s32.totalorder %v529, %v595
        %vm598 = vcmp.eq.s32.totalorder %v530, %v595
        %vm599 = vcmp.eq.s32.totalorder %v531, %v595
        %vm600 = vcmp.eq.s32.totalorder %v532, %v595
        %vm601 = vcmp.eq.s32.totalorder %v533, %v595
        %vm602 = vcmp.eq.s32.totalorder %v534, %v595
        %vm603 = vcmp.eq.s32.totalorder %v535, %v595
        %vm604 = vcmp.eq.s32.totalorder %v536, %v595
        %vm605 = vcmp.eq.s32.totalorder %v537, %v595
        %vm606 = vcmp.eq.s32.totalorder %v538, %v595
        %vm607 = vcmp.eq.s32.totalorder %v539, %v595
        %vm608 = vcmp.eq.s32.totalorder %v540, %v595
        %vm609 = vcmp.eq.s32.totalorder %v541, %v595
        %vm610 = vcmp.eq.s32.totalorder %v542, %v595
        %vm611 = vcmp.eq.s32.totalorder %v543, %v595
        %vm612 = vcmp.eq.s32.totalorder %v544, %v595
        %vm613 = vcmp.eq.s32.totalorder %v545, %v595
        %vm614 = vcmp.eq.s32.totalorder %v546, %v595
        %vm615 = vcmp.eq.s32.totalorder %v547, %v595
        %vm616 = vcmp.eq.s32.totalorder %v548, %v595
        %vm617 = vcmp.eq.s32.totalorder %v549, %v595
        %vm618 = vcmp.eq.s32.totalorder %v550, %v595
        %vm619 = vcmp.eq.s32.totalorder %v551, %v595
        %vm620 = vcmp.eq.s32.totalorder %v552, %v595
        %vm621 = vcmp.eq.s32.totalorder %v553, %v595
        %vm622 = vcmp.eq.s32.totalorder %v554, %v595
        %vm623 = vcmp.eq.s32.totalorder %v555, %v595
        %vm624 = vcmp.eq.s32.totalorder %v556, %v595
        %vm625 = vcmp.eq.s32.totalorder %v557, %v595
        %vm626 = vcmp.eq.s32.totalorder %v558, %v595
        %vm627 = vcmp.eq.s32.totalorder %v559, %v595
        %vm628 = vcmp.eq.s32.totalorder %v560, %v595
        %vm629 = vcmp.eq.s32.totalorder %v561, %v595
        %vm630 = vcmp.eq.s32.totalorder %v562, %v595
        %vm631 = vcmp.eq.s32.totalorder %v563, %v595
        %vm632 = vcmp.eq.s32.totalorder %v564, %v595
        %vm633 = vcmp.eq.s32.totalorder %v565, %v595
        %vm634 = vcmp.eq.s32.totalorder %v566, %v595
        %vm635 = vcmp.eq.s32.totalorder %v567, %v595
        %vm636 = vcmp.eq.s32.totalorder %v568, %v595
        %vm637 = vcmp.eq.s32.totalorder %v569, %v595
        %vm638 = vcmp.eq.s32.totalorder %v570, %v595
        %vm639 = vcmp.eq.s32.totalorder %v571, %v595
        %vm640 = vcmp.eq.s32.totalorder %v572, %v595
        %vm641 = vcmp.eq.s32.totalorder %v573, %v595
        %vm642 = vcmp.eq.s32.totalorder %v574, %v595
        %vm643 = vcmp.eq.s32.totalorder %v575, %v595
        %vm644 = vcmp.eq.s32.totalorder %v576, %v595
        %vm645 = vcmp.eq.s32.totalorder %v577, %v595
        %vm646 = vcmp.eq.s32.totalorder %v578, %v595
        %vm647 = vcmp.eq.s32.totalorder %v579, %v595
        %vm648 = vcmp.eq.s32.totalorder %v580, %v595
        %vm649 = vcmp.eq.s32.totalorder %v581, %v595
        %vm650 = vcmp.eq.s32.totalorder %v582, %v595
        %vm651 = vcmp.eq.s32.totalorder %v583, %v595
        %vm652 = vcmp.eq.s32.totalorder %v584, %v595
        %vm653 = vcmp.eq.s32.totalorder %v585, %v595
        %vm654 = vcmp.eq.s32.totalorder %v586, %v595
        %vm655 = vcmp.eq.s32.totalorder %v587, %v595
        %vm656 = vcmp.eq.s32.totalorder %v588, %v595
        %vm657 = vcmp.eq.s32.totalorder %v589, %v595
        %vm658 = vcmp.eq.s32.totalorder %v590, %v595
        %vm659 = vcmp.eq.s32.totalorder %v591, %v595
        %v660 = vsel %vm596, 1, 0
        %v661 = vsel %vm597, 1, 0
        %v662 = vsel %vm598, 1, 0
        %v663 = vsel %vm599, 1, 0
        %v664 = vsel %vm600, 1, 0
        %v665 = vsel %vm601, 1, 0
        %v666 = vsel %vm602, 1, 0
        %v667 = vsel %vm603, 1, 0
        %v668 = vsel %vm604, 1, 0
        %v669 = vsel %vm605, 1, 0
        %v670 = vsel %vm606, 1, 0
        %v671 = vsel %vm607, 1, 0
        %v672 = vsel %vm608, 1, 0
        %v673 = vsel %vm609, 1, 0
        %v674 = vsel %vm610, 1, 0
        %v675 = vsel %vm611, 1, 0
        %v676 = vsel %vm612, 1, 0
        %v677 = vsel %vm613, 1, 0
        %v678 = vsel %vm614, 1, 0
        %v679 = vsel %vm615, 1, 0
        %v680 = vsel %vm616, 1, 0
        %v681 = vsel %vm617, 1, 0
        %v682 = vsel %vm618, 1, 0
        %v683 = vsel %vm619, 1, 0
        %v684 = vsel %vm620, 1, 0
        %v685 = vsel %vm621, 1, 0
        %v686 = vsel %vm622, 1, 0
        %v687 = vsel %vm623, 1, 0
        %v688 = vsel %vm624, 1, 0
        %v689 = vsel %vm625, 1, 0
        %v690 = vsel %vm626, 1, 0
        %v691 = vsel %vm627, 1, 0
        %v692 = vsel %vm628, 1, 0
        %v693 = vsel %vm629, 1, 0
        %v694 = vsel %vm630, 1, 0
        %v695 = vsel %vm631, 1, 0
        %v696 = vsel %vm632, 1, 0
        %v697 = vsel %vm633, 1, 0
        %v698 = vsel %vm634, 1, 0
        %v699 = vsel %vm635, 1, 0
        %v700 = vsel %vm636, 1, 0
        %v701 = vsel %vm637, 1, 0
        %v702 = vsel %vm638, 1, 0
        %v703 = vsel %vm639, 1, 0
        %v704 = vsel %vm640, 1, 0
        %v705 = vsel %vm641, 1, 0
        %v706 = vsel %vm642, 1, 0
        %v707 = vsel %vm643, 1, 0
        %v708 = vsel %vm644, 1, 0
        %v709 = vsel %vm645, 1, 0
        %v710 = vsel %vm646, 1, 0
        %v711 = vsel %vm647, 1, 0
        %v712 = vsel %vm648, 1, 0
        %v713 = vsel %vm649, 1, 0
        %v714 = vsel %vm650, 1, 0
        %v715 = vsel %vm651, 1, 0
        %v716 = vsel %vm652, 1, 0
        %v717 = vsel %vm653, 1, 0
        %v718 = vsel %vm654, 1, 0
        %v719 = vsel %vm655, 1, 0
        %v720 = vsel %vm656, 1, 0
        %v721 = vsel %vm657, 1, 0
        %v722 = vsel %vm658, 1, 0
        %v723 = vsel %vm659, 1, 0
        %v724 = vcvt.s32.f32 %v660
        %v725 = vcvt.s32.f32 %v661
        %v726 = vcvt.s32.f32 %v662
        %v727 = vcvt.s32.f32 %v663
        %v728 = vcvt.s32.f32 %v664
        %v729 = vcvt.s32.f32 %v665
        %v730 = vcvt.s32.f32 %v666
        %v731 = vcvt.s32.f32 %v667
        %v732 = vcvt.s32.f32 %v668
        %v733 = vcvt.s32.f32 %v669
        %v734 = vcvt.s32.f32 %v670
        %v735 = vcvt.s32.f32 %v671
        %v736 = vcvt.s32.f32 %v672
        %v737 = vcvt.s32.f32 %v673
        %v738 = vcvt.s32.f32 %v674
        %v739 = vcvt.s32.f32 %v675
        %v740 = vcvt.s32.f32 %v676
        %v741 = vcvt.s32.f32 %v677
        %v742 = vcvt.s32.f32 %v678
        %v743 = vcvt.s32.f32 %v679
        %v744 = vcvt.s32.f32 %v680
        %v745 = vcvt.s32.f32 %v681
        %v746 = vcvt.s32.f32 %v682
        %v747 = vcvt.s32.f32 %v683
        %v748 = vcvt.s32.f32 %v684
        %v749 = vcvt.s32.f32 %v685
        %v750 = vcvt.s32.f32 %v686
        %v751 = vcvt.s32.f32 %v687
        %v752 = vcvt.s32.f32 %v688
        %v753 = vcvt.s32.f32 %v689
        %v754 = vcvt.s32.f32 %v690
        %v755 = vcvt.s32.f32 %v691
        %v756 = vcvt.s32.f32 %v692
        %v757 = vcvt.s32.f32 %v693
        %v758 = vcvt.s32.f32 %v694
        %v759 = vcvt.s32.f32 %v695
        %v760 = vcvt.s32.f32 %v696
        %v761 = vcvt.s32.f32 %v697
        %v762 = vcvt.s32.f32 %v698
        %v763 = vcvt.s32.f32 %v699
        %v764 = vcvt.s32.f32 %v700
        %v765 = vcvt.s32.f32 %v701
        %v766 = vcvt.s32.f32 %v702
        %v767 = vcvt.s32.f32 %v703
        %v768 = vcvt.s32.f32 %v704
        %v769 = vcvt.s32.f32 %v705
        %v770 = vcvt.s32.f32 %v706
        %v771 = vcvt.s32.f32 %v707
        %v772 = vcvt.s32.f32 %v708
        %v773 = vcvt.s32.f32 %v709
        %v774 = vcvt.s32.f32 %v710
        %v775 = vcvt.s32.f32 %v711
        %v776 = vcvt.s32.f32 %v712
        %v777 = vcvt.s32.f32 %v713
        %v778 = vcvt.s32.f32 %v714
        %v779 = vcvt.s32.f32 %v715
        %v780 = vcvt.s32.f32 %v716
        %v781 = vcvt.s32.f32 %v717
        %v782 = vcvt.s32.f32 %v718
        %v783 = vcvt.s32.f32 %v719
        %v784 = vcvt.s32.f32 %v720
        %v785 = vcvt.s32.f32 %v721
        %v786 = vcvt.s32.f32 %v722
        %v787 = vcvt.s32.f32 %v723
        %v789 = vrot.slane %v406, 7
        %v791 = vsel %vm403, 1.0, %v789
        %792 = vmatprep.subr.mxu0 0.0
        %793 = vmatpush1.xpose.msra.mxu0 %v739
        %794 = vmatprep.subr.mxu0 0.0
        %795 = vmatpush1.xpose.msra.mxu0 %v738
        %796 = vmatprep.subr.mxu0 0.0
        %797 = vmatpush1.xpose.msra.mxu0 %v737
        %798 = vmatprep.subr.mxu0 0.0
        %799 = vmatpush1.xpose.msra.mxu0 %v736
        %800 = vmatprep.subr.mxu0 0.0
        %801 = vmatpush1.xpose.msra.mxu0 %v735
        %802 = vmatprep.subr.mxu0 0.0
        %803 = vmatpush1.xpose.msra.mxu0 %v734
        %804 = vmatprep.subr.mxu0 0.0
        %805 = vmatpush1.xpose.msra.mxu0 %v733
        %806 = vmatprep.subr.mxu0 0.0
        %807 = vmatpush1.xpose.msra.mxu0 %v732
        %808 = vmatprep.subr.mxu0 0.0
        %809 = vmatpush1.xpose.msra.mxu0 %v731
        %810 = vmatprep.subr.mxu0 0.0
        %811 = vmatpush1.xpose.msra.mxu0 %v730
        %812 = vmatprep.subr.mxu0 0.0
        %813 = vmatpush1.xpose.msra.mxu0 %v729
        %814 = vmatprep.subr.mxu0 0.0
        %815 = vmatpush1.xpose.msra.mxu0 %v728
        %816 = vmatprep.subr.mxu0 0.0
        %817 = vmatpush1.xpose.msra.mxu0 %v727
        %818 = vmatprep.subr.mxu0 0.0
        %819 = vmatpush1.xpose.msra.mxu0 %v726
        %820 = vmatprep.subr.mxu0 0.0
        %821 = vmatpush1.xpose.msra.mxu0 %v725
        %822 = vmatprep.subr.mxu0 0.0
        %823 = vmatpush1.xpose.msra.mxu0 %v724
        %824 = vmatprep.subr.mxu0 0.0
        %825 = vmatpush2.xpose.msra.mxu0 %v755
        %826 = vmatprep.subr.mxu0 0.0
        %827 = vmatpush2.xpose.msra.mxu0 %v754
        %828 = vmatprep.subr.mxu0 0.0
        %829 = vmatpush2.xpose.msra.mxu0 %v753
        %830 = vmatprep.subr.mxu0 0.0
        %831 = vmatpush2.xpose.msra.mxu0 %v752
        %832 = vmatprep.subr.mxu0 0.0
        %833 = vmatpush2.xpose.msra.mxu0 %v751
        %834 = vmatprep.subr.mxu0 0.0
        %835 = vmatpush2.xpose.msra.mxu0 %v750
        %836 = vmatprep.subr.mxu0 0.0
        %837 = vmatpush2.xpose.msra.mxu0 %v749
        %838 = vmatprep.subr.mxu0 0.0
        %839 = vmatpush2.xpose.msra.mxu0 %v748
        %840 = vmatprep.subr.mxu0 0.0
        %841 = vmatpush2.xpose.msra.mxu0 %v747
        %842 = vmatprep.subr.mxu0 0.0
        %843 = vmatpush2.xpose.msra.mxu0 %v746
        %844 = vmatprep.subr.mxu0 0.0
        %845 = vmatpush2.xpose.msra.mxu0 %v745
        %846 = vmatprep.subr.mxu0 0.0
        %847 = vmatpush2.xpose.msra.mxu0 %v744
        %848 = vmatprep.subr.mxu0 0.0
        %849 = vmatpush2.xpose.msra.mxu0 %v743
        %850 = vmatprep.subr.mxu0 0.0
        %851 = vmatpush2.xpose.msra.mxu0 %v742
        %852 = vmatprep.subr.mxu0 0.0
        %853 = vmatpush2.xpose.msra.mxu0 %v741
        %854 = vmatprep.subr.mxu0 0.0
        %855 = vmatpush2.xpose.msra.mxu0 %v740
        %856 = vmatprep.mubr.f32.mxu0 0.0
        %857 = vmatmul.mubr.f32.gmra.mxu0 %v791
        %v858 = vpop.f32.mrf.mxu0
        %v859 = vadd.f32 0.0, %v858
        %v860 = vpop.f32.mrf.mxu0
        %v861 = vadd.f32 0.0, %v860
        %862 = vdwg.mxu0
        %863 = vmatprep.subr.mxu0 0.0
        %864 = vmatpush1.xpose.msra.mxu0 %v771
        %865 = vmatprep.subr.mxu0 0.0
        %866 = vmatpush1.xpose.msra.mxu0 %v770
        %867 = vmatprep.subr.mxu0 0.0
        %868 = vmatpush1.xpose.msra.mxu0 %v769
        %869 = vmatprep.subr.mxu0 0.0
        %870 = vmatpush1.xpose.msra.mxu0 %v768
        %871 = vmatprep.subr.mxu0 0.0
        %872 = vmatpush1.xpose.msra.mxu0 %v767
        %873 = vmatprep.subr.mxu0 0.0
        %874 = vmatpush1.xpose.msra.mxu0 %v766
        %875 = vmatprep.subr.mxu0 0.0
        %876 = vmatpush1.xpose.msra.mxu0 %v765
        %877 = vmatprep.subr.mxu0 0.0
        %878 = vmatpush1.xpose.msra.mxu0 %v764
        %879 = vmatprep.subr.mxu0 0.0
        %880 = vmatpush1.xpose.msra.mxu0 %v763
        %881 = vmatprep.subr.mxu0 0.0
        %882 = vmatpush1.xpose.msra.mxu0 %v762
        %883 = vmatprep.subr.mxu0 0.0
        %884 = vmatpush1.xpose.msra.mxu0 %v761
        %885 = vmatprep.subr.mxu0 0.0
        %886 = vmatpush1.xpose.msra.mxu0 %v760
        %887 = vmatprep.subr.mxu0 0.0
        %888 = vmatpush1.xpose.msra.mxu0 %v759
        %889 = vmatprep.subr.mxu0 0.0
        %890 = vmatpush1.xpose.msra.mxu0 %v758
        %891 = vmatprep.subr.mxu0 0.0
        %892 = vmatpush1.xpose.msra.mxu0 %v757
        %893 = vmatprep.subr.mxu0 0.0
        %894 = vmatpush1.xpose.msra.mxu0 %v756
        %895 = vmatprep.subr.mxu0 0.0
        %896 = vmatpush2.xpose.msra.mxu0 %v787
        %897 = vmatprep.subr.mxu0 0.0
        %898 = vmatpush2.xpose.msra.mxu0 %v786
        %899 = vmatprep.subr.mxu0 0.0
        %900 = vmatpush2.xpose.msra.mxu0 %v785
        %901 = vmatprep.subr.mxu0 0.0
        %902 = vmatpush2.xpose.msra.mxu0 %v784
        %903 = vmatprep.subr.mxu0 0.0
        %904 = vmatpush2.xpose.msra.mxu0 %v783
        %905 = vmatprep.subr.mxu0 0.0
        %906 = vmatpush2.xpose.msra.mxu0 %v782
        %907 = vmatprep.subr.mxu0 0.0
        %908 = vmatpush2.xpose.msra.mxu0 %v781
        %909 = vmatprep.subr.mxu0 0.0
        %910 = vmatpush2.xpose.msra.mxu0 %v780
        %911 = vmatprep.subr.mxu0 0.0
        %912 = vmatpush2.xpose.msra.mxu0 %v779
        %913 = vmatprep.subr.mxu0 0.0
        %914 = vmatpush2.xpose.msra.mxu0 %v778
        %915 = vmatprep.subr.mxu0 0.0
        %916 = vmatpush2.xpose.msra.mxu0 %v777
        %917 = vmatprep.subr.mxu0 0.0
        %918 = vmatpush2.xpose.msra.mxu0 %v776
        %919 = vmatprep.subr.mxu0 0.0
        %920 = vmatpush2.xpose.msra.mxu0 %v775
        %921 = vmatprep.subr.mxu0 0.0
        %922 = vmatpush2.xpose.msra.mxu0 %v774
        %923 = vmatprep.subr.mxu0 0.0
        %924 = vmatpush2.xpose.msra.mxu0 %v773
        %925 = vmatprep.subr.mxu0 0.0
        %926 = vmatpush2.xpose.msra.mxu0 %v772
        %927 = vmatprep.mubr.f32.mxu0 0.0
        %928 = vmatmul.mubr.f32.gmra.mxu0 %v791
        %v929 = vpop.f32.mrf.mxu0
        %v930 = vadd.f32 0.0, %v929
        %v931 = vpop.f32.mrf.mxu0
        %v932 = vadd.f32 0.0, %v931
        %933 = vdwg.mxu0
        %v938 = vcombine.low %v859, %v861
        %v939 = vcombine.low %v930, %v932
        %942 = vst [vmem:[%s360] sm:$0xff] %v938
        %943 = vst [vmem:[%s360 + $0x8] sm:$0xff] %v939
        %p944 = scmp.lt.s32.totalorder %s21, 1
        %s945 = scalar_select %p944, %s21, 1
        %s946 = smul.addr %s945, 4
        %s947 = scalar_lea.vmem %s5, %s946
        %p948 = scmp.lt.s32.totalorder %s21, 1
        %s949 = scalar_select %p948, %s21, 1
        %s950 = smul.addr %s949, 2
        %s951 = scalar_lea.vmem %s6, %s950
        %p952 = scmp.lt.s32.totalorder %s21, 1
        %s953 = scalar_select %p952, %s21, 1
        %s954 = smul.addr %s953, 4
        %s955 = smul.addr %s954, 4
        %s956 = scalar_lea.vmem %s7, %s955
        // Predicated region
        $region49: #{_forward_core.5} parent=39 // pred_check
          %p957 = pneg %p159
        $region50: #{_forward_core.5} parent=39 // pred_check_branch
          %959 = sbr.rel (%p957) target = $region52
        $region51: #{_forward_core.5} parent=39 // pred_region
          _
        $region52: #{_forward_core.5} parent=39 // pred_fallthru
          _
        // Predicated region
        $region53: #{_forward_core.5} parent=39 // pred_check
          %p960 = pneg %p185
        $region54: #{_forward_core.5} parent=39 // pred_check_branch
          %962 = sbr.rel (%p960) target = $region56
        $region55: #{_forward_core.5} parent=39 // pred_region
          _
        $region56: #{_forward_core.5} parent=39 // pred_fallthru
          _
        // Predicated region
        $region57: #{_forward_core.5} parent=39 // pred_check
          %p963 = pneg %p211
        $region58: #{_forward_core.5} parent=39 // pred_check_branch
          %965 = sbr.rel (%p963) target = $region60
        $region59: #{_forward_core.5} parent=39 // pred_region
          _
        $region60: #{_forward_core.5} parent=39 // pred_fallthru
          _
      $region40: #{_forward_core.5} parent=5 // pred_fallthru
        _
      %p966 = scmp.le.s32.totalorder 2, %s16
      // Predicated region
      $region61: #{_forward_core.5} parent=5 // pred_check
        %p967 = pneg %p966
      $region62: #{_forward_core.5} parent=5 // pred_check_branch
        %969 = sbr.rel (%p967) target = $region64
      $region63: #{_forward_core.5} parent=5 // pred_region
        %s970 = ssub.s32 %s16, 2
        // Predicated region
        $region65: #{_forward_core.5} parent=63 // pred_check
          %p971 = pneg %p165
        $region66: #{_forward_core.5} parent=63 // pred_check_branch
          %973 = sbr.rel (%p971) target = $region68
        $region67: #{_forward_core.5} parent=63 // pred_region
          %p974 = scmp.lt.s32.totalorder %s22, 1
          %s975 = scalar_select %p974, %s22, 1
          %s976 = smul.addr %s975, 4
          %s977 = scalar_lea.vmem %s5, %s976
        $region68: #{_forward_core.5} parent=63 // pred_fallthru
          _
        // Predicated region
        $region69: #{_forward_core.5} parent=63 // pred_check
          %p978 = pneg %p191
        $region70: #{_forward_core.5} parent=63 // pred_check_branch
          %980 = sbr.rel (%p978) target = $region72
        $region71: #{_forward_core.5} parent=63 // pred_region
          %p981 = scmp.lt.s32.totalorder %s22, 1
          %s982 = scalar_select %p981, %s22, 1
          %s983 = smul.addr %s982, 2
          %s984 = scalar_lea.vmem %s6, %s983
        $region72: #{_forward_core.5} parent=63 // pred_fallthru
          _
        // Predicated region
        $region73: #{_forward_core.5} parent=63 // pred_check
          %p985 = pneg %p217
        $region74: #{_forward_core.5} parent=63 // pred_check_branch
          %987 = sbr.rel (%p985) target = $region76
        $region75: #{_forward_core.5} parent=63 // pred_region
          %p988 = scmp.lt.s32.totalorder %s22, 1
          %s989 = scalar_select %p988, %s22, 1
          %s990 = smul.addr %s989, 4
          %s991 = smul.addr %s990, 4
          %s992 = scalar_lea.vmem %s7, %s991
        $region76: #{_forward_core.5} parent=63 // pred_fallthru
          _
      $region64: #{_forward_core.5} parent=5 // pred_fallthru
        _
    $region6: #{_forward_core.5} parent=1 // loop_footer
      %s20 = sadd.s32 1, %s16
    $region7: #{_forward_core.5} parent=1 // loop_footer_branch
      %15 = sbr.rel target = $region3
    $region8: #{_forward_core.5} parent=1 // loop_exit
      _
    %993 = vsyncpa [#allocation3], 1
    %s994 = scalar_lea.sflag [#allocation3], 1
    %995 = vsyncpa %s994, 1
    %996 = vsyncpa [#allocation5], 1

// kernel: _forward_core.6
$region0: #{_forward_core.6}
  #allocation0 [shape = 'u32[]', space=smem, size = 0x4, offset = 0x4, fixed_abs, tag = 'smem constant byte address 0x4 - core index']
  #allocation1 [shape = 'u32[144,128]{1,0:T(1,128)}', space=vmem, size = 0x12000, scoped, tag = 'internal scratch']
  %s0 = inlined_call_operand.vmem [shape: f32[1024,189], index: 0, kind: input, shape index: {}]
  %s1 = inlined_call_operand.vmem [shape: f32[189,128], index: 1, kind: input, shape index: {}]
  %s2 = inlined_call_operand.vmem [shape: f32[1,128], index: 2, kind: input, shape index: {}]
  %s3 = inlined_call_operand.vmem [shape: f32[1024,128], index: 3, kind: output, shape index: {}]
  %s4 = sld [smem:[#allocation0]]
  $region45: #{_forward_core.6} parent=0
    _
  %s6 = ssub.s32 1, %s4
  %s7 = scalar_select 0, %s6, %s4
  loop: start=0, step=1, limit=4
  $region2: #{_forward_core.6} parent=0 // loop_pre_header
    _
  $region3: #{_forward_core.6} parent=0 // loop_header
    %s9 = sphi 0, %s13
    %p10 = scmp.ge.s32.totalorder %s9, 4
    %s19 = sphi 0, %s21
    %s22 = sphi 0, %s19
    %s23 = sphi 0, %s22
    %s39 = sphi 0, %s23
    %s43 = sphi 0, %s43
    %s45 = sphi 0, %s43
    %s46 = sphi 0, %s45
    %s60 = sphi 0, %s46
    %s64 = sphi 0, %s64
    %s66 = sphi 0, %s64
    %s67 = sphi 0, %s66
    %s81 = sphi 0, %s67
    %s87 = sphi 0, %s89
    %s90 = sphi 0, %s87
    %s91 = sphi 0, %s90
    %s107 = sphi 0, %s91
  $region4: #{_forward_core.6} parent=0 // loop_header_branch
    %12 = sbr.rel (%p10) target = $region8
  $region5: #{_forward_core.6} parent=0 // loop_body
    %s14 = ssub.s32 %s9, 1
    %s15 = ssub.s32 %s9, 2
    %s16 = sadd.s32 %s9, 1
    %s17 = ssub.s32 %s9, %s16
    %p18 = scmp.eq.s32.totalorder %s17, 0
    %s20 = sadd.s32 %s19, 1
    %s21 = scalar_select %p18, %s19, %s20
    %p24 = pneg %p18
    %p25 = scmp.eq.s32.totalorder %s9, 1
    %p26 = por %p24, %p25
    %p27 = scmp.ne.s32.totalorder %s19, %s22
    %p28 = scmp.eq.s32.totalorder %s9, 0
    %p29 = por %p27, %p28
    %p30 = scmp.ne.s32.totalorder %s19, %s22
    %p31 = scmp.eq.s32.totalorder %s14, 1
    %p32 = por %p30, %p31
    %p33 = scmp.ne.s32.totalorder %s22, %s23
    %p34 = scmp.eq.s32.totalorder %s14, 0
    %p35 = por %p33, %p34
    %p36 = scmp.ne.s32.totalorder %s22, %s23
    %p37 = scmp.eq.s32.totalorder %s15, 1
    %p38 = por %p36, %p37
    %p40 = scmp.ne.s32.totalorder %s23, %s39
    %p41 = scmp.eq.s32.totalorder %s15, 0
    %p42 = por %p40, %p41
    %s44 = sadd.s32 %s43, 1
    %p47 = scmp.eq.s32.totalorder %s9, 1
    %p48 = scmp.ne.s32.totalorder %s43, %s45
    %p49 = scmp.eq.s32.totalorder %s9, 0
    %p50 = por %p48, %p49
    %p51 = scmp.ne.s32.totalorder %s43, %s45
    %p52 = scmp.eq.s32.totalorder %s14, 1
    %p53 = por %p51, %p52
    %p54 = scmp.ne.s32.totalorder %s45, %s46
    %p55 = scmp.eq.s32.totalorder %s14, 0
    %p56 = por %p54, %p55
    %p57 = scmp.ne.s32.totalorder %s45, %s46
    %p58 = scmp.eq.s32.totalorder %s15, 1
    %p59 = por %p57, %p58
    %p61 = scmp.ne.s32.totalorder %s46, %s60
    %p62 = scmp.eq.s32.totalorder %s15, 0
    %p63 = por %p61, %p62
    %s65 = sadd.s32 %s64, 1
    %p68 = scmp.eq.s32.totalorder %s9, 1
    %p69 = scmp.ne.s32.totalorder %s64, %s66
    %p70 = scmp.eq.s32.totalorder %s9, 0
    %p71 = por %p69, %p70
    %p72 = scmp.ne.s32.totalorder %s64, %s66
    %p73 = scmp.eq.s32.totalorder %s14, 1
    %p74 = por %p72, %p73
    %p75 = scmp.ne.s32.totalorder %s66, %s67
    %p76 = scmp.eq.s32.totalorder %s14, 0
    %p77 = por %p75, %p76
    %p78 = scmp.ne.s32.totalorder %s66, %s67
    %p79 = scmp.eq.s32.totalorder %s15, 1
    %p80 = por %p78, %p79
    %p82 = scmp.ne.s32.totalorder %s67, %s81
    %p83 = scmp.eq.s32.totalorder %s15, 0
    %p84 = por %p82, %p83
    %s85 = ssub.s32 %s9, %s16
    %p86 = scmp.eq.s32.totalorder %s85, 0
    %s88 = sadd.s32 %s87, 1
    %s89 = scalar_select %p86, %s87, %s88
    %p92 = pneg %p86
    %p93 = scmp.eq.s32.totalorder %s9, 1
    %p94 = por %p92, %p93
    %p95 = scmp.ne.s32.totalorder %s87, %s90
    %p96 = scmp.eq.s32.totalorder %s9, 0
    %p97 = por %p95, %p96
    %p98 = scmp.ne.s32.totalorder %s87, %s90
    %p99 = scmp.eq.s32.totalorder %s14, 1
    %p100 = por %p98, %p99
    %p101 = scmp.ne.s32.totalorder %s90, %s91
    %p102 = scmp.eq.s32.totalorder %s14, 0
    %p103 = por %p101, %p102
    %p104 = scmp.ne.s32.totalorder %s90, %s91
    %p105 = scmp.eq.s32.totalorder %s15, 1
    %p106 = por %p104, %p105
    %p108 = scmp.ne.s32.totalorder %s91, %s107
    %p109 = scmp.eq.s32.totalorder %s15, 0
    %p110 = por %p108, %p109
    %p111 = scmp.le.s32.totalorder 1, %s9
    %p112 = scmp.lt.s32.totalorder %s9, 3
    %p113 = pnand %p111, %p112
    %p114 = pneg %p113
    // Predicated region
    $region9: #{_forward_core.6} parent=5 // pred_check
      _
    $region10: #{_forward_core.6} parent=5 // pred_check_branch
      %116 = sbr.rel (%p113) target = $region12
    $region11: #{_forward_core.6} parent=5 // pred_region
      %s117 = ssub.s32 %s9, 1
      // Predicated region
      $region13: #{_forward_core.6} parent=11 // pred_check
        %p118 = pneg %p56
      $region14: #{_forward_core.6} parent=11 // pred_check_branch
        %120 = sbr.rel (%p118) target = $region16
      $region15: #{_forward_core.6} parent=11 // pred_region
        _
      $region16: #{_forward_core.6} parent=11 // pred_fallthru
        _
      // Predicated region
      $region17: #{_forward_core.6} parent=11 // pred_check
        %p121 = pneg %p77
      $region18: #{_forward_core.6} parent=11 // pred_check_branch
        %123 = sbr.rel (%p121) target = $region20
      $region19: #{_forward_core.6} parent=11 // pred_region
        _
      $region20: #{_forward_core.6} parent=11 // pred_fallthru
        _
    $region12: #{_forward_core.6} parent=5 // pred_fallthru
      _
    %p124 = scmp.lt.s32.totalorder %s9, 2
    // Predicated region
    $region21: #{_forward_core.6} parent=5 // pred_check
      %p125 = pneg %p124
    $region22: #{_forward_core.6} parent=5 // pred_check_branch
      %127 = sbr.rel (%p125) target = $region24
    $region23: #{_forward_core.6} parent=5 // pred_region
      // Predicated region
      $region25: #{_forward_core.6} parent=23 // pred_check
        %p128 = pneg %p29
      $region26: #{_forward_core.6} parent=23 // pred_check_branch
        %130 = sbr.rel (%p128) target = $region28
      $region27: #{_forward_core.6} parent=23 // pred_region
        %s131 = smul.u32 64, %s9
        %p132 = scmp.lt.s32.totalorder %s131, 127
        %s133 = scalar_select %p132, %s131, 127
        %s134 = smul.addr %s133, 2
        %s135 = smul.addr %s134, 8
        %s136 = scalar_lea.vmem %s0, %s135
        %s137 = smul.u32 64, %s9
      $region28: #{_forward_core.6} parent=23 // pred_fallthru
        _
    $region24: #{_forward_core.6} parent=5 // pred_fallthru
      _
    %p138 = scmp.le.s32.totalorder 1, %s9
    %p139 = scmp.lt.s32.totalorder %s9, 3
    %p140 = pnand %p138, %p139
    %p141 = pneg %p140
    // Predicated region
    $region29: #{_forward_core.6} parent=5 // pred_check
      _
    $region30: #{_forward_core.6} parent=5 // pred_check_branch
      %143 = sbr.rel (%p140) target = $region32
    $region31: #{_forward_core.6} parent=5 // pred_region
      %s144 = ssub.s32 %s9, 1
      %s145 = smul.u32 64, %s14
      %p146 = scmp.lt.s32.totalorder %s145, 127
      %s147 = scalar_select %p146, %s145, 127
      %s148 = smul.addr %s147, 2
      %s149 = smul.addr %s148, 8
      %s150 = scalar_lea.vmem %s0, %s149
      %p151 = pneg %p35
      %p152 = pneg %p32
      %p153 = pneg %p56
      %p154 = pneg %p53
      %p155 = pneg %p77
      %p156 = pneg %p74
      %p157 = pneg %p103
      %p158 = pneg %p100
      %s159 = smul.u32 64, %s14
      %p160 = scmp.lt.s32.totalorder %s159, 127
      %s161 = scalar_select %p160, %s159, 127
      %s162 = smul.addr %s161, 8
      %s163 = scalar_lea.vmem %s3, %s162
      %s164 = smul.u32 64, %s14
      %p165 = scmp.lt.s32.totalorder %s164, 127
      %s166 = scalar_select %p165, %s164, 127
      %s167 = smul.addr %s166, 2
      %s168 = smul.addr %s167, 8
      %s169 = scalar_lea.vmem %s0, %s168
      %s170 = smul.u32 64, %s14
      %s171 = smul.u32 64, %s14
      %p172 = scmp.lt.s32.totalorder %s171, 127
      %s173 = scalar_select %p172, %s171, 127
      %s174 = smul.addr %s173, 8
      %s175 = scalar_lea.vmem %s3, %s174
      %s176 = smul.u32 64, %s14
      %v177 = vld [vmem:[%s169] sm:$0xff]
      %v178 = vld [vmem:[%s169 + $0x8] sm:$0xff]
      %v179 = vld [vmem:[%s169 + $0x10] sm:$0xff]
      %v180 = vld [vmem:[%s169 + $0x18] sm:$0xff]
      %v181 = vld [vmem:[%s169 + $0x20] sm:$0xff]
      %v182 = vld [vmem:[%s169 + $0x28] sm:$0xff]
      %v183 = vld [vmem:[%s169 + $0x30] sm:$0xff]
      %v184 = vld [vmem:[%s169 + $0x38] sm:$0xff]
      %v185 = vld [vmem:[%s169 + $0x40] sm:$0xff]
      %v186 = vld [vmem:[%s169 + $0x48] sm:$0xff]
      %v187 = vld [vmem:[%s169 + $0x50] sm:$0xff]
      %v188 = vld [vmem:[%s169 + $0x58] sm:$0xff]
      %v189 = vld [vmem:[%s169 + $0x60] sm:$0xff]
      %v190 = vld [vmem:[%s169 + $0x68] sm:$0xff]
      %v191 = vld [vmem:[%s169 + $0x70] sm:$0xff]
      %v192 = vld [vmem:[%s169 + $0x78] sm:$0xff]
      %v193 = vld [vmem:[%s169 + $0x80] sm:$0xff]
      %v194 = vld [vmem:[%s169 + $0x88] sm:$0xff]
      %v195 = vld [vmem:[%s169 + $0x90] sm:$0xff]
      %v196 = vld [vmem:[%s169 + $0x98] sm:$0xff]
      %v197 = vld [vmem:[%s169 + $0xa0] sm:$0xff]
      %v198 = vld [vmem:[%s169 + $0xa8] sm:$0xff]
      %v199 = vld [vmem:[%s169 + $0xb0] sm:$0xff]
      %v200 = vld [vmem:[%s169 + $0xb8] sm:$0xff]
      %v201 = vld [vmem:[%s169 + $0xc0] sm:$0xff]
      %v202 = vld [vmem:[%s169 + $0xc8] sm:$0xff]
      %v203 = vld [vmem:[%s169 + $0xd0] sm:$0xff]
      %v204 = vld [vmem:[%s169 + $0xd8] sm:$0xff]
      %v205 = vld [vmem:[%s169 + $0xe0] sm:$0xff]
      %v206 = vld [vmem:[%s169 + $0xe8] sm:$0xff]
      %v207 = vld [vmem:[%s169 + $0xf0] sm:$0xff]
      %v208 = vld [vmem:[%s169 + $0xf8] sm:$0xff]
      %v209 = vld [vmem:[%s169 + $0x100] sm:$0xff]
      %v210 = vld [vmem:[%s169 + $0x108] sm:$0xff]
      %v211 = vld [vmem:[%s169 + $0x110] sm:$0xff]
      %v212 = vld [vmem:[%s169 + $0x118] sm:$0xff]
      %v213 = vld [vmem:[%s169 + $0x120] sm:$0xff]
      %v214 = vld [vmem:[%s169 + $0x128] sm:$0xff]
      %v215 = vld [vmem:[%s169 + $0x130] sm:$0xff]
      %v216 = vld [vmem:[%s169 + $0x138] sm:$0xff]
      %v217 = vld [vmem:[%s169 + $0x140] sm:$0xff]
      %v218 = vld [vmem:[%s169 + $0x148] sm:$0xff]
      %v219 = vld [vmem:[%s169 + $0x150] sm:$0xff]
      %v220 = vld [vmem:[%s169 + $0x158] sm:$0xff]
      %v221 = vld [vmem:[%s169 + $0x160] sm:$0xff]
      %v222 = vld [vmem:[%s169 + $0x168] sm:$0xff]
      %v223 = vld [vmem:[%s169 + $0x170] sm:$0xff]
      %v224 = vld [vmem:[%s169 + $0x178] sm:$0xff]
      %v225 = vld [vmem:[%s169 + $0x180] sm:$0xff]
      %v226 = vld [vmem:[%s169 + $0x188] sm:$0xff]
      %v227 = vld [vmem:[%s169 + $0x190] sm:$0xff]
      %v228 = vld [vmem:[%s169 + $0x198] sm:$0xff]
      %v229 = vld [vmem:[%s169 + $0x1a0] sm:$0xff]
      %v230 = vld [vmem:[%s169 + $0x1a8] sm:$0xff]
      %v231 = vld [vmem:[%s169 + $0x1b0] sm:$0xff]
      %v232 = vld [vmem:[%s169 + $0x1b8] sm:$0xff]
      %v233 = vld [vmem:[%s169 + $0x1c0] sm:$0xff]
      %v234 = vld [vmem:[%s169 + $0x1c8] sm:$0xff]
      %v235 = vld [vmem:[%s169 + $0x1d0] sm:$0xff]
      %v236 = vld [vmem:[%s169 + $0x1d8] sm:$0xff]
      %v237 = vld [vmem:[%s169 + $0x1e0] sm:$0xff]
      %v238 = vld [vmem:[%s169 + $0x1e8] sm:$0xff]
      %v239 = vld [vmem:[%s169 + $0x1f0] sm:$0xff]
      %v240 = vld [vmem:[%s169 + $0x1f8] sm:$0xff]
      %v241 = vld [vmem:[%s169 + $0x200] sm:$0xff]
      %v242 = vld [vmem:[%s169 + $0x208] sm:$0xff]
      %v243 = vld [vmem:[%s169 + $0x210] sm:$0xff]
      %v244 = vld [vmem:[%s169 + $0x218] sm:$0xff]
      %v245 = vld [vmem:[%s169 + $0x220] sm:$0xff]
      %v246 = vld [vmem:[%s169 + $0x228] sm:$0xff]
      %v247 = vld [vmem:[%s169 + $0x230] sm:$0xff]
      %v248 = vld [vmem:[%s169 + $0x238] sm:$0xff]
      %v249 = vld [vmem:[%s169 + $0x240] sm:$0xff]
      %v250 = vld [vmem:[%s169 + $0x248] sm:$0xff]
      %v251 = vld [vmem:[%s169 + $0x250] sm:$0xff]
      %v252 = vld [vmem:[%s169 + $0x258] sm:$0xff]
      %v253 = vld [vmem:[%s169 + $0x260] sm:$0xff]
      %v254 = vld [vmem:[%s169 + $0x268] sm:$0xff]
      %v255 = vld [vmem:[%s169 + $0x270] sm:$0xff]
      %v256 = vld [vmem:[%s169 + $0x278] sm:$0xff]
      %v257 = vld [vmem:[%s169 + $0x280] sm:$0xff]
      %v258 = vld [vmem:[%s169 + $0x288] sm:$0xff]
      %v259 = vld [vmem:[%s169 + $0x290] sm:$0xff]
      %v260 = vld [vmem:[%s169 + $0x298] sm:$0xff]
      %v261 = vld [vmem:[%s169 + $0x2a0] sm:$0xff]
      %v262 = vld [vmem:[%s169 + $0x2a8] sm:$0xff]
      %v263 = vld [vmem:[%s169 + $0x2b0] sm:$0xff]
      %v264 = vld [vmem:[%s169 + $0x2b8] sm:$0xff]
      %v265 = vld [vmem:[%s169 + $0x2c0] sm:$0xff]
      %v266 = vld [vmem:[%s169 + $0x2c8] sm:$0xff]
      %v267 = vld [vmem:[%s169 + $0x2d0] sm:$0xff]
      %v268 = vld [vmem:[%s169 + $0x2d8] sm:$0xff]
      %v269 = vld [vmem:[%s169 + $0x2e0] sm:$0xff]
      %v270 = vld [vmem:[%s169 + $0x2e8] sm:$0xff]
      %v271 = vld [vmem:[%s169 + $0x2f0] sm:$0xff]
      %v272 = vld [vmem:[%s169 + $0x2f8] sm:$0xff]
      %v273 = vld [vmem:[%s169 + $0x300] sm:$0xff]
      %v274 = vld [vmem:[%s169 + $0x308] sm:$0xff]
      %v275 = vld [vmem:[%s169 + $0x310] sm:$0xff]
      %v276 = vld [vmem:[%s169 + $0x318] sm:$0xff]
      %v277 = vld [vmem:[%s169 + $0x320] sm:$0xff]
      %v278 = vld [vmem:[%s169 + $0x328] sm:$0xff]
      %v279 = vld [vmem:[%s169 + $0x330] sm:$0xff]
      %v280 = vld [vmem:[%s169 + $0x338] sm:$0xff]
      %v281 = vld [vmem:[%s169 + $0x340] sm:$0xff]
      %v282 = vld [vmem:[%s169 + $0x348] sm:$0xff]
      %v283 = vld [vmem:[%s169 + $0x350] sm:$0xff]
      %v284 = vld [vmem:[%s169 + $0x358] sm:$0xff]
      %v285 = vld [vmem:[%s169 + $0x360] sm:$0xff]
      %v286 = vld [vmem:[%s169 + $0x368] sm:$0xff]
      %v287 = vld [vmem:[%s169 + $0x370] sm:$0xff]
      %v288 = vld [vmem:[%s169 + $0x378] sm:$0xff]
      %v289 = vld [vmem:[%s169 + $0x380] sm:$0xff]
      %v290 = vld [vmem:[%s169 + $0x388] sm:$0xff]
      %v291 = vld [vmem:[%s169 + $0x390] sm:$0xff]
      %v292 = vld [vmem:[%s169 + $0x398] sm:$0xff]
      %v293 = vld [vmem:[%s169 + $0x3a0] sm:$0xff]
      %v294 = vld [vmem:[%s169 + $0x3a8] sm:$0xff]
      %v295 = vld [vmem:[%s169 + $0x3b0] sm:$0xff]
      %v296 = vld [vmem:[%s169 + $0x3b8] sm:$0xff]
      %v297 = vld [vmem:[%s169 + $0x3c0] sm:$0xff]
      %v298 = vld [vmem:[%s169 + $0x3c8] sm:$0xff]
      %v299 = vld [vmem:[%s169 + $0x3d0] sm:$0xff]
      %v300 = vld [vmem:[%s169 + $0x3d8] sm:$0xff]
      %v301 = vld [vmem:[%s169 + $0x3e0] sm:$0xff]
      %v302 = vld [vmem:[%s169 + $0x3e8] sm:$0xff]
      %v303 = vld [vmem:[%s169 + $0x3f0] sm:$0xff]
      %v304 = vld [vmem:[%s169 + $0x3f8] sm:$0xff]
      %v305 = vld [vmem:[%s1] sm:$0xff]
      %v306 = vld [vmem:[%s1 + $0x8] sm:$0xff]
      %v307 = vld [vmem:[%s1 + $0x10] sm:$0xff]
      %v308 = vld [vmem:[%s1 + $0x18] sm:$0xff]
      %v309 = vld [vmem:[%s1 + $0x20] sm:$0xff]
      %v310 = vld [vmem:[%s1 + $0x28] sm:$0xff]
      %v311 = vld [vmem:[%s1 + $0x30] sm:$0xff]
      %v312 = vld [vmem:[%s1 + $0x38] sm:$0xff]
      %v313 = vld [vmem:[%s1 + $0x40] sm:$0xff]
      %v314 = vld [vmem:[%s1 + $0x48] sm:$0xff]
      %v315 = vld [vmem:[%s1 + $0x50] sm:$0xff]
      %v316 = vld [vmem:[%s1 + $0x58] sm:$0xff]
      %v317 = vld [vmem:[%s1 + $0x60] sm:$0xff]
      %v318 = vld [vmem:[%s1 + $0x68] sm:$0xff]
      %v319 = vld [vmem:[%s1 + $0x70] sm:$0xff]
      %v320 = vld [vmem:[%s1 + $0x78] sm:$0xff]
      %v321 = vld [vmem:[%s1 + $0x80] sm:$0xff]
      %v322 = vld [vmem:[%s1 + $0x88] sm:$0xff]
      %v323 = vld [vmem:[%s1 + $0x90] sm:$0xff]
      %v324 = vld [vmem:[%s1 + $0x98] sm:$0xff]
      %v325 = vld [vmem:[%s1 + $0xa0] sm:$0xff]
      %v326 = vld [vmem:[%s1 + $0xa8] sm:$0xff]
      %v327 = vld [vmem:[%s1 + $0xb0] sm:$0xff]
      %v328 = vld [vmem:[%s1 + $0xb8] sm:$0x1f]
      %v329 = vld [vmem:[%s2] sm:$0x1]
      %v331 = vlaneseq
      %v332 = vshrl.u32 %v331, 7
      %v333 = vsub.s32 0, %v332
      %v334 = vrot.slane %v329, %v333
      %vm336 = vcmask 498688
      %v338 = vsel %vm336, %v178, 0
      %v341 = vsel %vm336, %v180, 0
      %v344 = vsel %vm336, %v182, 0
      %v347 = vsel %vm336, %v184, 0
      %v350 = vsel %vm336, %v186, 0
      %v353 = vsel %vm336, %v188, 0
      %v356 = vsel %vm336, %v190, 0
      %v359 = vsel %vm336, %v192, 0
      %v362 = vsel %vm336, %v194, 0
      %v365 = vsel %vm336, %v196, 0
      %v368 = vsel %vm336, %v198, 0
      %v371 = vsel %vm336, %v200, 0
      %v374 = vsel %vm336, %v202, 0
      %v377 = vsel %vm336, %v204, 0
      %v380 = vsel %vm336, %v206, 0
      %v383 = vsel %vm336, %v208, 0
      %v386 = vsel %vm336, %v210, 0
      %v389 = vsel %vm336, %v212, 0
      %v392 = vsel %vm336, %v214, 0
      %v395 = vsel %vm336, %v216, 0
      %v398 = vsel %vm336, %v218, 0
      %v401 = vsel %vm336, %v220, 0
      %v404 = vsel %vm336, %v222, 0
      %v407 = vsel %vm336, %v224, 0
      %v410 = vsel %vm336, %v226, 0
      %v413 = vsel %vm336, %v228, 0
      %v416 = vsel %vm336, %v230, 0
      %v419 = vsel %vm336, %v232, 0
      %v422 = vsel %vm336, %v234, 0
      %v425 = vsel %vm336, %v236, 0
      %v428 = vsel %vm336, %v238, 0
      %v431 = vsel %vm336, %v240, 0
      %v434 = vsel %vm336, %v242, 0
      %v437 = vsel %vm336, %v244, 0
      %v440 = vsel %vm336, %v246, 0
      %v443 = vsel %vm336, %v248, 0
      %v446 = vsel %vm336, %v250, 0
      %v449 = vsel %vm336, %v252, 0
      %v452 = vsel %vm336, %v254, 0
      %v455 = vsel %vm336, %v256, 0
      %v458 = vsel %vm336, %v258, 0
      %v461 = vsel %vm336, %v260, 0
      %v464 = vsel %vm336, %v262, 0
      %v467 = vsel %vm336, %v264, 0
      %v470 = vsel %vm336, %v266, 0
      %v473 = vsel %vm336, %v268, 0
      %v476 = vsel %vm336, %v270, 0
      %v479 = vsel %vm336, %v272, 0
      %v482 = vsel %vm336, %v274, 0
      %v485 = vsel %vm336, %v276, 0
      %v488 = vsel %vm336, %v278, 0
      %v491 = vsel %vm336, %v280, 0
      %v494 = vsel %vm336, %v282, 0
      %v497 = vsel %vm336, %v284, 0
      %v500 = vsel %vm336, %v286, 0
      %v503 = vsel %vm336, %v288, 0
      %v506 = vsel %vm336, %v290, 0
      %v509 = vsel %vm336, %v292, 0
      %v512 = vsel %vm336, %v294, 0
      %v515 = vsel %vm336, %v296, 0
      %v518 = vsel %vm336, %v298, 0
      %v521 = vsel %vm336, %v300, 0
      %v524 = vsel %vm336, %v302, 0
      %v527 = vsel %vm336, %v304, 0
      %vm529 = vcmask 1044480
      %v531 = vsel %vm529, %v328, 0
      %533 = vmatprep.subr.mxu0 0.0
      %534 = vmatpush1.msra.mxu0 %v320
      %535 = vmatprep.subr.mxu0 0.0
      %536 = vmatpush1.msra.mxu0 %v319
      %537 = vmatprep.subr.mxu0 0.0
      %538 = vmatpush1.msra.mxu0 %v318
      %539 = vmatprep.subr.mxu0 0.0
      %540 = vmatpush1.msra.mxu0 %v317
      %541 = vmatprep.subr.mxu0 0.0
      %542 = vmatpush1.msra.mxu0 %v316
      %543 = vmatprep.subr.mxu0 0.0
      %544 = vmatpush1.msra.mxu0 %v315
      %545 = vmatprep.subr.mxu0 0.0
      %546 = vmatpush1.msra.mxu0 %v314
      %547 = vmatprep.subr.mxu0 0.0
      %548 = vmatpush1.msra.mxu0 %v313
      %549 = vmatprep.subr.mxu0 0.0
      %550 = vmatpush1.msra.mxu0 %v312
      %551 = vmatprep.subr.mxu0 0.0
      %552 = vmatpush1.msra.mxu0 %v311
      %553 = vmatprep.subr.mxu0 0.0
      %554 = vmatpush1.msra.mxu0 %v310
      %555 = vmatprep.subr.mxu0 0.0
      %556 = vmatpush1.msra.mxu0 %v309
      %557 = vmatprep.subr.mxu0 0.0
      %558 = vmatpush1.msra.mxu0 %v308
      %559 = vmatprep.subr.mxu0 0.0
      %560 = vmatpush1.msra.mxu0 %v307
      %561 = vmatprep.subr.mxu0 0.0
      %562 = vmatpush1.msra.mxu0 %v306
      %563 = vmatprep.subr.mxu0 0.0
      %564 = vmatpush1.msra.mxu0 %v305
      %565 = vmatprep.subr.mxu0 0.0
      %566 = vmatpush2.msra.mxu0 0.0
      %567 = vmatprep.subr.mxu0 0.0
      %568 = vmatpush2.msra.mxu0 0.0
      %569 = vmatprep.subr.mxu0 0.0
      %570 = vmatpush2.msra.mxu0 0.0
      %571 = vmatprep.subr.mxu0 0.0
      %572 = vmatpush2.msra.mxu0 0.0
      %573 = vmatprep.subr.mxu0 0.0
      %574 = vmatpush2.msra.mxu0 0.0
      %575 = vmatprep.subr.mxu0 0.0
      %576 = vmatpush2.msra.mxu0 0.0
      %577 = vmatprep.subr.mxu0 0.0
      %578 = vmatpush2.msra.mxu0 0.0
      %579 = vmatprep.subr.mxu0 0.0
      %580 = vmatpush2.msra.mxu0 0.0
      %581 = vmatprep.subr.mxu0 0.0
      %582 = vmatpush2.msra.mxu0 %v531
      %583 = vmatprep.subr.mxu0 0.0
      %584 = vmatpush2.msra.mxu0 %v327
      %585 = vmatprep.subr.mxu0 0.0
      %586 = vmatpush2.msra.mxu0 %v326
      %587 = vmatprep.subr.mxu0 0.0
      %588 = vmatpush2.msra.mxu0 %v325
      %589 = vmatprep.subr.mxu0 0.0
      %590 = vmatpush2.msra.mxu0 %v324
      %591 = vmatprep.subr.mxu0 0.0
      %592 = vmatpush2.msra.mxu0 %v323
      %593 = vmatprep.subr.mxu0 0.0
      %594 = vmatpush2.msra.mxu0 %v322
      %595 = vmatprep.subr.mxu0 0.0
      %596 = vmatpush2.msra.mxu0 %v321
      %597 = vmatprep.mubr.f32.mxu0 %v338
      %598 = vmatmul.mubr.f32.gmra.mxu0 %v177
      %v599 = vpop.f32.mrf.mxu0
      %v600 = vadd.f32 %v334, %v599
      %v601 = vpop.f32.mrf.mxu0
      %602 = vmatprep.mubr.f32.mxu0 %v341
      %603 = vmatmul.mubr.f32.gmra.mxu0 %v179
      %v604 = vpop.f32.mrf.mxu0
      %v605 = vadd.f32 %v334, %v604
      %v606 = vpop.f32.mrf.mxu0
      %607 = vmatprep.mubr.f32.mxu0 %v344
      %608 = vmatmul.mubr.f32.gmra.mxu0 %v181
      %v609 = vpop.f32.mrf.mxu0
      %v610 = vadd.f32 %v334, %v609
      %v611 = vpop.f32.mrf.mxu0
      %612 = vmatprep.mubr.f32.mxu0 %v347
      %613 = vmatmul.mubr.f32.gmra.mxu0 %v183
      %v614 = vpop.f32.mrf.mxu0
      %v615 = vadd.f32 %v334, %v614
      %v616 = vpop.f32.mrf.mxu0
      %617 = vmatprep.mubr.f32.mxu0 %v350
      %618 = vmatmul.mubr.f32.gmra.mxu0 %v185
      %v619 = vpop.f32.mrf.mxu0
      %v620 = vadd.f32 %v334, %v619
      %v621 = vpop.f32.mrf.mxu0
      %622 = vmatprep.mubr.f32.mxu0 %v353
      %623 = vmatmul.mubr.f32.gmra.mxu0 %v187
      %v624 = vpop.f32.mrf.mxu0
      %v625 = vadd.f32 %v334, %v624
      %v626 = vpop.f32.mrf.mxu0
      %627 = vmatprep.mubr.f32.mxu0 %v356
      %628 = vmatmul.mubr.f32.gmra.mxu0 %v189
      %v629 = vpop.f32.mrf.mxu0
      %v630 = vadd.f32 %v334, %v629
      %v631 = vpop.f32.mrf.mxu0
      %632 = vmatprep.mubr.f32.mxu0 %v359
      %633 = vmatmul.mubr.f32.gmra.mxu0 %v191
      %v634 = vpop.f32.mrf.mxu0
      %v635 = vadd.f32 %v334, %v634
      %v636 = vpop.f32.mrf.mxu0
      %637 = vmatprep.mubr.f32.mxu0 %v362
      %638 = vmatmul.mubr.f32.gmra.mxu0 %v193
      %v639 = vpop.f32.mrf.mxu0
      %v640 = vadd.f32 %v334, %v639
      %v641 = vpop.f32.mrf.mxu0
      %642 = vmatprep.mubr.f32.mxu0 %v365
      %643 = vmatmul.mubr.f32.gmra.mxu0 %v195
      %v644 = vpop.f32.mrf.mxu0
      %v645 = vadd.f32 %v334, %v644
      %v646 = vpop.f32.mrf.mxu0
      %647 = vmatprep.mubr.f32.mxu0 %v368
      %648 = vmatmul.mubr.f32.gmra.mxu0 %v197
      %v649 = vpop.f32.mrf.mxu0
      %v650 = vadd.f32 %v334, %v649
      %v651 = vpop.f32.mrf.mxu0
      %652 = vmatprep.mubr.f32.mxu0 %v371
      %653 = vmatmul.mubr.f32.gmra.mxu0 %v199
      %v654 = vpop.f32.mrf.mxu0
      %v655 = vadd.f32 %v334, %v654
      %v656 = vpop.f32.mrf.mxu0
      %657 = vmatprep.mubr.f32.mxu0 %v374
      %658 = vmatmul.mubr.f32.gmra.mxu0 %v201
      %v659 = vpop.f32.mrf.mxu0
      %v660 = vadd.f32 %v334, %v659
      %v661 = vpop.f32.mrf.mxu0
      %662 = vmatprep.mubr.f32.mxu0 %v377
      %663 = vmatmul.mubr.f32.gmra.mxu0 %v203
      %v664 = vpop.f32.mrf.mxu0
      %v665 = vadd.f32 %v334, %v664
      %v666 = vpop.f32.mrf.mxu0
      %667 = vmatprep.mubr.f32.mxu0 %v380
      %668 = vmatmul.mubr.f32.gmra.mxu0 %v205
      %v669 = vpop.f32.mrf.mxu0
      %v670 = vadd.f32 %v334, %v669
      %v671 = vpop.f32.mrf.mxu0
      %672 = vmatprep.mubr.f32.mxu0 %v383
      %673 = vmatmul.mubr.f32.gmra.mxu0 %v207
      %v674 = vpop.f32.mrf.mxu0
      %v675 = vadd.f32 %v334, %v674
      %v676 = vpop.f32.mrf.mxu0
      %677 = vmatprep.mubr.f32.mxu0 %v386
      %678 = vmatmul.mubr.f32.gmra.mxu0 %v209
      %v679 = vpop.f32.mrf.mxu0
      %v680 = vadd.f32 %v334, %v679
      %v681 = vpop.f32.mrf.mxu0
      %682 = vmatprep.mubr.f32.mxu0 %v389
      %683 = vmatmul.mubr.f32.gmra.mxu0 %v211
      %v684 = vpop.f32.mrf.mxu0
      %v685 = vadd.f32 %v334, %v684
      %v686 = vpop.f32.mrf.mxu0
      %687 = vmatprep.mubr.f32.mxu0 %v392
      %688 = vmatmul.mubr.f32.gmra.mxu0 %v213
      %v689 = vpop.f32.mrf.mxu0
      %v690 = vadd.f32 %v334, %v689
      %v691 = vpop.f32.mrf.mxu0
      %692 = vmatprep.mubr.f32.mxu0 %v395
      %693 = vmatmul.mubr.f32.gmra.mxu0 %v215
      %v694 = vpop.f32.mrf.mxu0
      %v695 = vadd.f32 %v334, %v694
      %v696 = vpop.f32.mrf.mxu0
      %697 = vmatprep.mubr.f32.mxu0 %v398
      %698 = vmatmul.mubr.f32.gmra.mxu0 %v217
      %v699 = vpop.f32.mrf.mxu0
      %v700 = vadd.f32 %v334, %v699
      %v701 = vpop.f32.mrf.mxu0
      %702 = vmatprep.mubr.f32.mxu0 %v401
      %703 = vmatmul.mubr.f32.gmra.mxu0 %v219
      %v704 = vpop.f32.mrf.mxu0
      %v705 = vadd.f32 %v334, %v704
      %v706 = vpop.f32.mrf.mxu0
      %707 = vmatprep.mubr.f32.mxu0 %v404
      %708 = vmatmul.mubr.f32.gmra.mxu0 %v221
      %v709 = vpop.f32.mrf.mxu0
      %v710 = vadd.f32 %v334, %v709
      %v711 = vpop.f32.mrf.mxu0
      %712 = vmatprep.mubr.f32.mxu0 %v407
      %713 = vmatmul.mubr.f32.gmra.mxu0 %v223
      %v714 = vpop.f32.mrf.mxu0
      %v715 = vadd.f32 %v334, %v714
      %v716 = vpop.f32.mrf.mxu0
      %717 = vmatprep.mubr.f32.mxu0 %v410
      %718 = vmatmul.mubr.f32.gmra.mxu0 %v225
      %v719 = vpop.f32.mrf.mxu0
      %v720 = vadd.f32 %v334, %v719
      %v721 = vpop.f32.mrf.mxu0
      %722 = vmatprep.mubr.f32.mxu0 %v413
      %723 = vmatmul.mubr.f32.gmra.mxu0 %v227
      %v724 = vpop.f32.mrf.mxu0
      %v725 = vadd.f32 %v334, %v724
      %v726 = vpop.f32.mrf.mxu0
      %727 = vmatprep.mubr.f32.mxu0 %v416
      %728 = vmatmul.mubr.f32.gmra.mxu0 %v229
      %v729 = vpop.f32.mrf.mxu0
      %v730 = vadd.f32 %v334, %v729
      %v731 = vpop.f32.mrf.mxu0
      %732 = vmatprep.mubr.f32.mxu0 %v419
      %733 = vmatmul.mubr.f32.gmra.mxu0 %v231
      %v734 = vpop.f32.mrf.mxu0
      %v735 = vadd.f32 %v334, %v734
      %v736 = vpop.f32.mrf.mxu0
      %737 = vmatprep.mubr.f32.mxu0 %v422
      %738 = vmatmul.mubr.f32.gmra.mxu0 %v233
      %v739 = vpop.f32.mrf.mxu0
      %v740 = vadd.f32 %v334, %v739
      %v741 = vpop.f32.mrf.mxu0
      %742 = vmatprep.mubr.f32.mxu0 %v425
      %743 = vmatmul.mubr.f32.gmra.mxu0 %v235
      %v744 = vpop.f32.mrf.mxu0
      %v745 = vadd.f32 %v334, %v744
      %v746 = vpop.f32.mrf.mxu0
      %747 = vmatprep.mubr.f32.mxu0 %v428
      %748 = vmatmul.mubr.f32.gmra.mxu0 %v237
      %v749 = vpop.f32.mrf.mxu0
      %v750 = vadd.f32 %v334, %v749
      %v751 = vpop.f32.mrf.mxu0
      %752 = vmatprep.mubr.f32.mxu0 %v431
      %753 = vmatmul.mubr.f32.gmra.mxu0 %v239
      %v754 = vpop.f32.mrf.mxu0
      %v755 = vadd.f32 %v334, %v754
      %v756 = vpop.f32.mrf.mxu0
      %757 = vmatprep.mubr.f32.mxu0 %v434
      %758 = vmatmul.mubr.f32.gmra.mxu0 %v241
      %v759 = vpop.f32.mrf.mxu0
      %v760 = vadd.f32 %v334, %v759
      %v761 = vpop.f32.mrf.mxu0
      %762 = vmatprep.mubr.f32.mxu0 %v437
      %763 = vmatmul.mubr.f32.gmra.mxu0 %v243
      %v764 = vpop.f32.mrf.mxu0
      %v765 = vadd.f32 %v334, %v764
      %v766 = vpop.f32.mrf.mxu0
      %767 = vmatprep.mubr.f32.mxu0 %v440
      %768 = vmatmul.mubr.f32.gmra.mxu0 %v245
      %v769 = vpop.f32.mrf.mxu0
      %v770 = vadd.f32 %v334, %v769
      %v771 = vpop.f32.mrf.mxu0
      %772 = vmatprep.mubr.f32.mxu0 %v443
      %773 = vmatmul.mubr.f32.gmra.mxu0 %v247
      %v774 = vpop.f32.mrf.mxu0
      %v775 = vadd.f32 %v334, %v774
      %v776 = vpop.f32.mrf.mxu0
      %777 = vmatprep.mubr.f32.mxu0 %v446
      %778 = vmatmul.mubr.f32.gmra.mxu0 %v249
      %v779 = vpop.f32.mrf.mxu0
      %v780 = vadd.f32 %v334, %v779
      %v781 = vpop.f32.mrf.mxu0
      %782 = vmatprep.mubr.f32.mxu0 %v449
      %783 = vmatmul.mubr.f32.gmra.mxu0 %v251
      %v784 = vpop.f32.mrf.mxu0
      %v785 = vadd.f32 %v334, %v784
      %v786 = vpop.f32.mrf.mxu0
      %787 = vmatprep.mubr.f32.mxu0 %v452
      %788 = vmatmul.mubr.f32.gmra.mxu0 %v253
      %v789 = vpop.f32.mrf.mxu0
      %v790 = vadd.f32 %v334, %v789
      %v791 = vpop.f32.mrf.mxu0
      %792 = vmatprep.mubr.f32.mxu0 %v455
      %793 = vmatmul.mubr.f32.gmra.mxu0 %v255
      %v794 = vpop.f32.mrf.mxu0
      %v795 = vadd.f32 %v334, %v794
      %v796 = vpop.f32.mrf.mxu0
      %797 = vmatprep.mubr.f32.mxu0 %v458
      %798 = vmatmul.mubr.f32.gmra.mxu0 %v257
      %v799 = vpop.f32.mrf.mxu0
      %v800 = vadd.f32 %v334, %v799
      %v801 = vpop.f32.mrf.mxu0
      %802 = vmatprep.mubr.f32.mxu0 %v461
      %803 = vmatmul.mubr.f32.gmra.mxu0 %v259
      %v804 = vpop.f32.mrf.mxu0
      %v805 = vadd.f32 %v334, %v804
      %v806 = vpop.f32.mrf.mxu0
      %807 = vmatprep.mubr.f32.mxu0 %v464
      %808 = vmatmul.mubr.f32.gmra.mxu0 %v261
      %v809 = vpop.f32.mrf.mxu0
      %v810 = vadd.f32 %v334, %v809
      %v811 = vpop.f32.mrf.mxu0
      %812 = vmatprep.mubr.f32.mxu0 %v467
      %813 = vmatmul.mubr.f32.gmra.mxu0 %v263
      %v814 = vpop.f32.mrf.mxu0
      %v815 = vadd.f32 %v334, %v814
      %v816 = vpop.f32.mrf.mxu0
      %817 = vmatprep.mubr.f32.mxu0 %v470
      %818 = vmatmul.mubr.f32.gmra.mxu0 %v265
      %v819 = vpop.f32.mrf.mxu0
      %v820 = vadd.f32 %v334, %v819
      %v821 = vpop.f32.mrf.mxu0
      %822 = vmatprep.mubr.f32.mxu0 %v473
      %823 = vmatmul.mubr.f32.gmra.mxu0 %v267
      %v824 = vpop.f32.mrf.mxu0
      %v825 = vadd.f32 %v334, %v824
      %v826 = vpop.f32.mrf.mxu0
      %827 = vmatprep.mubr.f32.mxu0 %v476
      %828 = vmatmul.mubr.f32.gmra.mxu0 %v269
      %v829 = vpop.f32.mrf.mxu0
      %v830 = vadd.f32 %v334, %v829
      %v831 = vpop.f32.mrf.mxu0
      %832 = vmatprep.mubr.f32.mxu0 %v479
      %833 = vmatmul.mubr.f32.gmra.mxu0 %v271
      %v834 = vpop.f32.mrf.mxu0
      %v835 = vadd.f32 %v334, %v834
      %v836 = vpop.f32.mrf.mxu0
      %837 = vmatprep.mubr.f32.mxu0 %v482
      %838 = vmatmul.mubr.f32.gmra.mxu0 %v273
      %v839 = vpop.f32.mrf.mxu0
      %v840 = vadd.f32 %v334, %v839
      %v841 = vpop.f32.mrf.mxu0
      %842 = vmatprep.mubr.f32.mxu0 %v485
      %843 = vmatmul.mubr.f32.gmra.mxu0 %v275
      %v844 = vpop.f32.mrf.mxu0
      %v845 = vadd.f32 %v334, %v844
      %v846 = vpop.f32.mrf.mxu0
      %847 = vmatprep.mubr.f32.mxu0 %v488
      %848 = vmatmul.mubr.f32.gmra.mxu0 %v277
      %v849 = vpop.f32.mrf.mxu0
      %v850 = vadd.f32 %v334, %v849
      %v851 = vpop.f32.mrf.mxu0
      %852 = vmatprep.mubr.f32.mxu0 %v491
      %853 = vmatmul.mubr.f32.gmra.mxu0 %v279
      %v854 = vpop.f32.mrf.mxu0
      %v855 = vadd.f32 %v334, %v854
      %v856 = vpop.f32.mrf.mxu0
      %857 = vmatprep.mubr.f32.mxu0 %v494
      %858 = vmatmul.mubr.f32.gmra.mxu0 %v281
      %v859 = vpop.f32.mrf.mxu0
      %v860 = vadd.f32 %v334, %v859
      %v861 = vpop.f32.mrf.mxu0
      %862 = vmatprep.mubr.f32.mxu0 %v497
      %863 = vmatmul.mubr.f32.gmra.mxu0 %v283
      %v864 = vpop.f32.mrf.mxu0
      %v865 = vadd.f32 %v334, %v864
      %v866 = vpop.f32.mrf.mxu0
      %867 = vmatprep.mubr.f32.mxu0 %v500
      %868 = vmatmul.mubr.f32.gmra.mxu0 %v285
      %v869 = vpop.f32.mrf.mxu0
      %v870 = vadd.f32 %v334, %v869
      %v871 = vpop.f32.mrf.mxu0
      %872 = vmatprep.mubr.f32.mxu0 %v503
      %873 = vmatmul.mubr.f32.gmra.mxu0 %v287
      %v874 = vpop.f32.mrf.mxu0
      %v875 = vadd.f32 %v334, %v874
      %v876 = vpop.f32.mrf.mxu0
      %877 = vmatprep.mubr.f32.mxu0 %v506
      %878 = vmatmul.mubr.f32.gmra.mxu0 %v289
      %v879 = vpop.f32.mrf.mxu0
      %v880 = vadd.f32 %v334, %v879
      %v881 = vpop.f32.mrf.mxu0
      %882 = vmatprep.mubr.f32.mxu0 %v509
      %883 = vmatmul.mubr.f32.gmra.mxu0 %v291
      %v884 = vpop.f32.mrf.mxu0
      %v885 = vadd.f32 %v334, %v884
      %v886 = vpop.f32.mrf.mxu0
      %887 = vmatprep.mubr.f32.mxu0 %v512
      %888 = vmatmul.mubr.f32.gmra.mxu0 %v293
      %v889 = vpop.f32.mrf.mxu0
      %v890 = vadd.f32 %v334, %v889
      %v891 = vpop.f32.mrf.mxu0
      %892 = vmatprep.mubr.f32.mxu0 %v515
      %893 = vmatmul.mubr.f32.gmra.mxu0 %v295
      %v894 = vpop.f32.mrf.mxu0
      %v895 = vadd.f32 %v334, %v894
      %v896 = vpop.f32.mrf.mxu0
      %897 = vmatprep.mubr.f32.mxu0 %v518
      %898 = vmatmul.mubr.f32.gmra.mxu0 %v297
      %v899 = vpop.f32.mrf.mxu0
      %v900 = vadd.f32 %v334, %v899
      %v901 = vpop.f32.mrf.mxu0
      %902 = vmatprep.mubr.f32.mxu0 %v521
      %903 = vmatmul.mubr.f32.gmra.mxu0 %v299
      %v904 = vpop.f32.mrf.mxu0
      %v905 = vadd.f32 %v334, %v904
      %v906 = vpop.f32.mrf.mxu0
      %907 = vmatprep.mubr.f32.mxu0 %v524
      %908 = vmatmul.mubr.f32.gmra.mxu0 %v301
      %v909 = vpop.f32.mrf.mxu0
      %v910 = vadd.f32 %v334, %v909
      %v911 = vpop.f32.mrf.mxu0
      %912 = vmatprep.mubr.f32.mxu0 %v527
      %913 = vmatmul.mubr.f32.gmra.mxu0 %v303
      %v914 = vpop.f32.mrf.mxu0
      %v915 = vadd.f32 %v334, %v914
      %v916 = vpop.f32.mrf.mxu0
      %917 = vdwg.mxu0
      %v918 = vmax.f32 %v600, 0.0
      %v919 = vmax.f32 %v605, 0.0
      %v920 = vmax.f32 %v610, 0.0
      %v921 = vmax.f32 %v615, 0.0
      %v922 = vmax.f32 %v620, 0.0
      %v923 = vmax.f32 %v625, 0.0
      %v924 = vmax.f32 %v630, 0.0
      %v925 = vmax.f32 %v635, 0.0
      %v926 = vmax.f32 %v640, 0.0
      %v927 = vmax.f32 %v645, 0.0
      %v928 = vmax.f32 %v650, 0.0
      %v929 = vmax.f32 %v655, 0.0
      %v930 = vmax.f32 %v660, 0.0
      %v931 = vmax.f32 %v665, 0.0
      %v932 = vmax.f32 %v670, 0.0
      %v933 = vmax.f32 %v675, 0.0
      %v934 = vmax.f32 %v680, 0.0
      %v935 = vmax.f32 %v685, 0.0
      %v936 = vmax.f32 %v690, 0.0
      %v937 = vmax.f32 %v695, 0.0
      %v938 = vmax.f32 %v700, 0.0
      %v939 = vmax.f32 %v705, 0.0
      %v940 = vmax.f32 %v710, 0.0
      %v941 = vmax.f32 %v715, 0.0
      %v942 = vmax.f32 %v720, 0.0
      %v943 = vmax.f32 %v725, 0.0
      %v944 = vmax.f32 %v730, 0.0
      %v945 = vmax.f32 %v735, 0.0
      %v946 = vmax.f32 %v740, 0.0
      %v947 = vmax.f32 %v745, 0.0
      %v948 = vmax.f32 %v750, 0.0
      %v949 = vmax.f32 %v755, 0.0
      %v950 = vmax.f32 %v760, 0.0
      %v951 = vmax.f32 %v765, 0.0
      %v952 = vmax.f32 %v770, 0.0
      %v953 = vmax.f32 %v775, 0.0
      %v954 = vmax.f32 %v780, 0.0
      %v955 = vmax.f32 %v785, 0.0
      %v956 = vmax.f32 %v790, 0.0
      %v957 = vmax.f32 %v795, 0.0
      %v958 = vmax.f32 %v800, 0.0
      %v959 = vmax.f32 %v805, 0.0
      %v960 = vmax.f32 %v810, 0.0
      %v961 = vmax.f32 %v815, 0.0
      %v962 = vmax.f32 %v820, 0.0
      %v963 = vmax.f32 %v825, 0.0
      %v964 = vmax.f32 %v830, 0.0
      %v965 = vmax.f32 %v835, 0.0
      %v966 = vmax.f32 %v840, 0.0
      %v967 = vmax.f32 %v845, 0.0
      %v968 = vmax.f32 %v850, 0.0
      %v969 = vmax.f32 %v855, 0.0
      %v970 = vmax.f32 %v860, 0.0
      %v971 = vmax.f32 %v865, 0.0
      %v972 = vmax.f32 %v870, 0.0
      %v973 = vmax.f32 %v875, 0.0
      %v974 = vmax.f32 %v880, 0.0
      %v975 = vmax.f32 %v885, 0.0
      %v976 = vmax.f32 %v890, 0.0
      %v977 = vmax.f32 %v895, 0.0
      %v978 = vmax.f32 %v900, 0.0
      %v979 = vmax.f32 %v905, 0.0
      %v980 = vmax.f32 %v910, 0.0
      %v981 = vmax.f32 %v915, 0.0
      %982 = vst [vmem:[%s175] sm:$0xff] %v918
      %983 = vst [vmem:[%s175 + $0x8] sm:$0xff] %v919
      %984 = vst [vmem:[%s175 + $0x10] sm:$0xff] %v920
      %985 = vst [vmem:[%s175 + $0x18] sm:$0xff] %v921
      %986 = vst [vmem:[%s175 + $0x20] sm:$0xff] %v922
      %987 = vst [vmem:[%s175 + $0x28] sm:$0xff] %v923
      %988 = vst [vmem:[%s175 + $0x30] sm:$0xff] %v924
      %989 = vst [vmem:[%s175 + $0x38] sm:$0xff] %v925
      %990 = vst [vmem:[%s175 + $0x40] sm:$0xff] %v926
      %991 = vst [vmem:[%s175 + $0x48] sm:$0xff] %v927
      %992 = vst [vmem:[%s175 + $0x50] sm:$0xff] %v928
      %993 = vst [vmem:[%s175 + $0x58] sm:$0xff] %v929
      %994 = vst [vmem:[%s175 + $0x60] sm:$0xff] %v930
      %995 = vst [vmem:[%s175 + $0x68] sm:$0xff] %v931
      %996 = vst [vmem:[%s175 + $0x70] sm:$0xff] %v932
      %997 = vst [vmem:[%s175 + $0x78] sm:$0xff] %v933
      %998 = vst [vmem:[%s175 + $0x80] sm:$0xff] %v934
      %999 = vst [vmem:[%s175 + $0x88] sm:$0xff] %v935
      %1000 = vst [vmem:[%s175 + $0x90] sm:$0xff] %v936
      %1001 = vst [vmem:[%s175 + $0x98] sm:$0xff] %v937
      %1002 = vst [vmem:[%s175 + $0xa0] sm:$0xff] %v938
      %1003 = vst [vmem:[%s175 + $0xa8] sm:$0xff] %v939
      %1004 = vst [vmem:[%s175 + $0xb0] sm:$0xff] %v940
      %1005 = vst [vmem:[%s175 + $0xb8] sm:$0xff] %v941
      %1006 = vst [vmem:[%s175 + $0xc0] sm:$0xff] %v942
      %1007 = vst [vmem:[%s175 + $0xc8] sm:$0xff] %v943
      %1008 = vst [vmem:[%s175 + $0xd0] sm:$0xff] %v944
      %1009 = vst [vmem:[%s175 + $0xd8] sm:$0xff] %v945
      %1010 = vst [vmem:[%s175 + $0xe0] sm:$0xff] %v946
      %1011 = vst [vmem:[%s175 + $0xe8] sm:$0xff] %v947
      %1012 = vst [vmem:[%s175 + $0xf0] sm:$0xff] %v948
      %1013 = vst [vmem:[%s175 + $0xf8] sm:$0xff] %v949
      %1014 = vst [vmem:[%s175 + $0x100] sm:$0xff] %v950
      %1015 = vst [vmem:[%s175 + $0x108] sm:$0xff] %v951
      %1016 = vst [vmem:[%s175 + $0x110] sm:$0xff] %v952
      %1017 = vst [vmem:[%s175 + $0x118] sm:$0xff] %v953
      %1018 = vst [vmem:[%s175 + $0x120] sm:$0xff] %v954
      %1019 = vst [vmem:[%s175 + $0x128] sm:$0xff] %v955
      %1020 = vst [vmem:[%s175 + $0x130] sm:$0xff] %v956
      %1021 = vst [vmem:[%s175 + $0x138] sm:$0xff] %v957
      %1022 = vst [vmem:[%s175 + $0x140] sm:$0xff] %v958
      %1023 = vst [vmem:[%s175 + $0x148] sm:$0xff] %v959
      %1024 = vst [vmem:[%s175 + $0x150] sm:$0xff] %v960
      %1025 = vst [vmem:[%s175 + $0x158] sm:$0xff] %v961
      %1026 = vst [vmem:[%s175 + $0x160] sm:$0xff] %v962
      %1027 = vst [vmem:[%s175 + $0x168] sm:$0xff] %v963
      %1028 = vst [vmem:[%s175 + $0x170] sm:$0xff] %v964
      %1029 = vst [vmem:[%s175 + $0x178] sm:$0xff] %v965
      %1030 = vst [vmem:[%s175 + $0x180] sm:$0xff] %v966
      %1031 = vst [vmem:[%s175 + $0x188] sm:$0xff] %v967
      %1032 = vst [vmem:[%s175 + $0x190] sm:$0xff] %v968
      %1033 = vst [vmem:[%s175 + $0x198] sm:$0xff] %v969
      %1034 = vst [vmem:[%s175 + $0x1a0] sm:$0xff] %v970
      %1035 = vst [vmem:[%s175 + $0x1a8] sm:$0xff] %v971
      %1036 = vst [vmem:[%s175 + $0x1b0] sm:$0xff] %v972
      %1037 = vst [vmem:[%s175 + $0x1b8] sm:$0xff] %v973
      %1038 = vst [vmem:[%s175 + $0x1c0] sm:$0xff] %v974
      %1039 = vst [vmem:[%s175 + $0x1c8] sm:$0xff] %v975
      %1040 = vst [vmem:[%s175 + $0x1d0] sm:$0xff] %v976
      %1041 = vst [vmem:[%s175 + $0x1d8] sm:$0xff] %v977
      %1042 = vst [vmem:[%s175 + $0x1e0] sm:$0xff] %v978
      %1043 = vst [vmem:[%s175 + $0x1e8] sm:$0xff] %v979
      %1044 = vst [vmem:[%s175 + $0x1f0] sm:$0xff] %v980
      %1045 = vst [vmem:[%s175 + $0x1f8] sm:$0xff] %v981
      %s1046 = smul.u32 64, %s14
      %p1047 = scmp.lt.s32.totalorder %s1046, 127
      %s1048 = scalar_select %p1047, %s1046, 127
      %s1049 = smul.addr %s1048, 8
      %s1050 = scalar_lea.vmem %s3, %s1049
      // Predicated region
      $region33: #{_forward_core.6} parent=31 // pred_check
        %p1051 = pneg %p100
      $region34: #{_forward_core.6} parent=31 // pred_check_branch
        %1053 = sbr.rel (%p1051) target = $region36
      $region35: #{_forward_core.6} parent=31 // pred_region
        %s1054 = smul.u32 64, %s14
      $region36: #{_forward_core.6} parent=31 // pred_fallthru
        _
    $region32: #{_forward_core.6} parent=5 // pred_fallthru
      _
    %p1055 = scmp.le.s32.totalorder 2, %s9
    // Predicated region
    $region37: #{_forward_core.6} parent=5 // pred_check
      %p1056 = pneg %p1055
    $region38: #{_forward_core.6} parent=5 // pred_check_branch
      %1058 = sbr.rel (%p1056) target = $region40
    $region39: #{_forward_core.6} parent=5 // pred_region
      %s1059 = ssub.s32 %s9, 2
      // Predicated region
      $region41: #{_forward_core.6} parent=39 // pred_check
        %p1060 = pneg %p106
      $region42: #{_forward_core.6} parent=39 // pred_check_branch
        %1062 = sbr.rel (%p1060) target = $region44
      $region43: #{_forward_core.6} parent=39 // pred_region
        %s1063 = smul.u32 64, %s15
        %p1064 = scmp.lt.s32.totalorder %s1063, 127
        %s1065 = scalar_select %p1064, %s1063, 127
        %s1066 = smul.addr %s1065, 8
        %s1067 = scalar_lea.vmem %s3, %s1066
      $region44: #{_forward_core.6} parent=39 // pred_fallthru
        _
    $region40: #{_forward_core.6} parent=5 // pred_fallthru
      _
  $region6: #{_forward_core.6} parent=0 // loop_footer
    %s13 = sadd.s32 1, %s9
  $region7: #{_forward_core.6} parent=0 // loop_footer_branch
    %8 = sbr.rel target = $region3
  $region8: #{_forward_core.6} parent=0 // loop_exit
    _

// kernel: _forward_core.7
$region0: #{_forward_core.7}
  #allocation0 [shape = 'u32[]', space=smem, size = 0x4, offset = 0x4, fixed_abs, tag = 'smem constant byte address 0x4 - core index']
  #allocation1 [shape = 'u32[144,128]{1,0:T(1,128)}', space=vmem, size = 0x12000, scoped, tag = 'internal scratch']
  %s0 = inlined_call_operand.vmem [shape: f32[1024,432], index: 0, kind: input, shape index: {}]
  %s1 = inlined_call_operand.vmem [shape: f32[432,128], index: 1, kind: input, shape index: {}]
  %s2 = inlined_call_operand.vmem [shape: f32[1,128], index: 2, kind: input, shape index: {}]
  %s3 = inlined_call_operand.vmem [shape: f32[1024,128], index: 3, kind: output, shape index: {}]
  %s4 = sld [smem:[#allocation0]]
  $region45: #{_forward_core.7} parent=0
    _
  %s6 = ssub.s32 1, %s4
  %s7 = scalar_select 0, %s6, %s4
  loop: start=0, step=1, limit=4
  $region2: #{_forward_core.7} parent=0 // loop_pre_header
    _
  $region3: #{_forward_core.7} parent=0 // loop_header
    %s9 = sphi 0, %s13
    %p10 = scmp.ge.s32.totalorder %s9, 4
    %s19 = sphi 0, %s21
    %s22 = sphi 0, %s19
    %s23 = sphi 0, %s22
    %s39 = sphi 0, %s23
    %s43 = sphi 0, %s43
    %s45 = sphi 0, %s43
    %s46 = sphi 0, %s45
    %s60 = sphi 0, %s46
    %s64 = sphi 0, %s64
    %s66 = sphi 0, %s64
    %s67 = sphi 0, %s66
    %s81 = sphi 0, %s67
    %s87 = sphi 0, %s89
    %s90 = sphi 0, %s87
    %s91 = sphi 0, %s90
    %s107 = sphi 0, %s91
  $region4: #{_forward_core.7} parent=0 // loop_header_branch
    %12 = sbr.rel (%p10) target = $region8
  $region5: #{_forward_core.7} parent=0 // loop_body
    %s14 = ssub.s32 %s9, 1
    %s15 = ssub.s32 %s9, 2
    %s16 = sadd.s32 %s9, 1
    %s17 = ssub.s32 %s9, %s16
    %p18 = scmp.eq.s32.totalorder %s17, 0
    %s20 = sadd.s32 %s19, 1
    %s21 = scalar_select %p18, %s19, %s20
    %p24 = pneg %p18
    %p25 = scmp.eq.s32.totalorder %s9, 1
    %p26 = por %p24, %p25
    %p27 = scmp.ne.s32.totalorder %s19, %s22
    %p28 = scmp.eq.s32.totalorder %s9, 0
    %p29 = por %p27, %p28
    %p30 = scmp.ne.s32.totalorder %s19, %s22
    %p31 = scmp.eq.s32.totalorder %s14, 1
    %p32 = por %p30, %p31
    %p33 = scmp.ne.s32.totalorder %s22, %s23
    %p34 = scmp.eq.s32.totalorder %s14, 0
    %p35 = por %p33, %p34
    %p36 = scmp.ne.s32.totalorder %s22, %s23
    %p37 = scmp.eq.s32.totalorder %s15, 1
    %p38 = por %p36, %p37
    %p40 = scmp.ne.s32.totalorder %s23, %s39
    %p41 = scmp.eq.s32.totalorder %s15, 0
    %p42 = por %p40, %p41
    %s44 = sadd.s32 %s43, 1
    %p47 = scmp.eq.s32.totalorder %s9, 1
    %p48 = scmp.ne.s32.totalorder %s43, %s45
    %p49 = scmp.eq.s32.totalorder %s9, 0
    %p50 = por %p48, %p49
    %p51 = scmp.ne.s32.totalorder %s43, %s45
    %p52 = scmp.eq.s32.totalorder %s14, 1
    %p53 = por %p51, %p52
    %p54 = scmp.ne.s32.totalorder %s45, %s46
    %p55 = scmp.eq.s32.totalorder %s14, 0
    %p56 = por %p54, %p55
    %p57 = scmp.ne.s32.totalorder %s45, %s46
    %p58 = scmp.eq.s32.totalorder %s15, 1
    %p59 = por %p57, %p58
    %p61 = scmp.ne.s32.totalorder %s46, %s60
    %p62 = scmp.eq.s32.totalorder %s15, 0
    %p63 = por %p61, %p62
    %s65 = sadd.s32 %s64, 1
    %p68 = scmp.eq.s32.totalorder %s9, 1
    %p69 = scmp.ne.s32.totalorder %s64, %s66
    %p70 = scmp.eq.s32.totalorder %s9, 0
    %p71 = por %p69, %p70
    %p72 = scmp.ne.s32.totalorder %s64, %s66
    %p73 = scmp.eq.s32.totalorder %s14, 1
    %p74 = por %p72, %p73
    %p75 = scmp.ne.s32.totalorder %s66, %s67
    %p76 = scmp.eq.s32.totalorder %s14, 0
    %p77 = por %p75, %p76
    %p78 = scmp.ne.s32.totalorder %s66, %s67
    %p79 = scmp.eq.s32.totalorder %s15, 1
    %p80 = por %p78, %p79
    %p82 = scmp.ne.s32.totalorder %s67, %s81
    %p83 = scmp.eq.s32.totalorder %s15, 0
    %p84 = por %p82, %p83
    %s85 = ssub.s32 %s9, %s16
    %p86 = scmp.eq.s32.totalorder %s85, 0
    %s88 = sadd.s32 %s87, 1
    %s89 = scalar_select %p86, %s87, %s88
    %p92 = pneg %p86
    %p93 = scmp.eq.s32.totalorder %s9, 1
    %p94 = por %p92, %p93
    %p95 = scmp.ne.s32.totalorder %s87, %s90
    %p96 = scmp.eq.s32.totalorder %s9, 0
    %p97 = por %p95, %p96
    %p98 = scmp.ne.s32.totalorder %s87, %s90
    %p99 = scmp.eq.s32.totalorder %s14, 1
    %p100 = por %p98, %p99
    %p101 = scmp.ne.s32.totalorder %s90, %s91
    %p102 = scmp.eq.s32.totalorder %s14, 0
    %p103 = por %p101, %p102
    %p104 = scmp.ne.s32.totalorder %s90, %s91
    %p105 = scmp.eq.s32.totalorder %s15, 1
    %p106 = por %p104, %p105
    %p108 = scmp.ne.s32.totalorder %s91, %s107
    %p109 = scmp.eq.s32.totalorder %s15, 0
    %p110 = por %p108, %p109
    %p111 = scmp.le.s32.totalorder 1, %s9
    %p112 = scmp.lt.s32.totalorder %s9, 3
    %p113 = pnand %p111, %p112
    %p114 = pneg %p113
    // Predicated region
    $region9: #{_forward_core.7} parent=5 // pred_check
      _
    $region10: #{_forward_core.7} parent=5 // pred_check_branch
      %116 = sbr.rel (%p113) target = $region12
    $region11: #{_forward_core.7} parent=5 // pred_region
      %s117 = ssub.s32 %s9, 1
      // Predicated region
      $region13: #{_forward_core.7} parent=11 // pred_check
        %p118 = pneg %p56
      $region14: #{_forward_core.7} parent=11 // pred_check_branch
        %120 = sbr.rel (%p118) target = $region16
      $region15: #{_forward_core.7} parent=11 // pred_region
        _
      $region16: #{_forward_core.7} parent=11 // pred_fallthru
        _
      // Predicated region
      $region17: #{_forward_core.7} parent=11 // pred_check
        %p121 = pneg %p77
      $region18: #{_forward_core.7} parent=11 // pred_check_branch
        %123 = sbr.rel (%p121) target = $region20
      $region19: #{_forward_core.7} parent=11 // pred_region
        _
      $region20: #{_forward_core.7} parent=11 // pred_fallthru
        _
    $region12: #{_forward_core.7} parent=5 // pred_fallthru
      _
    %p124 = scmp.lt.s32.totalorder %s9, 2
    // Predicated region
    $region21: #{_forward_core.7} parent=5 // pred_check
      %p125 = pneg %p124
    $region22: #{_forward_core.7} parent=5 // pred_check_branch
      %127 = sbr.rel (%p125) target = $region24
    $region23: #{_forward_core.7} parent=5 // pred_region
      // Predicated region
      $region25: #{_forward_core.7} parent=23 // pred_check
        %p128 = pneg %p29
      $region26: #{_forward_core.7} parent=23 // pred_check_branch
        %130 = sbr.rel (%p128) target = $region28
      $region27: #{_forward_core.7} parent=23 // pred_region
        %s131 = smul.u32 64, %s9
        %p132 = scmp.lt.s32.totalorder %s131, 127
        %s133 = scalar_select %p132, %s131, 127
        %s134 = smul.addr %s133, 4
        %s135 = smul.addr %s134, 8
        %s136 = scalar_lea.vmem %s0, %s135
        %s137 = smul.u32 64, %s9
      $region28: #{_forward_core.7} parent=23 // pred_fallthru
        _
    $region24: #{_forward_core.7} parent=5 // pred_fallthru
      _
    %p138 = scmp.le.s32.totalorder 1, %s9
    %p139 = scmp.lt.s32.totalorder %s9, 3
    %p140 = pnand %p138, %p139
    %p141 = pneg %p140
    // Predicated region
    $region29: #{_forward_core.7} parent=5 // pred_check
      _
    $region30: #{_forward_core.7} parent=5 // pred_check_branch
      %143 = sbr.rel (%p140) target = $region32
    $region31: #{_forward_core.7} parent=5 // pred_region
      %s144 = ssub.s32 %s9, 1
      %s145 = smul.u32 64, %s14
      %p146 = scmp.lt.s32.totalorder %s145, 127
      %s147 = scalar_select %p146, %s145, 127
      %s148 = smul.addr %s147, 4
      %s149 = smul.addr %s148, 8
      %s150 = scalar_lea.vmem %s0, %s149
      %p151 = pneg %p35
      %p152 = pneg %p32
      %p153 = pneg %p56
      %p154 = pneg %p53
      %p155 = pneg %p77
      %p156 = pneg %p74
      %p157 = pneg %p103
      %p158 = pneg %p100
      %s159 = smul.u32 64, %s14
      %p160 = scmp.lt.s32.totalorder %s159, 127
      %s161 = scalar_select %p160, %s159, 127
      %s162 = smul.addr %s161, 8
      %s163 = scalar_lea.vmem %s3, %s162
      %s164 = smul.u32 64, %s14
      %p165 = scmp.lt.s32.totalorder %s164, 127
      %s166 = scalar_select %p165, %s164, 127
      %s167 = smul.addr %s166, 4
      %s168 = smul.addr %s167, 8
      %s169 = scalar_lea.vmem %s0, %s168
      %s170 = smul.u32 64, %s14
      %s171 = smul.u32 64, %s14
      %p172 = scmp.lt.s32.totalorder %s171, 127
      %s173 = scalar_select %p172, %s171, 127
      %s174 = smul.addr %s173, 8
      %s175 = scalar_lea.vmem %s3, %s174
      %s176 = smul.u32 64, %s14
      %v177 = vld [vmem:[%s169] sm:$0xff]
      %v178 = vld [vmem:[%s169 + $0x8] sm:$0xff]
      %v179 = vld [vmem:[%s169 + $0x10] sm:$0xff]
      %v180 = vld [vmem:[%s169 + $0x18] sm:$0xff]
      %v181 = vld [vmem:[%s169 + $0x20] sm:$0xff]
      %v182 = vld [vmem:[%s169 + $0x28] sm:$0xff]
      %v183 = vld [vmem:[%s169 + $0x30] sm:$0xff]
      %v184 = vld [vmem:[%s169 + $0x38] sm:$0xff]
      %v185 = vld [vmem:[%s169 + $0x40] sm:$0xff]
      %v186 = vld [vmem:[%s169 + $0x48] sm:$0xff]
      %v187 = vld [vmem:[%s169 + $0x50] sm:$0xff]
      %v188 = vld [vmem:[%s169 + $0x58] sm:$0xff]
      %v189 = vld [vmem:[%s169 + $0x60] sm:$0xff]
      %v190 = vld [vmem:[%s169 + $0x68] sm:$0xff]
      %v191 = vld [vmem:[%s169 + $0x70] sm:$0xff]
      %v192 = vld [vmem:[%s169 + $0x78] sm:$0xff]
      %v193 = vld [vmem:[%s169 + $0x80] sm:$0xff]
      %v194 = vld [vmem:[%s169 + $0x88] sm:$0xff]
      %v195 = vld [vmem:[%s169 + $0x90] sm:$0xff]
      %v196 = vld [vmem:[%s169 + $0x98] sm:$0xff]
      %v197 = vld [vmem:[%s169 + $0xa0] sm:$0xff]
      %v198 = vld [vmem:[%s169 + $0xa8] sm:$0xff]
      %v199 = vld [vmem:[%s169 + $0xb0] sm:$0xff]
      %v200 = vld [vmem:[%s169 + $0xb8] sm:$0xff]
      %v201 = vld [vmem:[%s169 + $0xc0] sm:$0xff]
      %v202 = vld [vmem:[%s169 + $0xc8] sm:$0xff]
      %v203 = vld [vmem:[%s169 + $0xd0] sm:$0xff]
      %v204 = vld [vmem:[%s169 + $0xd8] sm:$0xff]
      %v205 = vld [vmem:[%s169 + $0xe0] sm:$0xff]
      %v206 = vld [vmem:[%s169 + $0xe8] sm:$0xff]
      %v207 = vld [vmem:[%s169 + $0xf0] sm:$0xff]
      %v208 = vld [vmem:[%s169 + $0xf8] sm:$0xff]
      %v209 = vld [vmem:[%s169 + $0x100] sm:$0xff]
      %v210 = vld [vmem:[%s169 + $0x108] sm:$0xff]
      %v211 = vld [vmem:[%s169 + $0x110] sm:$0xff]
      %v212 = vld [vmem:[%s169 + $0x118] sm:$0xff]
      %v213 = vld [vmem:[%s169 + $0x120] sm:$0xff]
      %v214 = vld [vmem:[%s169 + $0x128] sm:$0xff]
      %v215 = vld [vmem:[%s169 + $0x130] sm:$0xff]
      %v216 = vld [vmem:[%s169 + $0x138] sm:$0xff]
      %v217 = vld [vmem:[%s169 + $0x140] sm:$0xff]
      %v218 = vld [vmem:[%s169 + $0x148] sm:$0xff]
      %v219 = vld [vmem:[%s169 + $0x150] sm:$0xff]
      %v220 = vld [vmem:[%s169 + $0x158] sm:$0xff]
      %v221 = vld [vmem:[%s169 + $0x160] sm:$0xff]
      %v222 = vld [vmem:[%s169 + $0x168] sm:$0xff]
      %v223 = vld [vmem:[%s169 + $0x170] sm:$0xff]
      %v224 = vld [vmem:[%s169 + $0x178] sm:$0xff]
      %v225 = vld [vmem:[%s169 + $0x180] sm:$0xff]
      %v226 = vld [vmem:[%s169 + $0x188] sm:$0xff]
      %v227 = vld [vmem:[%s169 + $0x190] sm:$0xff]
      %v228 = vld [vmem:[%s169 + $0x198] sm:$0xff]
      %v229 = vld [vmem:[%s169 + $0x1a0] sm:$0xff]
      %v230 = vld [vmem:[%s169 + $0x1a8] sm:$0xff]
      %v231 = vld [vmem:[%s169 + $0x1b0] sm:$0xff]
      %v232 = vld [vmem:[%s169 + $0x1b8] sm:$0xff]
      %v233 = vld [vmem:[%s169 + $0x1c0] sm:$0xff]
      %v234 = vld [vmem:[%s169 + $0x1c8] sm:$0xff]
      %v235 = vld [vmem:[%s169 + $0x1d0] sm:$0xff]
      %v236 = vld [vmem:[%s169 + $0x1d8] sm:$0xff]
      %v237 = vld [vmem:[%s169 + $0x1e0] sm:$0xff]
      %v238 = vld [vmem:[%s169 + $0x1e8] sm:$0xff]
      %v239 = vld [vmem:[%s169 + $0x1f0] sm:$0xff]
      %v240 = vld [vmem:[%s169 + $0x1f8] sm:$0xff]
      %v241 = vld [vmem:[%s169 + $0x200] sm:$0xff]
      %v242 = vld [vmem:[%s169 + $0x208] sm:$0xff]
      %v243 = vld [vmem:[%s169 + $0x210] sm:$0xff]
      %v244 = vld [vmem:[%s169 + $0x218] sm:$0xff]
      %v245 = vld [vmem:[%s169 + $0x220] sm:$0xff]
      %v246 = vld [vmem:[%s169 + $0x228] sm:$0xff]
      %v247 = vld [vmem:[%s169 + $0x230] sm:$0xff]
      %v248 = vld [vmem:[%s169 + $0x238] sm:$0xff]
      %v249 = vld [vmem:[%s169 + $0x240] sm:$0xff]
      %v250 = vld [vmem:[%s169 + $0x248] sm:$0xff]
      %v251 = vld [vmem:[%s169 + $0x250] sm:$0xff]
      %v252 = vld [vmem:[%s169 + $0x258] sm:$0xff]
      %v253 = vld [vmem:[%s169 + $0x260] sm:$0xff]
      %v254 = vld [vmem:[%s169 + $0x268] sm:$0xff]
      %v255 = vld [vmem:[%s169 + $0x270] sm:$0xff]
      %v256 = vld [vmem:[%s169 + $0x278] sm:$0xff]
      %v257 = vld [vmem:[%s169 + $0x280] sm:$0xff]
      %v258 = vld [vmem:[%s169 + $0x288] sm:$0xff]
      %v259 = vld [vmem:[%s169 + $0x290] sm:$0xff]
      %v260 = vld [vmem:[%s169 + $0x298] sm:$0xff]
      %v261 = vld [vmem:[%s169 + $0x2a0] sm:$0xff]
      %v262 = vld [vmem:[%s169 + $0x2a8] sm:$0xff]
      %v263 = vld [vmem:[%s169 + $0x2b0] sm:$0xff]
      %v264 = vld [vmem:[%s169 + $0x2b8] sm:$0xff]
      %v265 = vld [vmem:[%s169 + $0x2c0] sm:$0xff]
      %v266 = vld [vmem:[%s169 + $0x2c8] sm:$0xff]
      %v267 = vld [vmem:[%s169 + $0x2d0] sm:$0xff]
      %v268 = vld [vmem:[%s169 + $0x2d8] sm:$0xff]
      %v269 = vld [vmem:[%s169 + $0x2e0] sm:$0xff]
      %v270 = vld [vmem:[%s169 + $0x2e8] sm:$0xff]
      %v271 = vld [vmem:[%s169 + $0x2f0] sm:$0xff]
      %v272 = vld [vmem:[%s169 + $0x2f8] sm:$0xff]
      %v273 = vld [vmem:[%s169 + $0x300] sm:$0xff]
      %v274 = vld [vmem:[%s169 + $0x308] sm:$0xff]
      %v275 = vld [vmem:[%s169 + $0x310] sm:$0xff]
      %v276 = vld [vmem:[%s169 + $0x318] sm:$0xff]
      %v277 = vld [vmem:[%s169 + $0x320] sm:$0xff]
      %v278 = vld [vmem:[%s169 + $0x328] sm:$0xff]
      %v279 = vld [vmem:[%s169 + $0x330] sm:$0xff]
      %v280 = vld [vmem:[%s169 + $0x338] sm:$0xff]
      %v281 = vld [vmem:[%s169 + $0x340] sm:$0xff]
      %v282 = vld [vmem:[%s169 + $0x348] sm:$0xff]
      %v283 = vld [vmem:[%s169 + $0x350] sm:$0xff]
      %v284 = vld [vmem:[%s169 + $0x358] sm:$0xff]
      %v285 = vld [vmem:[%s169 + $0x360] sm:$0xff]
      %v286 = vld [vmem:[%s169 + $0x368] sm:$0xff]
      %v287 = vld [vmem:[%s169 + $0x370] sm:$0xff]
      %v288 = vld [vmem:[%s169 + $0x378] sm:$0xff]
      %v289 = vld [vmem:[%s169 + $0x380] sm:$0xff]
      %v290 = vld [vmem:[%s169 + $0x388] sm:$0xff]
      %v291 = vld [vmem:[%s169 + $0x390] sm:$0xff]
      %v292 = vld [vmem:[%s169 + $0x398] sm:$0xff]
      %v293 = vld [vmem:[%s169 + $0x3a0] sm:$0xff]
      %v294 = vld [vmem:[%s169 + $0x3a8] sm:$0xff]
      %v295 = vld [vmem:[%s169 + $0x3b0] sm:$0xff]
      %v296 = vld [vmem:[%s169 + $0x3b8] sm:$0xff]
      %v297 = vld [vmem:[%s169 + $0x3c0] sm:$0xff]
      %v298 = vld [vmem:[%s169 + $0x3c8] sm:$0xff]
      %v299 = vld [vmem:[%s169 + $0x3d0] sm:$0xff]
      %v300 = vld [vmem:[%s169 + $0x3d8] sm:$0xff]
      %v301 = vld [vmem:[%s169 + $0x3e0] sm:$0xff]
      %v302 = vld [vmem:[%s169 + $0x3e8] sm:$0xff]
      %v303 = vld [vmem:[%s169 + $0x3f0] sm:$0xff]
      %v304 = vld [vmem:[%s169 + $0x3f8] sm:$0xff]
      %v305 = vld [vmem:[%s169 + $0x400] sm:$0xff]
      %v306 = vld [vmem:[%s169 + $0x408] sm:$0xff]
      %v307 = vld [vmem:[%s169 + $0x410] sm:$0xff]
      %v308 = vld [vmem:[%s169 + $0x418] sm:$0xff]
      %v309 = vld [vmem:[%s169 + $0x420] sm:$0xff]
      %v310 = vld [vmem:[%s169 + $0x428] sm:$0xff]
      %v311 = vld [vmem:[%s169 + $0x430] sm:$0xff]
      %v312 = vld [vmem:[%s169 + $0x438] sm:$0xff]
      %v313 = vld [vmem:[%s169 + $0x440] sm:$0xff]
      %v314 = vld [vmem:[%s169 + $0x448] sm:$0xff]
      %v315 = vld [vmem:[%s169 + $0x450] sm:$0xff]
      %v316 = vld [vmem:[%s169 + $0x458] sm:$0xff]
      %v317 = vld [vmem:[%s169 + $0x460] sm:$0xff]
      %v318 = vld [vmem:[%s169 + $0x468] sm:$0xff]
      %v319 = vld [vmem:[%s169 + $0x470] sm:$0xff]
      %v320 = vld [vmem:[%s169 + $0x478] sm:$0xff]
      %v321 = vld [vmem:[%s169 + $0x480] sm:$0xff]
      %v322 = vld [vmem:[%s169 + $0x488] sm:$0xff]
      %v323 = vld [vmem:[%s169 + $0x490] sm:$0xff]
      %v324 = vld [vmem:[%s169 + $0x498] sm:$0xff]
      %v325 = vld [vmem:[%s169 + $0x4a0] sm:$0xff]
      %v326 = vld [vmem:[%s169 + $0x4a8] sm:$0xff]
      %v327 = vld [vmem:[%s169 + $0x4b0] sm:$0xff]
      %v328 = vld [vmem:[%s169 + $0x4b8] sm:$0xff]
      %v329 = vld [vmem:[%s169 + $0x4c0] sm:$0xff]
      %v330 = vld [vmem:[%s169 + $0x4c8] sm:$0xff]
      %v331 = vld [vmem:[%s169 + $0x4d0] sm:$0xff]
      %v332 = vld [vmem:[%s169 + $0x4d8] sm:$0xff]
      %v333 = vld [vmem:[%s169 + $0x4e0] sm:$0xff]
      %v334 = vld [vmem:[%s169 + $0x4e8] sm:$0xff]
      %v335 = vld [vmem:[%s169 + $0x4f0] sm:$0xff]
      %v336 = vld [vmem:[%s169 + $0x4f8] sm:$0xff]
      %v337 = vld [vmem:[%s169 + $0x500] sm:$0xff]
      %v338 = vld [vmem:[%s169 + $0x508] sm:$0xff]
      %v339 = vld [vmem:[%s169 + $0x510] sm:$0xff]
      %v340 = vld [vmem:[%s169 + $0x518] sm:$0xff]
      %v341 = vld [vmem:[%s169 + $0x520] sm:$0xff]
      %v342 = vld [vmem:[%s169 + $0x528] sm:$0xff]
      %v343 = vld [vmem:[%s169 + $0x530] sm:$0xff]
      %v344 = vld [vmem:[%s169 + $0x538] sm:$0xff]
      %v345 = vld [vmem:[%s169 + $0x540] sm:$0xff]
      %v346 = vld [vmem:[%s169 + $0x548] sm:$0xff]
      %v347 = vld [vmem:[%s169 + $0x550] sm:$0xff]
      %v348 = vld [vmem:[%s169 + $0x558] sm:$0xff]
      %v349 = vld [vmem:[%s169 + $0x560] sm:$0xff]
      %v350 = vld [vmem:[%s169 + $0x568] sm:$0xff]
      %v351 = vld [vmem:[%s169 + $0x570] sm:$0xff]
      %v352 = vld [vmem:[%s169 + $0x578] sm:$0xff]
      %v353 = vld [vmem:[%s169 + $0x580] sm:$0xff]
      %v354 = vld [vmem:[%s169 + $0x588] sm:$0xff]
      %v355 = vld [vmem:[%s169 + $0x590] sm:$0xff]
      %v356 = vld [vmem:[%s169 + $0x598] sm:$0xff]
      %v357 = vld [vmem:[%s169 + $0x5a0] sm:$0xff]
      %v358 = vld [vmem:[%s169 + $0x5a8] sm:$0xff]
      %v359 = vld [vmem:[%s169 + $0x5b0] sm:$0xff]
      %v360 = vld [vmem:[%s169 + $0x5b8] sm:$0xff]
      %v361 = vld [vmem:[%s169 + $0x5c0] sm:$0xff]
      %v362 = vld [vmem:[%s169 + $0x5c8] sm:$0xff]
      %v363 = vld [vmem:[%s169 + $0x5d0] sm:$0xff]
      %v364 = vld [vmem:[%s169 + $0x5d8] sm:$0xff]
      %v365 = vld [vmem:[%s169 + $0x5e0] sm:$0xff]
      %v366 = vld [vmem:[%s169 + $0x5e8] sm:$0xff]
      %v367 = vld [vmem:[%s169 + $0x5f0] sm:$0xff]
      %v368 = vld [vmem:[%s169 + $0x5f8] sm:$0xff]
      %v369 = vld [vmem:[%s169 + $0x600] sm:$0xff]
      %v370 = vld [vmem:[%s169 + $0x608] sm:$0xff]
      %v371 = vld [vmem:[%s169 + $0x610] sm:$0xff]
      %v372 = vld [vmem:[%s169 + $0x618] sm:$0xff]
      %v373 = vld [vmem:[%s169 + $0x620] sm:$0xff]
      %v374 = vld [vmem:[%s169 + $0x628] sm:$0xff]
      %v375 = vld [vmem:[%s169 + $0x630] sm:$0xff]
      %v376 = vld [vmem:[%s169 + $0x638] sm:$0xff]
      %v377 = vld [vmem:[%s169 + $0x640] sm:$0xff]
      %v378 = vld [vmem:[%s169 + $0x648] sm:$0xff]
      %v379 = vld [vmem:[%s169 + $0x650] sm:$0xff]
      %v380 = vld [vmem:[%s169 + $0x658] sm:$0xff]
      %v381 = vld [vmem:[%s169 + $0x660] sm:$0xff]
      %v382 = vld [vmem:[%s169 + $0x668] sm:$0xff]
      %v383 = vld [vmem:[%s169 + $0x670] sm:$0xff]
      %v384 = vld [vmem:[%s169 + $0x678] sm:$0xff]
      %v385 = vld [vmem:[%s169 + $0x680] sm:$0xff]
      %v386 = vld [vmem:[%s169 + $0x688] sm:$0xff]
      %v387 = vld [vmem:[%s169 + $0x690] sm:$0xff]
      %v388 = vld [vmem:[%s169 + $0x698] sm:$0xff]
      %v389 = vld [vmem:[%s169 + $0x6a0] sm:$0xff]
      %v390 = vld [vmem:[%s169 + $0x6a8] sm:$0xff]
      %v391 = vld [vmem:[%s169 + $0x6b0] sm:$0xff]
      %v392 = vld [vmem:[%s169 + $0x6b8] sm:$0xff]
      %v393 = vld [vmem:[%s169 + $0x6c0] sm:$0xff]
      %v394 = vld [vmem:[%s169 + $0x6c8] sm:$0xff]
      %v395 = vld [vmem:[%s169 + $0x6d0] sm:$0xff]
      %v396 = vld [vmem:[%s169 + $0x6d8] sm:$0xff]
      %v397 = vld [vmem:[%s169 + $0x6e0] sm:$0xff]
      %v398 = vld [vmem:[%s169 + $0x6e8] sm:$0xff]
      %v399 = vld [vmem:[%s169 + $0x6f0] sm:$0xff]
      %v400 = vld [vmem:[%s169 + $0x6f8] sm:$0xff]
      %v401 = vld [vmem:[%s169 + $0x700] sm:$0xff]
      %v402 = vld [vmem:[%s169 + $0x708] sm:$0xff]
      %v403 = vld [vmem:[%s169 + $0x710] sm:$0xff]
      %v404 = vld [vmem:[%s169 + $0x718] sm:$0xff]
      %v405 = vld [vmem:[%s169 + $0x720] sm:$0xff]
      %v406 = vld [vmem:[%s169 + $0x728] sm:$0xff]
      %v407 = vld [vmem:[%s169 + $0x730] sm:$0xff]
      %v408 = vld [vmem:[%s169 + $0x738] sm:$0xff]
      %v409 = vld [vmem:[%s169 + $0x740] sm:$0xff]
      %v410 = vld [vmem:[%s169 + $0x748] sm:$0xff]
      %v411 = vld [vmem:[%s169 + $0x750] sm:$0xff]
      %v412 = vld [vmem:[%s169 + $0x758] sm:$0xff]
      %v413 = vld [vmem:[%s169 + $0x760] sm:$0xff]
      %v414 = vld [vmem:[%s169 + $0x768] sm:$0xff]
      %v415 = vld [vmem:[%s169 + $0x770] sm:$0xff]
      %v416 = vld [vmem:[%s169 + $0x778] sm:$0xff]
      %v417 = vld [vmem:[%s169 + $0x780] sm:$0xff]
      %v418 = vld [vmem:[%s169 + $0x788] sm:$0xff]
      %v419 = vld [vmem:[%s169 + $0x790] sm:$0xff]
      %v420 = vld [vmem:[%s169 + $0x798] sm:$0xff]
      %v421 = vld [vmem:[%s169 + $0x7a0] sm:$0xff]
      %v422 = vld [vmem:[%s169 + $0x7a8] sm:$0xff]
      %v423 = vld [vmem:[%s169 + $0x7b0] sm:$0xff]
      %v424 = vld [vmem:[%s169 + $0x7b8] sm:$0xff]
      %v425 = vld [vmem:[%s169 + $0x7c0] sm:$0xff]
      %v426 = vld [vmem:[%s169 + $0x7c8] sm:$0xff]
      %v427 = vld [vmem:[%s169 + $0x7d0] sm:$0xff]
      %v428 = vld [vmem:[%s169 + $0x7d8] sm:$0xff]
      %v429 = vld [vmem:[%s169 + $0x7e0] sm:$0xff]
      %v430 = vld [vmem:[%s169 + $0x7e8] sm:$0xff]
      %v431 = vld [vmem:[%s169 + $0x7f0] sm:$0xff]
      %v432 = vld [vmem:[%s169 + $0x7f8] sm:$0xff]
      %v433 = vld [vmem:[%s1] sm:$0xff]
      %v434 = vld [vmem:[%s1 + $0x8] sm:$0xff]
      %v435 = vld [vmem:[%s1 + $0x10] sm:$0xff]
      %v436 = vld [vmem:[%s1 + $0x18] sm:$0xff]
      %v437 = vld [vmem:[%s1 + $0x20] sm:$0xff]
      %v438 = vld [vmem:[%s1 + $0x28] sm:$0xff]
      %v439 = vld [vmem:[%s1 + $0x30] sm:$0xff]
      %v440 = vld [vmem:[%s1 + $0x38] sm:$0xff]
      %v441 = vld [vmem:[%s1 + $0x40] sm:$0xff]
      %v442 = vld [vmem:[%s1 + $0x48] sm:$0xff]
      %v443 = vld [vmem:[%s1 + $0x50] sm:$0xff]
      %v444 = vld [vmem:[%s1 + $0x58] sm:$0xff]
      %v445 = vld [vmem:[%s1 + $0x60] sm:$0xff]
      %v446 = vld [vmem:[%s1 + $0x68] sm:$0xff]
      %v447 = vld [vmem:[%s1 + $0x70] sm:$0xff]
      %v448 = vld [vmem:[%s1 + $0x78] sm:$0xff]
      %v449 = vld [vmem:[%s1 + $0x80] sm:$0xff]
      %v450 = vld [vmem:[%s1 + $0x88] sm:$0xff]
      %v451 = vld [vmem:[%s1 + $0x90] sm:$0xff]
      %v452 = vld [vmem:[%s1 + $0x98] sm:$0xff]
      %v453 = vld [vmem:[%s1 + $0xa0] sm:$0xff]
      %v454 = vld [vmem:[%s1 + $0xa8] sm:$0xff]
      %v455 = vld [vmem:[%s1 + $0xb0] sm:$0xff]
      %v456 = vld [vmem:[%s1 + $0xb8] sm:$0xff]
      %v457 = vld [vmem:[%s1 + $0xc0] sm:$0xff]
      %v458 = vld [vmem:[%s1 + $0xc8] sm:$0xff]
      %v459 = vld [vmem:[%s1 + $0xd0] sm:$0xff]
      %v460 = vld [vmem:[%s1 + $0xd8] sm:$0xff]
      %v461 = vld [vmem:[%s1 + $0xe0] sm:$0xff]
      %v462 = vld [vmem:[%s1 + $0xe8] sm:$0xff]
      %v463 = vld [vmem:[%s1 + $0xf0] sm:$0xff]
      %v464 = vld [vmem:[%s1 + $0xf8] sm:$0xff]
      %v465 = vld [vmem:[%s1 + $0x100] sm:$0xff]
      %v466 = vld [vmem:[%s1 + $0x108] sm:$0xff]
      %v467 = vld [vmem:[%s1 + $0x110] sm:$0xff]
      %v468 = vld [vmem:[%s1 + $0x118] sm:$0xff]
      %v469 = vld [vmem:[%s1 + $0x120] sm:$0xff]
      %v470 = vld [vmem:[%s1 + $0x128] sm:$0xff]
      %v471 = vld [vmem:[%s1 + $0x130] sm:$0xff]
      %v472 = vld [vmem:[%s1 + $0x138] sm:$0xff]
      %v473 = vld [vmem:[%s1 + $0x140] sm:$0xff]
      %v474 = vld [vmem:[%s1 + $0x148] sm:$0xff]
      %v475 = vld [vmem:[%s1 + $0x150] sm:$0xff]
      %v476 = vld [vmem:[%s1 + $0x158] sm:$0xff]
      %v477 = vld [vmem:[%s1 + $0x160] sm:$0xff]
      %v478 = vld [vmem:[%s1 + $0x168] sm:$0xff]
      %v479 = vld [vmem:[%s1 + $0x170] sm:$0xff]
      %v480 = vld [vmem:[%s1 + $0x178] sm:$0xff]
      %v481 = vld [vmem:[%s1 + $0x180] sm:$0xff]
      %v482 = vld [vmem:[%s1 + $0x188] sm:$0xff]
      %v483 = vld [vmem:[%s1 + $0x190] sm:$0xff]
      %v484 = vld [vmem:[%s1 + $0x198] sm:$0xff]
      %v485 = vld [vmem:[%s1 + $0x1a0] sm:$0xff]
      %v486 = vld [vmem:[%s1 + $0x1a8] sm:$0xff]
      %v487 = vld [vmem:[%s2] sm:$0x1]
      %v489 = vlaneseq
      %v490 = vshrl.u32 %v489, 7
      %v491 = vsub.s32 0, %v490
      %v492 = vrot.slane %v487, %v491
      %vm494 = vcmask 392192
      %v496 = vsel %vm494, %v180, 0
      %v499 = vsel %vm494, %v184, 0
      %v502 = vsel %vm494, %v188, 0
      %v505 = vsel %vm494, %v192, 0
      %v508 = vsel %vm494, %v196, 0
      %v511 = vsel %vm494, %v200, 0
      %v514 = vsel %vm494, %v204, 0
      %v517 = vsel %vm494, %v208, 0
      %v520 = vsel %vm494, %v212, 0
      %v523 = vsel %vm494, %v216, 0
      %v526 = vsel %vm494, %v220, 0
      %v529 = vsel %vm494, %v224, 0
      %v532 = vsel %vm494, %v228, 0
      %v535 = vsel %vm494, %v232, 0
      %v538 = vsel %vm494, %v236, 0
      %v541 = vsel %vm494, %v240, 0
      %v544 = vsel %vm494, %v244, 0
      %v547 = vsel %vm494, %v248, 0
      %v550 = vsel %vm494, %v252, 0
      %v553 = vsel %vm494, %v256, 0
      %v556 = vsel %vm494, %v260, 0
      %v559 = vsel %vm494, %v264, 0
      %v562 = vsel %vm494, %v268, 0
      %v565 = vsel %vm494, %v272, 0
      %v568 = vsel %vm494, %v276, 0
      %v571 = vsel %vm494, %v280, 0
      %v574 = vsel %vm494, %v284, 0
      %v577 = vsel %vm494, %v288, 0
      %v580 = vsel %vm494, %v292, 0
      %v583 = vsel %vm494, %v296, 0
      %v586 = vsel %vm494, %v300, 0
      %v589 = vsel %vm494, %v304, 0
      %v592 = vsel %vm494, %v308, 0
      %v595 = vsel %vm494, %v312, 0
      %v598 = vsel %vm494, %v316, 0
      %v601 = vsel %vm494, %v320, 0
      %v604 = vsel %vm494, %v324, 0
      %v607 = vsel %vm494, %v328, 0
      %v610 = vsel %vm494, %v332, 0
      %v613 = vsel %vm494, %v336, 0
      %v616 = vsel %vm494, %v340, 0
      %v619 = vsel %vm494, %v344, 0
      %v622 = vsel %vm494, %v348, 0
      %v625 = vsel %vm494, %v352, 0
      %v628 = vsel %vm494, %v356, 0
      %v631 = vsel %vm494, %v360, 0
      %v634 = vsel %vm494, %v364, 0
      %v637 = vsel %vm494, %v368, 0
      %v640 = vsel %vm494, %v372, 0
      %v643 = vsel %vm494, %v376, 0
      %v646 = vsel %vm494, %v380, 0
      %v649 = vsel %vm494, %v384, 0
      %v652 = vsel %vm494, %v388, 0
      %v655 = vsel %vm494, %v392, 0
      %v658 = vsel %vm494, %v396, 0
      %v661 = vsel %vm494, %v400, 0
      %v664 = vsel %vm494, %v404, 0
      %v667 = vsel %vm494, %v408, 0
      %v670 = vsel %vm494, %v412, 0
      %v673 = vsel %vm494, %v416, 0
      %v676 = vsel %vm494, %v420, 0
      %v679 = vsel %vm494, %v424, 0
      %v682 = vsel %vm494, %v428, 0
      %v685 = vsel %vm494, %v432, 0
      %687 = vmatprep.subr.mxu0 0.0
      %688 = vmatpush1.msra.mxu0 %v448
      %689 = vmatprep.subr.mxu0 0.0
      %690 = vmatpush1.msra.mxu0 %v447
      %691 = vmatprep.subr.mxu0 0.0
      %692 = vmatpush1.msra.mxu0 %v446
      %693 = vmatprep.subr.mxu0 0.0
      %694 = vmatpush1.msra.mxu0 %v445
      %695 = vmatprep.subr.mxu0 0.0
      %696 = vmatpush1.msra.mxu0 %v444
      %697 = vmatprep.subr.mxu0 0.0
      %698 = vmatpush1.msra.mxu0 %v443
      %699 = vmatprep.subr.mxu0 0.0
      %700 = vmatpush1.msra.mxu0 %v442
      %701 = vmatprep.subr.mxu0 0.0
      %702 = vmatpush1.msra.mxu0 %v441
      %703 = vmatprep.subr.mxu0 0.0
      %704 = vmatpush1.msra.mxu0 %v440
      %705 = vmatprep.subr.mxu0 0.0
      %706 = vmatpush1.msra.mxu0 %v439
      %707 = vmatprep.subr.mxu0 0.0
      %708 = vmatpush1.msra.mxu0 %v438
      %709 = vmatprep.subr.mxu0 0.0
      %710 = vmatpush1.msra.mxu0 %v437
      %711 = vmatprep.subr.mxu0 0.0
      %712 = vmatpush1.msra.mxu0 %v436
      %713 = vmatprep.subr.mxu0 0.0
      %714 = vmatpush1.msra.mxu0 %v435
      %715 = vmatprep.subr.mxu0 0.0
      %716 = vmatpush1.msra.mxu0 %v434
      %717 = vmatprep.subr.mxu0 0.0
      %718 = vmatpush1.msra.mxu0 %v433
      %719 = vmatprep.subr.mxu0 0.0
      %720 = vmatpush2.msra.mxu0 %v464
      %721 = vmatprep.subr.mxu0 0.0
      %722 = vmatpush2.msra.mxu0 %v463
      %723 = vmatprep.subr.mxu0 0.0
      %724 = vmatpush2.msra.mxu0 %v462
      %725 = vmatprep.subr.mxu0 0.0
      %726 = vmatpush2.msra.mxu0 %v461
      %727 = vmatprep.subr.mxu0 0.0
      %728 = vmatpush2.msra.mxu0 %v460
      %729 = vmatprep.subr.mxu0 0.0
      %730 = vmatpush2.msra.mxu0 %v459
      %731 = vmatprep.subr.mxu0 0.0
      %732 = vmatpush2.msra.mxu0 %v458
      %733 = vmatprep.subr.mxu0 0.0
      %734 = vmatpush2.msra.mxu0 %v457
      %735 = vmatprep.subr.mxu0 0.0
      %736 = vmatpush2.msra.mxu0 %v456
      %737 = vmatprep.subr.mxu0 0.0
      %738 = vmatpush2.msra.mxu0 %v455
      %739 = vmatprep.subr.mxu0 0.0
      %740 = vmatpush2.msra.mxu0 %v454
      %741 = vmatprep.subr.mxu0 0.0
      %742 = vmatpush2.msra.mxu0 %v453
      %743 = vmatprep.subr.mxu0 0.0
      %744 = vmatpush2.msra.mxu0 %v452
      %745 = vmatprep.subr.mxu0 0.0
      %746 = vmatpush2.msra.mxu0 %v451
      %747 = vmatprep.subr.mxu0 0.0
      %748 = vmatpush2.msra.mxu0 %v450
      %749 = vmatprep.subr.mxu0 0.0
      %750 = vmatpush2.msra.mxu0 %v449
      %751 = vmatprep.mubr.f32.mxu0 %v178
      %752 = vmatmul.mubr.f32.gmra.mxu0 %v177
      %v753 = vpop.f32.mrf.mxu0
      %v754 = vadd.f32 %v492, %v753
      %v755 = vpop.f32.mrf.mxu0
      %756 = vmatprep.mubr.f32.mxu0 %v182
      %757 = vmatmul.mubr.f32.gmra.mxu0 %v181
      %v758 = vpop.f32.mrf.mxu0
      %v759 = vadd.f32 %v492, %v758
      %v760 = vpop.f32.mrf.mxu0
      %761 = vmatprep.mubr.f32.mxu0 %v186
      %762 = vmatmul.mubr.f32.gmra.mxu0 %v185
      %v763 = vpop.f32.mrf.mxu0
      %v764 = vadd.f32 %v492, %v763
      %v765 = vpop.f32.mrf.mxu0
      %766 = vmatprep.mubr.f32.mxu0 %v190
      %767 = vmatmul.mubr.f32.gmra.mxu0 %v189
      %v768 = vpop.f32.mrf.mxu0
      %v769 = vadd.f32 %v492, %v768
      %v770 = vpop.f32.mrf.mxu0
      %771 = vmatprep.mubr.f32.mxu0 %v194
      %772 = vmatmul.mubr.f32.gmra.mxu0 %v193
      %v773 = vpop.f32.mrf.mxu0
      %v774 = vadd.f32 %v492, %v773
      %v775 = vpop.f32.mrf.mxu0
      %776 = vmatprep.mubr.f32.mxu0 %v198
      %777 = vmatmul.mubr.f32.gmra.mxu0 %v197
      %v778 = vpop.f32.mrf.mxu0
      %v779 = vadd.f32 %v492, %v778
      %v780 = vpop.f32.mrf.mxu0
      %781 = vmatprep.mubr.f32.mxu0 %v202
      %782 = vmatmul.mubr.f32.gmra.mxu0 %v201
      %v783 = vpop.f32.mrf.mxu0
      %v784 = vadd.f32 %v492, %v783
      %v785 = vpop.f32.mrf.mxu0
      %786 = vmatprep.mubr.f32.mxu0 %v206
      %787 = vmatmul.mubr.f32.gmra.mxu0 %v205
      %v788 = vpop.f32.mrf.mxu0
      %v789 = vadd.f32 %v492, %v788
      %v790 = vpop.f32.mrf.mxu0
      %791 = vmatprep.mubr.f32.mxu0 %v210
      %792 = vmatmul.mubr.f32.gmra.mxu0 %v209
      %v793 = vpop.f32.mrf.mxu0
      %v794 = vadd.f32 %v492, %v793
      %v795 = vpop.f32.mrf.mxu0
      %796 = vmatprep.mubr.f32.mxu0 %v214
      %797 = vmatmul.mubr.f32.gmra.mxu0 %v213
      %v798 = vpop.f32.mrf.mxu0
      %v799 = vadd.f32 %v492, %v798
      %v800 = vpop.f32.mrf.mxu0
      %801 = vmatprep.mubr.f32.mxu0 %v218
      %802 = vmatmul.mubr.f32.gmra.mxu0 %v217
      %v803 = vpop.f32.mrf.mxu0
      %v804 = vadd.f32 %v492, %v803
      %v805 = vpop.f32.mrf.mxu0
      %806 = vmatprep.mubr.f32.mxu0 %v222
      %807 = vmatmul.mubr.f32.gmra.mxu0 %v221
      %v808 = vpop.f32.mrf.mxu0
      %v809 = vadd.f32 %v492, %v808
      %v810 = vpop.f32.mrf.mxu0
      %811 = vmatprep.mubr.f32.mxu0 %v226
      %812 = vmatmul.mubr.f32.gmra.mxu0 %v225
      %v813 = vpop.f32.mrf.mxu0
      %v814 = vadd.f32 %v492, %v813
      %v815 = vpop.f32.mrf.mxu0
      %816 = vmatprep.mubr.f32.mxu0 %v230
      %817 = vmatmul.mubr.f32.gmra.mxu0 %v229
      %v818 = vpop.f32.mrf.mxu0
      %v819 = vadd.f32 %v492, %v818
      %v820 = vpop.f32.mrf.mxu0
      %821 = vmatprep.mubr.f32.mxu0 %v234
      %822 = vmatmul.mubr.f32.gmra.mxu0 %v233
      %v823 = vpop.f32.mrf.mxu0
      %v824 = vadd.f32 %v492, %v823
      %v825 = vpop.f32.mrf.mxu0
      %826 = vmatprep.mubr.f32.mxu0 %v238
      %827 = vmatmul.mubr.f32.gmra.mxu0 %v237
      %v828 = vpop.f32.mrf.mxu0
      %v829 = vadd.f32 %v492, %v828
      %v830 = vpop.f32.mrf.mxu0
      %831 = vmatprep.mubr.f32.mxu0 %v242
      %832 = vmatmul.mubr.f32.gmra.mxu0 %v241
      %v833 = vpop.f32.mrf.mxu0
      %v834 = vadd.f32 %v492, %v833
      %v835 = vpop.f32.mrf.mxu0
      %836 = vmatprep.mubr.f32.mxu0 %v246
      %837 = vmatmul.mubr.f32.gmra.mxu0 %v245
      %v838 = vpop.f32.mrf.mxu0
      %v839 = vadd.f32 %v492, %v838
      %v840 = vpop.f32.mrf.mxu0
      %841 = vmatprep.mubr.f32.mxu0 %v250
      %842 = vmatmul.mubr.f32.gmra.mxu0 %v249
      %v843 = vpop.f32.mrf.mxu0
      %v844 = vadd.f32 %v492, %v843
      %v845 = vpop.f32.mrf.mxu0
      %846 = vmatprep.mubr.f32.mxu0 %v254
      %847 = vmatmul.mubr.f32.gmra.mxu0 %v253
      %v848 = vpop.f32.mrf.mxu0
      %v849 = vadd.f32 %v492, %v848
      %v850 = vpop.f32.mrf.mxu0
      %851 = vmatprep.mubr.f32.mxu0 %v258
      %852 = vmatmul.mubr.f32.gmra.mxu0 %v257
      %v853 = vpop.f32.mrf.mxu0
      %v854 = vadd.f32 %v492, %v853
      %v855 = vpop.f32.mrf.mxu0
      %856 = vmatprep.mubr.f32.mxu0 %v262
      %857 = vmatmul.mubr.f32.gmra.mxu0 %v261
      %v858 = vpop.f32.mrf.mxu0
      %v859 = vadd.f32 %v492, %v858
      %v860 = vpop.f32.mrf.mxu0
      %861 = vmatprep.mubr.f32.mxu0 %v266
      %862 = vmatmul.mubr.f32.gmra.mxu0 %v265
      %v863 = vpop.f32.mrf.mxu0
      %v864 = vadd.f32 %v492, %v863
      %v865 = vpop.f32.mrf.mxu0
      %866 = vmatprep.mubr.f32.mxu0 %v270
      %867 = vmatmul.mubr.f32.gmra.mxu0 %v269
      %v868 = vpop.f32.mrf.mxu0
      %v869 = vadd.f32 %v492, %v868
      %v870 = vpop.f32.mrf.mxu0
      %871 = vmatprep.mubr.f32.mxu0 %v274
      %872 = vmatmul.mubr.f32.gmra.mxu0 %v273
      %v873 = vpop.f32.mrf.mxu0
      %v874 = vadd.f32 %v492, %v873
      %v875 = vpop.f32.mrf.mxu0
      %876 = vmatprep.mubr.f32.mxu0 %v278
      %877 = vmatmul.mubr.f32.gmra.mxu0 %v277
      %v878 = vpop.f32.mrf.mxu0
      %v879 = vadd.f32 %v492, %v878
      %v880 = vpop.f32.mrf.mxu0
      %881 = vmatprep.mubr.f32.mxu0 %v282
      %882 = vmatmul.mubr.f32.gmra.mxu0 %v281
      %v883 = vpop.f32.mrf.mxu0
      %v884 = vadd.f32 %v492, %v883
      %v885 = vpop.f32.mrf.mxu0
      %886 = vmatprep.mubr.f32.mxu0 %v286
      %887 = vmatmul.mubr.f32.gmra.mxu0 %v285
      %v888 = vpop.f32.mrf.mxu0
      %v889 = vadd.f32 %v492, %v888
      %v890 = vpop.f32.mrf.mxu0
      %891 = vmatprep.mubr.f32.mxu0 %v290
      %892 = vmatmul.mubr.f32.gmra.mxu0 %v289
      %v893 = vpop.f32.mrf.mxu0
      %v894 = vadd.f32 %v492, %v893
      %v895 = vpop.f32.mrf.mxu0
      %896 = vmatprep.mubr.f32.mxu0 %v294
      %897 = vmatmul.mubr.f32.gmra.mxu0 %v293
      %v898 = vpop.f32.mrf.mxu0
      %v899 = vadd.f32 %v492, %v898
      %v900 = vpop.f32.mrf.mxu0
      %901 = vmatprep.mubr.f32.mxu0 %v298
      %902 = vmatmul.mubr.f32.gmra.mxu0 %v297
      %v903 = vpop.f32.mrf.mxu0
      %v904 = vadd.f32 %v492, %v903
      %v905 = vpop.f32.mrf.mxu0
      %906 = vmatprep.mubr.f32.mxu0 %v302
      %907 = vmatmul.mubr.f32.gmra.mxu0 %v301
      %v908 = vpop.f32.mrf.mxu0
      %v909 = vadd.f32 %v492, %v908
      %v910 = vpop.f32.mrf.mxu0
      %911 = vmatprep.mubr.f32.mxu0 %v306
      %912 = vmatmul.mubr.f32.gmra.mxu0 %v305
      %v913 = vpop.f32.mrf.mxu0
      %v914 = vadd.f32 %v492, %v913
      %v915 = vpop.f32.mrf.mxu0
      %916 = vmatprep.mubr.f32.mxu0 %v310
      %917 = vmatmul.mubr.f32.gmra.mxu0 %v309
      %v918 = vpop.f32.mrf.mxu0
      %v919 = vadd.f32 %v492, %v918
      %v920 = vpop.f32.mrf.mxu0
      %921 = vmatprep.mubr.f32.mxu0 %v314
      %922 = vmatmul.mubr.f32.gmra.mxu0 %v313
      %v923 = vpop.f32.mrf.mxu0
      %v924 = vadd.f32 %v492, %v923
      %v925 = vpop.f32.mrf.mxu0
      %926 = vmatprep.mubr.f32.mxu0 %v318
      %927 = vmatmul.mubr.f32.gmra.mxu0 %v317
      %v928 = vpop.f32.mrf.mxu0
      %v929 = vadd.f32 %v492, %v928
      %v930 = vpop.f32.mrf.mxu0
      %931 = vmatprep.mubr.f32.mxu0 %v322
      %932 = vmatmul.mubr.f32.gmra.mxu0 %v321
      %v933 = vpop.f32.mrf.mxu0
      %v934 = vadd.f32 %v492, %v933
      %v935 = vpop.f32.mrf.mxu0
      %936 = vmatprep.mubr.f32.mxu0 %v326
      %937 = vmatmul.mubr.f32.gmra.mxu0 %v325
      %v938 = vpop.f32.mrf.mxu0
      %v939 = vadd.f32 %v492, %v938
      %v940 = vpop.f32.mrf.mxu0
      %941 = vmatprep.mubr.f32.mxu0 %v330
      %942 = vmatmul.mubr.f32.gmra.mxu0 %v329
      %v943 = vpop.f32.mrf.mxu0
      %v944 = vadd.f32 %v492, %v943
      %v945 = vpop.f32.mrf.mxu0
      %946 = vmatprep.mubr.f32.mxu0 %v334
      %947 = vmatmul.mubr.f32.gmra.mxu0 %v333
      %v948 = vpop.f32.mrf.mxu0
      %v949 = vadd.f32 %v492, %v948
      %v950 = vpop.f32.mrf.mxu0
      %951 = vmatprep.mubr.f32.mxu0 %v338
      %952 = vmatmul.mubr.f32.gmra.mxu0 %v337
      %v953 = vpop.f32.mrf.mxu0
      %v954 = vadd.f32 %v492, %v953
      %v955 = vpop.f32.mrf.mxu0
      %956 = vmatprep.mubr.f32.mxu0 %v342
      %957 = vmatmul.mubr.f32.gmra.mxu0 %v341
      %v958 = vpop.f32.mrf.mxu0
      %v959 = vadd.f32 %v492, %v958
      %v960 = vpop.f32.mrf.mxu0
      %961 = vmatprep.mubr.f32.mxu0 %v346
      %962 = vmatmul.mubr.f32.gmra.mxu0 %v345
      %v963 = vpop.f32.mrf.mxu0
      %v964 = vadd.f32 %v492, %v963
      %v965 = vpop.f32.mrf.mxu0
      %966 = vmatprep.mubr.f32.mxu0 %v350
      %967 = vmatmul.mubr.f32.gmra.mxu0 %v349
      %v968 = vpop.f32.mrf.mxu0
      %v969 = vadd.f32 %v492, %v968
      %v970 = vpop.f32.mrf.mxu0
      %971 = vmatprep.mubr.f32.mxu0 %v354
      %972 = vmatmul.mubr.f32.gmra.mxu0 %v353
      %v973 = vpop.f32.mrf.mxu0
      %v974 = vadd.f32 %v492, %v973
      %v975 = vpop.f32.mrf.mxu0
      %976 = vmatprep.mubr.f32.mxu0 %v358
      %977 = vmatmul.mubr.f32.gmra.mxu0 %v357
      %v978 = vpop.f32.mrf.mxu0
      %v979 = vadd.f32 %v492, %v978
      %v980 = vpop.f32.mrf.mxu0
      %981 = vmatprep.mubr.f32.mxu0 %v362
      %982 = vmatmul.mubr.f32.gmra.mxu0 %v361
      %v983 = vpop.f32.mrf.mxu0
      %v984 = vadd.f32 %v492, %v983
      %v985 = vpop.f32.mrf.mxu0
      %986 = vmatprep.mubr.f32.mxu0 %v366
      %987 = vmatmul.mubr.f32.gmra.mxu0 %v365
      %v988 = vpop.f32.mrf.mxu0
      %v989 = vadd.f32 %v492, %v988
      %v990 = vpop.f32.mrf.mxu0
      %991 = vmatprep.mubr.f32.mxu0 %v370
      %992 = vmatmul.mubr.f32.gmra.mxu0 %v369
      %v993 = vpop.f32.mrf.mxu0
      %v994 = vadd.f32 %v492, %v993
      %v995 = vpop.f32.mrf.mxu0
      %996 = vmatprep.mubr.f32.mxu0 %v374
      %997 = vmatmul.mubr.f32.gmra.mxu0 %v373
      %v998 = vpop.f32.mrf.mxu0
      %v999 = vadd.f32 %v492, %v998
      %v1000 = vpop.f32.mrf.mxu0
      %1001 = vmatprep.mubr.f32.mxu0 %v378
      %1002 = vmatmul.mubr.f32.gmra.mxu0 %v377
      %v1003 = vpop.f32.mrf.mxu0
      %v1004 = vadd.f32 %v492, %v1003
      %v1005 = vpop.f32.mrf.mxu0
      %1006 = vmatprep.mubr.f32.mxu0 %v382
      %1007 = vmatmul.mubr.f32.gmra.mxu0 %v381
      %v1008 = vpop.f32.mrf.mxu0
      %v1009 = vadd.f32 %v492, %v1008
      %v1010 = vpop.f32.mrf.mxu0
      %1011 = vmatprep.mubr.f32.mxu0 %v386
      %1012 = vmatmul.mubr.f32.gmra.mxu0 %v385
      %v1013 = vpop.f32.mrf.mxu0
      %v1014 = vadd.f32 %v492, %v1013
      %v1015 = vpop.f32.mrf.mxu0
      %1016 = vmatprep.mubr.f32.mxu0 %v390
      %1017 = vmatmul.mubr.f32.gmra.mxu0 %v389
      %v1018 = vpop.f32.mrf.mxu0
      %v1019 = vadd.f32 %v492, %v1018
      %v1020 = vpop.f32.mrf.mxu0
      %1021 = vmatprep.mubr.f32.mxu0 %v394
      %1022 = vmatmul.mubr.f32.gmra.mxu0 %v393
      %v1023 = vpop.f32.mrf.mxu0
      %v1024 = vadd.f32 %v492, %v1023
      %v1025 = vpop.f32.mrf.mxu0
      %1026 = vmatprep.mubr.f32.mxu0 %v398
      %1027 = vmatmul.mubr.f32.gmra.mxu0 %v397
      %v1028 = vpop.f32.mrf.mxu0
      %v1029 = vadd.f32 %v492, %v1028
      %v1030 = vpop.f32.mrf.mxu0
      %1031 = vmatprep.mubr.f32.mxu0 %v402
      %1032 = vmatmul.mubr.f32.gmra.mxu0 %v401
      %v1033 = vpop.f32.mrf.mxu0
      %v1034 = vadd.f32 %v492, %v1033
      %v1035 = vpop.f32.mrf.mxu0
      %1036 = vmatprep.mubr.f32.mxu0 %v406
      %1037 = vmatmul.mubr.f32.gmra.mxu0 %v405
      %v1038 = vpop.f32.mrf.mxu0
      %v1039 = vadd.f32 %v492, %v1038
      %v1040 = vpop.f32.mrf.mxu0
      %1041 = vmatprep.mubr.f32.mxu0 %v410
      %1042 = vmatmul.mubr.f32.gmra.mxu0 %v409
      %v1043 = vpop.f32.mrf.mxu0
      %v1044 = vadd.f32 %v492, %v1043
      %v1045 = vpop.f32.mrf.mxu0
      %1046 = vmatprep.mubr.f32.mxu0 %v414
      %1047 = vmatmul.mubr.f32.gmra.mxu0 %v413
      %v1048 = vpop.f32.mrf.mxu0
      %v1049 = vadd.f32 %v492, %v1048
      %v1050 = vpop.f32.mrf.mxu0
      %1051 = vmatprep.mubr.f32.mxu0 %v418
      %1052 = vmatmul.mubr.f32.gmra.mxu0 %v417
      %v1053 = vpop.f32.mrf.mxu0
      %v1054 = vadd.f32 %v492, %v1053
      %v1055 = vpop.f32.mrf.mxu0
      %1056 = vmatprep.mubr.f32.mxu0 %v422
      %1057 = vmatmul.mubr.f32.gmra.mxu0 %v421
      %v1058 = vpop.f32.mrf.mxu0
      %v1059 = vadd.f32 %v492, %v1058
      %v1060 = vpop.f32.mrf.mxu0
      %1061 = vmatprep.mubr.f32.mxu0 %v426
      %1062 = vmatmul.mubr.f32.gmra.mxu0 %v425
      %v1063 = vpop.f32.mrf.mxu0
      %v1064 = vadd.f32 %v492, %v1063
      %v1065 = vpop.f32.mrf.mxu0
      %1066 = vmatprep.mubr.f32.mxu0 %v430
      %1067 = vmatmul.mubr.f32.gmra.mxu0 %v429
      %v1068 = vpop.f32.mrf.mxu0
      %v1069 = vadd.f32 %v492, %v1068
      %v1070 = vpop.f32.mrf.mxu0
      %1071 = vdwg.mxu0
      %1072 = vmatprep.subr.mxu0 0.0
      %1073 = vmatpush1.msra.mxu0 %v480
      %1074 = vmatprep.subr.mxu0 0.0
      %1075 = vmatpush1.msra.mxu0 %v479
      %1076 = vmatprep.subr.mxu0 0.0
      %1077 = vmatpush1.msra.mxu0 %v478
      %1078 = vmatprep.subr.mxu0 0.0
      %1079 = vmatpush1.msra.mxu0 %v477
      %1080 = vmatprep.subr.mxu0 0.0
      %1081 = vmatpush1.msra.mxu0 %v476
      %1082 = vmatprep.subr.mxu0 0.0
      %1083 = vmatpush1.msra.mxu0 %v475
      %1084 = vmatprep.subr.mxu0 0.0
      %1085 = vmatpush1.msra.mxu0 %v474
      %1086 = vmatprep.subr.mxu0 0.0
      %1087 = vmatpush1.msra.mxu0 %v473
      %1088 = vmatprep.subr.mxu0 0.0
      %1089 = vmatpush1.msra.mxu0 %v472
      %1090 = vmatprep.subr.mxu0 0.0
      %1091 = vmatpush1.msra.mxu0 %v471
      %1092 = vmatprep.subr.mxu0 0.0
      %1093 = vmatpush1.msra.mxu0 %v470
      %1094 = vmatprep.subr.mxu0 0.0
      %1095 = vmatpush1.msra.mxu0 %v469
      %1096 = vmatprep.subr.mxu0 0.0
      %1097 = vmatpush1.msra.mxu0 %v468
      %1098 = vmatprep.subr.mxu0 0.0
      %1099 = vmatpush1.msra.mxu0 %v467
      %1100 = vmatprep.subr.mxu0 0.0
      %1101 = vmatpush1.msra.mxu0 %v466
      %1102 = vmatprep.subr.mxu0 0.0
      %1103 = vmatpush1.msra.mxu0 %v465
      %1104 = vmatprep.subr.mxu0 0.0
      %1105 = vmatpush2.msra.mxu0 0.0
      %1106 = vmatprep.subr.mxu0 0.0
      %1107 = vmatpush2.msra.mxu0 0.0
      %1108 = vmatprep.subr.mxu0 0.0
      %1109 = vmatpush2.msra.mxu0 0.0
      %1110 = vmatprep.subr.mxu0 0.0
      %1111 = vmatpush2.msra.mxu0 0.0
      %1112 = vmatprep.subr.mxu0 0.0
      %1113 = vmatpush2.msra.mxu0 0.0
      %1114 = vmatprep.subr.mxu0 0.0
      %1115 = vmatpush2.msra.mxu0 0.0
      %1116 = vmatprep.subr.mxu0 0.0
      %1117 = vmatpush2.msra.mxu0 0.0
      %1118 = vmatprep.subr.mxu0 0.0
      %1119 = vmatpush2.msra.mxu0 0.0
      %1120 = vmatprep.subr.mxu0 0.0
      %1121 = vmatpush2.msra.mxu0 0.0
      %1122 = vmatprep.subr.mxu0 0.0
      %1123 = vmatpush2.msra.mxu0 0.0
      %1124 = vmatprep.subr.mxu0 0.0
      %1125 = vmatpush2.msra.mxu0 %v486
      %1126 = vmatprep.subr.mxu0 0.0
      %1127 = vmatpush2.msra.mxu0 %v485
      %1128 = vmatprep.subr.mxu0 0.0
      %1129 = vmatpush2.msra.mxu0 %v484
      %1130 = vmatprep.subr.mxu0 0.0
      %1131 = vmatpush2.msra.mxu0 %v483
      %1132 = vmatprep.subr.mxu0 0.0
      %1133 = vmatpush2.msra.mxu0 %v482
      %1134 = vmatprep.subr.mxu0 0.0
      %1135 = vmatpush2.msra.mxu0 %v481
      %1136 = vmatprep.mubr.f32.mxu0 %v496
      %1137 = vmatmul.mubr.f32.gmra.mxu0 %v179
      %v1138 = vpop.f32.mrf.mxu0
      %v1139 = vadd.f32 %v754, %v1138
      %v1140 = vpop.f32.mrf.mxu0
      %1141 = vmatprep.mubr.f32.mxu0 %v499
      %1142 = vmatmul.mubr.f32.gmra.mxu0 %v183
      %v1143 = vpop.f32.mrf.mxu0
      %v1144 = vadd.f32 %v759, %v1143
      %v1145 = vpop.f32.mrf.mxu0
      %1146 = vmatprep.mubr.f32.mxu0 %v502
      %1147 = vmatmul.mubr.f32.gmra.mxu0 %v187
      %v1148 = vpop.f32.mrf.mxu0
      %v1149 = vadd.f32 %v764, %v1148
      %v1150 = vpop.f32.mrf.mxu0
      %1151 = vmatprep.mubr.f32.mxu0 %v505
      %1152 = vmatmul.mubr.f32.gmra.mxu0 %v191
      %v1153 = vpop.f32.mrf.mxu0
      %v1154 = vadd.f32 %v769, %v1153
      %v1155 = vpop.f32.mrf.mxu0
      %1156 = vmatprep.mubr.f32.mxu0 %v508
      %1157 = vmatmul.mubr.f32.gmra.mxu0 %v195
      %v1158 = vpop.f32.mrf.mxu0
      %v1159 = vadd.f32 %v774, %v1158
      %v1160 = vpop.f32.mrf.mxu0
      %1161 = vmatprep.mubr.f32.mxu0 %v511
      %1162 = vmatmul.mubr.f32.gmra.mxu0 %v199
      %v1163 = vpop.f32.mrf.mxu0
      %v1164 = vadd.f32 %v779, %v1163
      %v1165 = vpop.f32.mrf.mxu0
      %1166 = vmatprep.mubr.f32.mxu0 %v514
      %1167 = vmatmul.mubr.f32.gmra.mxu0 %v203
      %v1168 = vpop.f32.mrf.mxu0
      %v1169 = vadd.f32 %v784, %v1168
      %v1170 = vpop.f32.mrf.mxu0
      %1171 = vmatprep.mubr.f32.mxu0 %v517
      %1172 = vmatmul.mubr.f32.gmra.mxu0 %v207
      %v1173 = vpop.f32.mrf.mxu0
      %v1174 = vadd.f32 %v789, %v1173
      %v1175 = vpop.f32.mrf.mxu0
      %1176 = vmatprep.mubr.f32.mxu0 %v520
      %1177 = vmatmul.mubr.f32.gmra.mxu0 %v211
      %v1178 = vpop.f32.mrf.mxu0
      %v1179 = vadd.f32 %v794, %v1178
      %v1180 = vpop.f32.mrf.mxu0
      %1181 = vmatprep.mubr.f32.mxu0 %v523
      %1182 = vmatmul.mubr.f32.gmra.mxu0 %v215
      %v1183 = vpop.f32.mrf.mxu0
      %v1184 = vadd.f32 %v799, %v1183
      %v1185 = vpop.f32.mrf.mxu0
      %1186 = vmatprep.mubr.f32.mxu0 %v526
      %1187 = vmatmul.mubr.f32.gmra.mxu0 %v219
      %v1188 = vpop.f32.mrf.mxu0
      %v1189 = vadd.f32 %v804, %v1188
      %v1190 = vpop.f32.mrf.mxu0
      %1191 = vmatprep.mubr.f32.mxu0 %v529
      %1192 = vmatmul.mubr.f32.gmra.mxu0 %v223
      %v1193 = vpop.f32.mrf.mxu0
      %v1194 = vadd.f32 %v809, %v1193
      %v1195 = vpop.f32.mrf.mxu0
      %1196 = vmatprep.mubr.f32.mxu0 %v532
      %1197 = vmatmul.mubr.f32.gmra.mxu0 %v227
      %v1198 = vpop.f32.mrf.mxu0
      %v1199 = vadd.f32 %v814, %v1198
      %v1200 = vpop.f32.mrf.mxu0
      %1201 = vmatprep.mubr.f32.mxu0 %v535
      %1202 = vmatmul.mubr.f32.gmra.mxu0 %v231
      %v1203 = vpop.f32.mrf.mxu0
      %v1204 = vadd.f32 %v819, %v1203
      %v1205 = vpop.f32.mrf.mxu0
      %1206 = vmatprep.mubr.f32.mxu0 %v538
      %1207 = vmatmul.mubr.f32.gmra.mxu0 %v235
      %v1208 = vpop.f32.mrf.mxu0
      %v1209 = vadd.f32 %v824, %v1208
      %v1210 = vpop.f32.mrf.mxu0
      %1211 = vmatprep.mubr.f32.mxu0 %v541
      %1212 = vmatmul.mubr.f32.gmra.mxu0 %v239
      %v1213 = vpop.f32.mrf.mxu0
      %v1214 = vadd.f32 %v829, %v1213
      %v1215 = vpop.f32.mrf.mxu0
      %1216 = vmatprep.mubr.f32.mxu0 %v544
      %1217 = vmatmul.mubr.f32.gmra.mxu0 %v243
      %v1218 = vpop.f32.mrf.mxu0
      %v1219 = vadd.f32 %v834, %v1218
      %v1220 = vpop.f32.mrf.mxu0
      %1221 = vmatprep.mubr.f32.mxu0 %v547
      %1222 = vmatmul.mubr.f32.gmra.mxu0 %v247
      %v1223 = vpop.f32.mrf.mxu0
      %v1224 = vadd.f32 %v839, %v1223
      %v1225 = vpop.f32.mrf.mxu0
      %1226 = vmatprep.mubr.f32.mxu0 %v550
      %1227 = vmatmul.mubr.f32.gmra.mxu0 %v251
      %v1228 = vpop.f32.mrf.mxu0
      %v1229 = vadd.f32 %v844, %v1228
      %v1230 = vpop.f32.mrf.mxu0
      %1231 = vmatprep.mubr.f32.mxu0 %v553
      %1232 = vmatmul.mubr.f32.gmra.mxu0 %v255
      %v1233 = vpop.f32.mrf.mxu0
      %v1234 = vadd.f32 %v849, %v1233
      %v1235 = vpop.f32.mrf.mxu0
      %1236 = vmatprep.mubr.f32.mxu0 %v556
      %1237 = vmatmul.mubr.f32.gmra.mxu0 %v259
      %v1238 = vpop.f32.mrf.mxu0
      %v1239 = vadd.f32 %v854, %v1238
      %v1240 = vpop.f32.mrf.mxu0
      %1241 = vmatprep.mubr.f32.mxu0 %v559
      %1242 = vmatmul.mubr.f32.gmra.mxu0 %v263
      %v1243 = vpop.f32.mrf.mxu0
      %v1244 = vadd.f32 %v859, %v1243
      %v1245 = vpop.f32.mrf.mxu0
      %1246 = vmatprep.mubr.f32.mxu0 %v562
      %1247 = vmatmul.mubr.f32.gmra.mxu0 %v267
      %v1248 = vpop.f32.mrf.mxu0
      %v1249 = vadd.f32 %v864, %v1248
      %v1250 = vpop.f32.mrf.mxu0
      %1251 = vmatprep.mubr.f32.mxu0 %v565
      %1252 = vmatmul.mubr.f32.gmra.mxu0 %v271
      %v1253 = vpop.f32.mrf.mxu0
      %v1254 = vadd.f32 %v869, %v1253
      %v1255 = vpop.f32.mrf.mxu0
      %1256 = vmatprep.mubr.f32.mxu0 %v568
      %1257 = vmatmul.mubr.f32.gmra.mxu0 %v275
      %v1258 = vpop.f32.mrf.mxu0
      %v1259 = vadd.f32 %v874, %v1258
      %v1260 = vpop.f32.mrf.mxu0
      %1261 = vmatprep.mubr.f32.mxu0 %v571
      %1262 = vmatmul.mubr.f32.gmra.mxu0 %v279
      %v1263 = vpop.f32.mrf.mxu0
      %v1264 = vadd.f32 %v879, %v1263
      %v1265 = vpop.f32.mrf.mxu0
      %1266 = vmatprep.mubr.f32.mxu0 %v574
      %1267 = vmatmul.mubr.f32.gmra.mxu0 %v283
      %v1268 = vpop.f32.mrf.mxu0
      %v1269 = vadd.f32 %v884, %v1268
      %v1270 = vpop.f32.mrf.mxu0
      %1271 = vmatprep.mubr.f32.mxu0 %v577
      %1272 = vmatmul.mubr.f32.gmra.mxu0 %v287
      %v1273 = vpop.f32.mrf.mxu0
      %v1274 = vadd.f32 %v889, %v1273
      %v1275 = vpop.f32.mrf.mxu0
      %1276 = vmatprep.mubr.f32.mxu0 %v580
      %1277 = vmatmul.mubr.f32.gmra.mxu0 %v291
      %v1278 = vpop.f32.mrf.mxu0
      %v1279 = vadd.f32 %v894, %v1278
      %v1280 = vpop.f32.mrf.mxu0
      %1281 = vmatprep.mubr.f32.mxu0 %v583
      %1282 = vmatmul.mubr.f32.gmra.mxu0 %v295
      %v1283 = vpop.f32.mrf.mxu0
      %v1284 = vadd.f32 %v899, %v1283
      %v1285 = vpop.f32.mrf.mxu0
      %1286 = vmatprep.mubr.f32.mxu0 %v586
      %1287 = vmatmul.mubr.f32.gmra.mxu0 %v299
      %v1288 = vpop.f32.mrf.mxu0
      %v1289 = vadd.f32 %v904, %v1288
      %v1290 = vpop.f32.mrf.mxu0
      %1291 = vmatprep.mubr.f32.mxu0 %v589
      %1292 = vmatmul.mubr.f32.gmra.mxu0 %v303
      %v1293 = vpop.f32.mrf.mxu0
      %v1294 = vadd.f32 %v909, %v1293
      %v1295 = vpop.f32.mrf.mxu0
      %1296 = vmatprep.mubr.f32.mxu0 %v592
      %1297 = vmatmul.mubr.f32.gmra.mxu0 %v307
      %v1298 = vpop.f32.mrf.mxu0
      %v1299 = vadd.f32 %v914, %v1298
      %v1300 = vpop.f32.mrf.mxu0
      %1301 = vmatprep.mubr.f32.mxu0 %v595
      %1302 = vmatmul.mubr.f32.gmra.mxu0 %v311
      %v1303 = vpop.f32.mrf.mxu0
      %v1304 = vadd.f32 %v919, %v1303
      %v1305 = vpop.f32.mrf.mxu0
      %1306 = vmatprep.mubr.f32.mxu0 %v598
      %1307 = vmatmul.mubr.f32.gmra.mxu0 %v315
      %v1308 = vpop.f32.mrf.mxu0
      %v1309 = vadd.f32 %v924, %v1308
      %v1310 = vpop.f32.mrf.mxu0
      %1311 = vmatprep.mubr.f32.mxu0 %v601
      %1312 = vmatmul.mubr.f32.gmra.mxu0 %v319
      %v1313 = vpop.f32.mrf.mxu0
      %v1314 = vadd.f32 %v929, %v1313
      %v1315 = vpop.f32.mrf.mxu0
      %1316 = vmatprep.mubr.f32.mxu0 %v604
      %1317 = vmatmul.mubr.f32.gmra.mxu0 %v323
      %v1318 = vpop.f32.mrf.mxu0
      %v1319 = vadd.f32 %v934, %v1318
      %v1320 = vpop.f32.mrf.mxu0
      %1321 = vmatprep.mubr.f32.mxu0 %v607
      %1322 = vmatmul.mubr.f32.gmra.mxu0 %v327
      %v1323 = vpop.f32.mrf.mxu0
      %v1324 = vadd.f32 %v939, %v1323
      %v1325 = vpop.f32.mrf.mxu0
      %1326 = vmatprep.mubr.f32.mxu0 %v610
      %1327 = vmatmul.mubr.f32.gmra.mxu0 %v331
      %v1328 = vpop.f32.mrf.mxu0
      %v1329 = vadd.f32 %v944, %v1328
      %v1330 = vpop.f32.mrf.mxu0
      %1331 = vmatprep.mubr.f32.mxu0 %v613
      %1332 = vmatmul.mubr.f32.gmra.mxu0 %v335
      %v1333 = vpop.f32.mrf.mxu0
      %v1334 = vadd.f32 %v949, %v1333
      %v1335 = vpop.f32.mrf.mxu0
      %1336 = vmatprep.mubr.f32.mxu0 %v616
      %1337 = vmatmul.mubr.f32.gmra.mxu0 %v339
      %v1338 = vpop.f32.mrf.mxu0
      %v1339 = vadd.f32 %v954, %v1338
      %v1340 = vpop.f32.mrf.mxu0
      %1341 = vmatprep.mubr.f32.mxu0 %v619
      %1342 = vmatmul.mubr.f32.gmra.mxu0 %v343
      %v1343 = vpop.f32.mrf.mxu0
      %v1344 = vadd.f32 %v959, %v1343
      %v1345 = vpop.f32.mrf.mxu0
      %1346 = vmatprep.mubr.f32.mxu0 %v622
      %1347 = vmatmul.mubr.f32.gmra.mxu0 %v347
      %v1348 = vpop.f32.mrf.mxu0
      %v1349 = vadd.f32 %v964, %v1348
      %v1350 = vpop.f32.mrf.mxu0
      %1351 = vmatprep.mubr.f32.mxu0 %v625
      %1352 = vmatmul.mubr.f32.gmra.mxu0 %v351
      %v1353 = vpop.f32.mrf.mxu0
      %v1354 = vadd.f32 %v969, %v1353
      %v1355 = vpop.f32.mrf.mxu0
      %1356 = vmatprep.mubr.f32.mxu0 %v628
      %1357 = vmatmul.mubr.f32.gmra.mxu0 %v355
      %v1358 = vpop.f32.mrf.mxu0
      %v1359 = vadd.f32 %v974, %v1358
      %v1360 = vpop.f32.mrf.mxu0
      %1361 = vmatprep.mubr.f32.mxu0 %v631
      %1362 = vmatmul.mubr.f32.gmra.mxu0 %v359
      %v1363 = vpop.f32.mrf.mxu0
      %v1364 = vadd.f32 %v979, %v1363
      %v1365 = vpop.f32.mrf.mxu0
      %1366 = vmatprep.mubr.f32.mxu0 %v634
      %1367 = vmatmul.mubr.f32.gmra.mxu0 %v363
      %v1368 = vpop.f32.mrf.mxu0
      %v1369 = vadd.f32 %v984, %v1368
      %v1370 = vpop.f32.mrf.mxu0
      %1371 = vmatprep.mubr.f32.mxu0 %v637
      %1372 = vmatmul.mubr.f32.gmra.mxu0 %v367
      %v1373 = vpop.f32.mrf.mxu0
      %v1374 = vadd.f32 %v989, %v1373
      %v1375 = vpop.f32.mrf.mxu0
      %1376 = vmatprep.mubr.f32.mxu0 %v640
      %1377 = vmatmul.mubr.f32.gmra.mxu0 %v371
      %v1378 = vpop.f32.mrf.mxu0
      %v1379 = vadd.f32 %v994, %v1378
      %v1380 = vpop.f32.mrf.mxu0
      %1381 = vmatprep.mubr.f32.mxu0 %v643
      %1382 = vmatmul.mubr.f32.gmra.mxu0 %v375
      %v1383 = vpop.f32.mrf.mxu0
      %v1384 = vadd.f32 %v999, %v1383
      %v1385 = vpop.f32.mrf.mxu0
      %1386 = vmatprep.mubr.f32.mxu0 %v646
      %1387 = vmatmul.mubr.f32.gmra.mxu0 %v379
      %v1388 = vpop.f32.mrf.mxu0
      %v1389 = vadd.f32 %v1004, %v1388
      %v1390 = vpop.f32.mrf.mxu0
      %1391 = vmatprep.mubr.f32.mxu0 %v649
      %1392 = vmatmul.mubr.f32.gmra.mxu0 %v383
      %v1393 = vpop.f32.mrf.mxu0
      %v1394 = vadd.f32 %v1009, %v1393
      %v1395 = vpop.f32.mrf.mxu0
      %1396 = vmatprep.mubr.f32.mxu0 %v652
      %1397 = vmatmul.mubr.f32.gmra.mxu0 %v387
      %v1398 = vpop.f32.mrf.mxu0
      %v1399 = vadd.f32 %v1014, %v1398
      %v1400 = vpop.f32.mrf.mxu0
      %1401 = vmatprep.mubr.f32.mxu0 %v655
      %1402 = vmatmul.mubr.f32.gmra.mxu0 %v391
      %v1403 = vpop.f32.mrf.mxu0
      %v1404 = vadd.f32 %v1019, %v1403
      %v1405 = vpop.f32.mrf.mxu0
      %1406 = vmatprep.mubr.f32.mxu0 %v658
      %1407 = vmatmul.mubr.f32.gmra.mxu0 %v395
      %v1408 = vpop.f32.mrf.mxu0
      %v1409 = vadd.f32 %v1024, %v1408
      %v1410 = vpop.f32.mrf.mxu0
      %1411 = vmatprep.mubr.f32.mxu0 %v661
      %1412 = vmatmul.mubr.f32.gmra.mxu0 %v399
      %v1413 = vpop.f32.mrf.mxu0
      %v1414 = vadd.f32 %v1029, %v1413
      %v1415 = vpop.f32.mrf.mxu0
      %1416 = vmatprep.mubr.f32.mxu0 %v664
      %1417 = vmatmul.mubr.f32.gmra.mxu0 %v403
      %v1418 = vpop.f32.mrf.mxu0
      %v1419 = vadd.f32 %v1034, %v1418
      %v1420 = vpop.f32.mrf.mxu0
      %1421 = vmatprep.mubr.f32.mxu0 %v667
      %1422 = vmatmul.mubr.f32.gmra.mxu0 %v407
      %v1423 = vpop.f32.mrf.mxu0
      %v1424 = vadd.f32 %v1039, %v1423
      %v1425 = vpop.f32.mrf.mxu0
      %1426 = vmatprep.mubr.f32.mxu0 %v670
      %1427 = vmatmul.mubr.f32.gmra.mxu0 %v411
      %v1428 = vpop.f32.mrf.mxu0
      %v1429 = vadd.f32 %v1044, %v1428
      %v1430 = vpop.f32.mrf.mxu0
      %1431 = vmatprep.mubr.f32.mxu0 %v673
      %1432 = vmatmul.mubr.f32.gmra.mxu0 %v415
      %v1433 = vpop.f32.mrf.mxu0
      %v1434 = vadd.f32 %v1049, %v1433
      %v1435 = vpop.f32.mrf.mxu0
      %1436 = vmatprep.mubr.f32.mxu0 %v676
      %1437 = vmatmul.mubr.f32.gmra.mxu0 %v419
      %v1438 = vpop.f32.mrf.mxu0
      %v1439 = vadd.f32 %v1054, %v1438
      %v1440 = vpop.f32.mrf.mxu0
      %1441 = vmatprep.mubr.f32.mxu0 %v679
      %1442 = vmatmul.mubr.f32.gmra.mxu0 %v423
      %v1443 = vpop.f32.mrf.mxu0
      %v1444 = vadd.f32 %v1059, %v1443
      %v1445 = vpop.f32.mrf.mxu0
      %1446 = vmatprep.mubr.f32.mxu0 %v682
      %1447 = vmatmul.mubr.f32.gmra.mxu0 %v427
      %v1448 = vpop.f32.mrf.mxu0
      %v1449 = vadd.f32 %v1064, %v1448
      %v1450 = vpop.f32.mrf.mxu0
      %1451 = vmatprep.mubr.f32.mxu0 %v685
      %1452 = vmatmul.mubr.f32.gmra.mxu0 %v431
      %v1453 = vpop.f32.mrf.mxu0
      %v1454 = vadd.f32 %v1069, %v1453
      %v1455 = vpop.f32.mrf.mxu0
      %1456 = vdwg.mxu0
      %v1457 = vmax.f32 %v1139, 0.0
      %v1458 = vmax.f32 %v1144, 0.0
      %v1459 = vmax.f32 %v1149, 0.0
      %v1460 = vmax.f32 %v1154, 0.0
      %v1461 = vmax.f32 %v1159, 0.0
      %v1462 = vmax.f32 %v1164, 0.0
      %v1463 = vmax.f32 %v1169, 0.0
      %v1464 = vmax.f32 %v1174, 0.0
      %v1465 = vmax.f32 %v1179, 0.0
      %v1466 = vmax.f32 %v1184, 0.0
      %v1467 = vmax.f32 %v1189, 0.0
      %v1468 = vmax.f32 %v1194, 0.0
      %v1469 = vmax.f32 %v1199, 0.0
      %v1470 = vmax.f32 %v1204, 0.0
      %v1471 = vmax.f32 %v1209, 0.0
      %v1472 = vmax.f32 %v1214, 0.0
      %v1473 = vmax.f32 %v1219, 0.0
      %v1474 = vmax.f32 %v1224, 0.0
      %v1475 = vmax.f32 %v1229, 0.0
      %v1476 = vmax.f32 %v1234, 0.0
      %v1477 = vmax.f32 %v1239, 0.0
      %v1478 = vmax.f32 %v1244, 0.0
      %v1479 = vmax.f32 %v1249, 0.0
      %v1480 = vmax.f32 %v1254, 0.0
      %v1481 = vmax.f32 %v1259, 0.0
      %v1482 = vmax.f32 %v1264, 0.0
      %v1483 = vmax.f32 %v1269, 0.0
      %v1484 = vmax.f32 %v1274, 0.0
      %v1485 = vmax.f32 %v1279, 0.0
      %v1486 = vmax.f32 %v1284, 0.0
      %v1487 = vmax.f32 %v1289, 0.0
      %v1488 = vmax.f32 %v1294, 0.0
      %v1489 = vmax.f32 %v1299, 0.0
      %v1490 = vmax.f32 %v1304, 0.0
      %v1491 = vmax.f32 %v1309, 0.0
      %v1492 = vmax.f32 %v1314, 0.0
      %v1493 = vmax.f32 %v1319, 0.0
      %v1494 = vmax.f32 %v1324, 0.0
      %v1495 = vmax.f32 %v1329, 0.0
      %v1496 = vmax.f32 %v1334, 0.0
      %v1497 = vmax.f32 %v1339, 0.0
      %v1498 = vmax.f32 %v1344, 0.0
      %v1499 = vmax.f32 %v1349, 0.0
      %v1500 = vmax.f32 %v1354, 0.0
      %v1501 = vmax.f32 %v1359, 0.0
      %v1502 = vmax.f32 %v1364, 0.0
      %v1503 = vmax.f32 %v1369, 0.0
      %v1504 = vmax.f32 %v1374, 0.0
      %v1505 = vmax.f32 %v1379, 0.0
      %v1506 = vmax.f32 %v1384, 0.0
      %v1507 = vmax.f32 %v1389, 0.0
      %v1508 = vmax.f32 %v1394, 0.0
      %v1509 = vmax.f32 %v1399, 0.0
      %v1510 = vmax.f32 %v1404, 0.0
      %v1511 = vmax.f32 %v1409, 0.0
      %v1512 = vmax.f32 %v1414, 0.0
      %v1513 = vmax.f32 %v1419, 0.0
      %v1514 = vmax.f32 %v1424, 0.0
      %v1515 = vmax.f32 %v1429, 0.0
      %v1516 = vmax.f32 %v1434, 0.0
      %v1517 = vmax.f32 %v1439, 0.0
      %v1518 = vmax.f32 %v1444, 0.0
      %v1519 = vmax.f32 %v1449, 0.0
      %v1520 = vmax.f32 %v1454, 0.0
      %1521 = vst [vmem:[%s175] sm:$0xff] %v1457
      %1522 = vst [vmem:[%s175 + $0x8] sm:$0xff] %v1458
      %1523 = vst [vmem:[%s175 + $0x10] sm:$0xff] %v1459
      %1524 = vst [vmem:[%s175 + $0x18] sm:$0xff] %v1460
      %1525 = vst [vmem:[%s175 + $0x20] sm:$0xff] %v1461
      %1526 = vst [vmem:[%s175 + $0x28] sm:$0xff] %v1462
      %1527 = vst [vmem:[%s175 + $0x30] sm:$0xff] %v1463
      %1528 = vst [vmem:[%s175 + $0x38] sm:$0xff] %v1464
      %1529 = vst [vmem:[%s175 + $0x40] sm:$0xff] %v1465
      %1530 = vst [vmem:[%s175 + $0x48] sm:$0xff] %v1466
      %1531 = vst [vmem:[%s175 + $0x50] sm:$0xff] %v1467
      %1532 = vst [vmem:[%s175 + $0x58] sm:$0xff] %v1468
      %1533 = vst [vmem:[%s175 + $0x60] sm:$0xff] %v1469
      %1534 = vst [vmem:[%s175 + $0x68] sm:$0xff] %v1470
      %1535 = vst [vmem:[%s175 + $0x70] sm:$0xff] %v1471
      %1536 = vst [vmem:[%s175 + $0x78] sm:$0xff] %v1472
      %1537 = vst [vmem:[%s175 + $0x80] sm:$0xff] %v1473
      %1538 = vst [vmem:[%s175 + $0x88] sm:$0xff] %v1474
      %1539 = vst [vmem:[%s175 + $0x90] sm:$0xff] %v1475
      %1540 = vst [vmem:[%s175 + $0x98] sm:$0xff] %v1476
      %1541 = vst [vmem:[%s175 + $0xa0] sm:$0xff] %v1477
      %1542 = vst [vmem:[%s175 + $0xa8] sm:$0xff] %v1478
      %1543 = vst [vmem:[%s175 + $0xb0] sm:$0xff] %v1479
      %1544 = vst [vmem:[%s175 + $0xb8] sm:$0xff] %v1480
      %1545 = vst [vmem:[%s175 + $0xc0] sm:$0xff] %v1481
      %1546 = vst [vmem:[%s175 + $0xc8] sm:$0xff] %v1482
      %1547 = vst [vmem:[%s175 + $0xd0] sm:$0xff] %v1483
      %1548 = vst [vmem:[%s175 + $0xd8] sm:$0xff] %v1484
      %1549 = vst [vmem:[%s175 + $0xe0] sm:$0xff] %v1485
      %1550 = vst [vmem:[%s175 + $0xe8] sm:$0xff] %v1486
      %1551 = vst [vmem:[%s175 + $0xf0] sm:$0xff] %v1487
      %1552 = vst [vmem:[%s175 + $0xf8] sm:$0xff] %v1488
      %1553 = vst [vmem:[%s175 + $0x100] sm:$0xff] %v1489
      %1554 = vst [vmem:[%s175 + $0x108] sm:$0xff] %v1490
      %1555 = vst [vmem:[%s175 + $0x110] sm:$0xff] %v1491
      %1556 = vst [vmem:[%s175 + $0x118] sm:$0xff] %v1492
      %1557 = vst [vmem:[%s175 + $0x120] sm:$0xff] %v1493
      %1558 = vst [vmem:[%s175 + $0x128] sm:$0xff] %v1494
      %1559 = vst [vmem:[%s175 + $0x130] sm:$0xff] %v1495
      %1560 = vst [vmem:[%s175 + $0x138] sm:$0xff] %v1496
      %1561 = vst [vmem:[%s175 + $0x140] sm:$0xff] %v1497
      %1562 = vst [vmem:[%s175 + $0x148] sm:$0xff] %v1498
      %1563 = vst [vmem:[%s175 + $0x150] sm:$0xff] %v1499
      %1564 = vst [vmem:[%s175 + $0x158] sm:$0xff] %v1500
      %1565 = vst [vmem:[%s175 + $0x160] sm:$0xff] %v1501
      %1566 = vst [vmem:[%s175 + $0x168] sm:$0xff] %v1502
      %1567 = vst [vmem:[%s175 + $0x170] sm:$0xff] %v1503
      %1568 = vst [vmem:[%s175 + $0x178] sm:$0xff] %v1504
      %1569 = vst [vmem:[%s175 + $0x180] sm:$0xff] %v1505
      %1570 = vst [vmem:[%s175 + $0x188] sm:$0xff] %v1506
      %1571 = vst [vmem:[%s175 + $0x190] sm:$0xff] %v1507
      %1572 = vst [vmem:[%s175 + $0x198] sm:$0xff] %v1508
      %1573 = vst [vmem:[%s175 + $0x1a0] sm:$0xff] %v1509
      %1574 = vst [vmem:[%s175 + $0x1a8] sm:$0xff] %v1510
      %1575 = vst [vmem:[%s175 + $0x1b0] sm:$0xff] %v1511
      %1576 = vst [vmem:[%s175 + $0x1b8] sm:$0xff] %v1512
      %1577 = vst [vmem:[%s175 + $0x1c0] sm:$0xff] %v1513
      %1578 = vst [vmem:[%s175 + $0x1c8] sm:$0xff] %v1514
      %1579 = vst [vmem:[%s175 + $0x1d0] sm:$0xff] %v1515
      %1580 = vst [vmem:[%s175 + $0x1d8] sm:$0xff] %v1516
      %1581 = vst [vmem:[%s175 + $0x1e0] sm:$0xff] %v1517
      %1582 = vst [vmem:[%s175 + $0x1e8] sm:$0xff] %v1518
      %1583 = vst [vmem:[%s175 + $0x1f0] sm:$0xff] %v1519
      %1584 = vst [vmem:[%s175 + $0x1f8] sm:$0xff] %v1520
      %s1585 = smul.u32 64, %s14
      %p1586 = scmp.lt.s32.totalorder %s1585, 127
      %s1587 = scalar_select %p1586, %s1585, 127
      %s1588 = smul.addr %s1587, 8
      %s1589 = scalar_lea.vmem %s3, %s1588
      // Predicated region
      $region33: #{_forward_core.7} parent=31 // pred_check
        %p1590 = pneg %p100
      $region34: #{_forward_core.7} parent=31 // pred_check_branch
        %1592 = sbr.rel (%p1590) target = $region36
      $region35: #{_forward_core.7} parent=31 // pred_region
        %s1593 = smul.u32 64, %s14
      $region36: #{_forward_core.7} parent=31 // pred_fallthru
        _
    $region32: #{_forward_core.7} parent=5 // pred_fallthru
      _
    %p1594 = scmp.le.s32.totalorder 2, %s9
    // Predicated region
    $region37: #{_forward_core.7} parent=5 // pred_check
      %p1595 = pneg %p1594
    $region38: #{_forward_core.7} parent=5 // pred_check_branch
      %1597 = sbr.rel (%p1595) target = $region40
    $region39: #{_forward_core.7} parent=5 // pred_region
      %s1598 = ssub.s32 %s9, 2
      // Predicated region
      $region41: #{_forward_core.7} parent=39 // pred_check
        %p1599 = pneg %p106
      $region42: #{_forward_core.7} parent=39 // pred_check_branch
        %1601 = sbr.rel (%p1599) target = $region44
      $region43: #{_forward_core.7} parent=39 // pred_region
        %s1602 = smul.u32 64, %s15
        %p1603 = scmp.lt.s32.totalorder %s1602, 127
        %s1604 = scalar_select %p1603, %s1602, 127
        %s1605 = smul.addr %s1604, 8
        %s1606 = scalar_lea.vmem %s3, %s1605
      $region44: #{_forward_core.7} parent=39 // pred_fallthru
        _
    $region40: #{_forward_core.7} parent=5 // pred_fallthru
      _
  $region6: #{_forward_core.7} parent=0 // loop_footer
    %s13 = sadd.s32 1, %s9
  $region7: #{_forward_core.7} parent=0 // loop_footer_branch
    %8 = sbr.rel target = $region3
  $region8: #{_forward_core.7} parent=0 // loop_exit
    _

// kernel: custom-call.28
$region0: #{custom-call.28}
  %s0 = inlined_call_operand.hbm [shape: f32[2,2,4,4], index: 0, kind: input, shape index: {}]
  %s1 = inlined_call_operand.vmem [shape: f32[2,2,4,4], index: 1, kind: output, shape index: {0}]
  %s2 = inlined_call_operand.hbm [shape: s32[2,2,4], index: 2, kind: output, shape index: {1}]
  %s3 = inlined_call_operand.vmem [shape: s32[2,2,4], index: 3, kind: output, shape index: {2}]
  %4 = xla_tuple %s1, %s2, %s3
  $region1: #{custom-call.28} parent=0
    #allocation0 [shape = 'u8[4096]{0}', space=vmem, size = 0x1000, scoped, tag = 'operand span for operand 0']
    #allocation1 [shape = 'u8[4096]{0}', space=vmem, size = 0x1000, scoped, tag = 'packed  for operand 0']
    #allocation2 [shape = 's32[2]{0}', space=sflag, size = 0x8, scoped, tag = 'scoped memory for custom-call.28']
    #allocation3 [shape = 's32[2]{0}', space=sflag, size = 0x8, scoped, tag = 'scoped memory for custom-call.28']
    #allocation4 [shape = 'u8[4096]{0}', space=vmem, size = 0x1000, scoped, tag = 'operand span for operand 1']
    #allocation5 [shape = 'u8[4096]{0}', space=vmem, size = 0x1000, scoped, tag = 'packed  for operand 1']
    #allocation6 [shape = 'u8[4096]{0}', space=vmem, size = 0x1000, scoped, tag = 'operand span for operand 2']
    #allocation7 [shape = 'u8[2048]{0}', space=vmem, size = 0x800, scoped, tag = 'packed  for operand 2']
    #allocation8 [shape = 'u8[4096]{0}', space=vmem, size = 0x1000, scoped, tag = 'operand span for operand 3']
    #allocation9 [shape = 'u8[2048]{0}', space=vmem, size = 0x800, scoped, tag = 'packed  for operand 3']
    %5 = vsyncpa [#allocation2], 0
    %s6 = scalar_lea.sflag [#allocation2], 1
    %7 = vsyncpa %s6, 0
    %8 = vsyncpa [#allocation3], 0
    %s9 = scalar_lea.sflag [#allocation3], 1
    %10 = vsyncpa %s9, 0
    loop: start=0, step=1, limit=6
    $region2: #{custom-call.28} parent=1 // loop_pre_header
      _
    $region3: #{custom-call.28} parent=1 // loop_header
      %s12 = sphi 0, %s16
      %p13 = scmp.ge.s32.totalorder %s12, 6
      %s19 = sphi 0, %s31
      %s20 = sphi 0, %s27
      %s21 = sphi 0, %s19
      %s22 = sphi 0, %s20
      %s23 = sphi 0, %s21
      %s24 = sphi 0, %s22
      %s38 = sphi 0, %s40
      %s41 = sphi 0, %s38
      %s42 = sphi 0, %s41
      %s58 = sphi 0, %s42
      %s68 = sphi 0, %s70
      %s71 = sphi 0, %s68
      %s72 = sphi 0, %s71
      %s88 = sphi 0, %s72
    $region4: #{custom-call.28} parent=1 // loop_header_branch
      %15 = sbr.rel (%p13) target = $region8
    $region5: #{custom-call.28} parent=1 // loop_body
      %s17 = ssub.s32 %s12, 1
      %s18 = ssub.s32 %s12, 2
      %s25 = sadd.s32 1, %s20
      %p26 = scmp.ge.s32.totalorder %s25, 2
      %s27 = scalar_select %p26, 0, %s25
      %s28 = sadd.s32 1, %s19
      %s29 = scalar_select %p26, %s28, %s19
      %p30 = scmp.ge.s32.totalorder %s29, 2
      %s31 = scalar_select %p30, 0, %s29
      %s32 = sshrl.u32 %s20, 3
      %s33 = sshrl.u32 %s27, 3
      %s34 = ssub.s32 %s19, %s31
      %s35 = ssub.s32 %s32, %s33
      %s36 = sor.u32 %s34, %s35
      %p37 = scmp.eq.s32.totalorder %s36, 0
      %s39 = sadd.s32 %s38, 1
      %s40 = scalar_select %p37, %s38, %s39
      %p43 = pneg %p37
      %p44 = scmp.eq.s32.totalorder %s12, 3
      %p45 = por %p43, %p44
      %p46 = scmp.ne.s32.totalorder %s38, %s41
      %p47 = scmp.eq.s32.totalorder %s12, 0
      %p48 = por %p46, %p47
      %p49 = scmp.ne.s32.totalorder %s38, %s41
      %p50 = scmp.eq.s32.totalorder %s17, 3
      %p51 = por %p49, %p50
      %p52 = scmp.ne.s32.totalorder %s41, %s42
      %p53 = scmp.eq.s32.totalorder %s17, 0
      %p54 = por %p52, %p53
      %p55 = scmp.ne.s32.totalorder %s41, %s42
      %p56 = scmp.eq.s32.totalorder %s18, 3
      %p57 = por %p55, %p56
      %p59 = scmp.ne.s32.totalorder %s42, %s58
      %p60 = scmp.eq.s32.totalorder %s18, 0
      %p61 = por %p59, %p60
      %s62 = sshrl.u32 %s20, 3
      %s63 = sshrl.u32 %s27, 3
      %s64 = ssub.s32 %s19, %s31
      %s65 = ssub.s32 %s62, %s63
      %s66 = sor.u32 %s64, %s65
      %p67 = scmp.eq.s32.totalorder %s66, 0
      %s69 = sadd.s32 %s68, 1
      %s70 = scalar_select %p67, %s68, %s69
      %p73 = pneg %p67
      %p74 = scmp.eq.s32.totalorder %s12, 3
      %p75 = por %p73, %p74
      %p76 = scmp.ne.s32.totalorder %s68, %s71
      %p77 = scmp.eq.s32.totalorder %s12, 0
      %p78 = por %p76, %p77
      %p79 = scmp.ne.s32.totalorder %s68, %s71
      %p80 = scmp.eq.s32.totalorder %s17, 3
      %p81 = por %p79, %p80
      %p82 = scmp.ne.s32.totalorder %s71, %s72
      %p83 = scmp.eq.s32.totalorder %s17, 0
      %p84 = por %p82, %p83
      %p85 = scmp.ne.s32.totalorder %s71, %s72
      %p86 = scmp.eq.s32.totalorder %s18, 3
      %p87 = por %p85, %p86
      %p89 = scmp.ne.s32.totalorder %s72, %s88
      %p90 = scmp.eq.s32.totalorder %s18, 0
      %p91 = por %p89, %p90
      %p92 = scmp.le.s32.totalorder 1, %s12
      %p93 = scmp.lt.s32.totalorder %s12, 5
      %p94 = pnand %p92, %p93
      %p95 = pneg %p94
      // Predicated region
      $region9: #{custom-call.28} parent=5 // pred_check
        _
      $region10: #{custom-call.28} parent=5 // pred_check_branch
        %97 = sbr.rel (%p94) target = $region12
      $region11: #{custom-call.28} parent=5 // pred_region
        %s98 = ssub.s32 %s12, 1
      $region12: #{custom-call.28} parent=5 // pred_fallthru
        _
      %p99 = scmp.lt.s32.totalorder %s12, 4
      // Predicated region
      $region13: #{custom-call.28} parent=5 // pred_check
        %p100 = pneg %p99
      $region14: #{custom-call.28} parent=5 // pred_check_branch
        %102 = sbr.rel (%p100) target = $region16
      $region15: #{custom-call.28} parent=5 // pred_region
        %s103 = sand.u32 %s12, 1
        %s104 = scalar_lea.sflag [#allocation2], %s103
        %s105 = sand.u32 %s12, 1
        %s106 = smul.addr %s105, 4
        %s107 = scalar_lea.vmem [#allocation1], %s106
        %s109 = ssub.s32 64, 64
        %110 = vsyncadd %s104, %s109
        %s111 = smul.addr %s19, 2
        %s112 = sadd.s32 %s20, %s111
        %s113 = smul.addr %s112, 64
        %s114 = scalar_lea.hbm %s0, %s113
        %s116 = sshll.u32 %s107, 4
        %s117 = int_to_ptr.vmem [resolvable:$true] %s116
        %119 = dma.hbm_to_vmem [thread:$0]  %s114, 64, %s117, %s104
      $region16: #{custom-call.28} parent=5 // pred_fallthru
        _
      %p120 = scmp.le.s32.totalorder 1, %s12
      %p121 = scmp.lt.s32.totalorder %s12, 5
      %p122 = pnand %p120, %p121
      %p123 = pneg %p122
      // Predicated region
      $region17: #{custom-call.28} parent=5 // pred_check
        _
      $region18: #{custom-call.28} parent=5 // pred_check_branch
        %125 = sbr.rel (%p122) target = $region20
      $region19: #{custom-call.28} parent=5 // pred_region
        #allocation10 [shape = 's32[4,128]{1,0}', space=vmem, size = 0x1000, scoped, tag = 'scratch for permutations']
        %s126 = ssub.s32 %s12, 1
        %s127 = sand.u32 %s17, 1
        %s128 = scalar_lea.sflag [#allocation2], %s127
        %s129 = sand.u32 %s17, 1
        %s130 = smul.addr %s129, 4
        %s131 = scalar_lea.vmem [#allocation1], %s130
        %132 = dma.done %s128, 64
        %s133 = sand.u32 %s17, 1
        %s134 = scalar_lea.sflag [#allocation2], %s133
        %s135 = sand.u32 %s17, 1
        %s136 = smul.addr %s135, 4
        %s137 = scalar_lea.vmem [#allocation1], %s136
        %s138 = sand.u32 %s17, 1
        %s139 = sand.u32 %s17, 1
        %s140 = smul.addr %s139, 4
        %s141 = scalar_lea.vmem [#allocation5], %s140
        %p142 = pneg %p54
        %p143 = pneg %p51
        %s144 = sand.u32 %s41, 1
        %s145 = scalar_lea.sflag [#allocation3], %s144
        %s146 = sand.u32 %s41, 1
        %s147 = smul.addr %s146, 2
        %s148 = scalar_lea.vmem [#allocation7], %s147
        %p149 = pneg %p84
        %p150 = pneg %p81
        %s151 = sand.u32 %s71, 1
        %s152 = sand.u32 %s71, 1
        %s153 = smul.addr %s152, 2
        %s154 = scalar_lea.vmem [#allocation9], %s153
        %s156 = sshll.u32 1, 4
        %s157 = ssub.s32 %s156, 1
        %v158 = vld [vmem:[%s137] sm:%s157]
        %159 = vst [vmem:[#allocation0] sm:%s157] %v158
        %s160 = sshrl.u32 %s22, 3
        %s161 = sshrl.u32 %s22, 3
        %v162 = vld [vmem:[#allocation0] sm:$0xff]
        %163 = vst [vmem:[#allocation4] sm:$0xff] %v162
        %s164 = sand.u32 %s22, 7
        %s165 = scalar_lea.vmem [#allocation6], %s164
        %s166 = sand.u32 %s22, 7
        %s167 = scalar_lea.vmem [#allocation8], %s166
        %168 = vst [vmem:[%s165] sm:$0x1] 0
        %v169 = vlaneseq
        %v170 = vshrl.u32 %v169, 7
        %v171 = vmov %v170
        %173 = vst [vmem:[#allocation10] sm:$0xff] %v171
        loop: start=0, step=1, limit=4
        $region22: #{custom-call.28} parent=19 // loop_pre_header
          _
        $region23: #{custom-call.28} parent=19 // loop_header
          %s175 = sphi 0, %s179
          %p176 = scmp.ge.s32.totalorder %s175, 4
        $region24: #{custom-call.28} parent=19 // loop_header_branch
          %178 = sbr.rel (%p176) target = $region28
        $region25: #{custom-call.28} parent=19 // loop_body
          %v180 = vstv %s175
          %v181 = vlaneseq
          %v182 = vshrl.u32 %v181, 7
          %v183 = vmov %v182
          %v184 = vld [vmem:[#allocation4] sm:$0xff]
          %v185 = vand.u32 2147483647, %v184
          %v187 = vstv %s175
          %vm188 = vcmp.ge.s32.totalorder %v183, %v187
          %vm189 = vcmp.lt.s32.totalorder %v183, 4
          %vm190 = vmand %vm188, %vm189
          %vm191 = vcmp.lt.f32.partialorder -inf, %v185
          %vm192 = vmand %vm190, %vm191
          %v193 = vsel %vm192, %v183, %v180
          %v194 = vsel %vm192, %v185, -inf
          %v195 = vrot.slane %v194, 1
          %v196 = vrot.slane %v193, 1
          %vm197 = vcmp.ge.f32.partialorder %v195, %v194
          %v198 = vsel %vm197, %v195, %v194
          %v199 = vsel %vm197, %v196, %v193
          %v200 = vrot.slane %v195, 1
          %v201 = vrot.slane %v196, 1
          %vm202 = vcmp.ge.f32.partialorder %v200, %v198
          %v203 = vsel %vm202, %v200, %v198
          %v204 = vsel %vm202, %v201, %v199
          %v205 = vrot.slane %v200, 1
          %v206 = vrot.slane %v201, 1
          %vm207 = vcmp.ge.f32.partialorder %v205, %v203
          %v208 = vsel %vm207, %v205, %v203
          %v209 = vsel %vm207, %v206, %v204
          %v210 = vrot.slane %v205, 1
          %v211 = vrot.slane %v206, 1
          %vm212 = vcmp.ge.f32.partialorder %v210, %v208
          %v213 = vsel %vm212, %v210, %v208
          %v214 = vsel %vm212, %v211, %v209
          %v215 = vrot.slane %v210, 1
          %v216 = vrot.slane %v211, 1
          %vm217 = vcmp.ge.f32.partialorder %v215, %v213
          %v218 = vsel %vm217, %v215, %v213
          %v219 = vsel %vm217, %v216, %v214
          %v220 = vrot.slane %v215, 1
          %v221 = vrot.slane %v216, 1
          %vm222 = vcmp.ge.f32.partialorder %v220, %v218
          %v223 = vsel %vm222, %v220, %v218
          %v224 = vsel %vm222, %v221, %v219
          %v225 = vrot.slane %v220, 1
          %v226 = vrot.slane %v221, 1
          %vm227 = vcmp.ge.f32.partialorder %v225, %v223
          %v228 = vsel %vm227, %v225, %v223
          %v229 = vsel %vm227, %v226, %v224
          %s230 = ssub.s32 128, %s175
          %231 = vrot.lane.b32.xlu0 %v229, %s230
          %v232 = vpop.permute.xlu0 %231
          %s233 = vtos %v232
          %v234 = vstv %s175
          %v235 = vlaneseq
          %v236 = vand.u32 %v235, 127
          %vm237 = vcmp.eq.s32.totalorder %v236, %v234
          %v238 = vstv %s233
          %v239 = vld [vmem:[%s165] ss:$0 sm:$0xff]
          %v240 = vsel %vm237, %v238, %v239
          %241 = vst [vmem:[%s165] sm:$0x1] %v240
          %s242 = scalar_lea.vmem [#allocation4], %s175
          %s243 = scalar_lea.vmem [#allocation4], %s233
          %v244 = vld [vmem:[%s242] ss:$0 sm:$0xff]
          %v245 = vld [vmem:[%s243] ss:$0 sm:$0xff]
          %246 = vst [vmem:[%s243] sm:$0x1] %v244
          %247 = vst [vmem:[%s242] sm:$0x1] %v245
          %s248 = scalar_lea.vmem [#allocation10], %s175
          %s249 = scalar_lea.vmem [#allocation10], %s233
          %v250 = vld [vmem:[%s248] ss:$0 sm:$0xff]
          %v251 = vld [vmem:[%s249] ss:$0 sm:$0xff]
          %252 = vst [vmem:[%s249] sm:$0x1] %v250
          %253 = vst [vmem:[%s248] sm:$0x1] %v251
          %vm254 = vcmp.ne.f32.partialorder %v245, 0.0
          %vm255 = vmand %vm237, %vm254
          %v256 = vsel %vm255, %v245, 1.0
          %v257 = vlaneseq
          %v258 = vand.u32 %v257, 127
          %v259 = vstv %s175
          %vm260 = vcmp.gt.s32.totalorder %v258, %v259
          %v261 = vsel %vm260, %v245, 0.0
          %v262 = vlaneseq
          %v263 = vshrl.u32 %v262, 7
          %v264 = vmov %v263
          %v265 = vld [vmem:[#allocation4] sm:$0xff]
          %v267 = vstv %s175
          %vm268 = vcmp.gt.s32.totalorder %v264, %v267
          %v269 = vsel %vm268, %v256, 1.0
          %v270 = vrcp.pop %v269
          %v271 = vmul.f32 %v265, %v270
          %vm272 = vmand %vm268, %vm237
          %v273 = vsel %vm272, %v271, 0.0
          %274 = vadd.xlane.f32.xlu0 %v273
          %v275 = vpop.xlane.xlu0 %274
          %v276 = vmul.f32 %v275, %v261
          %v277 = vsub.f32 %v271, %v276
          %278 = vst [vmem:[#allocation4] sm:$0xff] %v277
        $region26: #{custom-call.28} parent=19 // loop_footer
          %s179 = sadd.s32 1, %s175
        $region27: #{custom-call.28} parent=19 // loop_footer_branch
          %174 = sbr.rel target = $region23
        $region28: #{custom-call.28} parent=19 // loop_exit
          _
        %v279 = vld [vmem:[#allocation10] sm:$0xff]
        %s280 = scalar_lea.vmem [#allocation10], 8
        %s281 = scalar_lea.vmem [#allocation10], 16
        %s282 = scalar_lea.vmem [#allocation10], 24
        %s283 = scalar_lea.vmem [#allocation10], 32
        %s284 = scalar_lea.vmem [#allocation10], 40
        %s285 = scalar_lea.vmem [#allocation10], 48
        %s286 = scalar_lea.vmem [#allocation10], 56
        %s287 = scalar_lea.vmem [#allocation10], 64
        %s288 = scalar_lea.vmem [#allocation10], 72
        %s289 = scalar_lea.vmem [#allocation10], 80
        %s290 = scalar_lea.vmem [#allocation10], 88
        %s291 = scalar_lea.vmem [#allocation10], 96
        %s292 = scalar_lea.vmem [#allocation10], 104
        %s293 = scalar_lea.vmem [#allocation10], 112
        %s294 = scalar_lea.vmem [#allocation10], 120
        %295 = vxpose.xlu0.b32.start [1/16] %v279, 128
        %296 = vxpose.xlu0.b32.cont [2/16] 0, 128
        %297 = vxpose.xlu0.b32.cont [3/16] 0, 128
        %298 = vxpose.xlu0.b32.cont [4/16] 0, 128
        %299 = vxpose.xlu0.b32.cont [5/16] 0, 128
        %300 = vxpose.xlu0.b32.cont [6/16] 0, 128
        %301 = vxpose.xlu0.b32.cont [7/16] 0, 128
        %302 = vxpose.xlu0.b32.cont [8/16] 0, 128
        %303 = vxpose.xlu0.b32.cont [9/16] 0, 128
        %304 = vxpose.xlu0.b32.cont [10/16] 0, 128
        %305 = vxpose.xlu0.b32.cont [11/16] 0, 128
        %306 = vxpose.xlu0.b32.cont [12/16] 0, 128
        %307 = vxpose.xlu0.b32.cont [13/16] 0, 128
        %308 = vxpose.xlu0.b32.cont [14/16] 0, 128
        %309 = vxpose.xlu0.b32.cont [15/16] 0, 128
        %310 = vxpose.xlu0.b32.end [16/16] 0, 128
        %v311 = vpop.trf.xlu0
        %v312 = vpop.trf.xlu0
        %v313 = vpop.trf.xlu0
        %v314 = vpop.trf.xlu0
        %v315 = vpop.trf.xlu0
        %v316 = vpop.trf.xlu0
        %v317 = vpop.trf.xlu0
        %v318 = vpop.trf.xlu0
        %v319 = vpop.trf.xlu0
        %v320 = vpop.trf.xlu0
        %v321 = vpop.trf.xlu0
        %v322 = vpop.trf.xlu0
        %v323 = vpop.trf.xlu0
        %v324 = vpop.trf.xlu0
        %v325 = vpop.trf.xlu0
        %v326 = vpop.trf.xlu0
        %327 = vst [vmem:[%s167] sm:$0x1] %v311
        %s329 = sshll.u32 1, 4
        %s330 = ssub.s32 %s329, 1
        %v332 = vld [vmem:[#allocation4] sm:%s330]
        %s333 = sshll.u32 1, 4
        %s334 = ssub.s32 %s333, 1
        %335 = vst [vmem:[%s141] sm:%s334] %v332
        %s337 = sshll.u32 1, 2
        %s338 = ssub.s32 %s337, 1
        %v340 = vld [vmem:[#allocation6] sm:%s338]
        %s341 = sshll.u32 1, 2
        %s342 = ssub.s32 %s341, 1
        %343 = vst [vmem:[%s148] sm:%s342] %v340
        %s345 = sshll.u32 1, 2
        %s346 = ssub.s32 %s345, 1
        %v348 = vld [vmem:[#allocation8] sm:%s346]
        %s349 = sshll.u32 1, 2
        %s350 = ssub.s32 %s349, 1
        %351 = vst [vmem:[%s154] sm:%s350] %v348
        %s352 = sand.u32 %s17, 1
        %s353 = sand.u32 %s17, 1
        %s354 = smul.addr %s353, 4
        %s355 = scalar_lea.vmem [#allocation5], %s354
        %s356 = sand.u32 %s41, 1
        %s357 = scalar_lea.sflag [#allocation3], %s356
        %s358 = sand.u32 %s41, 1
        %s359 = smul.addr %s358, 2
        %s360 = scalar_lea.vmem [#allocation7], %s359
        %s361 = sand.u32 %s71, 1
        %s362 = sand.u32 %s71, 1
        %s363 = smul.addr %s362, 2
        %s364 = scalar_lea.vmem [#allocation9], %s363
        %s365 = smul.addr %s21, 2
        %s366 = sadd.s32 %s22, %s365
        %s367 = smul.addr %s366, 4
        %s368 = scalar_lea.vmem %s1, %s367
        // Predicated region
        $region29: #{custom-call.28} parent=19 // pred_check
          _
        $region30: #{custom-call.28} parent=19 // pred_check_branch
          %370 = sbr.rel (0) target = $region32
        $region31: #{custom-call.28} parent=19 // pred_region
          // Predicated region
          $region33: #{custom-call.28} parent=31 // pred_check
            _
          $region34: #{custom-call.28} parent=31 // pred_check_branch
            %372 = sbr.rel target = $region36
          $region35: #{custom-call.28} parent=31 // pred_region
            // Predicated region
            $region48: #{custom-call.28} parent=35 // pred_check
              _
            $region49: #{custom-call.28} parent=35 // pred_check_branch
              %388 = sbr.rel (0) target = $region51
            $region50: #{custom-call.28} parent=35 // pred_region
              %s390 = ssub.s32 16, 1
              loop: start=0, step=1, limit=1
              $region52: #{custom-call.28} parent=50 // loop_pre_header
                _
              $region53: #{custom-call.28} parent=50 // loop_header
                %s392 = sphi 0, %s396
                %p393 = scmp.ge.s32.totalorder %s392, 1
                %s397 = sphi %s355, %s355
                %s398 = sphi %s368, %s368
              $region54: #{custom-call.28} parent=50 // loop_header_branch
                %395 = sbr.rel (%p393) target = $region58
              $region55: #{custom-call.28} parent=50 // loop_body
                %v399 = vld [vmem:[%s397] sm:%s390]
                %400 = vst [vmem:[%s398] sm:%s390] %v399
              $region56: #{custom-call.28} parent=50 // loop_footer
                %s396 = sadd.s32 1, %s392
              $region57: #{custom-call.28} parent=50 // loop_footer_branch
                %391 = sbr.rel target = $region53
              $region58: #{custom-call.28} parent=50 // loop_exit
                _
            $region51: #{custom-call.28} parent=35 // pred_fallthru
              _
          $region36: #{custom-call.28} parent=31 // pred_fallthru
            _
          // Predicated region
          $region37: #{custom-call.28} parent=31 // pred_check
            _
          $region38: #{custom-call.28} parent=31 // pred_check_branch
            %374 = sbr.rel (0) target = $region40
          $region39: #{custom-call.28} parent=31 // pred_region
            %s376 = ssub.s32 16, 1
            loop: start=0, step=1, limit=1
            $region41: #{custom-call.28} parent=39 // loop_pre_header
              _
            $region42: #{custom-call.28} parent=39 // loop_header
              %s378 = sphi 0, %s382
              %p379 = scmp.ge.s32.totalorder %s378, 1
              %s383 = sphi %s355, %s355
              %s384 = sphi %s368, %s368
            $region43: #{custom-call.28} parent=39 // loop_header_branch
              %381 = sbr.rel (%p379) target = $region47
            $region44: #{custom-call.28} parent=39 // loop_body
              %v385 = vld [vmem:[%s383] sm:%s376]
              %386 = vst [vmem:[%s384] sm:%s376] %v385
            $region45: #{custom-call.28} parent=39 // loop_footer
              %s382 = sadd.s32 1, %s378
            $region46: #{custom-call.28} parent=39 // loop_footer_branch
              %377 = sbr.rel target = $region42
            $region47: #{custom-call.28} parent=39 // loop_exit
              _
          $region40: #{custom-call.28} parent=31 // pred_fallthru
            _
        $region32: #{custom-call.28} parent=19 // pred_fallthru
          _
        %401 = vnop
        // Predicated region
        $region59: #{custom-call.28} parent=19 // pred_check
          %p402 = pneg %p51
        $region60: #{custom-call.28} parent=19 // pred_check_branch
          %404 = sbr.rel (%p402) target = $region62
        $region61: #{custom-call.28} parent=19 // pred_region
          %s405 = sshrl.u32 %s22, 3
          %s407 = ssub.s32 32, 32
          %408 = vsyncadd %s357, %s407
          %s409 = sadd.s32 %s405, %s21
          %s410 = smul.addr %s409, 32
          %s411 = scalar_lea.hbm %s2, %s410
          %s413 = sshll.u32 %s360, 4
          %s414 = int_to_ptr.vmem [resolvable:$true] %s413
          %416 = dma.vmem_to_hbm [thread:$0]  %s414, 32, %s411, %s357
        $region62: #{custom-call.28} parent=19 // pred_fallthru
          _
        // Predicated region
        $region63: #{custom-call.28} parent=19 // pred_check
          %p417 = pneg %p81
        $region64: #{custom-call.28} parent=19 // pred_check_branch
          %419 = sbr.rel (%p417) target = $region66
        $region65: #{custom-call.28} parent=19 // pred_region
          %s420 = sshrl.u32 %s22, 3
          %s421 = sadd.s32 %s420, %s21
          %s422 = smul.addr %s421, 2
          %s423 = scalar_lea.vmem %s3, %s422
          // Predicated region
          $region67: #{custom-call.28} parent=65 // pred_check
            _
          $region68: #{custom-call.28} parent=65 // pred_check_branch
            %425 = sbr.rel (0) target = $region70
          $region69: #{custom-call.28} parent=65 // pred_region
            // Predicated region
            $region71: #{custom-call.28} parent=69 // pred_check
              _
            $region72: #{custom-call.28} parent=69 // pred_check_branch
              %427 = sbr.rel target = $region74
            $region73: #{custom-call.28} parent=69 // pred_region
              // Predicated region
              $region86: #{custom-call.28} parent=73 // pred_check
                _
              $region87: #{custom-call.28} parent=73 // pred_check_branch
                %443 = sbr.rel (0) target = $region89
              $region88: #{custom-call.28} parent=73 // pred_region
                %s445 = ssub.s32 4, 1
                loop: start=0, step=1, limit=1
                $region90: #{custom-call.28} parent=88 // loop_pre_header
                  _
                $region91: #{custom-call.28} parent=88 // loop_header
                  %s447 = sphi 0, %s451
                  %p448 = scmp.ge.s32.totalorder %s447, 1
                  %s452 = sphi %s364, %s364
                  %s453 = sphi %s423, %s423
                $region92: #{custom-call.28} parent=88 // loop_header_branch
                  %450 = sbr.rel (%p448) target = $region96
                $region93: #{custom-call.28} parent=88 // loop_body
                  %v454 = vld [vmem:[%s452] sm:%s445]
                  %455 = vst [vmem:[%s453] sm:%s445] %v454
                $region94: #{custom-call.28} parent=88 // loop_footer
                  %s451 = sadd.s32 1, %s447
                $region95: #{custom-call.28} parent=88 // loop_footer_branch
                  %446 = sbr.rel target = $region91
                $region96: #{custom-call.28} parent=88 // loop_exit
                  _
              $region89: #{custom-call.28} parent=73 // pred_fallthru
                _
            $region74: #{custom-call.28} parent=69 // pred_fallthru
              _
            // Predicated region
            $region75: #{custom-call.28} parent=69 // pred_check
              _
            $region76: #{custom-call.28} parent=69 // pred_check_branch
              %429 = sbr.rel (0) target = $region78
            $region77: #{custom-call.28} parent=69 // pred_region
              %s431 = ssub.s32 4, 1
              loop: start=0, step=1, limit=1
              $region79: #{custom-call.28} parent=77 // loop_pre_header
                _
              $region80: #{custom-call.28} parent=77 // loop_header
                %s433 = sphi 0, %s437
                %p434 = scmp.ge.s32.totalorder %s433, 1
                %s438 = sphi %s364, %s364
                %s439 = sphi %s423, %s423
              $region81: #{custom-call.28} parent=77 // loop_header_branch
                %436 = sbr.rel (%p434) target = $region85
              $region82: #{custom-call.28} parent=77 // loop_body
                %v440 = vld [vmem:[%s438] sm:%s431]
                %441 = vst [vmem:[%s439] sm:%s431] %v440
              $region83: #{custom-call.28} parent=77 // loop_footer
                %s437 = sadd.s32 1, %s433
              $region84: #{custom-call.28} parent=77 // loop_footer_branch
                %432 = sbr.rel target = $region80
              $region85: #{custom-call.28} parent=77 // loop_exit
                _
            $region78: #{custom-call.28} parent=69 // pred_fallthru
              _
          $region70: #{custom-call.28} parent=65 // pred_fallthru
            _
          %456 = vnop
        $region66: #{custom-call.28} parent=19 // pred_fallthru
          _
      $region20: #{custom-call.28} parent=5 // pred_fallthru
        _
      %p457 = scmp.le.s32.totalorder 2, %s12
      // Predicated region
      $region97: #{custom-call.28} parent=5 // pred_check
        %p458 = pneg %p457
      $region98: #{custom-call.28} parent=5 // pred_check_branch
        %460 = sbr.rel (%p458) target = $region100
      $region99: #{custom-call.28} parent=5 // pred_region
        %s461 = ssub.s32 %s12, 2
        %s462 = sand.u32 %s18, 1
        %s463 = sand.u32 %s18, 1
        %s464 = smul.addr %s463, 4
        %s465 = scalar_lea.vmem [#allocation5], %s464
        // Predicated region
        $region101: #{custom-call.28} parent=99 // pred_check
          %p466 = pneg %p57
        $region102: #{custom-call.28} parent=99 // pred_check_branch
          %468 = sbr.rel (%p466) target = $region104
        $region103: #{custom-call.28} parent=99 // pred_region
          %s469 = sand.u32 %s42, 1
          %s470 = scalar_lea.sflag [#allocation3], %s469
          %s471 = sand.u32 %s42, 1
          %s472 = smul.addr %s471, 2
          %s473 = scalar_lea.vmem [#allocation7], %s472
          %474 = dma.done %s470, 32
        $region104: #{custom-call.28} parent=99 // pred_fallthru
          _
        // Predicated region
        $region105: #{custom-call.28} parent=99 // pred_check
          %p475 = pneg %p87
        $region106: #{custom-call.28} parent=99 // pred_check_branch
          %477 = sbr.rel (%p475) target = $region108
        $region107: #{custom-call.28} parent=99 // pred_region
          %s478 = sand.u32 %s72, 1
          %s479 = sand.u32 %s72, 1
          %s480 = smul.addr %s479, 2
          %s481 = scalar_lea.vmem [#allocation9], %s480
        $region108: #{custom-call.28} parent=99 // pred_fallthru
          _
      $region100: #{custom-call.28} parent=5 // pred_fallthru
        _
    $region6: #{custom-call.28} parent=1 // loop_footer
      %s16 = sadd.s32 1, %s12
    $region7: #{custom-call.28} parent=1 // loop_footer_branch
      %11 = sbr.rel target = $region3
    $region8: #{custom-call.28} parent=1 // loop_exit
      _
    %482 = vsyncpa [#allocation2], 1
    %s483 = scalar_lea.sflag [#allocation2], 1
    %484 = vsyncpa %s483, 1
    %485 = vsyncpa [#allocation3], 1
    %s486 = scalar_lea.sflag [#allocation3], 1
    %487 = vsyncpa %s486, 1

// kernel: custom-call.30
$region0: #{custom-call.30}
  %s0 = inlined_call_operand.vmem [shape: f32[2,2,1,4,4], index: 0, kind: input, shape index: {}]
  %s1 = inlined_call_operand.vmem [shape: f32[2,2,1,4,4], index: 1, kind: output, shape index: {}]
  $region1: #{custom-call.30} parent=0
    #allocation0 [shape = 'u8[4096]{0}', space=vmem, size = 0x1000, scoped, tag = 'operand span for operand 0']
    #allocation1 [shape = 'u8[4096]{0}', space=vmem, size = 0x1000, scoped, tag = 'packed  for operand 0']
    #allocation2 [shape = 'u8[4096]{0}', space=vmem, size = 0x1000, scoped, tag = 'operand span for operand 1']
    #allocation3 [shape = 'u8[4096]{0}', space=vmem, size = 0x1000, scoped, tag = 'packed  for operand 1']
    loop: start=0, step=1, limit=6
    $region2: #{custom-call.30} parent=1 // loop_pre_header
      _
    $region3: #{custom-call.30} parent=1 // loop_header
      %s3 = sphi 0, %s7
      %p4 = scmp.ge.s32.totalorder %s3, 6
      %s10 = sphi 0, %s43
      %s11 = sphi 0, %s39
      %s12 = sphi 0, %s35
      %s13 = sphi 0, %s31
      %s14 = sphi 0, %s27
      %s15 = sphi 0, %s10
      %s16 = sphi 0, %s11
      %s17 = sphi 0, %s12
      %s18 = sphi 0, %s13
      %s19 = sphi 0, %s14
      %s20 = sphi 0, %s15
      %s21 = sphi 0, %s16
      %s22 = sphi 0, %s17
      %s23 = sphi 0, %s18
      %s24 = sphi 0, %s19
    $region4: #{custom-call.30} parent=1 // loop_header_branch
      %6 = sbr.rel (%p4) target = $region8
    $region5: #{custom-call.30} parent=1 // loop_body
      %s8 = ssub.s32 %s3, 1
      %s9 = ssub.s32 %s3, 2
      %s25 = sadd.s32 1, %s14
      %p26 = scmp.ge.s32.totalorder %s25, 1
      %s27 = scalar_select %p26, 0, %s25
      %s28 = sadd.s32 1, %s13
      %s29 = scalar_select %p26, %s28, %s13
      %p30 = scmp.ge.s32.totalorder %s29, 1
      %s31 = scalar_select %p30, 0, %s29
      %s32 = sadd.s32 1, %s12
      %s33 = scalar_select %p30, %s32, %s12
      %p34 = scmp.ge.s32.totalorder %s33, 1
      %s35 = scalar_select %p34, 0, %s33
      %s36 = sadd.s32 1, %s11
      %s37 = scalar_select %p34, %s36, %s11
      %p38 = scmp.ge.s32.totalorder %s37, 2
      %s39 = scalar_select %p38, 0, %s37
      %s40 = sadd.s32 1, %s10
      %s41 = scalar_select %p38, %s40, %s10
      %p42 = scmp.ge.s32.totalorder %s41, 2
      %s43 = scalar_select %p42, 0, %s41
      %p44 = scmp.le.s32.totalorder 1, %s3
      %p45 = scmp.lt.s32.totalorder %s3, 5
      %p46 = pnand %p44, %p45
      %p47 = pneg %p46
      // Predicated region
      $region9: #{custom-call.30} parent=5 // pred_check
        _
      $region10: #{custom-call.30} parent=5 // pred_check_branch
        %49 = sbr.rel (%p46) target = $region12
      $region11: #{custom-call.30} parent=5 // pred_region
        %s50 = ssub.s32 %s3, 1
      $region12: #{custom-call.30} parent=5 // pred_fallthru
        _
      %p51 = scmp.lt.s32.totalorder %s3, 4
      // Predicated region
      $region13: #{custom-call.30} parent=5 // pred_check
        %p52 = pneg %p51
      $region14: #{custom-call.30} parent=5 // pred_check_branch
        %54 = sbr.rel (%p52) target = $region16
      $region15: #{custom-call.30} parent=5 // pred_region
        %s55 = sand.u32 %s3, 1
        %s56 = sand.u32 %s3, 1
        %s57 = smul.addr %s56, 4
        %s58 = scalar_lea.vmem [#allocation1], %s57
        %s59 = sadd.s32 %s14, %s13
        %s60 = sadd.s32 %s59, %s12
        %s61 = sadd.s32 %s60, %s11
        %s62 = smul.addr %s10, 2
        %s63 = sadd.s32 %s61, %s62
        %s64 = smul.addr %s63, 4
        %s65 = scalar_lea.vmem %s0, %s64
        // Predicated region
        $region17: #{custom-call.30} parent=15 // pred_check
          _
        $region18: #{custom-call.30} parent=15 // pred_check_branch
          %67 = sbr.rel (0) target = $region20
        $region19: #{custom-call.30} parent=15 // pred_region
          // Predicated region
          $region21: #{custom-call.30} parent=19 // pred_check
            _
          $region22: #{custom-call.30} parent=19 // pred_check_branch
            %69 = sbr.rel target = $region24
          $region23: #{custom-call.30} parent=19 // pred_region
            // Predicated region
            $region36: #{custom-call.30} parent=23 // pred_check
              _
            $region37: #{custom-call.30} parent=23 // pred_check_branch
              %85 = sbr.rel (0) target = $region39
            $region38: #{custom-call.30} parent=23 // pred_region
              %s87 = ssub.s32 16, 1
              loop: start=0, step=1, limit=1
              $region40: #{custom-call.30} parent=38 // loop_pre_header
                _
              $region41: #{custom-call.30} parent=38 // loop_header
                %s89 = sphi 0, %s93
                %p90 = scmp.ge.s32.totalorder %s89, 1
                %s94 = sphi %s65, %s65
                %s95 = sphi %s58, %s58
              $region42: #{custom-call.30} parent=38 // loop_header_branch
                %92 = sbr.rel (%p90) target = $region46
              $region43: #{custom-call.30} parent=38 // loop_body
                %v96 = vld [vmem:[%s94] sm:%s87]
                %97 = vst [vmem:[%s95] sm:%s87] %v96
              $region44: #{custom-call.30} parent=38 // loop_footer
                %s93 = sadd.s32 1, %s89
              $region45: #{custom-call.30} parent=38 // loop_footer_branch
                %88 = sbr.rel target = $region41
              $region46: #{custom-call.30} parent=38 // loop_exit
                _
            $region39: #{custom-call.30} parent=23 // pred_fallthru
              _
          $region24: #{custom-call.30} parent=19 // pred_fallthru
            _
          // Predicated region
          $region25: #{custom-call.30} parent=19 // pred_check
            _
          $region26: #{custom-call.30} parent=19 // pred_check_branch
            %71 = sbr.rel (0) target = $region28
          $region27: #{custom-call.30} parent=19 // pred_region
            %s73 = ssub.s32 16, 1
            loop: start=0, step=1, limit=1
            $region29: #{custom-call.30} parent=27 // loop_pre_header
              _
            $region30: #{custom-call.30} parent=27 // loop_header
              %s75 = sphi 0, %s79
              %p76 = scmp.ge.s32.totalorder %s75, 1
              %s80 = sphi %s65, %s65
              %s81 = sphi %s58, %s58
            $region31: #{custom-call.30} parent=27 // loop_header_branch
              %78 = sbr.rel (%p76) target = $region35
            $region32: #{custom-call.30} parent=27 // loop_body
              %v82 = vld [vmem:[%s80] sm:%s73]
              %83 = vst [vmem:[%s81] sm:%s73] %v82
            $region33: #{custom-call.30} parent=27 // loop_footer
              %s79 = sadd.s32 1, %s75
            $region34: #{custom-call.30} parent=27 // loop_footer_branch
              %74 = sbr.rel target = $region30
            $region35: #{custom-call.30} parent=27 // loop_exit
              _
          $region28: #{custom-call.30} parent=19 // pred_fallthru
            _
        $region20: #{custom-call.30} parent=15 // pred_fallthru
          _
        %98 = vnop
      $region16: #{custom-call.30} parent=5 // pred_fallthru
        _
      %p99 = scmp.le.s32.totalorder 1, %s3
      %p100 = scmp.lt.s32.totalorder %s3, 5
      %p101 = pnand %p99, %p100
      %p102 = pneg %p101
      // Predicated region
      $region47: #{custom-call.30} parent=5 // pred_check
        _
      $region48: #{custom-call.30} parent=5 // pred_check_branch
        %104 = sbr.rel (%p101) target = $region50
      $region49: #{custom-call.30} parent=5 // pred_region
        #allocation4 [shape = 'f32[4,4]{1,0}', space=vmem, size = 0x1000, scoped, tag = 'rescaled input a']
        %s105 = ssub.s32 %s3, 1
        %s106 = sand.u32 %s8, 1
        %s107 = sand.u32 %s8, 1
        %s108 = smul.addr %s107, 4
        %s109 = scalar_lea.vmem [#allocation1], %s108
        %s110 = sand.u32 %s8, 1
        %s111 = sand.u32 %s8, 1
        %s112 = smul.addr %s111, 4
        %s113 = scalar_lea.vmem [#allocation1], %s112
        %s114 = sand.u32 %s8, 1
        %s115 = sand.u32 %s8, 1
        %s116 = smul.addr %s115, 4
        %s117 = scalar_lea.vmem [#allocation3], %s116
        %s119 = sshll.u32 1, 4
        %s120 = ssub.s32 %s119, 1
        %v121 = vld [vmem:[%s113] sm:%s120]
        %122 = vst [vmem:[#allocation0] sm:%s120] %v121
        %v123 = vlaneseq
        %v124 = vand.u32 %v123, 127
        %vm125 = vcmp.lt.s32.totalorder %v124, 4
        %v126 = vlaneseq
        %v127 = vshrl.u32 %v126, 7
        %vm129 = vcmp.eq.s32.totalorder %v127, %v124
        %v130 = vld [vmem:[#allocation0] sm:$0xff]
        %v131 = vsel %vm129, %v130, 0.0
        %132 = vadd.xlane.f32.xlu0 %v131
        %v133 = vpop.xlane.xlu0 %132
        %vm134 = vcmp.ge.s32.totalorder %v127, %v124
        %vm135 = vmand %vm134, %vm125
        %v136 = vsel %vm135, %v130, 0.0
        %v137 = vrcp.pop %v133
        %v138 = vmul.f32 %v136, %v137
        %139 = vst [vmem:[#allocation4] sm:$0xff] %v138
        %v140 = vlaneseq
        %v141 = vand.u32 %v140, 127
        %v142 = vlaneseq
        %v143 = vshrl.u32 %v142, 7
        %vm145 = vcmp.eq.s32.totalorder %v141, %v143
        %v146 = vlaneseq
        %v147 = vand.u32 %v146, 127
        %vm148 = vcmp.eq.s32.totalorder %v147, 0
        %v149 = vsel %vm148, 1.0, -1.0
        %v150 = vsel %vm145, %v149, 0.0
        %s151 = scalar_lea.vmem [#allocation4], 1
        %v152 = vld [vmem:[%s151] ss:$0 sm:$0xff]
        %v153 = vxor.u32 %v152, 2147483648
        %v154 = vlaneseq
        %v155 = vand.u32 %v154, 127
        %vm156 = vcmp.eq.s32.totalorder %v155, 1
        %v157 = vmul.f32 %v153, %v150
        %158 = vadd.xlane.f32.xlu0 %v157
        %v159 = vpop.xlane.xlu0 %158
        %v160 = vsel %vm156, %v159, %v150
        %s161 = scalar_lea.vmem [#allocation4], 2
        %v162 = vld [vmem:[%s161] ss:$0 sm:$0xff]
        %v163 = vxor.u32 %v162, 2147483648
        %v164 = vlaneseq
        %v165 = vand.u32 %v164, 127
        %vm166 = vcmp.eq.s32.totalorder %v165, 2
        %v167 = vmul.f32 %v163, %v160
        %168 = vadd.xlane.f32.xlu0 %v167
        %v169 = vpop.xlane.xlu0 %168
        %v170 = vsel %vm166, %v169, %v160
        %s171 = scalar_lea.vmem [#allocation4], 3
        %v172 = vld [vmem:[%s171] ss:$0 sm:$0xff]
        %v173 = vxor.u32 %v172, 2147483648
        %v174 = vlaneseq
        %v175 = vand.u32 %v174, 127
        %vm176 = vcmp.eq.s32.totalorder %v175, 3
        %v177 = vmul.f32 %v173, %v170
        %178 = vadd.xlane.f32.xlu0 %v177
        %v179 = vpop.xlane.xlu0 %178
        %v180 = vsel %vm176, %v179, %v170
        %v181 = vrcp.pop %v133
        %v182 = vmul.f32 %v180, %v181
        %vm183 = vweird.f32 %v133
        %v184 = vsel %vm183, %v180, %v182
        %185 = vst [vmem:[#allocation2] sm:$0xff] %v184
        %s187 = sshll.u32 1, 4
        %s188 = ssub.s32 %s187, 1
        %v190 = vld [vmem:[#allocation2] sm:%s188]
        %s191 = sshll.u32 1, 4
        %s192 = ssub.s32 %s191, 1
        %193 = vst [vmem:[%s117] sm:%s192] %v190
        %s194 = sand.u32 %s8, 1
        %s195 = sand.u32 %s8, 1
        %s196 = smul.addr %s195, 4
        %s197 = scalar_lea.vmem [#allocation3], %s196
        %s198 = sadd.s32 %s19, %s18
        %s199 = sadd.s32 %s198, %s17
        %s200 = sadd.s32 %s199, %s16
        %s201 = smul.addr %s15, 2
        %s202 = sadd.s32 %s200, %s201
        %s203 = smul.addr %s202, 4
        %s204 = scalar_lea.vmem %s1, %s203
        // Predicated region
        $region51: #{custom-call.30} parent=49 // pred_check
          _
        $region52: #{custom-call.30} parent=49 // pred_check_branch
          %206 = sbr.rel (0) target = $region54
        $region53: #{custom-call.30} parent=49 // pred_region
          // Predicated region
          $region55: #{custom-call.30} parent=53 // pred_check
            _
          $region56: #{custom-call.30} parent=53 // pred_check_branch
            %208 = sbr.rel target = $region58
          $region57: #{custom-call.30} parent=53 // pred_region
            // Predicated region
            $region70: #{custom-call.30} parent=57 // pred_check
              _
            $region71: #{custom-call.30} parent=57 // pred_check_branch
              %224 = sbr.rel (0) target = $region73
            $region72: #{custom-call.30} parent=57 // pred_region
              %s226 = ssub.s32 16, 1
              loop: start=0, step=1, limit=1
              $region74: #{custom-call.30} parent=72 // loop_pre_header
                _
              $region75: #{custom-call.30} parent=72 // loop_header
                %s228 = sphi 0, %s232
                %p229 = scmp.ge.s32.totalorder %s228, 1
                %s233 = sphi %s197, %s197
                %s234 = sphi %s204, %s204
              $region76: #{custom-call.30} parent=72 // loop_header_branch
                %231 = sbr.rel (%p229) target = $region80
              $region77: #{custom-call.30} parent=72 // loop_body
                %v235 = vld [vmem:[%s233] sm:%s226]
                %236 = vst [vmem:[%s234] sm:%s226] %v235
              $region78: #{custom-call.30} parent=72 // loop_footer
                %s232 = sadd.s32 1, %s228
              $region79: #{custom-call.30} parent=72 // loop_footer_branch
                %227 = sbr.rel target = $region75
              $region80: #{custom-call.30} parent=72 // loop_exit
                _
            $region73: #{custom-call.30} parent=57 // pred_fallthru
              _
          $region58: #{custom-call.30} parent=53 // pred_fallthru
            _
          // Predicated region
          $region59: #{custom-call.30} parent=53 // pred_check
            _
          $region60: #{custom-call.30} parent=53 // pred_check_branch
            %210 = sbr.rel (0) target = $region62
          $region61: #{custom-call.30} parent=53 // pred_region
            %s212 = ssub.s32 16, 1
            loop: start=0, step=1, limit=1
            $region63: #{custom-call.30} parent=61 // loop_pre_header
              _
            $region64: #{custom-call.30} parent=61 // loop_header
              %s214 = sphi 0, %s218
              %p215 = scmp.ge.s32.totalorder %s214, 1
              %s219 = sphi %s197, %s197
              %s220 = sphi %s204, %s204
            $region65: #{custom-call.30} parent=61 // loop_header_branch
              %217 = sbr.rel (%p215) target = $region69
            $region66: #{custom-call.30} parent=61 // loop_body
              %v221 = vld [vmem:[%s219] sm:%s212]
              %222 = vst [vmem:[%s220] sm:%s212] %v221
            $region67: #{custom-call.30} parent=61 // loop_footer
              %s218 = sadd.s32 1, %s214
            $region68: #{custom-call.30} parent=61 // loop_footer_branch
              %213 = sbr.rel target = $region64
            $region69: #{custom-call.30} parent=61 // loop_exit
              _
          $region62: #{custom-call.30} parent=53 // pred_fallthru
            _
        $region54: #{custom-call.30} parent=49 // pred_fallthru
          _
        %237 = vnop
      $region50: #{custom-call.30} parent=5 // pred_fallthru
        _
      %p238 = scmp.le.s32.totalorder 2, %s3
      // Predicated region
      $region81: #{custom-call.30} parent=5 // pred_check
        %p239 = pneg %p238
      $region82: #{custom-call.30} parent=5 // pred_check_branch
        %241 = sbr.rel (%p239) target = $region84
      $region83: #{custom-call.30} parent=5 // pred_region
        %s242 = ssub.s32 %s3, 2
        %s243 = sand.u32 %s9, 1
        %s244 = sand.u32 %s9, 1
        %s245 = smul.addr %s244, 4
        %s246 = scalar_lea.vmem [#allocation3], %s245
      $region84: #{custom-call.30} parent=5 // pred_fallthru
        _
    $region6: #{custom-call.30} parent=1 // loop_footer
      %s7 = sadd.s32 1, %s3
    $region7: #{custom-call.30} parent=1 // loop_footer_branch
      %2 = sbr.rel target = $region3
    $region8: #{custom-call.30} parent=1 // loop_exit
      _

// kernel: _forward_core.8
$region0: #{_forward_core.8}
  #allocation0 [shape = 'u32[]', space=smem, size = 0x4, offset = 0x4, fixed_abs, tag = 'smem constant byte address 0x4 - core index']
  #allocation1 [shape = 'u32[144,128]{1,0:T(1,128)}', space=vmem, size = 0x12000, scoped, tag = 'internal scratch']
  %s0 = inlined_call_operand.vmem [shape: f32[2,43,128], index: 0, kind: input, shape index: {}]
  %s1 = inlined_call_operand.vmem [shape: f32[2,3,128], index: 1, kind: input, shape index: {}]
  %s2 = inlined_call_operand.vmem [shape: f32[64,43], index: 2, kind: input, shape index: {}]
  %s3 = inlined_call_operand.vmem [shape: f32[64,1], index: 3, kind: input, shape index: {}]
  %s4 = inlined_call_operand.vmem [shape: f32[14,64], index: 4, kind: input, shape index: {}]
  %s5 = inlined_call_operand.vmem [shape: f32[14,1], index: 5, kind: input, shape index: {}]
  %s6 = inlined_call_operand.vmem [shape: f32[2,14,128], index: 6, kind: output, shape index: {}]
  %s7 = sld [smem:[#allocation0]]
  $region57: #{_forward_core.8} parent=0
    _
  %s9 = ssub.s32 1, %s7
  %s10 = scalar_select 0, %s9, %s7
  loop: start=0, step=1, limit=4
  $region2: #{_forward_core.8} parent=0 // loop_pre_header
    _
  $region3: #{_forward_core.8} parent=0 // loop_header
    %s12 = sphi 0, %s16
    %p13 = scmp.ge.s32.totalorder %s12, 4
    %s22 = sphi 0, %s24
    %s25 = sphi 0, %s22
    %s26 = sphi 0, %s25
    %s42 = sphi 0, %s26
    %s48 = sphi 0, %s50
    %s51 = sphi 0, %s48
    %s52 = sphi 0, %s51
    %s68 = sphi 0, %s52
    %s72 = sphi 0, %s72
    %s74 = sphi 0, %s72
    %s75 = sphi 0, %s74
    %s89 = sphi 0, %s75
    %s93 = sphi 0, %s93
    %s95 = sphi 0, %s93
    %s96 = sphi 0, %s95
    %s110 = sphi 0, %s96
    %s114 = sphi 0, %s114
    %s116 = sphi 0, %s114
    %s117 = sphi 0, %s116
    %s131 = sphi 0, %s117
    %s135 = sphi 0, %s135
    %s137 = sphi 0, %s135
    %s138 = sphi 0, %s137
    %s152 = sphi 0, %s138
    %s158 = sphi 0, %s160
    %s161 = sphi 0, %s158
    %s162 = sphi 0, %s161
    %s178 = sphi 0, %s162
  $region4: #{_forward_core.8} parent=0 // loop_header_branch
    %15 = sbr.rel (%p13) target = $region8
  $region5: #{_forward_core.8} parent=0 // loop_body
    %s17 = ssub.s32 %s12, 1
    %s18 = ssub.s32 %s12, 2
    %s19 = sadd.s32 %s12, 1
    %s20 = ssub.s32 %s12, %s19
    %p21 = scmp.eq.s32.totalorder %s20, 0
    %s23 = sadd.s32 %s22, 1
    %s24 = scalar_select %p21, %s22, %s23
    %p27 = pneg %p21
    %p28 = scmp.eq.s32.totalorder %s12, 1
    %p29 = por %p27, %p28
    %p30 = scmp.ne.s32.totalorder %s22, %s25
    %p31 = scmp.eq.s32.totalorder %s12, 0
    %p32 = por %p30, %p31
    %p33 = scmp.ne.s32.totalorder %s22, %s25
    %p34 = scmp.eq.s32.totalorder %s17, 1
    %p35 = por %p33, %p34
    %p36 = scmp.ne.s32.totalorder %s25, %s26
    %p37 = scmp.eq.s32.totalorder %s17, 0
    %p38 = por %p36, %p37
    %p39 = scmp.ne.s32.totalorder %s25, %s26
    %p40 = scmp.eq.s32.totalorder %s18, 1
    %p41 = por %p39, %p40
    %p43 = scmp.ne.s32.totalorder %s26, %s42
    %p44 = scmp.eq.s32.totalorder %s18, 0
    %p45 = por %p43, %p44
    %s46 = ssub.s32 %s12, %s19
    %p47 = scmp.eq.s32.totalorder %s46, 0
    %s49 = sadd.s32 %s48, 1
    %s50 = scalar_select %p47, %s48, %s49
    %p53 = pneg %p47
    %p54 = scmp.eq.s32.totalorder %s12, 1
    %p55 = por %p53, %p54
    %p56 = scmp.ne.s32.totalorder %s48, %s51
    %p57 = scmp.eq.s32.totalorder %s12, 0
    %p58 = por %p56, %p57
    %p59 = scmp.ne.s32.totalorder %s48, %s51
    %p60 = scmp.eq.s32.totalorder %s17, 1
    %p61 = por %p59, %p60
    %p62 = scmp.ne.s32.totalorder %s51, %s52
    %p63 = scmp.eq.s32.totalorder %s17, 0
    %p64 = por %p62, %p63
    %p65 = scmp.ne.s32.totalorder %s51, %s52
    %p66 = scmp.eq.s32.totalorder %s18, 1
    %p67 = por %p65, %p66
    %p69 = scmp.ne.s32.totalorder %s52, %s68
    %p70 = scmp.eq.s32.totalorder %s18, 0
    %p71 = por %p69, %p70
    %s73 = sadd.s32 %s72, 1
    %p76 = scmp.eq.s32.totalorder %s12, 1
    %p77 = scmp.ne.s32.totalorder %s72, %s74
    %p78 = scmp.eq.s32.totalorder %s12, 0
    %p79 = por %p77, %p78
    %p80 = scmp.ne.s32.totalorder %s72, %s74
    %p81 = scmp.eq.s32.totalorder %s17, 1
    %p82 = por %p80, %p81
    %p83 = scmp.ne.s32.totalorder %s74, %s75
    %p84 = scmp.eq.s32.totalorder %s17, 0
    %p85 = por %p83, %p84
    %p86 = scmp.ne.s32.totalorder %s74, %s75
    %p87 = scmp.eq.s32.totalorder %s18, 1
    %p88 = por %p86, %p87
    %p90 = scmp.ne.s32.totalorder %s75, %s89
    %p91 = scmp.eq.s32.totalorder %s18, 0
    %p92 = por %p90, %p91
    %s94 = sadd.s32 %s93, 1
    %p97 = scmp.eq.s32.totalorder %s12, 1
    %p98 = scmp.ne.s32.totalorder %s93, %s95
    %p99 = scmp.eq.s32.totalorder %s12, 0
    %p100 = por %p98, %p99
    %p101 = scmp.ne.s32.totalorder %s93, %s95
    %p102 = scmp.eq.s32.totalorder %s17, 1
    %p103 = por %p101, %p102
    %p104 = scmp.ne.s32.totalorder %s95, %s96
    %p105 = scmp.eq.s32.totalorder %s17, 0
    %p106 = por %p104, %p105
    %p107 = scmp.ne.s32.totalorder %s95, %s96
    %p108 = scmp.eq.s32.totalorder %s18, 1
    %p109 = por %p107, %p108
    %p111 = scmp.ne.s32.totalorder %s96, %s110
    %p112 = scmp.eq.s32.totalorder %s18, 0
    %p113 = por %p111, %p112
    %s115 = sadd.s32 %s114, 1
    %p118 = scmp.eq.s32.totalorder %s12, 1
    %p119 = scmp.ne.s32.totalorder %s114, %s116
    %p120 = scmp.eq.s32.totalorder %s12, 0
    %p121 = por %p119, %p120
    %p122 = scmp.ne.s32.totalorder %s114, %s116
    %p123 = scmp.eq.s32.totalorder %s17, 1
    %p124 = por %p122, %p123
    %p125 = scmp.ne.s32.totalorder %s116, %s117
    %p126 = scmp.eq.s32.totalorder %s17, 0
    %p127 = por %p125, %p126
    %p128 = scmp.ne.s32.totalorder %s116, %s117
    %p129 = scmp.eq.s32.totalorder %s18, 1
    %p130 = por %p128, %p129
    %p132 = scmp.ne.s32.totalorder %s117, %s131
    %p133 = scmp.eq.s32.totalorder %s18, 0
    %p134 = por %p132, %p133
    %s136 = sadd.s32 %s135, 1
    %p139 = scmp.eq.s32.totalorder %s12, 1
    %p140 = scmp.ne.s32.totalorder %s135, %s137
    %p141 = scmp.eq.s32.totalorder %s12, 0
    %p142 = por %p140, %p141
    %p143 = scmp.ne.s32.totalorder %s135, %s137
    %p144 = scmp.eq.s32.totalorder %s17, 1
    %p145 = por %p143, %p144
    %p146 = scmp.ne.s32.totalorder %s137, %s138
    %p147 = scmp.eq.s32.totalorder %s17, 0
    %p148 = por %p146, %p147
    %p149 = scmp.ne.s32.totalorder %s137, %s138
    %p150 = scmp.eq.s32.totalorder %s18, 1
    %p151 = por %p149, %p150
    %p153 = scmp.ne.s32.totalorder %s138, %s152
    %p154 = scmp.eq.s32.totalorder %s18, 0
    %p155 = por %p153, %p154
    %s156 = ssub.s32 %s12, %s19
    %p157 = scmp.eq.s32.totalorder %s156, 0
    %s159 = sadd.s32 %s158, 1
    %s160 = scalar_select %p157, %s158, %s159
    %p163 = pneg %p157
    %p164 = scmp.eq.s32.totalorder %s12, 1
    %p165 = por %p163, %p164
    %p166 = scmp.ne.s32.totalorder %s158, %s161
    %p167 = scmp.eq.s32.totalorder %s12, 0
    %p168 = por %p166, %p167
    %p169 = scmp.ne.s32.totalorder %s158, %s161
    %p170 = scmp.eq.s32.totalorder %s17, 1
    %p171 = por %p169, %p170
    %p172 = scmp.ne.s32.totalorder %s161, %s162
    %p173 = scmp.eq.s32.totalorder %s17, 0
    %p174 = por %p172, %p173
    %p175 = scmp.ne.s32.totalorder %s161, %s162
    %p176 = scmp.eq.s32.totalorder %s18, 1
    %p177 = por %p175, %p176
    %p179 = scmp.ne.s32.totalorder %s162, %s178
    %p180 = scmp.eq.s32.totalorder %s18, 0
    %p181 = por %p179, %p180
    %p182 = scmp.le.s32.totalorder 1, %s12
    %p183 = scmp.lt.s32.totalorder %s12, 3
    %p184 = pnand %p182, %p183
    %p185 = pneg %p184
    // Predicated region
    $region9: #{_forward_core.8} parent=5 // pred_check
      _
    $region10: #{_forward_core.8} parent=5 // pred_check_branch
      %187 = sbr.rel (%p184) target = $region12
    $region11: #{_forward_core.8} parent=5 // pred_region
      %s188 = ssub.s32 %s12, 1
      // Predicated region
      $region13: #{_forward_core.8} parent=11 // pred_check
        %p189 = pneg %p85
      $region14: #{_forward_core.8} parent=11 // pred_check_branch
        %191 = sbr.rel (%p189) target = $region16
      $region15: #{_forward_core.8} parent=11 // pred_region
        _
      $region16: #{_forward_core.8} parent=11 // pred_fallthru
        _
      // Predicated region
      $region17: #{_forward_core.8} parent=11 // pred_check
        %p192 = pneg %p106
      $region18: #{_forward_core.8} parent=11 // pred_check_branch
        %194 = sbr.rel (%p192) target = $region20
      $region19: #{_forward_core.8} parent=11 // pred_region
        _
      $region20: #{_forward_core.8} parent=11 // pred_fallthru
        _
      // Predicated region
      $region21: #{_forward_core.8} parent=11 // pred_check
        %p195 = pneg %p127
      $region22: #{_forward_core.8} parent=11 // pred_check_branch
        %197 = sbr.rel (%p195) target = $region24
      $region23: #{_forward_core.8} parent=11 // pred_region
        _
      $region24: #{_forward_core.8} parent=11 // pred_fallthru
        _
      // Predicated region
      $region25: #{_forward_core.8} parent=11 // pred_check
        %p198 = pneg %p148
      $region26: #{_forward_core.8} parent=11 // pred_check_branch
        %200 = sbr.rel (%p198) target = $region28
      $region27: #{_forward_core.8} parent=11 // pred_region
        _
      $region28: #{_forward_core.8} parent=11 // pred_fallthru
        _
    $region12: #{_forward_core.8} parent=5 // pred_fallthru
      _
    %p201 = scmp.lt.s32.totalorder %s12, 2
    // Predicated region
    $region29: #{_forward_core.8} parent=5 // pred_check
      %p202 = pneg %p201
    $region30: #{_forward_core.8} parent=5 // pred_check_branch
      %204 = sbr.rel (%p202) target = $region32
    $region31: #{_forward_core.8} parent=5 // pred_region
      // Predicated region
      $region33: #{_forward_core.8} parent=31 // pred_check
        %p205 = pneg %p32
      $region34: #{_forward_core.8} parent=31 // pred_check_branch
        %207 = sbr.rel (%p205) target = $region36
      $region35: #{_forward_core.8} parent=31 // pred_region
        %p208 = scmp.lt.s32.totalorder %s12, 1
        %s209 = scalar_select %p208, %s12, 1
        %s210 = smul.addr %s209, 6
        %s211 = smul.addr %s210, 8
        %s212 = scalar_lea.vmem %s0, %s211
      $region36: #{_forward_core.8} parent=31 // pred_fallthru
        _
      // Predicated region
      $region37: #{_forward_core.8} parent=31 // pred_check
        %p213 = pneg %p58
      $region38: #{_forward_core.8} parent=31 // pred_check_branch
        %215 = sbr.rel (%p213) target = $region40
      $region39: #{_forward_core.8} parent=31 // pred_region
        %p216 = scmp.lt.s32.totalorder %s12, 1
        %s217 = scalar_select %p216, %s12, 1
        %s218 = smul.addr %s217, 4
        %s219 = scalar_lea.vmem %s1, %s218
      $region40: #{_forward_core.8} parent=31 // pred_fallthru
        _
    $region32: #{_forward_core.8} parent=5 // pred_fallthru
      _
    %p220 = scmp.le.s32.totalorder 1, %s12
    %p221 = scmp.lt.s32.totalorder %s12, 3
    %p222 = pnand %p220, %p221
    %p223 = pneg %p222
    // Predicated region
    $region41: #{_forward_core.8} parent=5 // pred_check
      _
    $region42: #{_forward_core.8} parent=5 // pred_check_branch
      %225 = sbr.rel (%p222) target = $region44
    $region43: #{_forward_core.8} parent=5 // pred_region
      %s226 = ssub.s32 %s12, 1
      %p227 = scmp.lt.s32.totalorder %s17, 1
      %s228 = scalar_select %p227, %s17, 1
      %s229 = smul.addr %s228, 6
      %s230 = smul.addr %s229, 8
      %s231 = scalar_lea.vmem %s0, %s230
      %p232 = pneg %p38
      %p233 = pneg %p35
      %p234 = scmp.lt.s32.totalorder %s17, 1
      %s235 = scalar_select %p234, %s17, 1
      %s236 = smul.addr %s235, 4
      %s237 = scalar_lea.vmem %s1, %s236
      %p238 = pneg %p64
      %p239 = pneg %p61
      %p240 = pneg %p85
      %p241 = pneg %p82
      %p242 = pneg %p106
      %p243 = pneg %p103
      %p244 = pneg %p127
      %p245 = pneg %p124
      %p246 = pneg %p148
      %p247 = pneg %p145
      %p248 = pneg %p174
      %p249 = pneg %p171
      %p250 = scmp.lt.s32.totalorder %s17, 1
      %s251 = scalar_select %p250, %s17, 1
      %s252 = smul.addr %s251, 2
      %s253 = smul.addr %s252, 8
      %s254 = scalar_lea.vmem %s6, %s253
      %p255 = scmp.lt.s32.totalorder %s17, 1
      %s256 = scalar_select %p255, %s17, 1
      %s257 = smul.addr %s256, 6
      %s258 = smul.addr %s257, 8
      %s259 = scalar_lea.vmem %s0, %s258
      %p260 = scmp.lt.s32.totalorder %s17, 1
      %s261 = scalar_select %p260, %s17, 1
      %s262 = smul.addr %s261, 4
      %s263 = scalar_lea.vmem %s1, %s262
      %p264 = scmp.lt.s32.totalorder %s17, 1
      %s265 = scalar_select %p264, %s17, 1
      %s266 = smul.addr %s265, 2
      %s267 = smul.addr %s266, 8
      %s268 = scalar_lea.vmem %s6, %s267
      %v269 = vld [vmem:[%s2] sm:$0xff]
      %v270 = vld [vmem:[%s2 + $0x8] sm:$0xff]
      %v271 = vld [vmem:[%s2 + $0x10] sm:$0xff]
      %v272 = vld [vmem:[%s2 + $0x18] sm:$0xff]
      %v273 = vld [vmem:[%s2 + $0x20] sm:$0xff]
      %v274 = vld [vmem:[%s2 + $0x28] sm:$0xff]
      %v275 = vld [vmem:[%s2 + $0x30] sm:$0xff]
      %v276 = vld [vmem:[%s2 + $0x38] sm:$0xff]
      %v277 = vld [vmem:[%s259] sm:$0xff]
      %v278 = vld [vmem:[%s259 + $0x8] sm:$0xff]
      %v279 = vld [vmem:[%s259 + $0x10] sm:$0xff]
      %v280 = vld [vmem:[%s259 + $0x18] sm:$0xff]
      %v281 = vld [vmem:[%s259 + $0x20] sm:$0xff]
      %v282 = vld [vmem:[%s259 + $0x28] sm:$0x7]
      %v283 = vld [vmem:[%s3] sm:$0xff]
      %v284 = vld [vmem:[%s3 + $0x8] sm:$0xff]
      %v285 = vld [vmem:[%s3 + $0x10] sm:$0xff]
      %v286 = vld [vmem:[%s3 + $0x18] sm:$0xff]
      %v287 = vld [vmem:[%s3 + $0x20] sm:$0xff]
      %v288 = vld [vmem:[%s3 + $0x28] sm:$0xff]
      %v289 = vld [vmem:[%s3 + $0x30] sm:$0xff]
      %v290 = vld [vmem:[%s3 + $0x38] sm:$0xff]
      %292 = vset.pattern.permute.xlu0 0
      %293 = vperm.xlu0 %292, %v283
      %v294 = vpop.permute.xlu0 %293
      %297 = vset.pattern.permute.xlu0 0
      %298 = vperm.xlu0 %297, %v284
      %v299 = vpop.permute.xlu0 %298
      %302 = vset.pattern.permute.xlu0 0
      %303 = vperm.xlu0 %302, %v285
      %v304 = vpop.permute.xlu0 %303
      %307 = vset.pattern.permute.xlu0 0
      %308 = vperm.xlu0 %307, %v286
      %v309 = vpop.permute.xlu0 %308
      %312 = vset.pattern.permute.xlu0 0
      %313 = vperm.xlu0 %312, %v287
      %v314 = vpop.permute.xlu0 %313
      %317 = vset.pattern.permute.xlu0 0
      %318 = vperm.xlu0 %317, %v288
      %v319 = vpop.permute.xlu0 %318
      %322 = vset.pattern.permute.xlu0 0
      %323 = vperm.xlu0 %322, %v289
      %v324 = vpop.permute.xlu0 %323
      %327 = vset.pattern.permute.xlu0 0
      %328 = vperm.xlu0 %327, %v290
      %v329 = vpop.permute.xlu0 %328
      %vm331 = vcmask 351232
      %v333 = vsel %vm331, %v269, 0
      %v336 = vsel %vm331, %v270, 0
      %v339 = vsel %vm331, %v271, 0
      %v342 = vsel %vm331, %v272, 0
      %v345 = vsel %vm331, %v273, 0
      %v348 = vsel %vm331, %v274, 0
      %v351 = vsel %vm331, %v275, 0
      %v354 = vsel %vm331, %v276, 0
      %vm356 = vcmask 1042432
      %v358 = vsel %vm356, %v282, 0
      %360 = vmatprep.subr.mxu0 0.0
      %361 = vmatpush1.msra.mxu0 0.0
      %362 = vmatprep.subr.mxu0 0.0
      %363 = vmatpush1.msra.mxu0 0.0
      %364 = vmatprep.subr.mxu0 0.0
      %365 = vmatpush1.msra.mxu0 0.0
      %366 = vmatprep.subr.mxu0 0.0
      %367 = vmatpush1.msra.mxu0 0.0
      %368 = vmatprep.subr.mxu0 0.0
      %369 = vmatpush1.msra.mxu0 0.0
      %370 = vmatprep.subr.mxu0 0.0
      %371 = vmatpush1.msra.mxu0 0.0
      %372 = vmatprep.subr.mxu0 0.0
      %373 = vmatpush1.msra.mxu0 0.0
      %374 = vmatprep.subr.mxu0 0.0
      %375 = vmatpush1.msra.mxu0 0.0
      %376 = vmatprep.subr.mxu0 0.0
      %377 = vmatpush1.msra.mxu0 0.0
      %378 = vmatprep.subr.mxu0 0.0
      %379 = vmatpush1.msra.mxu0 0.0
      %380 = vmatprep.subr.mxu0 0.0
      %381 = vmatpush1.msra.mxu0 %v358
      %382 = vmatprep.subr.mxu0 0.0
      %383 = vmatpush1.msra.mxu0 %v281
      %384 = vmatprep.subr.mxu0 0.0
      %385 = vmatpush1.msra.mxu0 %v280
      %386 = vmatprep.subr.mxu0 0.0
      %387 = vmatpush1.msra.mxu0 %v279
      %388 = vmatprep.subr.mxu0 0.0
      %389 = vmatpush1.msra.mxu0 %v278
      %390 = vmatprep.subr.mxu0 0.0
      %391 = vmatpush1.msra.mxu0 %v277
      %392 = vmatprep.subr.mxu0 0.0
      %393 = vmatpush2.msra.mxu0 0.0
      %394 = vmatprep.subr.mxu0 0.0
      %395 = vmatpush2.msra.mxu0 0.0
      %396 = vmatprep.subr.mxu0 0.0
      %397 = vmatpush2.msra.mxu0 0.0
      %398 = vmatprep.subr.mxu0 0.0
      %399 = vmatpush2.msra.mxu0 0.0
      %400 = vmatprep.subr.mxu0 0.0
      %401 = vmatpush2.msra.mxu0 0.0
      %402 = vmatprep.subr.mxu0 0.0
      %403 = vmatpush2.msra.mxu0 0.0
      %404 = vmatprep.subr.mxu0 0.0
      %405 = vmatpush2.msra.mxu0 0.0
      %406 = vmatprep.subr.mxu0 0.0
      %407 = vmatpush2.msra.mxu0 0.0
      %408 = vmatprep.subr.mxu0 0.0
      %409 = vmatpush2.msra.mxu0 0.0
      %410 = vmatprep.subr.mxu0 0.0
      %411 = vmatpush2.msra.mxu0 0.0
      %412 = vmatprep.subr.mxu0 0.0
      %413 = vmatpush2.msra.mxu0 0.0
      %414 = vmatprep.subr.mxu0 0.0
      %415 = vmatpush2.msra.mxu0 0.0
      %416 = vmatprep.subr.mxu0 0.0
      %417 = vmatpush2.msra.mxu0 0.0
      %418 = vmatprep.subr.mxu0 0.0
      %419 = vmatpush2.msra.mxu0 0.0
      %420 = vmatprep.subr.mxu0 0.0
      %421 = vmatpush2.msra.mxu0 0.0
      %422 = vmatprep.subr.mxu0 0.0
      %423 = vmatpush2.msra.mxu0 0.0
      %424 = vmatprep.mubr.f32.mxu0 0.0
      %425 = vmatmul.mubr.f32.gmra.mxu0 %v333
      %v426 = vpop.f32.mrf.mxu0
      %v427 = vadd.f32 %v294, %v426
      %v428 = vpop.f32.mrf.mxu0
      %429 = vmatprep.mubr.f32.mxu0 0.0
      %430 = vmatmul.mubr.f32.gmra.mxu0 %v336
      %v431 = vpop.f32.mrf.mxu0
      %v432 = vadd.f32 %v299, %v431
      %v433 = vpop.f32.mrf.mxu0
      %434 = vmatprep.mubr.f32.mxu0 0.0
      %435 = vmatmul.mubr.f32.gmra.mxu0 %v339
      %v436 = vpop.f32.mrf.mxu0
      %v437 = vadd.f32 %v304, %v436
      %v438 = vpop.f32.mrf.mxu0
      %439 = vmatprep.mubr.f32.mxu0 0.0
      %440 = vmatmul.mubr.f32.gmra.mxu0 %v342
      %v441 = vpop.f32.mrf.mxu0
      %v442 = vadd.f32 %v309, %v441
      %v443 = vpop.f32.mrf.mxu0
      %444 = vmatprep.mubr.f32.mxu0 0.0
      %445 = vmatmul.mubr.f32.gmra.mxu0 %v345
      %v446 = vpop.f32.mrf.mxu0
      %v447 = vadd.f32 %v314, %v446
      %v448 = vpop.f32.mrf.mxu0
      %449 = vmatprep.mubr.f32.mxu0 0.0
      %450 = vmatmul.mubr.f32.gmra.mxu0 %v348
      %v451 = vpop.f32.mrf.mxu0
      %v452 = vadd.f32 %v319, %v451
      %v453 = vpop.f32.mrf.mxu0
      %454 = vmatprep.mubr.f32.mxu0 0.0
      %455 = vmatmul.mubr.f32.gmra.mxu0 %v351
      %v456 = vpop.f32.mrf.mxu0
      %v457 = vadd.f32 %v324, %v456
      %v458 = vpop.f32.mrf.mxu0
      %459 = vmatprep.mubr.f32.mxu0 0.0
      %460 = vmatmul.mubr.f32.gmra.mxu0 %v354
      %v461 = vpop.f32.mrf.mxu0
      %v462 = vadd.f32 %v329, %v461
      %v463 = vpop.f32.mrf.mxu0
      %464 = vdwg.mxu0
      %v465 = vmax.f32 %v427, 0.0
      %v466 = vmax.f32 %v432, 0.0
      %v467 = vmax.f32 %v437, 0.0
      %v468 = vmax.f32 %v442, 0.0
      %v469 = vmax.f32 %v447, 0.0
      %v470 = vmax.f32 %v452, 0.0
      %v471 = vmax.f32 %v457, 0.0
      %v472 = vmax.f32 %v462, 0.0
      %v473 = vld [vmem:[%s4] sm:$0xff]
      %v474 = vld [vmem:[%s4 + $0x8] sm:$0x3f]
      %v475 = vld [vmem:[%s5] sm:$0xff]
      %v476 = vld [vmem:[%s5 + $0x8] sm:$0x3f]
      %478 = vset.pattern.permute.xlu0 0
      %479 = vperm.xlu0 %478, %v475
      %v480 = vpop.permute.xlu0 %479
      %483 = vset.pattern.permute.xlu0 0
      %484 = vperm.xlu0 %483, %v476
      %v485 = vpop.permute.xlu0 %484
      %vm487 = vcmask 523264
      %v489 = vsel %vm487, %v473, 0
      %v492 = vsel %vm487, %v474, 0
      %494 = vmatprep.subr.mxu0 0.0
      %495 = vmatpush1.msra.mxu0 0.0
      %496 = vmatprep.subr.mxu0 0.0
      %497 = vmatpush1.msra.mxu0 0.0
      %498 = vmatprep.subr.mxu0 0.0
      %499 = vmatpush1.msra.mxu0 0.0
      %500 = vmatprep.subr.mxu0 0.0
      %501 = vmatpush1.msra.mxu0 0.0
      %502 = vmatprep.subr.mxu0 0.0
      %503 = vmatpush1.msra.mxu0 0.0
      %504 = vmatprep.subr.mxu0 0.0
      %505 = vmatpush1.msra.mxu0 0.0
      %506 = vmatprep.subr.mxu0 0.0
      %507 = vmatpush1.msra.mxu0 0.0
      %508 = vmatprep.subr.mxu0 0.0
      %509 = vmatpush1.msra.mxu0 0.0
      %510 = vmatprep.subr.mxu0 0.0
      %511 = vmatpush1.msra.mxu0 %v472
      %512 = vmatprep.subr.mxu0 0.0
      %513 = vmatpush1.msra.mxu0 %v471
      %514 = vmatprep.subr.mxu0 0.0
      %515 = vmatpush1.msra.mxu0 %v470
      %516 = vmatprep.subr.mxu0 0.0
      %517 = vmatpush1.msra.mxu0 %v469
      %518 = vmatprep.subr.mxu0 0.0
      %519 = vmatpush1.msra.mxu0 %v468
      %520 = vmatprep.subr.mxu0 0.0
      %521 = vmatpush1.msra.mxu0 %v467
      %522 = vmatprep.subr.mxu0 0.0
      %523 = vmatpush1.msra.mxu0 %v466
      %524 = vmatprep.subr.mxu0 0.0
      %525 = vmatpush1.msra.mxu0 %v465
      %526 = vmatprep.subr.mxu0 0.0
      %527 = vmatpush2.msra.mxu0 0.0
      %528 = vmatprep.subr.mxu0 0.0
      %529 = vmatpush2.msra.mxu0 0.0
      %530 = vmatprep.subr.mxu0 0.0
      %531 = vmatpush2.msra.mxu0 0.0
      %532 = vmatprep.subr.mxu0 0.0
      %533 = vmatpush2.msra.mxu0 0.0
      %534 = vmatprep.subr.mxu0 0.0
      %535 = vmatpush2.msra.mxu0 0.0
      %536 = vmatprep.subr.mxu0 0.0
      %537 = vmatpush2.msra.mxu0 0.0
      %538 = vmatprep.subr.mxu0 0.0
      %539 = vmatpush2.msra.mxu0 0.0
      %540 = vmatprep.subr.mxu0 0.0
      %541 = vmatpush2.msra.mxu0 0.0
      %542 = vmatprep.subr.mxu0 0.0
      %543 = vmatpush2.msra.mxu0 0.0
      %544 = vmatprep.subr.mxu0 0.0
      %545 = vmatpush2.msra.mxu0 0.0
      %546 = vmatprep.subr.mxu0 0.0
      %547 = vmatpush2.msra.mxu0 0.0
      %548 = vmatprep.subr.mxu0 0.0
      %549 = vmatpush2.msra.mxu0 0.0
      %550 = vmatprep.subr.mxu0 0.0
      %551 = vmatpush2.msra.mxu0 0.0
      %552 = vmatprep.subr.mxu0 0.0
      %553 = vmatpush2.msra.mxu0 0.0
      %554 = vmatprep.subr.mxu0 0.0
      %555 = vmatpush2.msra.mxu0 0.0
      %556 = vmatprep.subr.mxu0 0.0
      %557 = vmatpush2.msra.mxu0 0.0
      %558 = vmatprep.mubr.f32.mxu0 0.0
      %559 = vmatmul.mubr.f32.gmra.mxu0 %v489
      %v560 = vpop.f32.mrf.mxu0
      %v561 = vadd.f32 %v480, %v560
      %v562 = vpop.f32.mrf.mxu0
      %563 = vmatprep.mubr.f32.mxu0 0.0
      %564 = vmatmul.mubr.f32.gmra.mxu0 %v492
      %v565 = vpop.f32.mrf.mxu0
      %v566 = vadd.f32 %v485, %v565
      %v567 = vpop.f32.mrf.mxu0
      %568 = vdwg.mxu0
      %v569 = vld [vmem:[%s263] sm:$0x7]
      %v570 = vtanh.pop %v561
      %v571 = vmul.f32 %v570, 0.05
      %v572 = vadd.f32 %v569, %v571
      %v573 = vmul.f32 %v561, %v561
      %v575 = vrot.slane %v573, 3
      %vm577 = vcmask 1043456
      %v578 = vsel %vm577, %v575, 0.0
      %v579 = vrot.slane %v578, 4
      %v580 = vadd.f32 %v578, %v579
      %v581 = vrot.slane %v580, 2
      %v582 = vadd.f32 %v580, %v581
      %v583 = vrot.slane %v582, 1
      %v584 = vadd.f32 %v582, %v583
      %v585 = vmax.f32 %v584, 1e-12
      %v586 = vrsqrt.pop %v585
      %v587 = vmul.f32 %v561, %v586
      %v588 = vsub.f32 0.0, %v561
      %v589 = vsub.f32 0.0, %v566
      %v590 = vmul.f32 %v588, 1.442695
      %v591 = vpow.pop %v590
      %v592 = vmul.f32 %v589, 1.442695
      %v593 = vpow.pop %v592
      %v594 = vadd.f32 %v591, 1.0
      %v595 = vadd.f32 %v593, 1.0
      %v596 = vrcp.pop %v594
      %v597 = vmul.f32 1.0, %v596
      %v598 = vrcp.pop %v595
      %v599 = vmul.f32 1.0, %v598
      %v600 = vmul.f32 %v597, 0.05
      %v601 = vmul.f32 %v599, 0.05
      %v602 = vadd.f32 %v600, 0.01
      %v603 = vadd.f32 %v601, 0.01
      %v604 = vsel %vm356, %v572, %v587
      %vm605 = vcmask 1046528
      %v606 = vsel %vm605, %v604, %v602
      %vm607 = vcmask 1041408
      %v608 = vsel %vm607, %v603, %v599
      %v609 = vsel %vm356, %v608, %v599
      %610 = vst [vmem:[%s268] sm:$0xff] %v606
      %611 = vst [vmem:[%s268 + $0x8] sm:$0x3f] %v609
      %p612 = scmp.lt.s32.totalorder %s17, 1
      %s613 = scalar_select %p612, %s17, 1
      %s614 = smul.addr %s613, 2
      %s615 = smul.addr %s614, 8
      %s616 = scalar_lea.vmem %s6, %s615
      // Predicated region
      $region45: #{_forward_core.8} parent=43 // pred_check
        %p617 = pneg %p171
      $region46: #{_forward_core.8} parent=43 // pred_check_branch
        %619 = sbr.rel (%p617) target = $region48
      $region47: #{_forward_core.8} parent=43 // pred_region
        _
      $region48: #{_forward_core.8} parent=43 // pred_fallthru
        _
    $region44: #{_forward_core.8} parent=5 // pred_fallthru
      _
    %p620 = scmp.le.s32.totalorder 2, %s12
    // Predicated region
    $region49: #{_forward_core.8} parent=5 // pred_check
      %p621 = pneg %p620
    $region50: #{_forward_core.8} parent=5 // pred_check_branch
      %623 = sbr.rel (%p621) target = $region52
    $region51: #{_forward_core.8} parent=5 // pred_region
      %s624 = ssub.s32 %s12, 2
      // Predicated region
      $region53: #{_forward_core.8} parent=51 // pred_check
        %p625 = pneg %p177
      $region54: #{_forward_core.8} parent=51 // pred_check_branch
        %627 = sbr.rel (%p625) target = $region56
      $region55: #{_forward_core.8} parent=51 // pred_region
        %p628 = scmp.lt.s32.totalorder %s18, 1
        %s629 = scalar_select %p628, %s18, 1
        %s630 = smul.addr %s629, 2
        %s631 = smul.addr %s630, 8
        %s632 = scalar_lea.vmem %s6, %s631
      $region56: #{_forward_core.8} parent=51 // pred_fallthru
        _
    $region52: #{_forward_core.8} parent=5 // pred_fallthru
      _
  $region6: #{_forward_core.8} parent=0 // loop_footer
    %s16 = sadd.s32 1, %s12
  $region7: #{_forward_core.8} parent=0 // loop_footer_branch
    %11 = sbr.rel target = $region3
  $region8: #{_forward_core.8} parent=0 // loop_exit
    _

// kernel: custom-call.29
$region0: #{custom-call.29}
  %s0 = inlined_call_operand.vmem [shape: f32[2,2,1,4,4], index: 0, kind: input, shape index: {}]
  %s1 = inlined_call_operand.vmem [shape: f32[2,2,1,4,4], index: 1, kind: output, shape index: {}]
  $region1: #{custom-call.29} parent=0
    #allocation0 [shape = 'u8[4096]{0}', space=vmem, size = 0x1000, scoped, tag = 'operand span for operand 0']
    #allocation1 [shape = 'u8[4096]{0}', space=vmem, size = 0x1000, scoped, tag = 'packed  for operand 0']
    #allocation2 [shape = 'u8[4096]{0}', space=vmem, size = 0x1000, scoped, tag = 'operand span for operand 1']
    #allocation3 [shape = 'u8[4096]{0}', space=vmem, size = 0x1000, scoped, tag = 'packed  for operand 1']
    loop: start=0, step=1, limit=6
    $region2: #{custom-call.29} parent=1 // loop_pre_header
      _
    $region3: #{custom-call.29} parent=1 // loop_header
      %s3 = sphi 0, %s7
      %p4 = scmp.ge.s32.totalorder %s3, 6
      %s10 = sphi 0, %s43
      %s11 = sphi 0, %s39
      %s12 = sphi 0, %s35
      %s13 = sphi 0, %s31
      %s14 = sphi 0, %s27
      %s15 = sphi 0, %s10
      %s16 = sphi 0, %s11
      %s17 = sphi 0, %s12
      %s18 = sphi 0, %s13
      %s19 = sphi 0, %s14
      %s20 = sphi 0, %s15
      %s21 = sphi 0, %s16
      %s22 = sphi 0, %s17
      %s23 = sphi 0, %s18
      %s24 = sphi 0, %s19
    $region4: #{custom-call.29} parent=1 // loop_header_branch
      %6 = sbr.rel (%p4) target = $region8
    $region5: #{custom-call.29} parent=1 // loop_body
      %s8 = ssub.s32 %s3, 1
      %s9 = ssub.s32 %s3, 2
      %s25 = sadd.s32 1, %s14
      %p26 = scmp.ge.s32.totalorder %s25, 1
      %s27 = scalar_select %p26, 0, %s25
      %s28 = sadd.s32 1, %s13
      %s29 = scalar_select %p26, %s28, %s13
      %p30 = scmp.ge.s32.totalorder %s29, 1
      %s31 = scalar_select %p30, 0, %s29
      %s32 = sadd.s32 1, %s12
      %s33 = scalar_select %p30, %s32, %s12
      %p34 = scmp.ge.s32.totalorder %s33, 1
      %s35 = scalar_select %p34, 0, %s33
      %s36 = sadd.s32 1, %s11
      %s37 = scalar_select %p34, %s36, %s11
      %p38 = scmp.ge.s32.totalorder %s37, 2
      %s39 = scalar_select %p38, 0, %s37
      %s40 = sadd.s32 1, %s10
      %s41 = scalar_select %p38, %s40, %s10
      %p42 = scmp.ge.s32.totalorder %s41, 2
      %s43 = scalar_select %p42, 0, %s41
      %p44 = scmp.le.s32.totalorder 1, %s3
      %p45 = scmp.lt.s32.totalorder %s3, 5
      %p46 = pnand %p44, %p45
      %p47 = pneg %p46
      // Predicated region
      $region9: #{custom-call.29} parent=5 // pred_check
        _
      $region10: #{custom-call.29} parent=5 // pred_check_branch
        %49 = sbr.rel (%p46) target = $region12
      $region11: #{custom-call.29} parent=5 // pred_region
        %s50 = ssub.s32 %s3, 1
      $region12: #{custom-call.29} parent=5 // pred_fallthru
        _
      %p51 = scmp.lt.s32.totalorder %s3, 4
      // Predicated region
      $region13: #{custom-call.29} parent=5 // pred_check
        %p52 = pneg %p51
      $region14: #{custom-call.29} parent=5 // pred_check_branch
        %54 = sbr.rel (%p52) target = $region16
      $region15: #{custom-call.29} parent=5 // pred_region
        %s55 = sand.u32 %s3, 1
        %s56 = sand.u32 %s3, 1
        %s57 = smul.addr %s56, 4
        %s58 = scalar_lea.vmem [#allocation1], %s57
        %s59 = sadd.s32 %s14, %s13
        %s60 = sadd.s32 %s59, %s12
        %s61 = sadd.s32 %s60, %s11
        %s62 = smul.addr %s10, 2
        %s63 = sadd.s32 %s61, %s62
        %s64 = smul.addr %s63, 4
        %s65 = scalar_lea.vmem %s0, %s64
        // Predicated region
        $region17: #{custom-call.29} parent=15 // pred_check
          _
        $region18: #{custom-call.29} parent=15 // pred_check_branch
          %67 = sbr.rel (0) target = $region20
        $region19: #{custom-call.29} parent=15 // pred_region
          // Predicated region
          $region21: #{custom-call.29} parent=19 // pred_check
            _
          $region22: #{custom-call.29} parent=19 // pred_check_branch
            %69 = sbr.rel target = $region24
          $region23: #{custom-call.29} parent=19 // pred_region
            // Predicated region
            $region36: #{custom-call.29} parent=23 // pred_check
              _
            $region37: #{custom-call.29} parent=23 // pred_check_branch
              %85 = sbr.rel (0) target = $region39
            $region38: #{custom-call.29} parent=23 // pred_region
              %s87 = ssub.s32 16, 1
              loop: start=0, step=1, limit=1
              $region40: #{custom-call.29} parent=38 // loop_pre_header
                _
              $region41: #{custom-call.29} parent=38 // loop_header
                %s89 = sphi 0, %s93
                %p90 = scmp.ge.s32.totalorder %s89, 1
                %s94 = sphi %s65, %s65
                %s95 = sphi %s58, %s58
              $region42: #{custom-call.29} parent=38 // loop_header_branch
                %92 = sbr.rel (%p90) target = $region46
              $region43: #{custom-call.29} parent=38 // loop_body
                %v96 = vld [vmem:[%s94] sm:%s87]
                %97 = vst [vmem:[%s95] sm:%s87] %v96
              $region44: #{custom-call.29} parent=38 // loop_footer
                %s93 = sadd.s32 1, %s89
              $region45: #{custom-call.29} parent=38 // loop_footer_branch
                %88 = sbr.rel target = $region41
              $region46: #{custom-call.29} parent=38 // loop_exit
                _
            $region39: #{custom-call.29} parent=23 // pred_fallthru
              _
          $region24: #{custom-call.29} parent=19 // pred_fallthru
            _
          // Predicated region
          $region25: #{custom-call.29} parent=19 // pred_check
            _
          $region26: #{custom-call.29} parent=19 // pred_check_branch
            %71 = sbr.rel (0) target = $region28
          $region27: #{custom-call.29} parent=19 // pred_region
            %s73 = ssub.s32 16, 1
            loop: start=0, step=1, limit=1
            $region29: #{custom-call.29} parent=27 // loop_pre_header
              _
            $region30: #{custom-call.29} parent=27 // loop_header
              %s75 = sphi 0, %s79
              %p76 = scmp.ge.s32.totalorder %s75, 1
              %s80 = sphi %s65, %s65
              %s81 = sphi %s58, %s58
            $region31: #{custom-call.29} parent=27 // loop_header_branch
              %78 = sbr.rel (%p76) target = $region35
            $region32: #{custom-call.29} parent=27 // loop_body
              %v82 = vld [vmem:[%s80] sm:%s73]
              %83 = vst [vmem:[%s81] sm:%s73] %v82
            $region33: #{custom-call.29} parent=27 // loop_footer
              %s79 = sadd.s32 1, %s75
            $region34: #{custom-call.29} parent=27 // loop_footer_branch
              %74 = sbr.rel target = $region30
            $region35: #{custom-call.29} parent=27 // loop_exit
              _
          $region28: #{custom-call.29} parent=19 // pred_fallthru
            _
        $region20: #{custom-call.29} parent=15 // pred_fallthru
          _
        %98 = vnop
      $region16: #{custom-call.29} parent=5 // pred_fallthru
        _
      %p99 = scmp.le.s32.totalorder 1, %s3
      %p100 = scmp.lt.s32.totalorder %s3, 5
      %p101 = pnand %p99, %p100
      %p102 = pneg %p101
      // Predicated region
      $region47: #{custom-call.29} parent=5 // pred_check
        _
      $region48: #{custom-call.29} parent=5 // pred_check_branch
        %104 = sbr.rel (%p101) target = $region50
      $region49: #{custom-call.29} parent=5 // pred_region
        #allocation4 [shape = 'f32[4,4]{1,0}', space=vmem, size = 0x1000, scoped, tag = 'rescaled input a']
        %s105 = ssub.s32 %s3, 1
        %s106 = sand.u32 %s8, 1
        %s107 = sand.u32 %s8, 1
        %s108 = smul.addr %s107, 4
        %s109 = scalar_lea.vmem [#allocation1], %s108
        %s110 = sand.u32 %s8, 1
        %s111 = sand.u32 %s8, 1
        %s112 = smul.addr %s111, 4
        %s113 = scalar_lea.vmem [#allocation1], %s112
        %s114 = sand.u32 %s8, 1
        %s115 = sand.u32 %s8, 1
        %s116 = smul.addr %s115, 4
        %s117 = scalar_lea.vmem [#allocation3], %s116
        %s119 = sshll.u32 1, 4
        %s120 = ssub.s32 %s119, 1
        %v121 = vld [vmem:[%s113] sm:%s120]
        %122 = vst [vmem:[#allocation0] sm:%s120] %v121
        %v123 = vlaneseq
        %v124 = vand.u32 %v123, 127
        %vm125 = vcmp.lt.s32.totalorder %v124, 4
        %v126 = vlaneseq
        %v127 = vshrl.u32 %v126, 7
        %vm129 = vcmp.eq.s32.totalorder %v127, %v124
        %v130 = vld [vmem:[#allocation0] sm:$0xff]
        %v131 = vsel %vm129, %v130, 0.0
        %132 = vadd.xlane.f32.xlu0 %v131
        %v133 = vpop.xlane.xlu0 %132
        %vm134 = vcmp.le.s32.totalorder %v127, %v124
        %vm135 = vmand %vm134, %vm125
        %v136 = vsel %vm135, %v130, 0.0
        %v137 = vrcp.pop %v133
        %v138 = vmul.f32 %v136, %v137
        %139 = vst [vmem:[#allocation4] sm:$0xff] %v138
        %v140 = vlaneseq
        %v141 = vand.u32 %v140, 127
        %v142 = vlaneseq
        %v143 = vshrl.u32 %v142, 7
        %vm145 = vcmp.eq.s32.totalorder %v141, %v143
        %v146 = vlaneseq
        %v147 = vand.u32 %v146, 127
        %vm148 = vcmp.eq.s32.totalorder %v147, 3
        %v149 = vsel %vm148, 1.0, -1.0
        %v150 = vsel %vm145, %v149, 0.0
        %s151 = scalar_lea.vmem [#allocation4], 2
        %v152 = vld [vmem:[%s151] ss:$0 sm:$0xff]
        %v153 = vxor.u32 %v152, 2147483648
        %v154 = vlaneseq
        %v155 = vand.u32 %v154, 127
        %vm156 = vcmp.eq.s32.totalorder %v155, 2
        %v157 = vmul.f32 %v153, %v150
        %158 = vadd.xlane.f32.xlu0 %v157
        %v159 = vpop.xlane.xlu0 %158
        %v160 = vsel %vm156, %v159, %v150
        %s161 = scalar_lea.vmem [#allocation4], 1
        %v162 = vld [vmem:[%s161] ss:$0 sm:$0xff]
        %v163 = vxor.u32 %v162, 2147483648
        %v164 = vlaneseq
        %v165 = vand.u32 %v164, 127
        %vm166 = vcmp.eq.s32.totalorder %v165, 1
        %v167 = vmul.f32 %v163, %v160
        %168 = vadd.xlane.f32.xlu0 %v167
        %v169 = vpop.xlane.xlu0 %168
        %v170 = vsel %vm166, %v169, %v160
        %v171 = vld [vmem:[#allocation4] ss:$0 sm:$0xff]
        %v172 = vxor.u32 %v171, 2147483648
        %v173 = vlaneseq
        %v174 = vand.u32 %v173, 127
        %vm175 = vcmp.eq.s32.totalorder %v174, 0
        %v176 = vmul.f32 %v172, %v170
        %177 = vadd.xlane.f32.xlu0 %v176
        %v178 = vpop.xlane.xlu0 %177
        %v179 = vsel %vm175, %v178, %v170
        %v180 = vrcp.pop %v133
        %v181 = vmul.f32 %v179, %v180
        %vm182 = vweird.f32 %v133
        %v183 = vsel %vm182, %v179, %v181
        %184 = vst [vmem:[#allocation2] sm:$0xff] %v183
        %s186 = sshll.u32 1, 4
        %s187 = ssub.s32 %s186, 1
        %v189 = vld [vmem:[#allocation2] sm:%s187]
        %s190 = sshll.u32 1, 4
        %s191 = ssub.s32 %s190, 1
        %192 = vst [vmem:[%s117] sm:%s191] %v189
        %s193 = sand.u32 %s8, 1
        %s194 = sand.u32 %s8, 1
        %s195 = smul.addr %s194, 4
        %s196 = scalar_lea.vmem [#allocation3], %s195
        %s197 = sadd.s32 %s19, %s18
        %s198 = sadd.s32 %s197, %s17
        %s199 = sadd.s32 %s198, %s16
        %s200 = smul.addr %s15, 2
        %s201 = sadd.s32 %s199, %s200
        %s202 = smul.addr %s201, 4
        %s203 = scalar_lea.vmem %s1, %s202
        // Predicated region
        $region51: #{custom-call.29} parent=49 // pred_check
          _
        $region52: #{custom-call.29} parent=49 // pred_check_branch
          %205 = sbr.rel (0) target = $region54
        $region53: #{custom-call.29} parent=49 // pred_region
          // Predicated region
          $region55: #{custom-call.29} parent=53 // pred_check
            _
          $region56: #{custom-call.29} parent=53 // pred_check_branch
            %207 = sbr.rel target = $region58
          $region57: #{custom-call.29} parent=53 // pred_region
            // Predicated region
            $region70: #{custom-call.29} parent=57 // pred_check
              _
            $region71: #{custom-call.29} parent=57 // pred_check_branch
              %223 = sbr.rel (0) target = $region73
            $region72: #{custom-call.29} parent=57 // pred_region
              %s225 = ssub.s32 16, 1
              loop: start=0, step=1, limit=1
              $region74: #{custom-call.29} parent=72 // loop_pre_header
                _
              $region75: #{custom-call.29} parent=72 // loop_header
                %s227 = sphi 0, %s231
                %p228 = scmp.ge.s32.totalorder %s227, 1
                %s232 = sphi %s196, %s196
                %s233 = sphi %s203, %s203
              $region76: #{custom-call.29} parent=72 // loop_header_branch
                %230 = sbr.rel (%p228) target = $region80
              $region77: #{custom-call.29} parent=72 // loop_body
                %v234 = vld [vmem:[%s232] sm:%s225]
                %235 = vst [vmem:[%s233] sm:%s225] %v234
              $region78: #{custom-call.29} parent=72 // loop_footer
                %s231 = sadd.s32 1, %s227
              $region79: #{custom-call.29} parent=72 // loop_footer_branch
                %226 = sbr.rel target = $region75
              $region80: #{custom-call.29} parent=72 // loop_exit
                _
            $region73: #{custom-call.29} parent=57 // pred_fallthru
              _
          $region58: #{custom-call.29} parent=53 // pred_fallthru
            _
          // Predicated region
          $region59: #{custom-call.29} parent=53 // pred_check
            _
          $region60: #{custom-call.29} parent=53 // pred_check_branch
            %209 = sbr.rel (0) target = $region62
          $region61: #{custom-call.29} parent=53 // pred_region
            %s211 = ssub.s32 16, 1
            loop: start=0, step=1, limit=1
            $region63: #{custom-call.29} parent=61 // loop_pre_header
              _
            $region64: #{custom-call.29} parent=61 // loop_header
              %s213 = sphi 0, %s217
              %p214 = scmp.ge.s32.totalorder %s213, 1
              %s218 = sphi %s196, %s196
              %s219 = sphi %s203, %s203
            $region65: #{custom-call.29} parent=61 // loop_header_branch
              %216 = sbr.rel (%p214) target = $region69
            $region66: #{custom-call.29} parent=61 // loop_body
              %v220 = vld [vmem:[%s218] sm:%s211]
              %221 = vst [vmem:[%s219] sm:%s211] %v220
            $region67: #{custom-call.29} parent=61 // loop_footer
              %s217 = sadd.s32 1, %s213
            $region68: #{custom-call.29} parent=61 // loop_footer_branch
              %212 = sbr.rel target = $region64
            $region69: #{custom-call.29} parent=61 // loop_exit
              _
          $region62: #{custom-call.29} parent=53 // pred_fallthru
            _
        $region54: #{custom-call.29} parent=49 // pred_fallthru
          _
        %236 = vnop
      $region50: #{custom-call.29} parent=5 // pred_fallthru
        _
      %p237 = scmp.le.s32.totalorder 2, %s3
      // Predicated region
      $region81: #{custom-call.29} parent=5 // pred_check
        %p238 = pneg %p237
      $region82: #{custom-call.29} parent=5 // pred_check_branch
        %240 = sbr.rel (%p238) target = $region84
      $region83: #{custom-call.29} parent=5 // pred_region
        %s241 = ssub.s32 %s3, 2
        %s242 = sand.u32 %s9, 1
        %s243 = sand.u32 %s9, 1
        %s244 = smul.addr %s243, 4
        %s245 = scalar_lea.vmem [#allocation3], %s244
      $region84: #{custom-call.29} parent=5 // pred_fallthru
        _
    $region6: #{custom-call.29} parent=1 // loop_footer
      %s7 = sadd.s32 1, %s3
    $region7: #{custom-call.29} parent=1 // loop_footer_branch
      %2 = sbr.rel target = $region3
    $region8: #{custom-call.29} parent=1 // loop_exit
      _

// kernel: _forward_core.9
$region0: #{_forward_core.9}
  #allocation0 [shape = 'u32[]', space=smem, size = 0x4, offset = 0x4, fixed_abs, tag = 'smem constant byte address 0x4 - core index']
  #allocation1 [shape = 'u32[144,128]{1,0:T(1,128)}', space=vmem, size = 0x12000, scoped, tag = 'internal scratch']
  %s0 = inlined_call_operand.vmem [shape: f32[256,1], index: 0, kind: input, shape index: {}]
  %s1 = inlined_call_operand.vmem [shape: f32[256,1], index: 1, kind: input, shape index: {}]
  %s2 = inlined_call_operand.vmem [shape: f32[2,14,128], index: 2, kind: input, shape index: {}]
  %s3 = inlined_call_operand.vmem [shape: f32[4,16], index: 3, kind: input, shape index: {}]
  %s4 = inlined_call_operand.vmem [shape: f32[4,9], index: 4, kind: input, shape index: {}]
  %s5 = inlined_call_operand.vmem [shape: f32[2,2,3,256], index: 5, kind: output, shape index: {}]
  %s6 = sld [smem:[#allocation0]]
  $region61: #{_forward_core.9} parent=0
    _
  %s8 = ssub.s32 1, %s6
  %s9 = scalar_select 0, %s8, %s6
  $region1: #{_forward_core.9} parent=0
    #allocation2 [shape = 'u8[2048]{0}', space=smem, size = 0x800, scoped, tag = 'input window, operand 3, single buffered']
    #allocation3 [shape = 's32[2]{0}', space=sflag, size = 0x8, scoped, tag = 'scoped memory for _forward_core.9']
    #allocation4 [shape = 'u8[2048]{0}', space=smem, size = 0x800, scoped, tag = 'input window, operand 4, single buffered']
    #allocation5 [shape = 's32[1]{0}', space=sflag, size = 0x4, scoped, tag = 'scoped memory for _forward_core.9']
    %10 = vsyncpa [#allocation3], 0
    %11 = vsyncpa [#allocation5], 0
    loop: start=0, step=1, limit=6
    $region2: #{_forward_core.9} parent=1 // loop_pre_header
      _
    $region3: #{_forward_core.9} parent=1 // loop_header
      %s13 = sphi 0, %s17
      %p14 = scmp.ge.s32.totalorder %s13, 6
      %s20 = sphi 0, %s32
      %s21 = sphi 0, %s28
      %s22 = sphi 0, %s20
      %s23 = sphi 0, %s21
      %s24 = sphi 0, %s22
      %s25 = sphi 0, %s23
      %s33 = sphi 0, %s33
      %s35 = sphi 0, %s33
      %s36 = sphi 0, %s35
      %s50 = sphi 0, %s36
      %s54 = sphi 0, %s54
      %s56 = sphi 0, %s54
      %s57 = sphi 0, %s56
      %s71 = sphi 0, %s57
      %s77 = sphi 0, %s79
      %s80 = sphi 0, %s77
      %s81 = sphi 0, %s80
      %s97 = sphi 0, %s81
      %s101 = sphi 0, %s101
      %s103 = sphi 0, %s101
      %s104 = sphi 0, %s103
      %s118 = sphi 0, %s104
      %s122 = sphi 0, %s122
      %s124 = sphi 0, %s122
      %s125 = sphi 0, %s124
      %s139 = sphi 0, %s125
      %s147 = sphi 0, %s149
      %s150 = sphi 0, %s147
      %s151 = sphi 0, %s150
      %s167 = sphi 0, %s151
    $region4: #{_forward_core.9} parent=1 // loop_header_branch
      %16 = sbr.rel (%p14) target = $region8
    $region5: #{_forward_core.9} parent=1 // loop_body
      %s18 = ssub.s32 %s13, 1
      %s19 = ssub.s32 %s13, 2
      %s26 = sadd.s32 1, %s21
      %p27 = scmp.ge.s32.totalorder %s26, 2
      %s28 = scalar_select %p27, 0, %s26
      %s29 = sadd.s32 1, %s20
      %s30 = scalar_select %p27, %s29, %s20
      %p31 = scmp.ge.s32.totalorder %s30, 2
      %s32 = scalar_select %p31, 0, %s30
      %s34 = sadd.s32 %s33, 1
      %p37 = scmp.eq.s32.totalorder %s13, 3
      %p38 = scmp.ne.s32.totalorder %s33, %s35
      %p39 = scmp.eq.s32.totalorder %s13, 0
      %p40 = por %p38, %p39
      %p41 = scmp.ne.s32.totalorder %s33, %s35
      %p42 = scmp.eq.s32.totalorder %s18, 3
      %p43 = por %p41, %p42
      %p44 = scmp.ne.s32.totalorder %s35, %s36
      %p45 = scmp.eq.s32.totalorder %s18, 0
      %p46 = por %p44, %p45
      %p47 = scmp.ne.s32.totalorder %s35, %s36
      %p48 = scmp.eq.s32.totalorder %s19, 3
      %p49 = por %p47, %p48
      %p51 = scmp.ne.s32.totalorder %s36, %s50
      %p52 = scmp.eq.s32.totalorder %s19, 0
      %p53 = por %p51, %p52
      %s55 = sadd.s32 %s54, 1
      %p58 = scmp.eq.s32.totalorder %s13, 3
      %p59 = scmp.ne.s32.totalorder %s54, %s56
      %p60 = scmp.eq.s32.totalorder %s13, 0
      %p61 = por %p59, %p60
      %p62 = scmp.ne.s32.totalorder %s54, %s56
      %p63 = scmp.eq.s32.totalorder %s18, 3
      %p64 = por %p62, %p63
      %p65 = scmp.ne.s32.totalorder %s56, %s57
      %p66 = scmp.eq.s32.totalorder %s18, 0
      %p67 = por %p65, %p66
      %p68 = scmp.ne.s32.totalorder %s56, %s57
      %p69 = scmp.eq.s32.totalorder %s19, 3
      %p70 = por %p68, %p69
      %p72 = scmp.ne.s32.totalorder %s57, %s71
      %p73 = scmp.eq.s32.totalorder %s19, 0
      %p74 = por %p72, %p73
      %s75 = ssub.s32 %s20, %s32
      %p76 = scmp.eq.s32.totalorder %s75, 0
      %s78 = sadd.s32 %s77, 1
      %s79 = scalar_select %p76, %s77, %s78
      %p82 = pneg %p76
      %p83 = scmp.eq.s32.totalorder %s13, 3
      %p84 = por %p82, %p83
      %p85 = scmp.ne.s32.totalorder %s77, %s80
      %p86 = scmp.eq.s32.totalorder %s13, 0
      %p87 = por %p85, %p86
      %p88 = scmp.ne.s32.totalorder %s77, %s80
      %p89 = scmp.eq.s32.totalorder %s18, 3
      %p90 = por %p88, %p89
      %p91 = scmp.ne.s32.totalorder %s80, %s81
      %p92 = scmp.eq.s32.totalorder %s18, 0
      %p93 = por %p91, %p92
      %p94 = scmp.ne.s32.totalorder %s80, %s81
      %p95 = scmp.eq.s32.totalorder %s19, 3
      %p96 = por %p94, %p95
      %p98 = scmp.ne.s32.totalorder %s81, %s97
      %p99 = scmp.eq.s32.totalorder %s19, 0
      %p100 = por %p98, %p99
      %s102 = sadd.s32 %s101, 1
      %p105 = scmp.eq.s32.totalorder %s13, 3
      %p106 = scmp.ne.s32.totalorder %s101, %s103
      %p107 = scmp.eq.s32.totalorder %s13, 0
      %p108 = por %p106, %p107
      %p109 = scmp.ne.s32.totalorder %s101, %s103
      %p110 = scmp.eq.s32.totalorder %s18, 3
      %p111 = por %p109, %p110
      %p112 = scmp.ne.s32.totalorder %s103, %s104
      %p113 = scmp.eq.s32.totalorder %s18, 0
      %p114 = por %p112, %p113
      %p115 = scmp.ne.s32.totalorder %s103, %s104
      %p116 = scmp.eq.s32.totalorder %s19, 3
      %p117 = por %p115, %p116
      %p119 = scmp.ne.s32.totalorder %s104, %s118
      %p120 = scmp.eq.s32.totalorder %s19, 0
      %p121 = por %p119, %p120
      %s123 = sadd.s32 %s122, 1
      %p126 = scmp.eq.s32.totalorder %s13, 3
      %p127 = scmp.ne.s32.totalorder %s122, %s124
      %p128 = scmp.eq.s32.totalorder %s13, 0
      %p129 = por %p127, %p128
      %p130 = scmp.ne.s32.totalorder %s122, %s124
      %p131 = scmp.eq.s32.totalorder %s18, 3
      %p132 = por %p130, %p131
      %p133 = scmp.ne.s32.totalorder %s124, %s125
      %p134 = scmp.eq.s32.totalorder %s18, 0
      %p135 = por %p133, %p134
      %p136 = scmp.ne.s32.totalorder %s124, %s125
      %p137 = scmp.eq.s32.totalorder %s19, 3
      %p138 = por %p136, %p137
      %p140 = scmp.ne.s32.totalorder %s125, %s139
      %p141 = scmp.eq.s32.totalorder %s19, 0
      %p142 = por %p140, %p141
      %s143 = ssub.s32 %s20, %s32
      %s144 = ssub.s32 %s21, %s28
      %s145 = sor.u32 %s143, %s144
      %p146 = scmp.eq.s32.totalorder %s145, 0
      %s148 = sadd.s32 %s147, 1
      %s149 = scalar_select %p146, %s147, %s148
      %p152 = pneg %p146
      %p153 = scmp.eq.s32.totalorder %s13, 3
      %p154 = por %p152, %p153
      %p155 = scmp.ne.s32.totalorder %s147, %s150
      %p156 = scmp.eq.s32.totalorder %s13, 0
      %p157 = por %p155, %p156
      %p158 = scmp.ne.s32.totalorder %s147, %s150
      %p159 = scmp.eq.s32.totalorder %s18, 3
      %p160 = por %p158, %p159
      %p161 = scmp.ne.s32.totalorder %s150, %s151
      %p162 = scmp.eq.s32.totalorder %s18, 0
      %p163 = por %p161, %p162
      %p164 = scmp.ne.s32.totalorder %s150, %s151
      %p165 = scmp.eq.s32.totalorder %s19, 3
      %p166 = por %p164, %p165
      %p168 = scmp.ne.s32.totalorder %s151, %s167
      %p169 = scmp.eq.s32.totalorder %s19, 0
      %p170 = por %p168, %p169
      %p171 = scmp.le.s32.totalorder 1, %s13
      %p172 = scmp.lt.s32.totalorder %s13, 5
      %p173 = pnand %p171, %p172
      %p174 = pneg %p173
      // Predicated region
      $region9: #{_forward_core.9} parent=5 // pred_check
        _
      $region10: #{_forward_core.9} parent=5 // pred_check_branch
        %176 = sbr.rel (%p173) target = $region12
      $region11: #{_forward_core.9} parent=5 // pred_region
        %s177 = ssub.s32 %s13, 1
        // Predicated region
        $region13: #{_forward_core.9} parent=11 // pred_check
          %p178 = pneg %p46
        $region14: #{_forward_core.9} parent=11 // pred_check_branch
          %180 = sbr.rel (%p178) target = $region16
        $region15: #{_forward_core.9} parent=11 // pred_region
          _
        $region16: #{_forward_core.9} parent=11 // pred_fallthru
          _
        // Predicated region
        $region17: #{_forward_core.9} parent=11 // pred_check
          %p181 = pneg %p67
        $region18: #{_forward_core.9} parent=11 // pred_check_branch
          %183 = sbr.rel (%p181) target = $region20
        $region19: #{_forward_core.9} parent=11 // pred_region
          _
        $region20: #{_forward_core.9} parent=11 // pred_fallthru
          _
        // Predicated region
        $region21: #{_forward_core.9} parent=11 // pred_check
          %p184 = pneg %p114
        $region22: #{_forward_core.9} parent=11 // pred_check_branch
          %186 = sbr.rel (%p184) target = $region24
        $region23: #{_forward_core.9} parent=11 // pred_region
          %s188 = ssub.s32 64, 64
          %189 = vsyncadd [#allocation3], %s188
          %s191 = sshll.u32 %s3, 4
          %s192 = int_to_ptr.vmem [resolvable:$true] %s191
          %194 = dma.vmem_to_smem %s192, 64, [#allocation2], [#allocation3]
        $region24: #{_forward_core.9} parent=11 // pred_fallthru
          _
        // Predicated region
        $region25: #{_forward_core.9} parent=11 // pred_check
          %p195 = pneg %p135
        $region26: #{_forward_core.9} parent=11 // pred_check_branch
          %197 = sbr.rel (%p195) target = $region28
        $region27: #{_forward_core.9} parent=11 // pred_region
          %s199 = ssub.s32 64, 64
          %200 = vsyncadd [#allocation5], %s199
          %s202 = sshll.u32 %s4, 4
          %s203 = int_to_ptr.vmem [resolvable:$true] %s202
          %205 = dma.vmem_to_smem %s203, 64, [#allocation4], [#allocation5]
        $region28: #{_forward_core.9} parent=11 // pred_fallthru
          _
      $region12: #{_forward_core.9} parent=5 // pred_fallthru
        _
      %p206 = scmp.lt.s32.totalorder %s13, 4
      // Predicated region
      $region29: #{_forward_core.9} parent=5 // pred_check
        %p207 = pneg %p206
      $region30: #{_forward_core.9} parent=5 // pred_check_branch
        %209 = sbr.rel (%p207) target = $region32
      $region31: #{_forward_core.9} parent=5 // pred_region
        // Predicated region
        $region33: #{_forward_core.9} parent=31 // pred_check
          %p210 = pneg %p87
        $region34: #{_forward_core.9} parent=31 // pred_check_branch
          %212 = sbr.rel (%p210) target = $region36
        $region35: #{_forward_core.9} parent=31 // pred_region
          %p213 = scmp.lt.s32.totalorder %s20, 1
          %s214 = scalar_select %p213, %s20, 1
          %s215 = smul.addr %s214, 2
          %s216 = smul.addr %s215, 8
          %s217 = scalar_lea.vmem %s2, %s216
        $region36: #{_forward_core.9} parent=31 // pred_fallthru
          _
      $region32: #{_forward_core.9} parent=5 // pred_fallthru
        _
      %p218 = scmp.le.s32.totalorder 1, %s13
      %p219 = scmp.lt.s32.totalorder %s13, 5
      %p220 = pnand %p218, %p219
      %p221 = pneg %p220
      // Predicated region
      $region37: #{_forward_core.9} parent=5 // pred_check
        _
      $region38: #{_forward_core.9} parent=5 // pred_check_branch
        %223 = sbr.rel (%p220) target = $region40
      $region39: #{_forward_core.9} parent=5 // pred_region
        %s224 = ssub.s32 %s13, 1
        // Predicated region
        $region41: #{_forward_core.9} parent=39 // pred_check
          %p225 = pneg %p114
        $region42: #{_forward_core.9} parent=39 // pred_check_branch
          %227 = sbr.rel (%p225) target = $region44
        $region43: #{_forward_core.9} parent=39 // pred_region
          %228 = dma.done [#allocation3], 64
        $region44: #{_forward_core.9} parent=39 // pred_fallthru
          _
        // Predicated region
        $region45: #{_forward_core.9} parent=39 // pred_check
          %p229 = pneg %p135
        $region46: #{_forward_core.9} parent=39 // pred_check_branch
          %231 = sbr.rel (%p229) target = $region48
        $region47: #{_forward_core.9} parent=39 // pred_region
          %232 = dma.done [#allocation5], 64
        $region48: #{_forward_core.9} parent=39 // pred_fallthru
          _
        %233 = sfence
        %p234 = pneg %p46
        %p235 = pneg %p43
        %p236 = pneg %p67
        %p237 = pneg %p64
        %p238 = scmp.lt.s32.totalorder %s22, 1
        %s239 = scalar_select %p238, %s22, 1
        %s240 = smul.addr %s239, 2
        %s241 = smul.addr %s240, 8
        %s242 = scalar_lea.vmem %s2, %s241
        %p243 = pneg %p93
        %p244 = pneg %p90
        %p245 = pneg %p114
        %p246 = pneg %p111
        %p247 = pneg %p135
        %p248 = pneg %p132
        %p249 = pneg %p163
        %p250 = pneg %p160
        %p251 = scmp.lt.s32.totalorder %s22, 1
        %s252 = scalar_select %p251, %s22, 1
        %p253 = scmp.lt.s32.totalorder %s23, 1
        %s254 = scalar_select %p253, %s23, 1
        %s255 = smul.addr %s254, 2
        %s256 = smul.addr %s252, 4
        %s257 = sadd.s32 %s255, %s256
        %s258 = smul.addr %s257, 4
        %s259 = scalar_lea.vmem %s5, %s258
        %p260 = scmp.lt.s32.totalorder %s22, 1
        %s261 = scalar_select %p260, %s22, 1
        %s262 = smul.addr %s261, 2
        %s263 = smul.addr %s262, 8
        %s264 = scalar_lea.vmem %s2, %s263
        %p265 = scmp.lt.s32.totalorder %s22, 1
        %s266 = scalar_select %p265, %s22, 1
        %p267 = scmp.lt.s32.totalorder %s23, 1
        %s268 = scalar_select %p267, %s23, 1
        %s269 = smul.addr %s268, 2
        %s270 = smul.addr %s266, 4
        %s271 = sadd.s32 %s269, %s270
        %s272 = smul.addr %s271, 4
        %s273 = scalar_lea.vmem %s5, %s272
        %s274 = smul.u32 %s22, 2
        %s275 = sadd.s32 %s274, %s23
        %v276 = vld [vmem:[%s264] sm:$0xff]
        %v277 = vld [vmem:[%s264 + $0x8] sm:$0x3f]
        %s278 = smul.u32 %s275, 128
        %s279 = sld [smem:[#allocation2 + %s278]]
        %v280 = vstv %s279
        %v281 = vmul.f32 %v280, %v276
        %s282 = sadd.s32 %s278, 1
        %s283 = sld [smem:[#allocation2 + %s282]]
        %v284 = vstv %s283
        %v285 = vmul.f32 %v284, %v276
        %v287 = vrot.slane %v285, 1
        %v289 = vadd.f32 %v281, %v287
        %s290 = sadd.s32 %s278, 2
        %s291 = sld [smem:[#allocation2 + %s290]]
        %v292 = vstv %s291
        %v293 = vmul.f32 %v292, %v276
        %v295 = vrot.slane %v293, 2
        %v297 = vadd.f32 %v289, %v295
        %s298 = sadd.s32 %s278, 3
        %s299 = sld [smem:[#allocation2 + %s298]]
        %v300 = vstv %s299
        %v301 = vadd.f32 %v297, %v300
        %s302 = sadd.s32 %s278, 4
        %s303 = sld [smem:[#allocation2 + %s302]]
        %v304 = vstv %s303
        %v305 = vmul.f32 %v304, %v276
        %s306 = sadd.s32 %s278, 5
        %s307 = sld [smem:[#allocation2 + %s306]]
        %v308 = vstv %s307
        %v309 = vmul.f32 %v308, %v276
        %v311 = vrot.slane %v309, 1
        %v313 = vadd.f32 %v305, %v311
        %s314 = sadd.s32 %s278, 6
        %s315 = sld [smem:[#allocation2 + %s314]]
        %v316 = vstv %s315
        %v317 = vmul.f32 %v316, %v276
        %v319 = vrot.slane %v317, 2
        %v321 = vadd.f32 %v313, %v319
        %s322 = sadd.s32 %s278, 7
        %s323 = sld [smem:[#allocation2 + %s322]]
        %v324 = vstv %s323
        %v325 = vadd.f32 %v321, %v324
        %s326 = sadd.s32 %s278, 8
        %s327 = sld [smem:[#allocation2 + %s326]]
        %v328 = vstv %s327
        %v329 = vmul.f32 %v328, %v276
        %s330 = sadd.s32 %s278, 9
        %s331 = sld [smem:[#allocation2 + %s330]]
        %v332 = vstv %s331
        %v333 = vmul.f32 %v332, %v276
        %v335 = vrot.slane %v333, 1
        %v337 = vadd.f32 %v329, %v335
        %s338 = sadd.s32 %s278, 10
        %s339 = sld [smem:[#allocation2 + %s338]]
        %v340 = vstv %s339
        %v341 = vmul.f32 %v340, %v276
        %v343 = vrot.slane %v341, 2
        %v345 = vadd.f32 %v337, %v343
        %s346 = sadd.s32 %s278, 11
        %s347 = sld [smem:[#allocation2 + %s346]]
        %v348 = vstv %s347
        %v349 = vadd.f32 %v345, %v348
        %s350 = sld [smem:[#allocation4 + %s278]]
        %s351 = sld [smem:[#allocation4 + %s290]]
        %s352 = sld [smem:[#allocation4 + %s302]]
        %s353 = sld [smem:[#allocation4 + %s306]]
        %vm354 = vcmp.gt.f32.partialorder %v349, 1e-06
        %v355 = vsel %vm354, 1, 0
        %v356 = vcvt.s32.f32 %v355
        %v357 = vmax.f32 %v349, 1e-06
        %v358 = vrcp.pop %v357
        %v359 = vstv %s350
        %v360 = vmul.f32 %v359, %v301
        %v361 = vmul.f32 %v360, %v358
        %v362 = vstv %s351
        %v363 = vadd.f32 %v361, %v362
        %v364 = vstv %s352
        %v365 = vmul.f32 %v364, %v325
        %v366 = vmul.f32 %v365, %v358
        %v367 = vstv %s353
        %v368 = vadd.f32 %v366, %v367
        %v370 = vrot.slane %v277, 1
        %v372 = vadd.f32 %v276, %v370
        %v373 = vrot.slane %v277, 2
        %v375 = vadd.f32 %v372, %v373
        %v376 = vmul.f32 %v375, 0.33333334
        %v377 = vmul.f32 %v359, %v376
        %v378 = vadd.f32 %v377, 1.0
        %v379 = vmul.f32 %v378, %v378
        %v380 = vrcp.pop %v379
        %v381 = vmul.f32 %v380, -0.5
        %v383 = vrot.slane %v356, 6
        %v385 = vmul.f32 %v277, %v383
        %v386 = vld [vmem:[%s0] sm:$0xff]
        %v387 = vld [vmem:[%s0 + $0x8] sm:$0xff]
        %v388 = vld [vmem:[%s0 + $0x10] sm:$0xff]
        %v389 = vld [vmem:[%s0 + $0x18] sm:$0xff]
        %v390 = vld [vmem:[%s0 + $0x20] sm:$0xff]
        %v391 = vld [vmem:[%s0 + $0x28] sm:$0xff]
        %v392 = vld [vmem:[%s0 + $0x30] sm:$0xff]
        %v393 = vld [vmem:[%s0 + $0x38] sm:$0xff]
        %v394 = vld [vmem:[%s0 + $0x40] sm:$0xff]
        %v395 = vld [vmem:[%s0 + $0x48] sm:$0xff]
        %v396 = vld [vmem:[%s0 + $0x50] sm:$0xff]
        %v397 = vld [vmem:[%s0 + $0x58] sm:$0xff]
        %v398 = vld [vmem:[%s0 + $0x60] sm:$0xff]
        %v399 = vld [vmem:[%s0 + $0x68] sm:$0xff]
        %v400 = vld [vmem:[%s0 + $0x70] sm:$0xff]
        %v401 = vld [vmem:[%s0 + $0x78] sm:$0xff]
        %v402 = vld [vmem:[%s0 + $0x80] sm:$0xff]
        %v403 = vld [vmem:[%s0 + $0x88] sm:$0xff]
        %v404 = vld [vmem:[%s0 + $0x90] sm:$0xff]
        %v405 = vld [vmem:[%s0 + $0x98] sm:$0xff]
        %v406 = vld [vmem:[%s0 + $0xa0] sm:$0xff]
        %v407 = vld [vmem:[%s0 + $0xa8] sm:$0xff]
        %v408 = vld [vmem:[%s0 + $0xb0] sm:$0xff]
        %v409 = vld [vmem:[%s0 + $0xb8] sm:$0xff]
        %v410 = vld [vmem:[%s0 + $0xc0] sm:$0xff]
        %v411 = vld [vmem:[%s0 + $0xc8] sm:$0xff]
        %v412 = vld [vmem:[%s0 + $0xd0] sm:$0xff]
        %v413 = vld [vmem:[%s0 + $0xd8] sm:$0xff]
        %v414 = vld [vmem:[%s0 + $0xe0] sm:$0xff]
        %v415 = vld [vmem:[%s0 + $0xe8] sm:$0xff]
        %v416 = vld [vmem:[%s0 + $0xf0] sm:$0xff]
        %v417 = vld [vmem:[%s0 + $0xf8] sm:$0xff]
        %419 = vset.pattern.permute.xlu0 0
        %420 = vperm.xlu0 %419, %v386
        %v421 = vpop.permute.xlu0 %420
        %424 = vset.pattern.permute.xlu0 0
        %425 = vperm.xlu0 %424, %v387
        %v426 = vpop.permute.xlu0 %425
        %429 = vset.pattern.permute.xlu0 0
        %430 = vperm.xlu0 %429, %v388
        %v431 = vpop.permute.xlu0 %430
        %434 = vset.pattern.permute.xlu0 0
        %435 = vperm.xlu0 %434, %v389
        %v436 = vpop.permute.xlu0 %435
        %439 = vset.pattern.permute.xlu0 0
        %440 = vperm.xlu0 %439, %v390
        %v441 = vpop.permute.xlu0 %440
        %444 = vset.pattern.permute.xlu0 0
        %445 = vperm.xlu0 %444, %v391
        %v446 = vpop.permute.xlu0 %445
        %449 = vset.pattern.permute.xlu0 0
        %450 = vperm.xlu0 %449, %v392
        %v451 = vpop.permute.xlu0 %450
        %454 = vset.pattern.permute.xlu0 0
        %455 = vperm.xlu0 %454, %v393
        %v456 = vpop.permute.xlu0 %455
        %459 = vset.pattern.permute.xlu0 0
        %460 = vperm.xlu0 %459, %v394
        %v461 = vpop.permute.xlu0 %460
        %464 = vset.pattern.permute.xlu0 0
        %465 = vperm.xlu0 %464, %v395
        %v466 = vpop.permute.xlu0 %465
        %469 = vset.pattern.permute.xlu0 0
        %470 = vperm.xlu0 %469, %v396
        %v471 = vpop.permute.xlu0 %470
        %474 = vset.pattern.permute.xlu0 0
        %475 = vperm.xlu0 %474, %v397
        %v476 = vpop.permute.xlu0 %475
        %479 = vset.pattern.permute.xlu0 0
        %480 = vperm.xlu0 %479, %v398
        %v481 = vpop.permute.xlu0 %480
        %484 = vset.pattern.permute.xlu0 0
        %485 = vperm.xlu0 %484, %v399
        %v486 = vpop.permute.xlu0 %485
        %489 = vset.pattern.permute.xlu0 0
        %490 = vperm.xlu0 %489, %v400
        %v491 = vpop.permute.xlu0 %490
        %494 = vset.pattern.permute.xlu0 0
        %495 = vperm.xlu0 %494, %v401
        %v496 = vpop.permute.xlu0 %495
        %499 = vset.pattern.permute.xlu0 0
        %500 = vperm.xlu0 %499, %v402
        %v501 = vpop.permute.xlu0 %500
        %504 = vset.pattern.permute.xlu0 0
        %505 = vperm.xlu0 %504, %v403
        %v506 = vpop.permute.xlu0 %505
        %509 = vset.pattern.permute.xlu0 0
        %510 = vperm.xlu0 %509, %v404
        %v511 = vpop.permute.xlu0 %510
        %514 = vset.pattern.permute.xlu0 0
        %515 = vperm.xlu0 %514, %v405
        %v516 = vpop.permute.xlu0 %515
        %519 = vset.pattern.permute.xlu0 0
        %520 = vperm.xlu0 %519, %v406
        %v521 = vpop.permute.xlu0 %520
        %524 = vset.pattern.permute.xlu0 0
        %525 = vperm.xlu0 %524, %v407
        %v526 = vpop.permute.xlu0 %525
        %529 = vset.pattern.permute.xlu0 0
        %530 = vperm.xlu0 %529, %v408
        %v531 = vpop.permute.xlu0 %530
        %534 = vset.pattern.permute.xlu0 0
        %535 = vperm.xlu0 %534, %v409
        %v536 = vpop.permute.xlu0 %535
        %539 = vset.pattern.permute.xlu0 0
        %540 = vperm.xlu0 %539, %v410
        %v541 = vpop.permute.xlu0 %540
        %544 = vset.pattern.permute.xlu0 0
        %545 = vperm.xlu0 %544, %v411
        %v546 = vpop.permute.xlu0 %545
        %549 = vset.pattern.permute.xlu0 0
        %550 = vperm.xlu0 %549, %v412
        %v551 = vpop.permute.xlu0 %550
        %554 = vset.pattern.permute.xlu0 0
        %555 = vperm.xlu0 %554, %v413
        %v556 = vpop.permute.xlu0 %555
        %559 = vset.pattern.permute.xlu0 0
        %560 = vperm.xlu0 %559, %v414
        %v561 = vpop.permute.xlu0 %560
        %564 = vset.pattern.permute.xlu0 0
        %565 = vperm.xlu0 %564, %v415
        %v566 = vpop.permute.xlu0 %565
        %569 = vset.pattern.permute.xlu0 0
        %570 = vperm.xlu0 %569, %v416
        %v571 = vpop.permute.xlu0 %570
        %574 = vset.pattern.permute.xlu0 0
        %575 = vperm.xlu0 %574, %v417
        %v576 = vpop.permute.xlu0 %575
        %v578 = vlaneseq
        %v579 = vshrl.u32 %v578, 7
        %v580 = vsub.s32 0, %v579
        %v581 = vrot.slane %v363, %v580
        %v582 = vsub.f32 %v421, %v581
        %v583 = vsub.f32 %v426, %v581
        %v584 = vsub.f32 %v431, %v581
        %v585 = vsub.f32 %v436, %v581
        %v586 = vsub.f32 %v441, %v581
        %v587 = vsub.f32 %v446, %v581
        %v588 = vsub.f32 %v451, %v581
        %v589 = vsub.f32 %v456, %v581
        %v590 = vsub.f32 %v461, %v581
        %v591 = vsub.f32 %v466, %v581
        %v592 = vsub.f32 %v471, %v581
        %v593 = vsub.f32 %v476, %v581
        %v594 = vsub.f32 %v481, %v581
        %v595 = vsub.f32 %v486, %v581
        %v596 = vsub.f32 %v491, %v581
        %v597 = vsub.f32 %v496, %v581
        %v598 = vsub.f32 %v501, %v581
        %v599 = vsub.f32 %v506, %v581
        %v600 = vsub.f32 %v511, %v581
        %v601 = vsub.f32 %v516, %v581
        %v602 = vsub.f32 %v521, %v581
        %v603 = vsub.f32 %v526, %v581
        %v604 = vsub.f32 %v531, %v581
        %v605 = vsub.f32 %v536, %v581
        %v606 = vsub.f32 %v541, %v581
        %v607 = vsub.f32 %v546, %v581
        %v608 = vsub.f32 %v551, %v581
        %v609 = vsub.f32 %v556, %v581
        %v610 = vsub.f32 %v561, %v581
        %v611 = vsub.f32 %v566, %v581
        %v612 = vsub.f32 %v571, %v581
        %v613 = vsub.f32 %v576, %v581
        %v614 = vmul.f32 %v582, %v582
        %v615 = vmul.f32 %v583, %v583
        %v616 = vmul.f32 %v584, %v584
        %v617 = vmul.f32 %v585, %v585
        %v618 = vmul.f32 %v586, %v586
        %v619 = vmul.f32 %v587, %v587
        %v620 = vmul.f32 %v588, %v588
        %v621 = vmul.f32 %v589, %v589
        %v622 = vmul.f32 %v590, %v590
        %v623 = vmul.f32 %v591, %v591
        %v624 = vmul.f32 %v592, %v592
        %v625 = vmul.f32 %v593, %v593
        %v626 = vmul.f32 %v594, %v594
        %v627 = vmul.f32 %v595, %v595
        %v628 = vmul.f32 %v596, %v596
        %v629 = vmul.f32 %v597, %v597
        %v630 = vmul.f32 %v598, %v598
        %v631 = vmul.f32 %v599, %v599
        %v632 = vmul.f32 %v600, %v600
        %v633 = vmul.f32 %v601, %v601
        %v634 = vmul.f32 %v602, %v602
        %v635 = vmul.f32 %v603, %v603
        %v636 = vmul.f32 %v604, %v604
        %v637 = vmul.f32 %v605, %v605
        %v638 = vmul.f32 %v606, %v606
        %v639 = vmul.f32 %v607, %v607
        %v640 = vmul.f32 %v608, %v608
        %v641 = vmul.f32 %v609, %v609
        %v642 = vmul.f32 %v610, %v610
        %v643 = vmul.f32 %v611, %v611
        %v644 = vmul.f32 %v612, %v612
        %v645 = vmul.f32 %v613, %v613
        %v646 = vld [vmem:[%s1] sm:$0xff]
        %v647 = vld [vmem:[%s1 + $0x8] sm:$0xff]
        %v648 = vld [vmem:[%s1 + $0x10] sm:$0xff]
        %v649 = vld [vmem:[%s1 + $0x18] sm:$0xff]
        %v650 = vld [vmem:[%s1 + $0x20] sm:$0xff]
        %v651 = vld [vmem:[%s1 + $0x28] sm:$0xff]
        %v652 = vld [vmem:[%s1 + $0x30] sm:$0xff]
        %v653 = vld [vmem:[%s1 + $0x38] sm:$0xff]
        %v654 = vld [vmem:[%s1 + $0x40] sm:$0xff]
        %v655 = vld [vmem:[%s1 + $0x48] sm:$0xff]
        %v656 = vld [vmem:[%s1 + $0x50] sm:$0xff]
        %v657 = vld [vmem:[%s1 + $0x58] sm:$0xff]
        %v658 = vld [vmem:[%s1 + $0x60] sm:$0xff]
        %v659 = vld [vmem:[%s1 + $0x68] sm:$0xff]
        %v660 = vld [vmem:[%s1 + $0x70] sm:$0xff]
        %v661 = vld [vmem:[%s1 + $0x78] sm:$0xff]
        %v662 = vld [vmem:[%s1 + $0x80] sm:$0xff]
        %v663 = vld [vmem:[%s1 + $0x88] sm:$0xff]
        %v664 = vld [vmem:[%s1 + $0x90] sm:$0xff]
        %v665 = vld [vmem:[%s1 + $0x98] sm:$0xff]
        %v666 = vld [vmem:[%s1 + $0xa0] sm:$0xff]
        %v667 = vld [vmem:[%s1 + $0xa8] sm:$0xff]
        %v668 = vld [vmem:[%s1 + $0xb0] sm:$0xff]
        %v669 = vld [vmem:[%s1 + $0xb8] sm:$0xff]
        %v670 = vld [vmem:[%s1 + $0xc0] sm:$0xff]
        %v671 = vld [vmem:[%s1 + $0xc8] sm:$0xff]
        %v672 = vld [vmem:[%s1 + $0xd0] sm:$0xff]
        %v673 = vld [vmem:[%s1 + $0xd8] sm:$0xff]
        %v674 = vld [vmem:[%s1 + $0xe0] sm:$0xff]
        %v675 = vld [vmem:[%s1 + $0xe8] sm:$0xff]
        %v676 = vld [vmem:[%s1 + $0xf0] sm:$0xff]
        %v677 = vld [vmem:[%s1 + $0xf8] sm:$0xff]
        %679 = vset.pattern.permute.xlu0 0
        %680 = vperm.xlu0 %679, %v646
        %v681 = vpop.permute.xlu0 %680
        %684 = vset.pattern.permute.xlu0 0
        %685 = vperm.xlu0 %684, %v647
        %v686 = vpop.permute.xlu0 %685
        %689 = vset.pattern.permute.xlu0 0
        %690 = vperm.xlu0 %689, %v648
        %v691 = vpop.permute.xlu0 %690
        %694 = vset.pattern.permute.xlu0 0
        %695 = vperm.xlu0 %694, %v649
        %v696 = vpop.permute.xlu0 %695
        %699 = vset.pattern.permute.xlu0 0
        %700 = vperm.xlu0 %699, %v650
        %v701 = vpop.permute.xlu0 %700
        %704 = vset.pattern.permute.xlu0 0
        %705 = vperm.xlu0 %704, %v651
        %v706 = vpop.permute.xlu0 %705
        %709 = vset.pattern.permute.xlu0 0
        %710 = vperm.xlu0 %709, %v652
        %v711 = vpop.permute.xlu0 %710
        %714 = vset.pattern.permute.xlu0 0
        %715 = vperm.xlu0 %714, %v653
        %v716 = vpop.permute.xlu0 %715
        %719 = vset.pattern.permute.xlu0 0
        %720 = vperm.xlu0 %719, %v654
        %v721 = vpop.permute.xlu0 %720
        %724 = vset.pattern.permute.xlu0 0
        %725 = vperm.xlu0 %724, %v655
        %v726 = vpop.permute.xlu0 %725
        %729 = vset.pattern.permute.xlu0 0
        %730 = vperm.xlu0 %729, %v656
        %v731 = vpop.permute.xlu0 %730
        %734 = vset.pattern.permute.xlu0 0
        %735 = vperm.xlu0 %734, %v657
        %v736 = vpop.permute.xlu0 %735
        %739 = vset.pattern.permute.xlu0 0
        %740 = vperm.xlu0 %739, %v658
        %v741 = vpop.permute.xlu0 %740
        %744 = vset.pattern.permute.xlu0 0
        %745 = vperm.xlu0 %744, %v659
        %v746 = vpop.permute.xlu0 %745
        %749 = vset.pattern.permute.xlu0 0
        %750 = vperm.xlu0 %749, %v660
        %v751 = vpop.permute.xlu0 %750
        %754 = vset.pattern.permute.xlu0 0
        %755 = vperm.xlu0 %754, %v661
        %v756 = vpop.permute.xlu0 %755
        %759 = vset.pattern.permute.xlu0 0
        %760 = vperm.xlu0 %759, %v662
        %v761 = vpop.permute.xlu0 %760
        %764 = vset.pattern.permute.xlu0 0
        %765 = vperm.xlu0 %764, %v663
        %v766 = vpop.permute.xlu0 %765
        %769 = vset.pattern.permute.xlu0 0
        %770 = vperm.xlu0 %769, %v664
        %v771 = vpop.permute.xlu0 %770
        %774 = vset.pattern.permute.xlu0 0
        %775 = vperm.xlu0 %774, %v665
        %v776 = vpop.permute.xlu0 %775
        %779 = vset.pattern.permute.xlu0 0
        %780 = vperm.xlu0 %779, %v666
        %v781 = vpop.permute.xlu0 %780
        %784 = vset.pattern.permute.xlu0 0
        %785 = vperm.xlu0 %784, %v667
        %v786 = vpop.permute.xlu0 %785
        %789 = vset.pattern.permute.xlu0 0
        %790 = vperm.xlu0 %789, %v668
        %v791 = vpop.permute.xlu0 %790
        %794 = vset.pattern.permute.xlu0 0
        %795 = vperm.xlu0 %794, %v669
        %v796 = vpop.permute.xlu0 %795
        %799 = vset.pattern.permute.xlu0 0
        %800 = vperm.xlu0 %799, %v670
        %v801 = vpop.permute.xlu0 %800
        %804 = vset.pattern.permute.xlu0 0
        %805 = vperm.xlu0 %804, %v671
        %v806 = vpop.permute.xlu0 %805
        %809 = vset.pattern.permute.xlu0 0
        %810 = vperm.xlu0 %809, %v672
        %v811 = vpop.permute.xlu0 %810
        %814 = vset.pattern.permute.xlu0 0
        %815 = vperm.xlu0 %814, %v673
        %v816 = vpop.permute.xlu0 %815
        %819 = vset.pattern.permute.xlu0 0
        %820 = vperm.xlu0 %819, %v674
        %v821 = vpop.permute.xlu0 %820
        %824 = vset.pattern.permute.xlu0 0
        %825 = vperm.xlu0 %824, %v675
        %v826 = vpop.permute.xlu0 %825
        %829 = vset.pattern.permute.xlu0 0
        %830 = vperm.xlu0 %829, %v676
        %v831 = vpop.permute.xlu0 %830
        %834 = vset.pattern.permute.xlu0 0
        %835 = vperm.xlu0 %834, %v677
        %v836 = vpop.permute.xlu0 %835
        %v838 = vlaneseq
        %v839 = vshrl.u32 %v838, 7
        %v840 = vsub.s32 0, %v839
        %v841 = vrot.slane %v368, %v840
        %v842 = vsub.f32 %v681, %v841
        %v843 = vsub.f32 %v686, %v841
        %v844 = vsub.f32 %v691, %v841
        %v845 = vsub.f32 %v696, %v841
        %v846 = vsub.f32 %v701, %v841
        %v847 = vsub.f32 %v706, %v841
        %v848 = vsub.f32 %v711, %v841
        %v849 = vsub.f32 %v716, %v841
        %v850 = vsub.f32 %v721, %v841
        %v851 = vsub.f32 %v726, %v841
        %v852 = vsub.f32 %v731, %v841
        %v853 = vsub.f32 %v736, %v841
        %v854 = vsub.f32 %v741, %v841
        %v855 = vsub.f32 %v746, %v841
        %v856 = vsub.f32 %v751, %v841
        %v857 = vsub.f32 %v756, %v841
        %v858 = vsub.f32 %v761, %v841
        %v859 = vsub.f32 %v766, %v841
        %v860 = vsub.f32 %v771, %v841
        %v861 = vsub.f32 %v776, %v841
        %v862 = vsub.f32 %v781, %v841
        %v863 = vsub.f32 %v786, %v841
        %v864 = vsub.f32 %v791, %v841
        %v865 = vsub.f32 %v796, %v841
        %v866 = vsub.f32 %v801, %v841
        %v867 = vsub.f32 %v806, %v841
        %v868 = vsub.f32 %v811, %v841
        %v869 = vsub.f32 %v816, %v841
        %v870 = vsub.f32 %v821, %v841
        %v871 = vsub.f32 %v826, %v841
        %v872 = vsub.f32 %v831, %v841
        %v873 = vsub.f32 %v836, %v841
        %v874 = vmul.f32 %v842, %v842
        %v875 = vmul.f32 %v843, %v843
        %v876 = vmul.f32 %v844, %v844
        %v877 = vmul.f32 %v845, %v845
        %v878 = vmul.f32 %v846, %v846
        %v879 = vmul.f32 %v847, %v847
        %v880 = vmul.f32 %v848, %v848
        %v881 = vmul.f32 %v849, %v849
        %v882 = vmul.f32 %v850, %v850
        %v883 = vmul.f32 %v851, %v851
        %v884 = vmul.f32 %v852, %v852
        %v885 = vmul.f32 %v853, %v853
        %v886 = vmul.f32 %v854, %v854
        %v887 = vmul.f32 %v855, %v855
        %v888 = vmul.f32 %v856, %v856
        %v889 = vmul.f32 %v857, %v857
        %v890 = vmul.f32 %v858, %v858
        %v891 = vmul.f32 %v859, %v859
        %v892 = vmul.f32 %v860, %v860
        %v893 = vmul.f32 %v861, %v861
        %v894 = vmul.f32 %v862, %v862
        %v895 = vmul.f32 %v863, %v863
        %v896 = vmul.f32 %v864, %v864
        %v897 = vmul.f32 %v865, %v865
        %v898 = vmul.f32 %v866, %v866
        %v899 = vmul.f32 %v867, %v867
        %v900 = vmul.f32 %v868, %v868
        %v901 = vmul.f32 %v869, %v869
        %v902 = vmul.f32 %v870, %v870
        %v903 = vmul.f32 %v871, %v871
        %v904 = vmul.f32 %v872, %v872
        %v905 = vmul.f32 %v873, %v873
        %v906 = vadd.f32 %v614, %v874
        %v907 = vadd.f32 %v615, %v875
        %v908 = vadd.f32 %v616, %v876
        %v909 = vadd.f32 %v617, %v877
        %v910 = vadd.f32 %v618, %v878
        %v911 = vadd.f32 %v619, %v879
        %v912 = vadd.f32 %v620, %v880
        %v913 = vadd.f32 %v621, %v881
        %v914 = vadd.f32 %v622, %v882
        %v915 = vadd.f32 %v623, %v883
        %v916 = vadd.f32 %v624, %v884
        %v917 = vadd.f32 %v625, %v885
        %v918 = vadd.f32 %v626, %v886
        %v919 = vadd.f32 %v627, %v887
        %v920 = vadd.f32 %v628, %v888
        %v921 = vadd.f32 %v629, %v889
        %v922 = vadd.f32 %v630, %v890
        %v923 = vadd.f32 %v631, %v891
        %v924 = vadd.f32 %v632, %v892
        %v925 = vadd.f32 %v633, %v893
        %v926 = vadd.f32 %v634, %v894
        %v927 = vadd.f32 %v635, %v895
        %v928 = vadd.f32 %v636, %v896
        %v929 = vadd.f32 %v637, %v897
        %v930 = vadd.f32 %v638, %v898
        %v931 = vadd.f32 %v639, %v899
        %v932 = vadd.f32 %v640, %v900
        %v933 = vadd.f32 %v641, %v901
        %v934 = vadd.f32 %v642, %v902
        %v935 = vadd.f32 %v643, %v903
        %v936 = vadd.f32 %v644, %v904
        %v937 = vadd.f32 %v645, %v905
        %v938 = vlaneseq
        %v939 = vshrl.u32 %v938, 7
        %v940 = vsub.s32 7, %v939
        %v941 = vrot.slane %v381, %v940
        %v942 = vmul.f32 %v941, %v906
        %v943 = vmul.f32 %v941, %v907
        %v944 = vmul.f32 %v941, %v908
        %v945 = vmul.f32 %v941, %v909
        %v946 = vmul.f32 %v941, %v910
        %v947 = vmul.f32 %v941, %v911
        %v948 = vmul.f32 %v941, %v912
        %v949 = vmul.f32 %v941, %v913
        %v950 = vmul.f32 %v941, %v914
        %v951 = vmul.f32 %v941, %v915
        %v952 = vmul.f32 %v941, %v916
        %v953 = vmul.f32 %v941, %v917
        %v954 = vmul.f32 %v941, %v918
        %v955 = vmul.f32 %v941, %v919
        %v956 = vmul.f32 %v941, %v920
        %v957 = vmul.f32 %v941, %v921
        %v958 = vmul.f32 %v941, %v922
        %v959 = vmul.f32 %v941, %v923
        %v960 = vmul.f32 %v941, %v924
        %v961 = vmul.f32 %v941, %v925
        %v962 = vmul.f32 %v941, %v926
        %v963 = vmul.f32 %v941, %v927
        %v964 = vmul.f32 %v941, %v928
        %v965 = vmul.f32 %v941, %v929
        %v966 = vmul.f32 %v941, %v930
        %v967 = vmul.f32 %v941, %v931
        %v968 = vmul.f32 %v941, %v932
        %v969 = vmul.f32 %v941, %v933
        %v970 = vmul.f32 %v941, %v934
        %v971 = vmul.f32 %v941, %v935
        %v972 = vmul.f32 %v941, %v936
        %v973 = vmul.f32 %v941, %v937
        %v974 = vmul.f32 %v942, 1.442695
        %v975 = vpow.pop %v974
        %v976 = vmul.f32 %v943, 1.442695
        %v977 = vpow.pop %v976
        %v978 = vmul.f32 %v944, 1.442695
        %v979 = vpow.pop %v978
        %v980 = vmul.f32 %v945, 1.442695
        %v981 = vpow.pop %v980
        %v982 = vmul.f32 %v946, 1.442695
        %v983 = vpow.pop %v982
        %v984 = vmul.f32 %v947, 1.442695
        %v985 = vpow.pop %v984
        %v986 = vmul.f32 %v948, 1.442695
        %v987 = vpow.pop %v986
        %v988 = vmul.f32 %v949, 1.442695
        %v989 = vpow.pop %v988
        %v990 = vmul.f32 %v950, 1.442695
        %v991 = vpow.pop %v990
        %v992 = vmul.f32 %v951, 1.442695
        %v993 = vpow.pop %v992
        %v994 = vmul.f32 %v952, 1.442695
        %v995 = vpow.pop %v994
        %v996 = vmul.f32 %v953, 1.442695
        %v997 = vpow.pop %v996
        %v998 = vmul.f32 %v954, 1.442695
        %v999 = vpow.pop %v998
        %v1000 = vmul.f32 %v955, 1.442695
        %v1001 = vpow.pop %v1000
        %v1002 = vmul.f32 %v956, 1.442695
        %v1003 = vpow.pop %v1002
        %v1004 = vmul.f32 %v957, 1.442695
        %v1005 = vpow.pop %v1004
        %v1006 = vmul.f32 %v958, 1.442695
        %v1007 = vpow.pop %v1006
        %v1008 = vmul.f32 %v959, 1.442695
        %v1009 = vpow.pop %v1008
        %v1010 = vmul.f32 %v960, 1.442695
        %v1011 = vpow.pop %v1010
        %v1012 = vmul.f32 %v961, 1.442695
        %v1013 = vpow.pop %v1012
        %v1014 = vmul.f32 %v962, 1.442695
        %v1015 = vpow.pop %v1014
        %v1016 = vmul.f32 %v963, 1.442695
        %v1017 = vpow.pop %v1016
        %v1018 = vmul.f32 %v964, 1.442695
        %v1019 = vpow.pop %v1018
        %v1020 = vmul.f32 %v965, 1.442695
        %v1021 = vpow.pop %v1020
        %v1022 = vmul.f32 %v966, 1.442695
        %v1023 = vpow.pop %v1022
        %v1024 = vmul.f32 %v967, 1.442695
        %v1025 = vpow.pop %v1024
        %v1026 = vmul.f32 %v968, 1.442695
        %v1027 = vpow.pop %v1026
        %v1028 = vmul.f32 %v969, 1.442695
        %v1029 = vpow.pop %v1028
        %v1030 = vmul.f32 %v970, 1.442695
        %v1031 = vpow.pop %v1030
        %v1032 = vmul.f32 %v971, 1.442695
        %v1033 = vpow.pop %v1032
        %v1034 = vmul.f32 %v972, 1.442695
        %v1035 = vpow.pop %v1034
        %v1036 = vmul.f32 %v973, 1.442695
        %v1037 = vpow.pop %v1036
        %v1038 = vlaneseq
        %v1039 = vshrl.u32 %v1038, 7
        %v1040 = vsub.s32 2, %v1039
        %v1041 = vrot.slane %v385, %v1040
        %v1042 = vmul.f32 %v1041, %v975
        %v1043 = vmul.f32 %v1041, %v977
        %v1044 = vmul.f32 %v1041, %v979
        %v1045 = vmul.f32 %v1041, %v981
        %v1046 = vmul.f32 %v1041, %v983
        %v1047 = vmul.f32 %v1041, %v985
        %v1048 = vmul.f32 %v1041, %v987
        %v1049 = vmul.f32 %v1041, %v989
        %v1050 = vmul.f32 %v1041, %v991
        %v1051 = vmul.f32 %v1041, %v993
        %v1052 = vmul.f32 %v1041, %v995
        %v1053 = vmul.f32 %v1041, %v997
        %v1054 = vmul.f32 %v1041, %v999
        %v1055 = vmul.f32 %v1041, %v1001
        %v1056 = vmul.f32 %v1041, %v1003
        %v1057 = vmul.f32 %v1041, %v1005
        %v1058 = vmul.f32 %v1041, %v1007
        %v1059 = vmul.f32 %v1041, %v1009
        %v1060 = vmul.f32 %v1041, %v1011
        %v1061 = vmul.f32 %v1041, %v1013
        %v1062 = vmul.f32 %v1041, %v1015
        %v1063 = vmul.f32 %v1041, %v1017
        %v1064 = vmul.f32 %v1041, %v1019
        %v1065 = vmul.f32 %v1041, %v1021
        %v1066 = vmul.f32 %v1041, %v1023
        %v1067 = vmul.f32 %v1041, %v1025
        %v1068 = vmul.f32 %v1041, %v1027
        %v1069 = vmul.f32 %v1041, %v1029
        %v1070 = vmul.f32 %v1041, %v1031
        %v1071 = vmul.f32 %v1041, %v1033
        %v1072 = vmul.f32 %v1041, %v1035
        %v1073 = vmul.f32 %v1041, %v1037
        %v1074 = vrot.slane %v277, 3
        %vm1076 = vcmask 1042432
        %v1077 = vsel %vm1076, %v1074, 1.0
        %1078 = vmatprep.subr.mxu0 0.0
        %1079 = vmatpush1.xpose.msra.mxu0 %v1057
        %1080 = vmatprep.subr.mxu0 0.0
        %1081 = vmatpush1.xpose.msra.mxu0 %v1056
        %1082 = vmatprep.subr.mxu0 0.0
        %1083 = vmatpush1.xpose.msra.mxu0 %v1055
        %1084 = vmatprep.subr.mxu0 0.0
        %1085 = vmatpush1.xpose.msra.mxu0 %v1054
        %1086 = vmatprep.subr.mxu0 0.0
        %1087 = vmatpush1.xpose.msra.mxu0 %v1053
        %1088 = vmatprep.subr.mxu0 0.0
        %1089 = vmatpush1.xpose.msra.mxu0 %v1052
        %1090 = vmatprep.subr.mxu0 0.0
        %1091 = vmatpush1.xpose.msra.mxu0 %v1051
        %1092 = vmatprep.subr.mxu0 0.0
        %1093 = vmatpush1.xpose.msra.mxu0 %v1050
        %1094 = vmatprep.subr.mxu0 0.0
        %1095 = vmatpush1.xpose.msra.mxu0 %v1049
        %1096 = vmatprep.subr.mxu0 0.0
        %1097 = vmatpush1.xpose.msra.mxu0 %v1048
        %1098 = vmatprep.subr.mxu0 0.0
        %1099 = vmatpush1.xpose.msra.mxu0 %v1047
        %1100 = vmatprep.subr.mxu0 0.0
        %1101 = vmatpush1.xpose.msra.mxu0 %v1046
        %1102 = vmatprep.subr.mxu0 0.0
        %1103 = vmatpush1.xpose.msra.mxu0 %v1045
        %1104 = vmatprep.subr.mxu0 0.0
        %1105 = vmatpush1.xpose.msra.mxu0 %v1044
        %1106 = vmatprep.subr.mxu0 0.0
        %1107 = vmatpush1.xpose.msra.mxu0 %v1043
        %1108 = vmatprep.subr.mxu0 0.0
        %1109 = vmatpush1.xpose.msra.mxu0 %v1042
        %1110 = vmatprep.subr.mxu0 0.0
        %1111 = vmatpush2.xpose.msra.mxu0 %v1073
        %1112 = vmatprep.subr.mxu0 0.0
        %1113 = vmatpush2.xpose.msra.mxu0 %v1072
        %1114 = vmatprep.subr.mxu0 0.0
        %1115 = vmatpush2.xpose.msra.mxu0 %v1071
        %1116 = vmatprep.subr.mxu0 0.0
        %1117 = vmatpush2.xpose.msra.mxu0 %v1070
        %1118 = vmatprep.subr.mxu0 0.0
        %1119 = vmatpush2.xpose.msra.mxu0 %v1069
        %1120 = vmatprep.subr.mxu0 0.0
        %1121 = vmatpush2.xpose.msra.mxu0 %v1068
        %1122 = vmatprep.subr.mxu0 0.0
        %1123 = vmatpush2.xpose.msra.mxu0 %v1067
        %1124 = vmatprep.subr.mxu0 0.0
        %1125 = vmatpush2.xpose.msra.mxu0 %v1066
        %1126 = vmatprep.subr.mxu0 0.0
        %1127 = vmatpush2.xpose.msra.mxu0 %v1065
        %1128 = vmatprep.subr.mxu0 0.0
        %1129 = vmatpush2.xpose.msra.mxu0 %v1064
        %1130 = vmatprep.subr.mxu0 0.0
        %1131 = vmatpush2.xpose.msra.mxu0 %v1063
        %1132 = vmatprep.subr.mxu0 0.0
        %1133 = vmatpush2.xpose.msra.mxu0 %v1062
        %1134 = vmatprep.subr.mxu0 0.0
        %1135 = vmatpush2.xpose.msra.mxu0 %v1061
        %1136 = vmatprep.subr.mxu0 0.0
        %1137 = vmatpush2.xpose.msra.mxu0 %v1060
        %1138 = vmatprep.subr.mxu0 0.0
        %1139 = vmatpush2.xpose.msra.mxu0 %v1059
        %1140 = vmatprep.subr.mxu0 0.0
        %1141 = vmatpush2.xpose.msra.mxu0 %v1058
        %1142 = vmatprep.mubr.f32.mxu0 0.0
        %1143 = vmatmul.mubr.f32.gmra.mxu0 %v1077
        %v1144 = vpop.f32.mrf.mxu0
        %v1145 = vadd.f32 0.0, %v1144
        %v1146 = vpop.f32.mrf.mxu0
        %v1147 = vadd.f32 0.0, %v1146
        %1148 = vdwg.mxu0
        %v1149 = vmin.f32 %v1145, 1.0
        %v1150 = vmin.f32 %v1147, 1.0
        %v1151 = vsub.f32 1.0, %v1149
        %v1152 = vsub.f32 1.0, %v1150
        %v1153 = vmax.f32 %v1151, 0.0
        %v1154 = vmax.f32 %v1152, 0.0
        %v1155 = vmul.f32 %v1153, 0.0
        %v1156 = vmul.f32 %v1154, 0.0
        %v1159 = vrot.slane %v1155, 3
        %v1160 = vrot.slane %v1156, 3
        %v1163 = vrot.slane %v1155, 2
        %v1164 = vrot.slane %v1156, 2
        %v1167 = vrot.slane %v1155, 1
        %v1168 = vrot.slane %v1156, 1
        %vm1171 = vcmask 1040384
        %v1172 = vsel %vm1171, %v1159, %v1163
        %v1173 = vsel %vm1171, %v1160, %v1164
        %vm1174 = vcmask 1041408
        %v1175 = vsel %vm1174, %v1172, %v1167
        %v1176 = vsel %vm1174, %v1173, %v1168
        %v1177 = vadd.f32 %v1145, %v1175
        %v1178 = vadd.f32 %v1147, %v1176
        %v1181 = vcombine.low %v1177, %v1178
        %1183 = vst [vmem:[%s273] sm:$0x77] %v1181
        %p1184 = scmp.lt.s32.totalorder %s22, 1
        %s1185 = scalar_select %p1184, %s22, 1
        %p1186 = scmp.lt.s32.totalorder %s23, 1
        %s1187 = scalar_select %p1186, %s23, 1
        %s1188 = smul.addr %s1187, 2
        %s1189 = smul.addr %s1185, 4
        %s1190 = sadd.s32 %s1188, %s1189
        %s1191 = smul.addr %s1190, 4
        %s1192 = scalar_lea.vmem %s5, %s1191
        // Predicated region
        $region49: #{_forward_core.9} parent=39 // pred_check
          %p1193 = pneg %p160
        $region50: #{_forward_core.9} parent=39 // pred_check_branch
          %1195 = sbr.rel (%p1193) target = $region52
        $region51: #{_forward_core.9} parent=39 // pred_region
          _
        $region52: #{_forward_core.9} parent=39 // pred_fallthru
          _
      $region40: #{_forward_core.9} parent=5 // pred_fallthru
        _
      %p1196 = scmp.le.s32.totalorder 2, %s13
      // Predicated region
      $region53: #{_forward_core.9} parent=5 // pred_check
        %p1197 = pneg %p1196
      $region54: #{_forward_core.9} parent=5 // pred_check_branch
        %1199 = sbr.rel (%p1197) target = $region56
      $region55: #{_forward_core.9} parent=5 // pred_region
        %s1200 = ssub.s32 %s13, 2
        // Predicated region
        $region57: #{_forward_core.9} parent=55 // pred_check
          %p1201 = pneg %p166
        $region58: #{_forward_core.9} parent=55 // pred_check_branch
          %1203 = sbr.rel (%p1201) target = $region60
        $region59: #{_forward_core.9} parent=55 // pred_region
          %p1204 = scmp.lt.s32.totalorder %s24, 1
          %s1205 = scalar_select %p1204, %s24, 1
          %p1206 = scmp.lt.s32.totalorder %s25, 1
          %s1207 = scalar_select %p1206, %s25, 1
          %s1208 = smul.addr %s1207, 2
          %s1209 = smul.addr %s1205, 4
          %s1210 = sadd.s32 %s1208, %s1209
          %s1211 = smul.addr %s1210, 4
          %s1212 = scalar_lea.vmem %s5, %s1211
        $region60: #{_forward_core.9} parent=55 // pred_fallthru
          _
      $region56: #{_forward_core.9} parent=5 // pred_fallthru
        _
    $region6: #{_forward_core.9} parent=1 // loop_footer
      %s17 = sadd.s32 1, %s13
    $region7: #{_forward_core.9} parent=1 // loop_footer_branch
      %12 = sbr.rel target = $region3
    $region8: #{_forward_core.9} parent=1 // loop_exit
      _
    %1213 = vsyncpa [#allocation3], 1
    %s1214 = scalar_lea.sflag [#allocation3], 1
    %1215 = vsyncpa %s1214, 1
    %1216 = vsyncpa [#allocation5], 1

</llo_original>
